<compile_context>
chip_gen: v6e
topology: v6e:2x2x1
jax: 0.10.0
libtpu: 0.0.40
codegen_flags: <defaults>
</compile_context>

<pallas_src>
import functools
import math

import jax
import jax.numpy as jnp
from jax.experimental import pallas as pl
from jax.experimental.pallas import tpu as pltpu


# ----------------------------- configuration --------------------------------
class Cfg:
    WORD_EMBED_SIZE = 32
    HIDDEN_SIZE = 32
    MULTI_HEAD = 4
    HIDDEN_SIZE_HEAD = 8          # HIDDEN_SIZE // MULTI_HEAD
    FF_SIZE = 64
    FLAT_MLP_SIZE = 16
    FLAT_GLIMPSES = 1
    FLAT_OUT_SIZE = 64
    LAYER = 2
    DROPOUT_R = 0.1               # inference -> dropout is identity
    FRCN_FEAT_SIZE = 64
    USE_GLOVE = True
    USE_BERT = False
    BERT_ENCODER = False


BF16 = jnp.bfloat16
_VMEM = pl.BlockSpec(memory_space=pltpu.MemorySpace.VMEM)


def _wspec(arr):
    """BlockSpec for a weight that is fully resident and shared across the grid."""
    nd = arr.ndim
    return pl.BlockSpec(arr.shape, lambda b, _nd=nd: (0,) * _nd)


# --------------------------- in-kernel helpers -------------------------------
def _mm(x, w_ref, b_ref=None):
    """bf16 MXU matmul with f32 accumulate; bias add in f32."""
    y = jnp.dot(x.astype(BF16), w_ref[...], preferred_element_type=jnp.float32)
    if b_ref is not None:
        y = y + b_ref[...]
    return y


def _ln(x, g, b, eps=1e-6):
    """openvqa LayerNorm: unbiased std (D-1), eps added to std (torch-style)."""
    mu = jnp.mean(x, axis=-1, keepdims=True)
    var = jnp.sum((x - mu) ** 2, axis=-1, keepdims=True) / (x.shape[-1] - 1)
    return g * (x - mu) / (jnp.sqrt(var) + eps) + b


def _mha(q, k, v, mask, nh, dh):
    """All heads for one batch element. q (Sq,H), k/v (Sk,H), mask (1,Sk)."""
    scale = 1.0 / math.sqrt(dh)
    outs = []
    for h in range(nh):                      # statically unrolled (nh=4)
        sl = slice(h * dh, (h + 1) * dh)
        s = jnp.dot(q[:, sl], k[:, sl].T, preferred_element_type=jnp.float32) * scale
        s = jnp.where(mask > 0.5, -1e9, s)   # masked_fill(mask, -1e9)
        p = jax.nn.softmax(s, axis=-1)
        outs.append(jnp.dot(p, v[:, sl], preferred_element_type=jnp.float32))
    return jnp.concatenate(outs, axis=-1)    # lane-dense (Sq, H)


# ------------------------------ fused kernels --------------------------------
def _sa_block_kernel(x_ref, m_ref,
                     qkv_w, qkv_b, o_w, o_b, ln1_g, ln1_b,
                     f1_w, f1_b, f2_w, f2_b, ln2_g, ln2_b,
                     o_ref, *, nh, dh):
    """Encoder self-attention block, one batch element per grid step."""
    H = nh * dh
    x = x_ref[0]                              # (S, H)
    mask = m_ref[0]                           # (1, S)

    qkv = _mm(x, qkv_w, qkv_b)                # (S, 3H) fused Q/K/V projection
    att = _mha(qkv[:, :H], qkv[:, H:2 * H], qkv[:, 2 * H:], mask, nh, dh)
    x = _ln(x + _mm(att, o_w, o_b), ln1_g[...], ln1_b[...])

    f = jnp.maximum(_mm(x, f1_w, f1_b), 0.0)  # FFN (dropout = identity)
    f = _mm(f, f2_w, f2_b)
    o_ref[0] = _ln(x + f, ln2_g[...], ln2_b[...])


def _sga_block_kernel(x_ref, y_ref, xm_ref, ym_ref,
                      a1_qkv_w, a1_qkv_b, a1_o_w, a1_o_b, ln1_g, ln1_b,
                      a2_q_w, a2_q_b, a2_kv_w, a2_kv_b, a2_o_w, a2_o_b, ln2_g, ln2_b,
                      f1_w, f1_b, f2_w, f2_b, ln3_g, ln3_b,
                      o_ref, *, nh, dh):
    """Decoder self+guided attention block, one batch element per grid step."""
    H = nh * dh
    x = x_ref[0]                              # (N, H) image features
    y = y_ref[0]                              # (S, H) language features
    xm = xm_ref[0]                            # (1, N)
    ym = ym_ref[0]                            # (1, S)

    qkv = _mm(x, a1_qkv_w, a1_qkv_b)          # self-attention on x
    att = _mha(qkv[:, :H], qkv[:, H:2 * H], qkv[:, 2 * H:], xm, nh, dh)
    x = _ln(x + _mm(att, a1_o_w, a1_o_b), ln1_g[...], ln1_b[...])

    q = _mm(x, a2_q_w, a2_q_b)                # cross-attention: q from x, k/v from y
    kv = _mm(y, a2_kv_w, a2_kv_b)
    att = _mha(q, kv[:, :H], kv[:, H:], ym, nh, dh)
    x = _ln(x + _mm(att, a2_o_w, a2_o_b), ln2_g[...], ln2_b[...])

    f = jnp.maximum(_mm(x, f1_w, f1_b), 0.0)
    f = _mm(f, f2_w, f2_b)
    o_ref[0] = _ln(x + f, ln3_g[...], ln3_b[...])


def _tail_kernel(lang_ref, lmask_ref, img_ref, imask_ref,
                 lw1, lb1, lw2, lb2, lwm, lbm,
                 iw1, ib1, iw2, ib2, iwm, ibm,
                 pn_g, pn_b, p_w, p_b,
                 pn2_g, pn2_b, p2_w, p2_b,
                 o1_ref, o2_ref):
    """AttFlat(lang) + AttFlat(img) + fusion + proj_norm/proj (x2), per batch elem."""

    def attflat(x, m, w1, b1, w2, b2, wm, bm):
        a = jnp.maximum(_mm(x, w1, b1), 0.0)          # (S, MID)
        a = _mm(a, w2, b2)                            # (S, G)
        a = jnp.where(m > 0.5, -1e9, a)               # mask (S, 1)
        a = jax.nn.softmax(a, axis=0)                 # softmax over sequence
        flat = jnp.dot(a.T, x, preferred_element_type=jnp.float32)   # (G, H)
        flat = flat.reshape(1, -1)                    # (1, G*H)
        return _mm(flat, wm, bm)                      # (1, FLAT_OUT)

    lang_flat = attflat(lang_ref[0], lmask_ref[0], lw1, lb1, lw2, lb2, lwm, lbm)
    img_flat = attflat(img_ref[0], imask_ref[0], iw1, ib1, iw2, ib2, iwm, ibm)

    # TODO(synk): MGMIF's modified MCA_ED returns two fused features directly (source
    # not provided); reconstructed as additive fusion + tanh/sigmoid gated fusion.
    pf = _ln(lang_flat + img_flat, pn_g[...], pn_b[...])
    o1_ref[0] = _mm(pf, p_w, p_b)
    pf2 = _ln(jnp.tanh(lang_flat) * jax.nn.sigmoid(img_flat), pn2_g[...], pn2_b[...])
    o2_ref[0] = _mm(pf2, p2_w, p2_b)


def _lstm_kernel(x_ref, wih_ref, whh_ref, b_ref, o_ref, *, hidden):
    """Single-layer LSTM (batch_first), gates i,f,g,o. Weights resident in VMEM."""
    H = hidden
    x = x_ref[...]                            # (B, S, E)
    S = x.shape[1]
    wih = wih_ref[...]
    whh = whh_ref[...]
    bias = b_ref[...]
    h = jnp.zeros((x.shape[0], H), jnp.float32)
    c = jnp.zeros((x.shape[0], H), jnp.float32)
    # TODO(synk): recurrence statically unrolled (S is small); torch LSTM has
    # b_ih + b_hh — port ported weights as their sum into `bias`.
    for t in range(S):
        z = (jnp.dot(x[:, t, :], wih, preferred_element_type=jnp.float32) + bias
             + jnp.dot(h, whh, preferred_element_type=jnp.float32))
        i = jax.nn.sigmoid(z[:, 0:H])
        f = jax.nn.sigmoid(z[:, H:2 * H])
        g = jnp.tanh(z[:, 2 * H:3 * H])
        o = jax.nn.sigmoid(z[:, 3 * H:4 * H])
        c = f * c + i * g
        h = o * jnp.tanh(c)
        o_ref[t] = h                          # output laid out (S, B, H)


def _linear_kernel(x_ref, w_ref, b_ref, o_ref):
    o_ref[...] = _mm(x_ref[...], w_ref, b_ref)


# ------------------------------ kernel wrappers -------------------------------
_SA_WEIGHT_KEYS = ("qkv_w", "qkv_b", "o_w", "o_b", "ln1_g", "ln1_b",
                   "f1_w", "f1_b", "f2_w", "f2_b", "ln2_g", "ln2_b")

_SGA_WEIGHT_KEYS = ("a1_qkv_w", "a1_qkv_b", "a1_o_w", "a1_o_b", "ln1_g", "ln1_b",
                    "a2_q_w", "a2_q_b", "a2_kv_w", "a2_kv_b", "a2_o_w", "a2_o_b",
                    "ln2_g", "ln2_b",
                    "f1_w", "f1_b", "f2_w", "f2_b", "ln3_g", "ln3_b")


def run_sa_block(x, mask, wts, cfg):
    B, S, H = x.shape
    weights = [wts[k] for k in _SA_WEIGHT_KEYS]
    return pl.pallas_call(
        functools.partial(_sa_block_kernel, nh=cfg.MULTI_HEAD, dh=cfg.HIDDEN_SIZE_HEAD),
        out_shape=jax.ShapeDtypeStruct((B, S, H), jnp.float32),
        grid=(B,),
        in_specs=[pl.BlockSpec((1, S, H), lambda b: (b, 0, 0)),
                  pl.BlockSpec((1, 1, S), lambda b: (b, 0, 0))]
                 + [_wspec(a) for a in weights],
        out_specs=pl.BlockSpec((1, S, H), lambda b: (b, 0, 0)),
        compiler_params=pltpu.CompilerParams(dimension_semantics=("parallel",)),
    )(x, mask, *weights)


def run_sga_block(x, y, x_mask, y_mask, wts, cfg):
    B, N, H = x.shape
    S = y.shape[1]
    weights = [wts[k] for k in _SGA_WEIGHT_KEYS]
    return pl.pallas_call(
        functools.partial(_sga_block_kernel, nh=cfg.MULTI_HEAD, dh=cfg.HIDDEN_SIZE_HEAD),
        out_shape=jax.ShapeDtypeStruct((B, N, H), jnp.float32),
        grid=(B,),
        in_specs=[pl.BlockSpec((1, N, H), lambda b: (b, 0, 0)),
                  pl.BlockSpec((1, S, H), lambda b: (b, 0, 0)),
                  pl.BlockSpec((1, 1, N), lambda b: (b, 0, 0)),
                  pl.BlockSpec((1, 1, S), lambda b: (b, 0, 0))]
                 + [_wspec(a) for a in weights],
        out_specs=pl.BlockSpec((1, N, H), lambda b: (b, 0, 0)),
        compiler_params=pltpu.CompilerParams(dimension_semantics=("parallel",)),
    )(x, y, x_mask, y_mask, *weights)


def run_tail(params, lang_feat, img_feat, lang_mask, img_mask):
    B, S, H = lang_feat.shape
    N = img_feat.shape[1]
    A = params["proj_w"].shape[1]
    lm = lang_mask[:, 0, :, None]             # (B, S, 1)
    im = img_mask[:, 0, :, None]              # (B, N, 1)
    afl, afi = params["attflat_lang"], params["attflat_img"]
    weights = [afl["w1"], afl["b1"], afl["w2"], afl["b2"], afl["wm"], afl["bm"],
               afi["w1"], afi["b1"], afi["w2"], afi["b2"], afi["wm"], afi["bm"],
               params["proj_norm_g"], params["proj_norm_b"],
               params["proj_w"], params["proj_b"],
               params["proj_norm_2_g"], params["proj_norm_2_b"],
               params["proj_2_w"], params["proj_2_b"]]
    o1, o2 = pl.pallas_call(
        _tail_kernel,
        out_shape=(jax.ShapeDtypeStruct((B, 1, A), jnp.float32),
                   jax.ShapeDtypeStruct((B, 1, A), jnp.float32)),
        grid=(B,),
        in_specs=[pl.BlockSpec((1, S, H), lambda b: (b, 0, 0)),
                  pl.BlockSpec((1, S, 1), lambda b: (b, 0, 0)),
                  pl.BlockSpec((1, N, H), lambda b: (b, 0, 0)),
                  pl.BlockSpec((1, N, 1), lambda b: (b, 0, 0))]
                 + [_wspec(a) for a in weights],
        out_specs=(pl.BlockSpec((1, 1, A), lambda b: (b, 0, 0)),
                   pl.BlockSpec((1, 1, A), lambda b: (b, 0, 0))),
        compiler_params=pltpu.CompilerParams(dimension_semantics=("parallel",)),
    )(lang_feat, lm, img_feat, im, *weights)
    return o1[:, 0, :], o2[:, 0, :]


def lstm_forward(p, x):
    B, S, E = x.shape
    H = p["whh"].shape[0]
    hs = pl.pallas_call(
        functools.partial(_lstm_kernel, hidden=H),
        out_shape=jax.ShapeDtypeStruct((S, B, H), jnp.float32),
        in_specs=[_VMEM, _VMEM, _VMEM, _VMEM],
        out_specs=_VMEM,
    )(x, p["wih"], p["whh"], p["b"])
    return hs.transpose(1, 0, 2)              # (B, S, H)


def adapter_forward(p, frcn_feat):
    B, N, F = frcn_feat.shape
    H = p["w"].shape[1]
    y = pl.pallas_call(
        _linear_kernel,
        out_shape=jax.ShapeDtypeStruct((B * N, H), jnp.float32),
        in_specs=[_VMEM, _VMEM, _VMEM],
        out_specs=_VMEM,
    )(frcn_feat.reshape(B * N, F), p["w"], p["b"])
    return y.reshape(B, N, H)


# ------------------------------ model forward ---------------------------------
def make_mask_feat(feature):
    """(B, N, D) -> (B, 1, N) float; 1.0 where the whole feature row is zero."""
    return (jnp.sum(jnp.abs(feature), axis=-1) == 0).astype(jnp.float32)[:, None, :]


def net_forward(params, cfg, frcn_feat, grid_feat, bbox_feat, ques_ix, step, epoch):
    del grid_feat, step, epoch
    del bbox_feat  # TODO(synk): Adapter source not provided; no-bbox frcn-linear path implemented.

    # language branch (USE_GLOVE path of the reference)
    lang_mask = make_mask_feat(ques_ix[..., None].astype(jnp.float32))   # (B, 1, S)
    # TODO(synk): embedding gather kept as plain JAX glue (single XLA gather).
    lang_feat = params["embedding"][ques_ix]                             # (B, S, E)
    lang_feat = lstm_forward(params["lstm"], lang_feat)                  # (B, S, H)

    # image branch (adapter)
    img_mask = make_mask_feat(frcn_feat)                                 # (B, 1, N)
    img_feat = adapter_forward(params["adapter"], frcn_feat)             # (B, N, H)

    # backbone (MCA_ED encoder-decoder), one fused pallas_call per layer
    for lp in params["enc"]:
        lang_feat = run_sa_block(lang_feat, lang_mask, lp, cfg)
    for lp in params["dec"]:
        img_feat = run_sga_block(img_feat, lang_feat, img_mask, lang_mask, lp, cfg)

    # AttFlat (lang + img) + fusion + proj_norm/proj heads, all in one kernel
    return run_tail(params, lang_feat, img_feat, lang_mask, img_mask)


# ------------------------------ parameter init --------------------------------
def _init_dense(key, din, dout, dtype=BF16):
    w = (jax.random.normal(key, (din, dout), jnp.float32) * 0.02).astype(dtype)
    return w, jnp.zeros((1, dout), jnp.float32)


def _init_ln(d):
    return jnp.ones((1, d), jnp.float32), jnp.zeros((1, d), jnp.float32)


def _init_enc_layer(key, cfg):
    H, FF = cfg.HIDDEN_SIZE, cfg.FF_SIZE
    ks = jax.random.split(key, 6)
    qw, qb = _init_dense(ks[0], H, H)
    kw, kb = _init_dense(ks[1], H, H)
    vw, vb = _init_dense(ks[2], H, H)
    ow, ob = _init_dense(ks[3], H, H)
    f1w, f1b = _init_dense(ks[4], H, FF)
    f2w, f2b = _init_dense(ks[5], FF, H)
    g1, b1 = _init_ln(H)
    g2, b2 = _init_ln(H)
    return dict(qkv_w=jnp.concatenate([qw, kw, vw], axis=1),
                qkv_b=jnp.concatenate([qb, kb, vb], axis=1),
                o_w=ow, o_b=ob, ln1_g=g1, ln1_b=b1,
                f1_w=f1w, f1_b=f1b, f2_w=f2w, f2_b=f2b,
                ln2_g=g2, ln2_b=b2)


def _init_dec_layer(key, cfg):
    H, FF = cfg.HIDDEN_SIZE, cfg.FF_SIZE
    ks = jax.random.split(key, 10)
    q1w, q1b = _init_dense(ks[0], H, H)
    k1w, k1b = _init_dense(ks[1], H, H)
    v1w, v1b = _init_dense(ks[2], H, H)
    o1w, o1b = _init_dense(ks[3], H, H)
    q2w, q2b = _init_dense(ks[4], H, H)
    k2w, k2b = _init_dense(ks[5], H, H)
    v2w, v2b = _init_dense(ks[6], H, H)
    o2w, o2b = _init_dense(ks[7], H, H)
    f1w, f1b = _init_dense(ks[8], H, FF)
    f2w, f2b = _init_dense(ks[9], FF, H)
    g1, b1 = _init_ln(H)
    g2, b2 = _init_ln(H)
    g3, b3 = _init_ln(H)
    return dict(a1_qkv_w=jnp.concatenate([q1w, k1w, v1w], axis=1),
                a1_qkv_b=jnp.concatenate([q1b, k1b, v1b], axis=1),
                a1_o_w=o1w, a1_o_b=o1b, ln1_g=g1, ln1_b=b1,
                a2_q_w=q2w, a2_q_b=q2b,
                a2_kv_w=jnp.concatenate([k2w, v2w], axis=1),
                a2_kv_b=jnp.concatenate([k2b, v2b], axis=1),
                a2_o_w=o2w, a2_o_b=o2b, ln2_g=g2, ln2_b=b2,
                f1_w=f1w, f1_b=f1b, f2_w=f2w, f2_b=f2b, ln3_g=g3, ln3_b=b3)


def _init_attflat(key, cfg):
    H, M, G, FO = cfg.HIDDEN_SIZE, cfg.FLAT_MLP_SIZE, cfg.FLAT_GLIMPSES, cfg.FLAT_OUT_SIZE
    k1, k2, k3 = jax.random.split(key, 3)
    w1, b1 = _init_dense(k1, H, M)
    w2, b2 = _init_dense(k2, M, G)
    wm, bm = _init_dense(k3, H * G, FO)
    return dict(w1=w1, b1=b1, w2=w2, b2=b2, wm=wm, bm=bm)


def init_params(key, cfg, token_size, answer_size):
    H, E, FO = cfg.HIDDEN_SIZE, cfg.WORD_EMBED_SIZE, cfg.FLAT_OUT_SIZE
    keys = jax.random.split(key, 10)
    enc = [_init_enc_layer(k, cfg) for k in jax.random.split(keys[4], cfg.LAYER)]
    dec = [_init_dec_layer(k, cfg) for k in jax.random.split(keys[5], cfg.LAYER)]
    aw, ab = _init_dense(keys[3], cfg.FRCN_FEAT_SIZE, H)
    pw, pb = _init_dense(keys[8], FO, answer_size)
    p2w, p2b = _init_dense(keys[9], FO, answer_size)
    png, pnb = _init_ln(FO)
    pn2g, pn2b = _init_ln(FO)
    return {
        "embedding": jax.random.normal(keys[0], (token_size, E), jnp.float32) * 0.02,
        "lstm": {"wih": jax.random.normal(keys[1], (E, 4 * H), jnp.float32) * 0.02,
                 "whh": jax.random.normal(keys[2], (H, 4 * H), jnp.float32) * 0.02,
                 "b": jnp.zeros((1, 4 * H), jnp.float32)},   # = b_ih + b_hh when porting
        "adapter": {"w": aw, "b": ab},
        "enc": enc,
        "dec": dec,
        "attflat_lang": _init_attflat(keys[6], cfg),
        "attflat_img": _init_attflat(keys[7], cfg),
        "proj_norm_g": png, "proj_norm_b": pnb, "proj_w": pw, "proj_b": pb,
        "proj_norm_2_g": pn2g, "proj_norm_2_b": pn2b, "proj_2_w": p2w, "proj_2_b": p2b,
    }


# ---------------------------------- main --------------------------------------
if __name__ == "__main__":
    cfg = Cfg()
    token_size, answer_size = 20, 10
    B, S, NOBJ = 2, 8, 16

    key = jax.random.PRNGKey(0)
    kp, kq, kf, kb, kg = jax.random.split(key, 5)

    params = init_params(kp, cfg, token_size, answer_size)

    ques_ix = jax.random.randint(kq, (B, S), 1, token_size, dtype=jnp.int32)
    ques_ix = ques_ix.at[:, 6:].set(0)                       # padding tokens
    frcn_feat = jax.random.normal(kf, (B, NOBJ, cfg.FRCN_FEAT_SIZE), jnp.float32)
    frcn_feat = frcn_feat.at[:, 12:, :].set(0.0)             # padded regions
    bbox_feat = jax.random.normal(kb, (B, NOBJ, 5), jnp.float32)
    grid_feat = jax.random.normal(kg, (B, 4, 4), jnp.float32)

    fwd = jax.jit(lambda p, ff, gf, bf, qi: net_forward(p, cfg, ff, gf, bf, qi, 0, 0))
    out1, out2 = fwd(params, frcn_feat, grid_feat, bbox_feat, ques_ix)
    jax.block_until_ready((out1, out2))

    assert out1.shape == (B, answer_size) and out2.shape == (B, answer_size)
    assert jnp.all(jnp.isfinite(out1)) and jnp.all(jnp.isfinite(out2))
    print("KERNEL_OK")
</pallas_src>

<mosaic_0001>
module attributes {stable_mosaic.version = 11 : i64} {
  func.func @_lstm_kernel(%arg0: memref<2x8x32xf32, #tpu.memory_space<vmem>>, %arg1: memref<32x128xf32, #tpu.memory_space<vmem>>, %arg2: memref<32x128xf32, #tpu.memory_space<vmem>>, %arg3: memref<1x128xf32, #tpu.memory_space<vmem>>, %arg4: memref<8x2x32xf32, #tpu.memory_space<vmem>>) attributes {dimension_semantics = [], scalar_prefetch = 0 : i64, scratch_operands = 0 : i64, tpu.core_type = #tpu.core_type<tc>} {
    %c0 = arith.constant 0 : index
    %c0_0 = arith.constant 0 : index
    %c0_1 = arith.constant 0 : index
    %0 = vector.load %arg0[%c0, %c0_0, %c0_1] : memref<2x8x32xf32, #tpu.memory_space<vmem>>, vector<2x8x32xf32>
    %c0_2 = arith.constant 0 : index
    %c0_3 = arith.constant 0 : index
    %1 = vector.load %arg1[%c0_2, %c0_3] : memref<32x128xf32, #tpu.memory_space<vmem>>, vector<32x128xf32>
    %c0_4 = arith.constant 0 : index
    %c0_5 = arith.constant 0 : index
    %2 = vector.load %arg2[%c0_4, %c0_5] : memref<32x128xf32, #tpu.memory_space<vmem>>, vector<32x128xf32>
    %c0_6 = arith.constant 0 : index
    %c0_7 = arith.constant 0 : index
    %3 = vector.load %arg3[%c0_6, %c0_7] : memref<1x128xf32, #tpu.memory_space<vmem>>, vector<1x128xf32>
    %cst = arith.constant 0.000000e+00 : f32
    %4 = vector.broadcast %cst : f32 to vector<2x32xf32>
    %cst_8 = arith.constant 0.000000e+00 : f32
    %5 = vector.broadcast %cst_8 : f32 to vector<2x32xf32>
    %6 = vector.extract_strided_slice %0 {offsets = [0, 0, 0], sizes = [2, 1, 32], strides = [1, 1, 1]} : vector<2x8x32xf32> to vector<2x1x32xf32>
    %7 = vector.shape_cast %6 : vector<2x1x32xf32> to vector<2x32xf32>
    %cst_9 = arith.constant dense<0.000000e+00> : vector<2x128xf32>
    %8 = tpu.matmul %7, %1, %cst_9 {dimension_numbers = #tpu.dot_dimension_numbers<[1], [0], [0], [1], [0, 0, 1, 1], [], []>} : vector<2x32xf32>, vector<32x128xf32>, vector<2x128xf32> -> vector<2x128xf32>
    %9 = vector.broadcast %3 : vector<1x128xf32> to vector<2x128xf32>
    %10 = arith.addf %8, %9 : vector<2x128xf32>
    %cst_10 = arith.constant dense<0.000000e+00> : vector<2x128xf32>
    %11 = tpu.matmul %4, %2, %cst_10 {dimension_numbers = #tpu.dot_dimension_numbers<[1], [0], [0], [1], [0, 0, 1, 1], [], []>} : vector<2x32xf32>, vector<32x128xf32>, vector<2x128xf32> -> vector<2x128xf32>
    %12 = arith.addf %10, %11 : vector<2x128xf32>
    %13 = vector.extract_strided_slice %12 {offsets = [0, 0], sizes = [2, 32], strides = [1, 1]} : vector<2x128xf32> to vector<2x32xf32>
    %14 = arith.negf %13 : vector<2x32xf32>
    %15 = math.exp %14 : vector<2x32xf32>
    %cst_11 = arith.constant 1.000000e+00 : f32
    %16 = vector.broadcast %cst_11 : f32 to vector<2x32xf32>
    %17 = arith.addf %16, %15 : vector<2x32xf32>
    %18 = arith.divf %16, %17 : vector<2x32xf32>
    %19 = vector.extract_strided_slice %12 {offsets = [0, 32], sizes = [2, 32], strides = [1, 1]} : vector<2x128xf32> to vector<2x32xf32>
    %20 = arith.negf %19 : vector<2x32xf32>
    %21 = math.exp %20 : vector<2x32xf32>
    %cst_12 = arith.constant 1.000000e+00 : f32
    %22 = vector.broadcast %cst_12 : f32 to vector<2x32xf32>
    %23 = arith.addf %22, %21 : vector<2x32xf32>
    %24 = arith.divf %22, %23 : vector<2x32xf32>
    %25 = vector.extract_strided_slice %12 {offsets = [0, 64], sizes = [2, 32], strides = [1, 1]} : vector<2x128xf32> to vector<2x32xf32>
    %26 = math.tanh %25 : vector<2x32xf32>
    %27 = vector.extract_strided_slice %12 {offsets = [0, 96], sizes = [2, 32], strides = [1, 1]} : vector<2x128xf32> to vector<2x32xf32>
    %28 = arith.negf %27 : vector<2x32xf32>
    %29 = math.exp %28 : vector<2x32xf32>
    %cst_13 = arith.constant 1.000000e+00 : f32
    %30 = vector.broadcast %cst_13 : f32 to vector<2x32xf32>
    %31 = arith.addf %30, %29 : vector<2x32xf32>
    %32 = arith.divf %30, %31 : vector<2x32xf32>
    %33 = arith.mulf %24, %5 : vector<2x32xf32>
    %34 = arith.mulf %18, %26 : vector<2x32xf32>
    %35 = arith.addf %33, %34 : vector<2x32xf32>
    %36 = math.tanh %35 : vector<2x32xf32>
    %37 = arith.mulf %32, %36 : vector<2x32xf32>
    %c0_14 = arith.constant 0 : index
    %c0_15 = arith.constant 0 : index
    %c0_16 = arith.constant 0 : index
    %38 = vector.load %arg4[%c0_14, %c0_15, %c0_16] : memref<8x2x32xf32, #tpu.memory_space<vmem>>, vector<1x2x32xf32>
    %39 = vector.shape_cast %38 : vector<1x2x32xf32> to vector<2x32xf32>
    %40 = vector.shape_cast %37 : vector<2x32xf32> to vector<1x2x32xf32>
    tpu.vector_store %arg4[%c0_14, %c0_15, %c0_16], %40 {strides = array<i32>} : memref<8x2x32xf32, #tpu.memory_space<vmem>>, vector<1x2x32xf32>,
    %41 = vector.extract_strided_slice %0 {offsets = [0, 1, 0], sizes = [2, 1, 32], strides = [1, 1, 1]} : vector<2x8x32xf32> to vector<2x1x32xf32>
    %42 = vector.shape_cast %41 : vector<2x1x32xf32> to vector<2x32xf32>
    %cst_17 = arith.constant dense<0.000000e+00> : vector<2x128xf32>
    %43 = tpu.matmul %42, %1, %cst_17 {dimension_numbers = #tpu.dot_dimension_numbers<[1], [0], [0], [1], [0, 0, 1, 1], [], []>} : vector<2x32xf32>, vector<32x128xf32>, vector<2x128xf32> -> vector<2x128xf32>
    %44 = vector.broadcast %3 : vector<1x128xf32> to vector<2x128xf32>
    %45 = arith.addf %43, %44 : vector<2x128xf32>
    %cst_18 = arith.constant dense<0.000000e+00> : vector<2x128xf32>
    %46 = tpu.matmul %37, %2, %cst_18 {dimension_numbers = #tpu.dot_dimension_numbers<[1], [0], [0], [1], [0, 0, 1, 1], [], []>} : vector<2x32xf32>, vector<32x128xf32>, vector<2x128xf32> -> vector<2x128xf32>
    %47 = arith.addf %45, %46 : vector<2x128xf32>
    %48 = vector.extract_strided_slice %47 {offsets = [0, 0], sizes = [2, 32], strides = [1, 1]} : vector<2x128xf32> to vector<2x32xf32>
    %49 = arith.negf %48 : vector<2x32xf32>
    %50 = math.exp %49 : vector<2x32xf32>
    %cst_19 = arith.constant 1.000000e+00 : f32
    %51 = vector.broadcast %cst_19 : f32 to vector<2x32xf32>
    %52 = arith.addf %51, %50 : vector<2x32xf32>
    %53 = arith.divf %51, %52 : vector<2x32xf32>
    %54 = vector.extract_strided_slice %47 {offsets = [0, 32], sizes = [2, 32], strides = [1, 1]} : vector<2x128xf32> to vector<2x32xf32>
    %55 = arith.negf %54 : vector<2x32xf32>
    %56 = math.exp %55 : vector<2x32xf32>
    %cst_20 = arith.constant 1.000000e+00 : f32
    %57 = vector.broadcast %cst_20 : f32 to vector<2x32xf32>
    %58 = arith.addf %57, %56 : vector<2x32xf32>
    %59 = arith.divf %57, %58 : vector<2x32xf32>
    %60 = vector.extract_strided_slice %47 {offsets = [0, 64], sizes = [2, 32], strides = [1, 1]} : vector<2x128xf32> to vector<2x32xf32>
    %61 = math.tanh %60 : vector<2x32xf32>
    %62 = vector.extract_strided_slice %47 {offsets = [0, 96], sizes = [2, 32], strides = [1, 1]} : vector<2x128xf32> to vector<2x32xf32>
    %63 = arith.negf %62 : vector<2x32xf32>
    %64 = math.exp %63 : vector<2x32xf32>
    %cst_21 = arith.constant 1.000000e+00 : f32
    %65 = vector.broadcast %cst_21 : f32 to vector<2x32xf32>
    %66 = arith.addf %65, %64 : vector<2x32xf32>
    %67 = arith.divf %65, %66 : vector<2x32xf32>
    %68 = arith.mulf %59, %35 : vector<2x32xf32>
    %69 = arith.mulf %53, %61 : vector<2x32xf32>
    %70 = arith.addf %68, %69 : vector<2x32xf32>
    %71 = math.tanh %70 : vector<2x32xf32>
    %72 = arith.mulf %67, %71 : vector<2x32xf32>
    %c1 = arith.constant 1 : index
    %c0_22 = arith.constant 0 : index
    %c0_23 = arith.constant 0 : index
    %73 = vector.load %arg4[%c1, %c0_22, %c0_23] : memref<8x2x32xf32, #tpu.memory_space<vmem>>, vector<1x2x32xf32>
    %74 = vector.shape_cast %73 : vector<1x2x32xf32> to vector<2x32xf32>
    %75 = vector.shape_cast %72 : vector<2x32xf32> to vector<1x2x32xf32>
    tpu.vector_store %arg4[%c1, %c0_22, %c0_23], %75 {strides = array<i32>} : memref<8x2x32xf32, #tpu.memory_space<vmem>>, vector<1x2x32xf32>,
    %76 = vector.extract_strided_slice %0 {offsets = [0, 2, 0], sizes = [2, 1, 32], strides = [1, 1, 1]} : vector<2x8x32xf32> to vector<2x1x32xf32>
    %77 = vector.shape_cast %76 : vector<2x1x32xf32> to vector<2x32xf32>
    %cst_24 = arith.constant dense<0.000000e+00> : vector<2x128xf32>
    %78 = tpu.matmul %77, %1, %cst_24 {dimension_numbers = #tpu.dot_dimension_numbers<[1], [0], [0], [1], [0, 0, 1, 1], [], []>} : vector<2x32xf32>, vector<32x128xf32>, vector<2x128xf32> -> vector<2x128xf32>
    %79 = vector.broadcast %3 : vector<1x128xf32> to vector<2x128xf32>
    %80 = arith.addf %78, %79 : vector<2x128xf32>
    %cst_25 = arith.constant dense<0.000000e+00> : vector<2x128xf32>
    %81 = tpu.matmul %72, %2, %cst_25 {dimension_numbers = #tpu.dot_dimension_numbers<[1], [0], [0], [1], [0, 0, 1, 1], [], []>} : vector<2x32xf32>, vector<32x128xf32>, vector<2x128xf32> -> vector<2x128xf32>
    %82 = arith.addf %80, %81 : vector<2x128xf32>
    %83 = vector.extract_strided_slice %82 {offsets = [0, 0], sizes = [2, 32], strides = [1, 1]} : vector<2x128xf32> to vector<2x32xf32>
    %84 = arith.negf %83 : vector<2x32xf32>
    %85 = math.exp %84 : vector<2x32xf32>
    %cst_26 = arith.constant 1.000000e+00 : f32
    %86 = vector.broadcast %cst_26 : f32 to vector<2x32xf32>
    %87 = arith.addf %86, %85 : vector<2x32xf32>
    %88 = arith.divf %86, %87 : vector<2x32xf32>
    %89 = vector.extract_strided_slice %82 {offsets = [0, 32], sizes = [2, 32], strides = [1, 1]} : vector<2x128xf32> to vector<2x32xf32>
    %90 = arith.negf %89 : vector<2x32xf32>
    %91 = math.exp %90 : vector<2x32xf32>
    %cst_27 = arith.constant 1.000000e+00 : f32
    %92 = vector.broadcast %cst_27 : f32 to vector<2x32xf32>
    %93 = arith.addf %92, %91 : vector<2x32xf32>
    %94 = arith.divf %92, %93 : vector<2x32xf32>
    %95 = vector.extract_strided_slice %82 {offsets = [0, 64], sizes = [2, 32], strides = [1, 1]} : vector<2x128xf32> to vector<2x32xf32>
    %96 = math.tanh %95 : vector<2x32xf32>
    %97 = vector.extract_strided_slice %82 {offsets = [0, 96], sizes = [2, 32], strides = [1, 1]} : vector<2x128xf32> to vector<2x32xf32>
    %98 = arith.negf %97 : vector<2x32xf32>
    %99 = math.exp %98 : vector<2x32xf32>
    %cst_28 = arith.constant 1.000000e+00 : f32
    %100 = vector.broadcast %cst_28 : f32 to vector<2x32xf32>
    %101 = arith.addf %100, %99 : vector<2x32xf32>
    %102 = arith.divf %100, %101 : vector<2x32xf32>
    %103 = arith.mulf %94, %70 : vector<2x32xf32>
    %104 = arith.mulf %88, %96 : vector<2x32xf32>
    %105 = arith.addf %103, %104 : vector<2x32xf32>
    %106 = math.tanh %105 : vector<2x32xf32>
    %107 = arith.mulf %102, %106 : vector<2x32xf32>
    %c2 = arith.constant 2 : index
    %c0_29 = arith.constant 0 : index
    %c0_30 = arith.constant 0 : index
    %108 = vector.load %arg4[%c2, %c0_29, %c0_30] : memref<8x2x32xf32, #tpu.memory_space<vmem>>, vector<1x2x32xf32>
    %109 = vector.shape_cast %108 : vector<1x2x32xf32> to vector<2x32xf32>
    %110 = vector.shape_cast %107 : vector<2x32xf32> to vector<1x2x32xf32>
    tpu.vector_store %arg4[%c2, %c0_29, %c0_30], %110 {strides = array<i32>} : memref<8x2x32xf32, #tpu.memory_space<vmem>>, vector<1x2x32xf32>,
    %111 = vector.extract_strided_slice %0 {offsets = [0, 3, 0], sizes = [2, 1, 32], strides = [1, 1, 1]} : vector<2x8x32xf32> to vector<2x1x32xf32>
    %112 = vector.shape_cast %111 : vector<2x1x32xf32> to vector<2x32xf32>
    %cst_31 = arith.constant dense<0.000000e+00> : vector<2x128xf32>
    %113 = tpu.matmul %112, %1, %cst_31 {dimension_numbers = #tpu.dot_dimension_numbers<[1], [0], [0], [1], [0, 0, 1, 1], [], []>} : vector<2x32xf32>, vector<32x128xf32>, vector<2x128xf32> -> vector<2x128xf32>
    %114 = vector.broadcast %3 : vector<1x128xf32> to vector<2x128xf32>
    %115 = arith.addf %113, %114 : vector<2x128xf32>
    %cst_32 = arith.constant dense<0.000000e+00> : vector<2x128xf32>
    %116 = tpu.matmul %107, %2, %cst_32 {dimension_numbers = #tpu.dot_dimension_numbers<[1], [0], [0], [1], [0, 0, 1, 1], [], []>} : vector<2x32xf32>, vector<32x128xf32>, vector<2x128xf32> -> vector<2x128xf32>
    %117 = arith.addf %115, %116 : vector<2x128xf32>
    %118 = vector.extract_strided_slice %117 {offsets = [0, 0], sizes = [2, 32], strides = [1, 1]} : vector<2x128xf32> to vector<2x32xf32>
    %119 = arith.negf %118 : vector<2x32xf32>
    %120 = math.exp %119 : vector<2x32xf32>
    %cst_33 = arith.constant 1.000000e+00 : f32
    %121 = vector.broadcast %cst_33 : f32 to vector<2x32xf32>
    %122 = arith.addf %121, %120 : vector<2x32xf32>
    %123 = arith.divf %121, %122 : vector<2x32xf32>
    %124 = vector.extract_strided_slice %117 {offsets = [0, 32], sizes = [2, 32], strides = [1, 1]} : vector<2x128xf32> to vector<2x32xf32>
    %125 = arith.negf %124 : vector<2x32xf32>
    %126 = math.exp %125 : vector<2x32xf32>
    %cst_34 = arith.constant 1.000000e+00 : f32
    %127 = vector.broadcast %cst_34 : f32 to vector<2x32xf32>
    %128 = arith.addf %127, %126 : vector<2x32xf32>
    %129 = arith.divf %127, %128 : vector<2x32xf32>
    %130 = vector.extract_strided_slice %117 {offsets = [0, 64], sizes = [2, 32], strides = [1, 1]} : vector<2x128xf32> to vector<2x32xf32>
    %131 = math.tanh %130 : vector<2x32xf32>
    %132 = vector.extract_strided_slice %117 {offsets = [0, 96], sizes = [2, 32], strides = [1, 1]} : vector<2x128xf32> to vector<2x32xf32>
    %133 = arith.negf %132 : vector<2x32xf32>
    %134 = math.exp %133 : vector<2x32xf32>
    %cst_35 = arith.constant 1.000000e+00 : f32
    %135 = vector.broadcast %cst_35 : f32 to vector<2x32xf32>
    %136 = arith.addf %135, %134 : vector<2x32xf32>
    %137 = arith.divf %135, %136 : vector<2x32xf32>
    %138 = arith.mulf %129, %105 : vector<2x32xf32>
    %139 = arith.mulf %123, %131 : vector<2x32xf32>
    %140 = arith.addf %138, %139 : vector<2x32xf32>
    %141 = math.tanh %140 : vector<2x32xf32>
    %142 = arith.mulf %137, %141 : vector<2x32xf32>
    %c3 = arith.constant 3 : index
    %c0_36 = arith.constant 0 : index
    %c0_37 = arith.constant 0 : index
    %143 = vector.load %arg4[%c3, %c0_36, %c0_37] : memref<8x2x32xf32, #tpu.memory_space<vmem>>, vector<1x2x32xf32>
    %144 = vector.shape_cast %143 : vector<1x2x32xf32> to vector<2x32xf32>
    %145 = vector.shape_cast %142 : vector<2x32xf32> to vector<1x2x32xf32>
    tpu.vector_store %arg4[%c3, %c0_36, %c0_37], %145 {strides = array<i32>} : memref<8x2x32xf32, #tpu.memory_space<vmem>>, vector<1x2x32xf32>,
    %146 = vector.extract_strided_slice %0 {offsets = [0, 4, 0], sizes = [2, 1, 32], strides = [1, 1, 1]} : vector<2x8x32xf32> to vector<2x1x32xf32>
    %147 = vector.shape_cast %146 : vector<2x1x32xf32> to vector<2x32xf32>
    %cst_38 = arith.constant dense<0.000000e+00> : vector<2x128xf32>
    %148 = tpu.matmul %147, %1, %cst_38 {dimension_numbers = #tpu.dot_dimension_numbers<[1], [0], [0], [1], [0, 0, 1, 1], [], []>} : vector<2x32xf32>, vector<32x128xf32>, vector<2x128xf32> -> vector<2x128xf32>
    %149 = vector.broadcast %3 : vector<1x128xf32> to vector<2x128xf32>
    %150 = arith.addf %148, %149 : vector<2x128xf32>
    %cst_39 = arith.constant dense<0.000000e+00> : vector<2x128xf32>
    %151 = tpu.matmul %142, %2, %cst_39 {dimension_numbers = #tpu.dot_dimension_numbers<[1], [0], [0], [1], [0, 0, 1, 1], [], []>} : vector<2x32xf32>, vector<32x128xf32>, vector<2x128xf32> -> vector<2x128xf32>
    %152 = arith.addf %150, %151 : vector<2x128xf32>
    %153 = vector.extract_strided_slice %152 {offsets = [0, 0], sizes = [2, 32], strides = [1, 1]} : vector<2x128xf32> to vector<2x32xf32>
    %154 = arith.negf %153 : vector<2x32xf32>
    %155 = math.exp %154 : vector<2x32xf32>
    %cst_40 = arith.constant 1.000000e+00 : f32
    %156 = vector.broadcast %cst_40 : f32 to vector<2x32xf32>
    %157 = arith.addf %156, %155 : vector<2x32xf32>
    %158 = arith.divf %156, %157 : vector<2x32xf32>
    %159 = vector.extract_strided_slice %152 {offsets = [0, 32], sizes = [2, 32], strides = [1, 1]} : vector<2x128xf32> to vector<2x32xf32>
    %160 = arith.negf %159 : vector<2x32xf32>
    %161 = math.exp %160 : vector<2x32xf32>
    %cst_41 = arith.constant 1.000000e+00 : f32
    %162 = vector.broadcast %cst_41 : f32 to vector<2x32xf32>
    %163 = arith.addf %162, %161 : vector<2x32xf32>
    %164 = arith.divf %162, %163 : vector<2x32xf32>
    %165 = vector.extract_strided_slice %152 {offsets = [0, 64], sizes = [2, 32], strides = [1, 1]} : vector<2x128xf32> to vector<2x32xf32>
    %166 = math.tanh %165 : vector<2x32xf32>
    %167 = vector.extract_strided_slice %152 {offsets = [0, 96], sizes = [2, 32], strides = [1, 1]} : vector<2x128xf32> to vector<2x32xf32>
    %168 = arith.negf %167 : vector<2x32xf32>
    %169 = math.exp %168 : vector<2x32xf32>
    %cst_42 = arith.constant 1.000000e+00 : f32
    %170 = vector.broadcast %cst_42 : f32 to vector<2x32xf32>
    %171 = arith.addf %170, %169 : vector<2x32xf32>
    %172 = arith.divf %170, %171 : vector<2x32xf32>
    %173 = arith.mulf %164, %140 : vector<2x32xf32>
    %174 = arith.mulf %158, %166 : vector<2x32xf32>
    %175 = arith.addf %173, %174 : vector<2x32xf32>
    %176 = math.tanh %175 : vector<2x32xf32>
    %177 = arith.mulf %172, %176 : vector<2x32xf32>
    %c4 = arith.constant 4 : index
    %c0_43 = arith.constant 0 : index
    %c0_44 = arith.constant 0 : index
    %178 = vector.load %arg4[%c4, %c0_43, %c0_44] : memref<8x2x32xf32, #tpu.memory_space<vmem>>, vector<1x2x32xf32>
    %179 = vector.shape_cast %178 : vector<1x2x32xf32> to vector<2x32xf32>
    %180 = vector.shape_cast %177 : vector<2x32xf32> to vector<1x2x32xf32>
    tpu.vector_store %arg4[%c4, %c0_43, %c0_44], %180 {strides = array<i32>} : memref<8x2x32xf32, #tpu.memory_space<vmem>>, vector<1x2x32xf32>,
    %181 = vector.extract_strided_slice %0 {offsets = [0, 5, 0], sizes = [2, 1, 32], strides = [1, 1, 1]} : vector<2x8x32xf32> to vector<2x1x32xf32>
    %182 = vector.shape_cast %181 : vector<2x1x32xf32> to vector<2x32xf32>
    %cst_45 = arith.constant dense<0.000000e+00> : vector<2x128xf32>
    %183 = tpu.matmul %182, %1, %cst_45 {dimension_numbers = #tpu.dot_dimension_numbers<[1], [0], [0], [1], [0, 0, 1, 1], [], []>} : vector<2x32xf32>, vector<32x128xf32>, vector<2x128xf32> -> vector<2x128xf32>
    %184 = vector.broadcast %3 : vector<1x128xf32> to vector<2x128xf32>
    %185 = arith.addf %183, %184 : vector<2x128xf32>
    %cst_46 = arith.constant dense<0.000000e+00> : vector<2x128xf32>
    %186 = tpu.matmul %177, %2, %cst_46 {dimension_numbers = #tpu.dot_dimension_numbers<[1], [0], [0], [1], [0, 0, 1, 1], [], []>} : vector<2x32xf32>, vector<32x128xf32>, vector<2x128xf32> -> vector<2x128xf32>
    %187 = arith.addf %185, %186 : vector<2x128xf32>
    %188 = vector.extract_strided_slice %187 {offsets = [0, 0], sizes = [2, 32], strides = [1, 1]} : vector<2x128xf32> to vector<2x32xf32>
    %189 = arith.negf %188 : vector<2x32xf32>
    %190 = math.exp %189 : vector<2x32xf32>
    %cst_47 = arith.constant 1.000000e+00 : f32
    %191 = vector.broadcast %cst_47 : f32 to vector<2x32xf32>
    %192 = arith.addf %191, %190 : vector<2x32xf32>
    %193 = arith.divf %191, %192 : vector<2x32xf32>
    %194 = vector.extract_strided_slice %187 {offsets = [0, 32], sizes = [2, 32], strides = [1, 1]} : vector<2x128xf32> to vector<2x32xf32>
    %195 = arith.negf %194 : vector<2x32xf32>
    %196 = math.exp %195 : vector<2x32xf32>
    %cst_48 = arith.constant 1.000000e+00 : f32
    %197 = vector.broadcast %cst_48 : f32 to vector<2x32xf32>
    %198 = arith.addf %197, %196 : vector<2x32xf32>
    %199 = arith.divf %197, %198 : vector<2x32xf32>
    %200 = vector.extract_strided_slice %187 {offsets = [0, 64], sizes = [2, 32], strides = [1, 1]} : vector<2x128xf32> to vector<2x32xf32>
    %201 = math.tanh %200 : vector<2x32xf32>
    %202 = vector.extract_strided_slice %187 {offsets = [0, 96], sizes = [2, 32], strides = [1, 1]} : vector<2x128xf32> to vector<2x32xf32>
    %203 = arith.negf %202 : vector<2x32xf32>
    %204 = math.exp %203 : vector<2x32xf32>
    %cst_49 = arith.constant 1.000000e+00 : f32
    %205 = vector.broadcast %cst_49 : f32 to vector<2x32xf32>
    %206 = arith.addf %205, %204 : vector<2x32xf32>
    %207 = arith.divf %205, %206 : vector<2x32xf32>
    %208 = arith.mulf %199, %175 : vector<2x32xf32>
    %209 = arith.mulf %193, %201 : vector<2x32xf32>
    %210 = arith.addf %208, %209 : vector<2x32xf32>
    %211 = math.tanh %210 : vector<2x32xf32>
    %212 = arith.mulf %207, %211 : vector<2x32xf32>
    %c5 = arith.constant 5 : index
    %c0_50 = arith.constant 0 : index
    %c0_51 = arith.constant 0 : index
    %213 = vector.load %arg4[%c5, %c0_50, %c0_51] : memref<8x2x32xf32, #tpu.memory_space<vmem>>, vector<1x2x32xf32>
    %214 = vector.shape_cast %213 : vector<1x2x32xf32> to vector<2x32xf32>
    %215 = vector.shape_cast %212 : vector<2x32xf32> to vector<1x2x32xf32>
    tpu.vector_store %arg4[%c5, %c0_50, %c0_51], %215 {strides = array<i32>} : memref<8x2x32xf32, #tpu.memory_space<vmem>>, vector<1x2x32xf32>,
    %216 = vector.extract_strided_slice %0 {offsets = [0, 6, 0], sizes = [2, 1, 32], strides = [1, 1, 1]} : vector<2x8x32xf32> to vector<2x1x32xf32>
    %217 = vector.shape_cast %216 : vector<2x1x32xf32> to vector<2x32xf32>
    %cst_52 = arith.constant dense<0.000000e+00> : vector<2x128xf32>
    %218 = tpu.matmul %217, %1, %cst_52 {dimension_numbers = #tpu.dot_dimension_numbers<[1], [0], [0], [1], [0, 0, 1, 1], [], []>} : vector<2x32xf32>, vector<32x128xf32>, vector<2x128xf32> -> vector<2x128xf32>
    %219 = vector.broadcast %3 : vector<1x128xf32> to vector<2x128xf32>
    %220 = arith.addf %218, %219 : vector<2x128xf32>
    %cst_53 = arith.constant dense<0.000000e+00> : vector<2x128xf32>
    %221 = tpu.matmul %212, %2, %cst_53 {dimension_numbers = #tpu.dot_dimension_numbers<[1], [0], [0], [1], [0, 0, 1, 1], [], []>} : vector<2x32xf32>, vector<32x128xf32>, vector<2x128xf32> -> vector<2x128xf32>
    %222 = arith.addf %220, %221 : vector<2x128xf32>
    %223 = vector.extract_strided_slice %222 {offsets = [0, 0], sizes = [2, 32], strides = [1, 1]} : vector<2x128xf32> to vector<2x32xf32>
    %224 = arith.negf %223 : vector<2x32xf32>
    %225 = math.exp %224 : vector<2x32xf32>
    %cst_54 = arith.constant 1.000000e+00 : f32
    %226 = vector.broadcast %cst_54 : f32 to vector<2x32xf32>
    %227 = arith.addf %226, %225 : vector<2x32xf32>
    %228 = arith.divf %226, %227 : vector<2x32xf32>
    %229 = vector.extract_strided_slice %222 {offsets = [0, 32], sizes = [2, 32], strides = [1, 1]} : vector<2x128xf32> to vector<2x32xf32>
    %230 = arith.negf %229 : vector<2x32xf32>
    %231 = math.exp %230 : vector<2x32xf32>
    %cst_55 = arith.constant 1.000000e+00 : f32
    %232 = vector.broadcast %cst_55 : f32 to vector<2x32xf32>
    %233 = arith.addf %232, %231 : vector<2x32xf32>
    %234 = arith.divf %232, %233 : vector<2x32xf32>
    %235 = vector.extract_strided_slice %222 {offsets = [0, 64], sizes = [2, 32], strides = [1, 1]} : vector<2x128xf32> to vector<2x32xf32>
    %236 = math.tanh %235 : vector<2x32xf32>
    %237 = vector.extract_strided_slice %222 {offsets = [0, 96], sizes = [2, 32], strides = [1, 1]} : vector<2x128xf32> to vector<2x32xf32>
    %238 = arith.negf %237 : vector<2x32xf32>
    %239 = math.exp %238 : vector<2x32xf32>
    %cst_56 = arith.constant 1.000000e+00 : f32
    %240 = vector.broadcast %cst_56 : f32 to vector<2x32xf32>
    %241 = arith.addf %240, %239 : vector<2x32xf32>
    %242 = arith.divf %240, %241 : vector<2x32xf32>
    %243 = arith.mulf %234, %210 : vector<2x32xf32>
    %244 = arith.mulf %228, %236 : vector<2x32xf32>
    %245 = arith.addf %243, %244 : vector<2x32xf32>
    %246 = math.tanh %245 : vector<2x32xf32>
    %247 = arith.mulf %242, %246 : vector<2x32xf32>
    %c6 = arith.constant 6 : index
    %c0_57 = arith.constant 0 : index
    %c0_58 = arith.constant 0 : index
    %248 = vector.load %arg4[%c6, %c0_57, %c0_58] : memref<8x2x32xf32, #tpu.memory_space<vmem>>, vector<1x2x32xf32>
    %249 = vector.shape_cast %248 : vector<1x2x32xf32> to vector<2x32xf32>
    %250 = vector.shape_cast %247 : vector<2x32xf32> to vector<1x2x32xf32>
    tpu.vector_store %arg4[%c6, %c0_57, %c0_58], %250 {strides = array<i32>} : memref<8x2x32xf32, #tpu.memory_space<vmem>>, vector<1x2x32xf32>,
    %251 = vector.extract_strided_slice %0 {offsets = [0, 7, 0], sizes = [2, 1, 32], strides = [1, 1, 1]} : vector<2x8x32xf32> to vector<2x1x32xf32>
    %252 = vector.shape_cast %251 : vector<2x1x32xf32> to vector<2x32xf32>
    %cst_59 = arith.constant dense<0.000000e+00> : vector<2x128xf32>
    %253 = tpu.matmul %252, %1, %cst_59 {dimension_numbers = #tpu.dot_dimension_numbers<[1], [0], [0], [1], [0, 0, 1, 1], [], []>} : vector<2x32xf32>, vector<32x128xf32>, vector<2x128xf32> -> vector<2x128xf32>
    %254 = vector.broadcast %3 : vector<1x128xf32> to vector<2x128xf32>
    %255 = arith.addf %253, %254 : vector<2x128xf32>
    %cst_60 = arith.constant dense<0.000000e+00> : vector<2x128xf32>
    %256 = tpu.matmul %247, %2, %cst_60 {dimension_numbers = #tpu.dot_dimension_numbers<[1], [0], [0], [1], [0, 0, 1, 1], [], []>} : vector<2x32xf32>, vector<32x128xf32>, vector<2x128xf32> -> vector<2x128xf32>
    %257 = arith.addf %255, %256 : vector<2x128xf32>
    %258 = vector.extract_strided_slice %257 {offsets = [0, 0], sizes = [2, 32], strides = [1, 1]} : vector<2x128xf32> to vector<2x32xf32>
    %259 = arith.negf %258 : vector<2x32xf32>
    %260 = math.exp %259 : vector<2x32xf32>
    %cst_61 = arith.constant 1.000000e+00 : f32
    %261 = vector.broadcast %cst_61 : f32 to vector<2x32xf32>
    %262 = arith.addf %261, %260 : vector<2x32xf32>
    %263 = arith.divf %261, %262 : vector<2x32xf32>
    %264 = vector.extract_strided_slice %257 {offsets = [0, 32], sizes = [2, 32], strides = [1, 1]} : vector<2x128xf32> to vector<2x32xf32>
    %265 = arith.negf %264 : vector<2x32xf32>
    %266 = math.exp %265 : vector<2x32xf32>
    %cst_62 = arith.constant 1.000000e+00 : f32
    %267 = vector.broadcast %cst_62 : f32 to vector<2x32xf32>
    %268 = arith.addf %267, %266 : vector<2x32xf32>
    %269 = arith.divf %267, %268 : vector<2x32xf32>
    %270 = vector.extract_strided_slice %257 {offsets = [0, 64], sizes = [2, 32], strides = [1, 1]} : vector<2x128xf32> to vector<2x32xf32>
    %271 = math.tanh %270 : vector<2x32xf32>
    %272 = vector.extract_strided_slice %257 {offsets = [0, 96], sizes = [2, 32], strides = [1, 1]} : vector<2x128xf32> to vector<2x32xf32>
    %273 = arith.negf %272 : vector<2x32xf32>
    %274 = math.exp %273 : vector<2x32xf32>
    %cst_63 = arith.constant 1.000000e+00 : f32
    %275 = vector.broadcast %cst_63 : f32 to vector<2x32xf32>
    %276 = arith.addf %275, %274 : vector<2x32xf32>
    %277 = arith.divf %275, %276 : vector<2x32xf32>
    %278 = arith.mulf %269, %245 : vector<2x32xf32>
    %279 = arith.mulf %263, %271 : vector<2x32xf32>
    %280 = arith.addf %278, %279 : vector<2x32xf32>
    %281 = math.tanh %280 : vector<2x32xf32>
    %282 = arith.mulf %277, %281 : vector<2x32xf32>
    %c7 = arith.constant 7 : index
    %c0_64 = arith.constant 0 : index
    %c0_65 = arith.constant 0 : index
    %283 = vector.load %arg4[%c7, %c0_64, %c0_65] : memref<8x2x32xf32, #tpu.memory_space<vmem>>, vector<1x2x32xf32>
    %284 = vector.shape_cast %283 : vector<1x2x32xf32> to vector<2x32xf32>
    %285 = vector.shape_cast %282 : vector<2x32xf32> to vector<1x2x32xf32>
    tpu.vector_store %arg4[%c7, %c0_64, %c0_65], %285 {strides = array<i32>} : memref<8x2x32xf32, #tpu.memory_space<vmem>>, vector<1x2x32xf32>,
    return
  }
}

module attributes {stable_mosaic.version = 11 : i64} {
  func.func @_sa_block_kernel(%arg0: i32, %arg1: memref<1x8x32xf32, #tpu.memory_space<vmem>>, %arg2: memref<1x1x8xf32, #tpu.memory_space<vmem>>, %arg3: memref<32x96xbf16, #tpu.memory_space<vmem>>, %arg4: memref<1x96xf32, #tpu.memory_space<vmem>>, %arg5: memref<32x32xbf16, #tpu.memory_space<vmem>>, %arg6: memref<1x32xf32, #tpu.memory_space<vmem>>, %arg7: memref<1x32xf32, #tpu.memory_space<vmem>>, %arg8: memref<1x32xf32, #tpu.memory_space<vmem>>, %arg9: memref<32x64xbf16, #tpu.memory_space<vmem>>, %arg10: memref<1x64xf32, #tpu.memory_space<vmem>>, %arg11: memref<64x32xbf16, #tpu.memory_space<vmem>>, %arg12: memref<1x32xf32, #tpu.memory_space<vmem>>, %arg13: memref<1x32xf32, #tpu.memory_space<vmem>>, %arg14: memref<1x32xf32, #tpu.memory_space<vmem>>, %arg15: memref<1x8x32xf32, #tpu.memory_space<vmem>>) attributes {dimension_semantics = [#tpu.dimension_semantics<parallel>], iteration_bounds = array<i64: 2>, scalar_prefetch = 0 : i64, scratch_operands = 0 : i64, tpu.core_type = #tpu.core_type<tc>, window_params = [{transform_indices = @transform_0, window_bounds = array<i64: 1, 8, 32>}, {transform_indices = @transform_1, window_bounds = array<i64: 1, 1, 8>}, {pipeline_mode = #tpu.pipeline_mode<synchronous>, transform_indices = @transform_2, window_bounds = array<i64: 32, 96>}, {pipeline_mode = #tpu.pipeline_mode<synchronous>, transform_indices = @transform_3, window_bounds = array<i64: 1, 96>}, {pipeline_mode = #tpu.pipeline_mode<synchronous>, transform_indices = @transform_4, window_bounds = array<i64: 32, 32>}, {pipeline_mode = #tpu.pipeline_mode<synchronous>, transform_indices = @transform_5, window_bounds = array<i64: 1, 32>}, {pipeline_mode = #tpu.pipeline_mode<synchronous>, transform_indices = @transform_6, window_bounds = array<i64: 1, 32>}, {pipeline_mode = #tpu.pipeline_mode<synchronous>, transform_indices = @transform_7, window_bounds = array<i64: 1, 32>}, {pipeline_mode = #tpu.pipeline_mode<synchronous>, transform_indices = @transform_8, window_bounds = array<i64: 32, 64>}, {pipeline_mode = #tpu.pipeline_mode<synchronous>, transform_indices = @transform_9, window_bounds = array<i64: 1, 64>}, {pipeline_mode = #tpu.pipeline_mode<synchronous>, transform_indices = @transform_10, window_bounds = array<i64: 64, 32>}, {pipeline_mode = #tpu.pipeline_mode<synchronous>, transform_indices = @transform_11, window_bounds = array<i64: 1, 32>}, {pipeline_mode = #tpu.pipeline_mode<synchronous>, transform_indices = @transform_12, window_bounds = array<i64: 1, 32>}, {pipeline_mode = #tpu.pipeline_mode<synchronous>, transform_indices = @transform_13, window_bounds = array<i64: 1, 32>}, {transform_indices = @transform_14, window_bounds = array<i64: 1, 8, 32>}]} {
    %c0 = arith.constant 0 : index
    %c0_0 = arith.constant 0 : index
    %c0_1 = arith.constant 0 : index
    %0 = vector.load %arg1[%c0, %c0_0, %c0_1] : memref<1x8x32xf32, #tpu.memory_space<vmem>>, vector<1x8x32xf32>
    %1 = vector.shape_cast %0 : vector<1x8x32xf32> to vector<8x32xf32>
    %c0_2 = arith.constant 0 : index
    %c0_3 = arith.constant 0 : index
    %c0_4 = arith.constant 0 : index
    %2 = vector.load %arg2[%c0_2, %c0_3, %c0_4] : memref<1x1x8xf32, #tpu.memory_space<vmem>>, vector<1x1x8xf32>
    %3 = vector.shape_cast %2 : vector<1x1x8xf32> to vector<1x8xf32>
    %4 = arith.truncf %1 : vector<8x32xf32> to vector<8x32xbf16>
    %c0_5 = arith.constant 0 : index
    %c0_6 = arith.constant 0 : index
    %5 = vector.load %arg3[%c0_5, %c0_6] : memref<32x96xbf16, #tpu.memory_space<vmem>>, vector<32x96xbf16>
    %cst = arith.constant dense<0.000000e+00> : vector<8x96xf32>
    %6 = tpu.matmul %4, %5, %cst {dimension_numbers = #tpu.dot_dimension_numbers<[1], [0], [0], [1], [0, 0, 1, 1], [], []>} : vector<8x32xbf16>, vector<32x96xbf16>, vector<8x96xf32> -> vector<8x96xf32>
    %c0_7 = arith.constant 0 : index
    %c0_8 = arith.constant 0 : index
    %7 = vector.load %arg4[%c0_7, %c0_8] : memref<1x96xf32, #tpu.memory_space<vmem>>, vector<1x96xf32>
    %8 = vector.broadcast %7 : vector<1x96xf32> to vector<8x96xf32>
    %9 = arith.addf %6, %8 : vector<8x96xf32>
    %10 = vector.extract_strided_slice %9 {offsets = [0, 0], sizes = [8, 32], strides = [1, 1]} : vector<8x96xf32> to vector<8x32xf32>
    %11 = vector.extract_strided_slice %9 {offsets = [0, 32], sizes = [8, 32], strides = [1, 1]} : vector<8x96xf32> to vector<8x32xf32>
    %12 = vector.extract_strided_slice %9 {offsets = [0, 64], sizes = [8, 32], strides = [1, 1]} : vector<8x96xf32> to vector<8x32xf32>
    %13 = vector.extract_strided_slice %10 {offsets = [0, 0], sizes = [8, 8], strides = [1, 1]} : vector<8x32xf32> to vector<8x8xf32>
    %14 = vector.extract_strided_slice %11 {offsets = [0, 0], sizes = [8, 8], strides = [1, 1]} : vector<8x32xf32> to vector<8x8xf32>
    %15 = tpu.transpose %14, [1, 0] : vector<8x8xf32> -> vector<8x8xf32>
    %cst_9 = arith.constant dense<0.000000e+00> : vector<8x8xf32>
    %16 = tpu.matmul %13, %15, %cst_9 {dimension_numbers = #tpu.dot_dimension_numbers<[1], [0], [0], [1], [0, 0, 1, 1], [], []>} : vector<8x8xf32>, vector<8x8xf32>, vector<8x8xf32> -> vector<8x8xf32>
    %cst_10 = arith.constant 0.353553385 : f32
    %17 = vector.broadcast %cst_10 : f32 to vector<8x8xf32>
    %18 = arith.mulf %16, %17 : vector<8x8xf32>
    %cst_11 = arith.constant 5.000000e-01 : f32
    %19 = vector.broadcast %cst_11 : f32 to vector<1x8xf32>
    %20 = arith.cmpf ogt, %3, %19 : vector<1x8xf32>
    %cst_12 = arith.constant -1.000000e+09 : f32
    %21 = vector.shape_cast %20 : vector<1x8xi1> to vector<1x8xi1>
    %22 = vector.broadcast %21 : vector<1x8xi1> to vector<8x8xi1>
    %23 = vector.broadcast %cst_12 : f32 to vector<8x8xf32>
    %24 = arith.select %22, %23, %18 : vector<8x8xi1>, vector<8x8xf32>
    %cst_13 = arith.constant dense<0xFF800000> : vector<8xf32>
    %25 = vector.multi_reduction <maximumf>, %24, %cst_13 [1] : vector<8x8xf32> to vector<8xf32>
    %cst_14 = arith.constant 0xFF800000 : f32
    %26 = vector.broadcast %cst_14 : f32 to vector<8xf32>
    %27 = arith.maximumf %26, %25 : vector<8xf32>
    %28 = vector.shape_cast %27 : vector<8xf32> to vector<8x1xf32>
    %29 = vector.broadcast %28 : vector<8x1xf32> to vector<8x8xf32>
    %30 = arith.subf %24, %29 : vector<8x8xf32>
    %31 = math.exp %30 : vector<8x8xf32>
    %cst_15 = arith.constant dense<0.000000e+00> : vector<8xf32>
    %32 = vector.multi_reduction <add>, %31, %cst_15 [1] : vector<8x8xf32> to vector<8xf32>
    %33 = vector.shape_cast %32 : vector<8xf32> to vector<8x1xf32>
    %34 = vector.broadcast %33 : vector<8x1xf32> to vector<8x8xf32>
    %35 = arith.divf %31, %34 : vector<8x8xf32>
    %36 = vector.extract_strided_slice %12 {offsets = [0, 0], sizes = [8, 8], strides = [1, 1]} : vector<8x32xf32> to vector<8x8xf32>
    %cst_16 = arith.constant dense<0.000000e+00> : vector<8x8xf32>
    %37 = tpu.matmul %35, %36, %cst_16 {dimension_numbers = #tpu.dot_dimension_numbers<[1], [0], [0], [1], [0, 0, 1, 1], [], []>} : vector<8x8xf32>, vector<8x8xf32>, vector<8x8xf32> -> vector<8x8xf32>
    %38 = vector.extract_strided_slice %10 {offsets = [0, 8], sizes = [8, 8], strides = [1, 1]} : vector<8x32xf32> to vector<8x8xf32>
    %39 = vector.extract_strided_slice %11 {offsets = [0, 8], sizes = [8, 8], strides = [1, 1]} : vector<8x32xf32> to vector<8x8xf32>
    %40 = tpu.transpose %39, [1, 0] : vector<8x8xf32> -> vector<8x8xf32>
    %cst_17 = arith.constant dense<0.000000e+00> : vector<8x8xf32>
    %41 = tpu.matmul %38, %40, %cst_17 {dimension_numbers = #tpu.dot_dimension_numbers<[1], [0], [0], [1], [0, 0, 1, 1], [], []>} : vector<8x8xf32>, vector<8x8xf32>, vector<8x8xf32> -> vector<8x8xf32>
    %cst_18 = arith.constant 0.353553385 : f32
    %42 = vector.broadcast %cst_18 : f32 to vector<8x8xf32>
    %43 = arith.mulf %41, %42 : vector<8x8xf32>
    %cst_19 = arith.constant 5.000000e-01 : f32
    %44 = vector.broadcast %cst_19 : f32 to vector<1x8xf32>
    %45 = arith.cmpf ogt, %3, %44 : vector<1x8xf32>
    %cst_20 = arith.constant -1.000000e+09 : f32
    %46 = vector.shape_cast %45 : vector<1x8xi1> to vector<1x8xi1>
    %47 = vector.broadcast %46 : vector<1x8xi1> to vector<8x8xi1>
    %48 = vector.broadcast %cst_20 : f32 to vector<8x8xf32>
    %49 = arith.select %47, %48, %43 : vector<8x8xi1>, vector<8x8xf32>
    %cst_21 = arith.constant dense<0xFF800000> : vector<8xf32>
    %50 = vector.multi_reduction <maximumf>, %49, %cst_21 [1] : vector<8x8xf32> to vector<8xf32>
    %cst_22 = arith.constant 0xFF800000 : f32
    %51 = vector.broadcast %cst_22 : f32 to vector<8xf32>
    %52 = arith.maximumf %51, %50 : vector<8xf32>
    %53 = vector.shape_cast %52 : vector<8xf32> to vector<8x1xf32>
    %54 = vector.broadcast %53 : vector<8x1xf32> to vector<8x8xf32>
    %55 = arith.subf %49, %54 : vector<8x8xf32>
    %56 = math.exp %55 : vector<8x8xf32>
    %cst_23 = arith.constant dense<0.000000e+00> : vector<8xf32>
    %57 = vector.multi_reduction <add>, %56, %cst_23 [1] : vector<8x8xf32> to vector<8xf32>
    %58 = vector.shape_cast %57 : vector<8xf32> to vector<8x1xf32>
    %59 = vector.broadcast %58 : vector<8x1xf32> to vector<8x8xf32>
    %60 = arith.divf %56, %59 : vector<8x8xf32>
    %61 = vector.extract_strided_slice %12 {offsets = [0, 8], sizes = [8, 8], strides = [1, 1]} : vector<8x32xf32> to vector<8x8xf32>
    %cst_24 = arith.constant dense<0.000000e+00> : vector<8x8xf32>
    %62 = tpu.matmul %60, %61, %cst_24 {dimension_numbers = #tpu.dot_dimension_numbers<[1], [0], [0], [1], [0, 0, 1, 1], [], []>} : vector<8x8xf32>, vector<8x8xf32>, vector<8x8xf32> -> vector<8x8xf32>
    %63 = vector.extract_strided_slice %10 {offsets = [0, 16], sizes = [8, 8], strides = [1, 1]} : vector<8x32xf32> to vector<8x8xf32>
    %64 = vector.extract_strided_slice %11 {offsets = [0, 16], sizes = [8, 8], strides = [1, 1]} : vector<8x32xf32> to vector<8x8xf32>
    %65 = tpu.transpose %64, [1, 0] : vector<8x8xf32> -> vector<8x8xf32>
    %cst_25 = arith.constant dense<0.000000e+00> : vector<8x8xf32>
    %66 = tpu.matmul %63, %65, %cst_25 {dimension_numbers = #tpu.dot_dimension_numbers<[1], [0], [0], [1], [0, 0, 1, 1], [], []>} : vector<8x8xf32>, vector<8x8xf32>, vector<8x8xf32> -> vector<8x8xf32>
    %cst_26 = arith.constant 0.353553385 : f32
    %67 = vector.broadcast %cst_26 : f32 to vector<8x8xf32>
    %68 = arith.mulf %66, %67 : vector<8x8xf32>
    %cst_27 = arith.constant 5.000000e-01 : f32
    %69 = vector.broadcast %cst_27 : f32 to vector<1x8xf32>
    %70 = arith.cmpf ogt, %3, %69 : vector<1x8xf32>
    %cst_28 = arith.constant -1.000000e+09 : f32
    %71 = vector.shape_cast %70 : vector<1x8xi1> to vector<1x8xi1>
    %72 = vector.broadcast %71 : vector<1x8xi1> to vector<8x8xi1>
    %73 = vector.broadcast %cst_28 : f32 to vector<8x8xf32>
    %74 = arith.select %72, %73, %68 : vector<8x8xi1>, vector<8x8xf32>
    %cst_29 = arith.constant dense<0xFF800000> : vector<8xf32>
    %75 = vector.multi_reduction <maximumf>, %74, %cst_29 [1] : vector<8x8xf32> to vector<8xf32>
    %cst_30 = arith.constant 0xFF800000 : f32
    %76 = vector.broadcast %cst_30 : f32 to vector<8xf32>
    %77 = arith.maximumf %76, %75 : vector<8xf32>
    %78 = vector.shape_cast %77 : vector<8xf32> to vector<8x1xf32>
    %79 = vector.broadcast %78 : vector<8x1xf32> to vector<8x8xf32>
    %80 = arith.subf %74, %79 : vector<8x8xf32>
    %81 = math.exp %80 : vector<8x8xf32>
    %cst_31 = arith.constant dense<0.000000e+00> : vector<8xf32>
    %82 = vector.multi_reduction <add>, %81, %cst_31 [1] : vector<8x8xf32> to vector<8xf32>
    %83 = vector.shape_cast %82 : vector<8xf32> to vector<8x1xf32>
    %84 = vector.broadcast %83 : vector<8x1xf32> to vector<8x8xf32>
    %85 = arith.divf %81, %84 : vector<8x8xf32>
    %86 = vector.extract_strided_slice %12 {offsets = [0, 16], sizes = [8, 8], strides = [1, 1]} : vector<8x32xf32> to vector<8x8xf32>
    %cst_32 = arith.constant dense<0.000000e+00> : vector<8x8xf32>
    %87 = tpu.matmul %85, %86, %cst_32 {dimension_numbers = #tpu.dot_dimension_numbers<[1], [0], [0], [1], [0, 0, 1, 1], [], []>} : vector<8x8xf32>, vector<8x8xf32>, vector<8x8xf32> -> vector<8x8xf32>
    %88 = vector.extract_strided_slice %10 {offsets = [0, 24], sizes = [8, 8], strides = [1, 1]} : vector<8x32xf32> to vector<8x8xf32>
    %89 = vector.extract_strided_slice %11 {offsets = [0, 24], sizes = [8, 8], strides = [1, 1]} : vector<8x32xf32> to vector<8x8xf32>
    %90 = tpu.transpose %89, [1, 0] : vector<8x8xf32> -> vector<8x8xf32>
    %cst_33 = arith.constant dense<0.000000e+00> : vector<8x8xf32>
    %91 = tpu.matmul %88, %90, %cst_33 {dimension_numbers = #tpu.dot_dimension_numbers<[1], [0], [0], [1], [0, 0, 1, 1], [], []>} : vector<8x8xf32>, vector<8x8xf32>, vector<8x8xf32> -> vector<8x8xf32>
    %cst_34 = arith.constant 0.353553385 : f32
    %92 = vector.broadcast %cst_34 : f32 to vector<8x8xf32>
    %93 = arith.mulf %91, %92 : vector<8x8xf32>
    %cst_35 = arith.constant 5.000000e-01 : f32
    %94 = vector.broadcast %cst_35 : f32 to vector<1x8xf32>
    %95 = arith.cmpf ogt, %3, %94 : vector<1x8xf32>
    %cst_36 = arith.constant -1.000000e+09 : f32
    %96 = vector.shape_cast %95 : vector<1x8xi1> to vector<1x8xi1>
    %97 = vector.broadcast %96 : vector<1x8xi1> to vector<8x8xi1>
    %98 = vector.broadcast %cst_36 : f32 to vector<8x8xf32>
    %99 = arith.select %97, %98, %93 : vector<8x8xi1>, vector<8x8xf32>
    %cst_37 = arith.constant dense<0xFF800000> : vector<8xf32>
    %100 = vector.multi_reduction <maximumf>, %99, %cst_37 [1] : vector<8x8xf32> to vector<8xf32>
    %cst_38 = arith.constant 0xFF800000 : f32
    %101 = vector.broadcast %cst_38 : f32 to vector<8xf32>
    %102 = arith.maximumf %101, %100 : vector<8xf32>
    %103 = vector.shape_cast %102 : vector<8xf32> to vector<8x1xf32>
    %104 = vector.broadcast %103 : vector<8x1xf32> to vector<8x8xf32>
    %105 = arith.subf %99, %104 : vector<8x8xf32>
    %106 = math.exp %105 : vector<8x8xf32>
    %cst_39 = arith.constant dense<0.000000e+00> : vector<8xf32>
    %107 = vector.multi_reduction <add>, %106, %cst_39 [1] : vector<8x8xf32> to vector<8xf32>
    %108 = vector.shape_cast %107 : vector<8xf32> to vector<8x1xf32>
    %109 = vector.broadcast %108 : vector<8x1xf32> to vector<8x8xf32>
    %110 = arith.divf %106, %109 : vector<8x8xf32>
    %111 = vector.extract_strided_slice %12 {offsets = [0, 24], sizes = [8, 8], strides = [1, 1]} : vector<8x32xf32> to vector<8x8xf32>
    %cst_40 = arith.constant dense<0.000000e+00> : vector<8x8xf32>
    %112 = tpu.matmul %110, %111, %cst_40 {dimension_numbers = #tpu.dot_dimension_numbers<[1], [0], [0], [1], [0, 0, 1, 1], [], []>} : vector<8x8xf32>, vector<8x8xf32>, vector<8x8xf32> -> vector<8x8xf32>
    %113 = tpu.concatenate %37, %62, %87, %112 in 1 : vector<8x8xf32>, vector<8x8xf32>, vector<8x8xf32>, vector<8x8xf32> -> vector<8x32xf32>
    %114 = arith.truncf %113 : vector<8x32xf32> to vector<8x32xbf16>
    %c0_41 = arith.constant 0 : index
    %c0_42 = arith.constant 0 : index
    %115 = vector.load %arg5[%c0_41, %c0_42] : memref<32x32xbf16, #tpu.memory_space<vmem>>, vector<32x32xbf16>
    %cst_43 = arith.constant dense<0.000000e+00> : vector<8x32xf32>
    %116 = tpu.matmul %114, %115, %cst_43 {dimension_numbers = #tpu.dot_dimension_numbers<[1], [0], [0], [1], [0, 0, 1, 1], [], []>} : vector<8x32xbf16>, vector<32x32xbf16>, vector<8x32xf32> -> vector<8x32xf32>
    %c0_44 = arith.constant 0 : index
    %c0_45 = arith.constant 0 : index
    %117 = vector.load %arg6[%c0_44, %c0_45] : memref<1x32xf32, #tpu.memory_space<vmem>>, vector<1x32xf32>
    %118 = vector.broadcast %117 : vector<1x32xf32> to vector<8x32xf32>
    %119 = arith.addf %116, %118 : vector<8x32xf32>
    %120 = arith.addf %1, %119 : vector<8x32xf32>
    %c0_46 = arith.constant 0 : index
    %c0_47 = arith.constant 0 : index
    %121 = vector.load %arg7[%c0_46, %c0_47] : memref<1x32xf32, #tpu.memory_space<vmem>>, vector<1x32xf32>
    %c0_48 = arith.constant 0 : index
    %c0_49 = arith.constant 0 : index
    %122 = vector.load %arg8[%c0_48, %c0_49] : memref<1x32xf32, #tpu.memory_space<vmem>>, vector<1x32xf32>
    %cst_50 = arith.constant dense<0.000000e+00> : vector<8xf32>
    %123 = vector.multi_reduction <add>, %120, %cst_50 [1] : vector<8x32xf32> to vector<8xf32>
    %124 = vector.shape_cast %123 : vector<8xf32> to vector<8x1xf32>
    %cst_51 = arith.constant 3.200000e+01 : f32
    %125 = vector.broadcast %cst_51 : f32 to vector<8x1xf32>
    %126 = arith.divf %124, %125 : vector<8x1xf32>
    %127 = vector.broadcast %126 : vector<8x1xf32> to vector<8x32xf32>
    %128 = arith.subf %120, %127 : vector<8x32xf32>
    %129 = arith.mulf %128, %128 : vector<8x32xf32>
    %cst_52 = arith.constant dense<0.000000e+00> : vector<8xf32>
    %130 = vector.multi_reduction <add>, %129, %cst_52 [1] : vector<8x32xf32> to vector<8xf32>
    %131 = vector.shape_cast %130 : vector<8xf32> to vector<8x1xf32>
    %cst_53 = arith.constant 3.100000e+01 : f32
    %132 = vector.broadcast %cst_53 : f32 to vector<8x1xf32>
    %133 = arith.divf %131, %132 : vector<8x1xf32>
    %134 = vector.broadcast %126 : vector<8x1xf32> to vector<8x32xf32>
    %135 = arith.subf %120, %134 : vector<8x32xf32>
    %136 = vector.broadcast %121 : vector<1x32xf32> to vector<8x32xf32>
    %137 = arith.mulf %136, %135 : vector<8x32xf32>
    %138 = math.sqrt %133 : vector<8x1xf32>
    %cst_54 = arith.constant 9.99999997E-7 : f32
    %139 = vector.broadcast %cst_54 : f32 to vector<8x1xf32>
    %140 = arith.addf %138, %139 : vector<8x1xf32>
    %141 = vector.broadcast %140 : vector<8x1xf32> to vector<8x32xf32>
    %142 = arith.divf %137, %141 : vector<8x32xf32>
    %143 = vector.broadcast %122 : vector<1x32xf32> to vector<8x32xf32>
    %144 = arith.addf %142, %143 : vector<8x32xf32>
    %145 = arith.truncf %144 : vector<8x32xf32> to vector<8x32xbf16>
    %c0_55 = arith.constant 0 : index
    %c0_56 = arith.constant 0 : index
    %146 = vector.load %arg9[%c0_55, %c0_56] : memref<32x64xbf16, #tpu.memory_space<vmem>>, vector<32x64xbf16>
    %cst_57 = arith.constant dense<0.000000e+00> : vector<8x64xf32>
    %147 = tpu.matmul %145, %146, %cst_57 {dimension_numbers = #tpu.dot_dimension_numbers<[1], [0], [0], [1], [0, 0, 1, 1], [], []>} : vector<8x32xbf16>, vector<32x64xbf16>, vector<8x64xf32> -> vector<8x64xf32>
    %c0_58 = arith.constant 0 : index
    %c0_59 = arith.constant 0 : index
    %148 = vector.load %arg10[%c0_58, %c0_59] : memref<1x64xf32, #tpu.memory_space<vmem>>, vector<1x64xf32>
    %149 = vector.broadcast %148 : vector<1x64xf32> to vector<8x64xf32>
    %150 = arith.addf %147, %149 : vector<8x64xf32>
    %cst_60 = arith.constant 0.000000e+00 : f32
    %151 = vector.broadcast %cst_60 : f32 to vector<8x64xf32>
    %152 = arith.maximumf %150, %151 : vector<8x64xf32>
    %153 = arith.truncf %152 : vector<8x64xf32> to vector<8x64xbf16>
    %c0_61 = arith.constant 0 : index
    %c0_62 = arith.constant 0 : index
    %154 = vector.load %arg11[%c0_61, %c0_62] : memref<64x32xbf16, #tpu.memory_space<vmem>>, vector<64x32xbf16>
    %cst_63 = arith.constant dense<0.000000e+00> : vector<8x32xf32>
    %155 = tpu.matmul %153, %154, %cst_63 {dimension_numbers = #tpu.dot_dimension_numbers<[1], [0], [0], [1], [0, 0, 1, 1], [], []>} : vector<8x64xbf16>, vector<64x32xbf16>, vector<8x32xf32> -> vector<8x32xf32>
    %c0_64 = arith.constant 0 : index
    %c0_65 = arith.constant 0 : index
    %156 = vector.load %arg12[%c0_64, %c0_65] : memref<1x32xf32, #tpu.memory_space<vmem>>, vector<1x32xf32>
    %157 = vector.broadcast %156 : vector<1x32xf32> to vector<8x32xf32>
    %158 = arith.addf %155, %157 : vector<8x32xf32>
    %159 = arith.addf %144, %158 : vector<8x32xf32>
    %c0_66 = arith.constant 0 : index
    %c0_67 = arith.constant 0 : index
    %160 = vector.load %arg13[%c0_66, %c0_67] : memref<1x32xf32, #tpu.memory_space<vmem>>, vector<1x32xf32>
    %c0_68 = arith.constant 0 : index
    %c0_69 = arith.constant 0 : index
    %161 = vector.load %arg14[%c0_68, %c0_69] : memref<1x32xf32, #tpu.memory_space<vmem>>, vector<1x32xf32>
    %cst_70 = arith.constant dense<0.000000e+00> : vector<8xf32>
    %162 = vector.multi_reduction <add>, %159, %cst_70 [1] : vector<8x32xf32> to vector<8xf32>
    %163 = vector.shape_cast %162 : vector<8xf32> to vector<8x1xf32>
    %cst_71 = arith.constant 3.200000e+01 : f32
    %164 = vector.broadcast %cst_71 : f32 to vector<8x1xf32>
    %165 = arith.divf %163, %164 : vector<8x1xf32>
    %166 = vector.broadcast %165 : vector<8x1xf32> to vector<8x32xf32>
    %167 = arith.subf %159, %166 : vector<8x32xf32>
    %168 = arith.mulf %167, %167 : vector<8x32xf32>
    %cst_72 = arith.constant dense<0.000000e+00> : vector<8xf32>
    %169 = vector.multi_reduction <add>, %168, %cst_72 [1] : vector<8x32xf32> to vector<8xf32>
    %170 = vector.shape_cast %169 : vector<8xf32> to vector<8x1xf32>
    %cst_73 = arith.constant 3.100000e+01 : f32
    %171 = vector.broadcast %cst_73 : f32 to vector<8x1xf32>
    %172 = arith.divf %170, %171 : vector<8x1xf32>
    %173 = vector.broadcast %165 : vector<8x1xf32> to vector<8x32xf32>
    %174 = arith.subf %159, %173 : vector<8x32xf32>
    %175 = vector.broadcast %160 : vector<1x32xf32> to vector<8x32xf32>
    %176 = arith.mulf %175, %174 : vector<8x32xf32>
    %177 = math.sqrt %172 : vector<8x1xf32>
    %cst_74 = arith.constant 9.99999997E-7 : f32
    %178 = vector.broadcast %cst_74 : f32 to vector<8x1xf32>
    %179 = arith.addf %177, %178 : vector<8x1xf32>
    %180 = vector.broadcast %179 : vector<8x1xf32> to vector<8x32xf32>
    %181 = arith.divf %176, %180 : vector<8x32xf32>
    %182 = vector.broadcast %161 : vector<1x32xf32> to vector<8x32xf32>
    %183 = arith.addf %181, %182 : vector<8x32xf32>
    %c0_75 = arith.constant 0 : index
    %c0_76 = arith.constant 0 : index
    %c0_77 = arith.constant 0 : index
    %184 = vector.load %arg15[%c0_75, %c0_76, %c0_77] : memref<1x8x32xf32, #tpu.memory_space<vmem>>, vector<1x8x32xf32>
    %185 = vector.shape_cast %184 : vector<1x8x32xf32> to vector<8x32xf32>
    %186 = vector.shape_cast %183 : vector<8x32xf32> to vector<1x8x32xf32>
    tpu.vector_store %arg15[%c0_75, %c0_76, %c0_77], %186 {strides = array<i32>} : memref<1x8x32xf32, #tpu.memory_space<vmem>>, vector<1x8x32xf32>,
    return
  }
  func.func @transform_0(%arg0: i32) -> (i32, i32, i32) {
    %c0_i32 = arith.constant 0 : i32
    %c0_i32_0 = arith.constant 0 : i32
    %c0_i32_1 = arith.constant 0 : i32
    return %arg0, %c0_i32, %c0_i32_0 : i32, i32, i32
  }
  func.func @transform_1(%arg0: i32) -> (i32, i32, i32) {
    %c0_i32 = arith.constant 0 : i32
    %c0_i32_0 = arith.constant 0 : i32
    %c0_i32_1 = arith.constant 0 : i32
    return %arg0, %c0_i32, %c0_i32_0 : i32, i32, i32
  }
  func.func @transform_2(%arg0: i32) -> (i32, i32) {
    %c0_i32 = arith.constant 0 : i32
    %c0_i32_0 = arith.constant 0 : i32
    %c0_i32_1 = arith.constant 0 : i32
    return %c0_i32, %c0_i32_0 : i32, i32
  }
  func.func @transform_3(%arg0: i32) -> (i32, i32) {
    %c0_i32 = arith.constant 0 : i32
    %c0_i32_0 = arith.constant 0 : i32
    %c0_i32_1 = arith.constant 0 : i32
    return %c0_i32, %c0_i32_0 : i32, i32
  }
  func.func @transform_4(%arg0: i32) -> (i32, i32) {
    %c0_i32 = arith.constant 0 : i32
    %c0_i32_0 = arith.constant 0 : i32
    %c0_i32_1 = arith.constant 0 : i32
    return %c0_i32, %c0_i32_0 : i32, i32
  }
  func.func @transform_5(%arg0: i32) -> (i32, i32) {
    %c0_i32 = arith.constant 0 : i32
    %c0_i32_0 = arith.constant 0 : i32
    %c0_i32_1 = arith.constant 0 : i32
    return %c0_i32, %c0_i32_0 : i32, i32
  }
  func.func @transform_6(%arg0: i32) -> (i32, i32) {
    %c0_i32 = arith.constant 0 : i32
    %c0_i32_0 = arith.constant 0 : i32
    %c0_i32_1 = arith.constant 0 : i32
    return %c0_i32, %c0_i32_0 : i32, i32
  }
  func.func @transform_7(%arg0: i32) -> (i32, i32) {
    %c0_i32 = arith.constant 0 : i32
    %c0_i32_0 = arith.constant 0 : i32
    %c0_i32_1 = arith.constant 0 : i32
    return %c0_i32, %c0_i32_0 : i32, i32
  }
  func.func @transform_8(%arg0: i32) -> (i32, i32) {
    %c0_i32 = arith.constant 0 : i32
    %c0_i32_0 = arith.constant 0 : i32
    %c0_i32_1 = arith.constant 0 : i32
    return %c0_i32, %c0_i32_0 : i32, i32
  }
  func.func @transform_9(%arg0: i32) -> (i32, i32) {
    %c0_i32 = arith.constant 0 : i32
    %c0_i32_0 = arith.constant 0 : i32
    %c0_i32_1 = arith.constant 0 : i32
    return %c0_i32, %c0_i32_0 : i32, i32
  }
  func.func @transform_10(%arg0: i32) -> (i32, i32) {
    %c0_i32 = arith.constant 0 : i32
    %c0_i32_0 = arith.constant 0 : i32
    %c0_i32_1 = arith.constant 0 : i32
    return %c0_i32, %c0_i32_0 : i32, i32
  }
  func.func @transform_11(%arg0: i32) -> (i32, i32) {
    %c0_i32 = arith.constant 0 : i32
    %c0_i32_0 = arith.constant 0 : i32
    %c0_i32_1 = arith.constant 0 : i32
    return %c0_i32, %c0_i32_0 : i32, i32
  }
  func.func @transform_12(%arg0: i32) -> (i32, i32) {
    %c0_i32 = arith.constant 0 : i32
    %c0_i32_0 = arith.constant 0 : i32
    %c0_i32_1 = arith.constant 0 : i32
    return %c0_i32, %c0_i32_0 : i32, i32
  }
  func.func @transform_13(%arg0: i32) -> (i32, i32) {
    %c0_i32 = arith.constant 0 : i32
    %c0_i32_0 = arith.constant 0 : i32
    %c0_i32_1 = arith.constant 0 : i32
    return %c0_i32, %c0_i32_0 : i32, i32
  }
  func.func @transform_14(%arg0: i32) -> (i32, i32, i32) {
    %c0_i32 = arith.constant 0 : i32
    %c0_i32_0 = arith.constant 0 : i32
    %c0_i32_1 = arith.constant 0 : i32
    return %arg0, %c0_i32, %c0_i32_0 : i32, i32, i32
  }
}

module attributes {stable_mosaic.version = 11 : i64} {
  func.func @_linear_kernel(%arg0: memref<32x64xf32, #tpu.memory_space<vmem>>, %arg1: memref<64x32xbf16, #tpu.memory_space<vmem>>, %arg2: memref<1x32xf32, #tpu.memory_space<vmem>>, %arg3: memref<32x32xf32, #tpu.memory_space<vmem>>) attributes {dimension_semantics = [], scalar_prefetch = 0 : i64, scratch_operands = 0 : i64, tpu.core_type = #tpu.core_type<tc>} {
    %c0 = arith.constant 0 : index
    %c0_0 = arith.constant 0 : index
    %0 = vector.load %arg0[%c0, %c0_0] : memref<32x64xf32, #tpu.memory_space<vmem>>, vector<32x64xf32>
    %1 = arith.truncf %0 : vector<32x64xf32> to vector<32x64xbf16>
    %c0_1 = arith.constant 0 : index
    %c0_2 = arith.constant 0 : index
    %2 = vector.load %arg1[%c0_1, %c0_2] : memref<64x32xbf16, #tpu.memory_space<vmem>>, vector<64x32xbf16>
    %cst = arith.constant dense<0.000000e+00> : vector<32x32xf32>
    %3 = tpu.matmul %1, %2, %cst {dimension_numbers = #tpu.dot_dimension_numbers<[1], [0], [0], [1], [0, 0, 1, 1], [], []>} : vector<32x64xbf16>, vector<64x32xbf16>, vector<32x32xf32> -> vector<32x32xf32>
    %c0_3 = arith.constant 0 : index
    %c0_4 = arith.constant 0 : index
    %4 = vector.load %arg2[%c0_3, %c0_4] : memref<1x32xf32, #tpu.memory_space<vmem>>, vector<1x32xf32>
    %5 = vector.broadcast %4 : vector<1x32xf32> to vector<32x32xf32>
    %6 = arith.addf %3, %5 : vector<32x32xf32>
    %c0_5 = arith.constant 0 : index
    %c0_6 = arith.constant 0 : index
    %7 = vector.load %arg3[%c0_5, %c0_6] : memref<32x32xf32, #tpu.memory_space<vmem>>, vector<32x32xf32>
    tpu.vector_store %arg3[%c0_5, %c0_6], %6 {strides = array<i32>} : memref<32x32xf32, #tpu.memory_space<vmem>>, vector<32x32xf32>,
    return
  }
}

module attributes {stable_mosaic.version = 11 : i64} {
  func.func @_sga_block_kernel(%arg0: i32, %arg1: memref<1x16x32xf32, #tpu.memory_space<vmem>>, %arg2: memref<1x8x32xf32, #tpu.memory_space<vmem>>, %arg3: memref<1x1x16xf32, #tpu.memory_space<vmem>>, %arg4: memref<1x1x8xf32, #tpu.memory_space<vmem>>, %arg5: memref<32x96xbf16, #tpu.memory_space<vmem>>, %arg6: memref<1x96xf32, #tpu.memory_space<vmem>>, %arg7: memref<32x32xbf16, #tpu.memory_space<vmem>>, %arg8: memref<1x32xf32, #tpu.memory_space<vmem>>, %arg9: memref<1x32xf32, #tpu.memory_space<vmem>>, %arg10: memref<1x32xf32, #tpu.memory_space<vmem>>, %arg11: memref<32x32xbf16, #tpu.memory_space<vmem>>, %arg12: memref<1x32xf32, #tpu.memory_space<vmem>>, %arg13: memref<32x64xbf16, #tpu.memory_space<vmem>>, %arg14: memref<1x64xf32, #tpu.memory_space<vmem>>, %arg15: memref<32x32xbf16, #tpu.memory_space<vmem>>, %arg16: memref<1x32xf32, #tpu.memory_space<vmem>>, %arg17: memref<1x32xf32, #tpu.memory_space<vmem>>, %arg18: memref<1x32xf32, #tpu.memory_space<vmem>>, %arg19: memref<32x64xbf16, #tpu.memory_space<vmem>>, %arg20: memref<1x64xf32, #tpu.memory_space<vmem>>, %arg21: memref<64x32xbf16, #tpu.memory_space<vmem>>, %arg22: memref<1x32xf32, #tpu.memory_space<vmem>>, %arg23: memref<1x32xf32, #tpu.memory_space<vmem>>, %arg24: memref<1x32xf32, #tpu.memory_space<vmem>>, %arg25: memref<1x16x32xf32, #tpu.memory_space<vmem>>) attributes {dimension_semantics = [#tpu.dimension_semantics<parallel>], iteration_bounds = array<i64: 2>, scalar_prefetch = 0 : i64, scratch_operands = 0 : i64, tpu.core_type = #tpu.core_type<tc>, window_params = [{transform_indices = @transform_0, window_bounds = array<i64: 1, 16, 32>}, {transform_indices = @transform_1, window_bounds = array<i64: 1, 8, 32>}, {transform_indices = @transform_2, window_bounds = array<i64: 1, 1, 16>}, {transform_indices = @transform_3, window_bounds = array<i64: 1, 1, 8>}, {pipeline_mode = #tpu.pipeline_mode<synchronous>, transform_indices = @transform_4, window_bounds = array<i64: 32, 96>}, {pipeline_mode = #tpu.pipeline_mode<synchronous>, transform_indices = @transform_5, window_bounds = array<i64: 1, 96>}, {pipeline_mode = #tpu.pipeline_mode<synchronous>, transform_indices = @transform_6, window_bounds = array<i64: 32, 32>}, {pipeline_mode = #tpu.pipeline_mode<synchronous>, transform_indices = @transform_7, window_bounds = array<i64: 1, 32>}, {pipeline_mode = #tpu.pipeline_mode<synchronous>, transform_indices = @transform_8, window_bounds = array<i64: 1, 32>}, {pipeline_mode = #tpu.pipeline_mode<synchronous>, transform_indices = @transform_9, window_bounds = array<i64: 1, 32>}, {pipeline_mode = #tpu.pipeline_mode<synchronous>, transform_indices = @transform_10, window_bounds = array<i64: 32, 32>}, {pipeline_mode = #tpu.pipeline_mode<synchronous>, transform_indices = @transform_11, window_bounds = array<i64: 1, 32>}, {pipeline_mode = #tpu.pipeline_mode<synchronous>, transform_indices = @transform_12, window_bounds = array<i64: 32, 64>}, {pipeline_mode = #tpu.pipeline_mode<synchronous>, transform_indices = @transform_13, window_bounds = array<i64: 1, 64>}, {pipeline_mode = #tpu.pipeline_mode<synchronous>, transform_indices = @transform_14, window_bounds = array<i64: 32, 32>}, {pipeline_mode = #tpu.pipeline_mode<synchronous>, transform_indices = @transform_15, window_bounds = array<i64: 1, 32>}, {pipeline_mode = #tpu.pipeline_mode<synchronous>, transform_indices = @transform_16, window_bounds = array<i64: 1, 32>}, {pipeline_mode = #tpu.pipeline_mode<synchronous>, transform_indices = @transform_17, window_bounds = array<i64: 1, 32>}, {pipeline_mode = #tpu.pipeline_mode<synchronous>, transform_indices = @transform_18, window_bounds = array<i64: 32, 64>}, {pipeline_mode = #tpu.pipeline_mode<synchronous>, transform_indices = @transform_19, window_bounds = array<i64: 1, 64>}, {pipeline_mode = #tpu.pipeline_mode<synchronous>, transform_indices = @transform_20, window_bounds = array<i64: 64, 32>}, {pipeline_mode = #tpu.pipeline_mode<synchronous>, transform_indices = @transform_21, window_bounds = array<i64: 1, 32>}, {pipeline_mode = #tpu.pipeline_mode<synchronous>, transform_indices = @transform_22, window_bounds = array<i64: 1, 32>}, {pipeline_mode = #tpu.pipeline_mode<synchronous>, transform_indices = @transform_23, window_bounds = array<i64: 1, 32>}, {transform_indices = @transform_24, window_bounds = array<i64: 1, 16, 32>}]} {
    %c0 = arith.constant 0 : index
    %c0_0 = arith.constant 0 : index
    %c0_1 = arith.constant 0 : index
    %0 = vector.load %arg1[%c0, %c0_0, %c0_1] : memref<1x16x32xf32, #tpu.memory_space<vmem>>, vector<1x16x32xf32>
    %1 = vector.shape_cast %0 : vector<1x16x32xf32> to vector<16x32xf32>
    %c0_2 = arith.constant 0 : index
    %c0_3 = arith.constant 0 : index
    %c0_4 = arith.constant 0 : index
    %2 = vector.load %arg2[%c0_2, %c0_3, %c0_4] : memref<1x8x32xf32, #tpu.memory_space<vmem>>, vector<1x8x32xf32>
    %3 = vector.shape_cast %2 : vector<1x8x32xf32> to vector<8x32xf32>
    %c0_5 = arith.constant 0 : index
    %c0_6 = arith.constant 0 : index
    %c0_7 = arith.constant 0 : index
    %4 = vector.load %arg3[%c0_5, %c0_6, %c0_7] : memref<1x1x16xf32, #tpu.memory_space<vmem>>, vector<1x1x16xf32>
    %5 = vector.shape_cast %4 : vector<1x1x16xf32> to vector<1x16xf32>
    %c0_8 = arith.constant 0 : index
    %c0_9 = arith.constant 0 : index
    %c0_10 = arith.constant 0 : index
    %6 = vector.load %arg4[%c0_8, %c0_9, %c0_10] : memref<1x1x8xf32, #tpu.memory_space<vmem>>, vector<1x1x8xf32>
    %7 = vector.shape_cast %6 : vector<1x1x8xf32> to vector<1x8xf32>
    %8 = arith.truncf %1 : vector<16x32xf32> to vector<16x32xbf16>
    %c0_11 = arith.constant 0 : index
    %c0_12 = arith.constant 0 : index
    %9 = vector.load %arg5[%c0_11, %c0_12] : memref<32x96xbf16, #tpu.memory_space<vmem>>, vector<32x96xbf16>
    %cst = arith.constant dense<0.000000e+00> : vector<16x96xf32>
    %10 = tpu.matmul %8, %9, %cst {dimension_numbers = #tpu.dot_dimension_numbers<[1], [0], [0], [1], [0, 0, 1, 1], [], []>} : vector<16x32xbf16>, vector<32x96xbf16>, vector<16x96xf32> -> vector<16x96xf32>
    %c0_13 = arith.constant 0 : index
    %c0_14 = arith.constant 0 : index
    %11 = vector.load %arg6[%c0_13, %c0_14] : memref<1x96xf32, #tpu.memory_space<vmem>>, vector<1x96xf32>
    %12 = vector.broadcast %11 : vector<1x96xf32> to vector<16x96xf32>
    %13 = arith.addf %10, %12 : vector<16x96xf32>
    %14 = vector.extract_strided_slice %13 {offsets = [0, 0], sizes = [16, 32], strides = [1, 1]} : vector<16x96xf32> to vector<16x32xf32>
    %15 = vector.extract_strided_slice %13 {offsets = [0, 32], sizes = [16, 32], strides = [1, 1]} : vector<16x96xf32> to vector<16x32xf32>
    %16 = vector.extract_strided_slice %13 {offsets = [0, 64], sizes = [16, 32], strides = [1, 1]} : vector<16x96xf32> to vector<16x32xf32>
    %17 = vector.extract_strided_slice %14 {offsets = [0, 0], sizes = [16, 8], strides = [1, 1]} : vector<16x32xf32> to vector<16x8xf32>
    %18 = vector.extract_strided_slice %15 {offsets = [0, 0], sizes = [16, 8], strides = [1, 1]} : vector<16x32xf32> to vector<16x8xf32>
    %19 = tpu.transpose %18, [1, 0] : vector<16x8xf32> -> vector<8x16xf32>
    %cst_15 = arith.constant dense<0.000000e+00> : vector<16x16xf32>
    %20 = tpu.matmul %17, %19, %cst_15 {dimension_numbers = #tpu.dot_dimension_numbers<[1], [0], [0], [1], [0, 0, 1, 1], [], []>} : vector<16x8xf32>, vector<8x16xf32>, vector<16x16xf32> -> vector<16x16xf32>
    %cst_16 = arith.constant 0.353553385 : f32
    %21 = vector.broadcast %cst_16 : f32 to vector<16x16xf32>
    %22 = arith.mulf %20, %21 : vector<16x16xf32>
    %cst_17 = arith.constant 5.000000e-01 : f32
    %23 = vector.broadcast %cst_17 : f32 to vector<1x16xf32>
    %24 = arith.cmpf ogt, %5, %23 : vector<1x16xf32>
    %cst_18 = arith.constant -1.000000e+09 : f32
    %25 = vector.shape_cast %24 : vector<1x16xi1> to vector<1x16xi1>
    %26 = vector.broadcast %25 : vector<1x16xi1> to vector<16x16xi1>
    %27 = vector.broadcast %cst_18 : f32 to vector<16x16xf32>
    %28 = arith.select %26, %27, %22 : vector<16x16xi1>, vector<16x16xf32>
    %cst_19 = arith.constant dense<0xFF800000> : vector<16xf32>
    %29 = vector.multi_reduction <maximumf>, %28, %cst_19 [1] : vector<16x16xf32> to vector<16xf32>
    %cst_20 = arith.constant 0xFF800000 : f32
    %30 = vector.broadcast %cst_20 : f32 to vector<16xf32>
    %31 = arith.maximumf %30, %29 : vector<16xf32>
    %32 = vector.shape_cast %31 : vector<16xf32> to vector<16x1xf32>
    %33 = vector.broadcast %32 : vector<16x1xf32> to vector<16x16xf32>
    %34 = arith.subf %28, %33 : vector<16x16xf32>
    %35 = math.exp %34 : vector<16x16xf32>
    %cst_21 = arith.constant dense<0.000000e+00> : vector<16xf32>
    %36 = vector.multi_reduction <add>, %35, %cst_21 [1] : vector<16x16xf32> to vector<16xf32>
    %37 = vector.shape_cast %36 : vector<16xf32> to vector<16x1xf32>
    %38 = vector.broadcast %37 : vector<16x1xf32> to vector<16x16xf32>
    %39 = arith.divf %35, %38 : vector<16x16xf32>
    %40 = vector.extract_strided_slice %16 {offsets = [0, 0], sizes = [16, 8], strides = [1, 1]} : vector<16x32xf32> to vector<16x8xf32>
    %cst_22 = arith.constant dense<0.000000e+00> : vector<16x8xf32>
    %41 = tpu.matmul %39, %40, %cst_22 {dimension_numbers = #tpu.dot_dimension_numbers<[1], [0], [0], [1], [0, 0, 1, 1], [], []>} : vector<16x16xf32>, vector<16x8xf32>, vector<16x8xf32> -> vector<16x8xf32>
    %42 = vector.extract_strided_slice %14 {offsets = [0, 8], sizes = [16, 8], strides = [1, 1]} : vector<16x32xf32> to vector<16x8xf32>
    %43 = vector.extract_strided_slice %15 {offsets = [0, 8], sizes = [16, 8], strides = [1, 1]} : vector<16x32xf32> to vector<16x8xf32>
    %44 = tpu.transpose %43, [1, 0] : vector<16x8xf32> -> vector<8x16xf32>
    %cst_23 = arith.constant dense<0.000000e+00> : vector<16x16xf32>
    %45 = tpu.matmul %42, %44, %cst_23 {dimension_numbers = #tpu.dot_dimension_numbers<[1], [0], [0], [1], [0, 0, 1, 1], [], []>} : vector<16x8xf32>, vector<8x16xf32>, vector<16x16xf32> -> vector<16x16xf32>
    %cst_24 = arith.constant 0.353553385 : f32
    %46 = vector.broadcast %cst_24 : f32 to vector<16x16xf32>
    %47 = arith.mulf %45, %46 : vector<16x16xf32>
    %cst_25 = arith.constant 5.000000e-01 : f32
    %48 = vector.broadcast %cst_25 : f32 to vector<1x16xf32>
    %49 = arith.cmpf ogt, %5, %48 : vector<1x16xf32>
    %cst_26 = arith.constant -1.000000e+09 : f32
    %50 = vector.shape_cast %49 : vector<1x16xi1> to vector<1x16xi1>
    %51 = vector.broadcast %50 : vector<1x16xi1> to vector<16x16xi1>
    %52 = vector.broadcast %cst_26 : f32 to vector<16x16xf32>
    %53 = arith.select %51, %52, %47 : vector<16x16xi1>, vector<16x16xf32>
    %cst_27 = arith.constant dense<0xFF800000> : vector<16xf32>
    %54 = vector.multi_reduction <maximumf>, %53, %cst_27 [1] : vector<16x16xf32> to vector<16xf32>
    %cst_28 = arith.constant 0xFF800000 : f32
    %55 = vector.broadcast %cst_28 : f32 to vector<16xf32>
    %56 = arith.maximumf %55, %54 : vector<16xf32>
    %57 = vector.shape_cast %56 : vector<16xf32> to vector<16x1xf32>
    %58 = vector.broadcast %57 : vector<16x1xf32> to vector<16x16xf32>
    %59 = arith.subf %53, %58 : vector<16x16xf32>
    %60 = math.exp %59 : vector<16x16xf32>
    %cst_29 = arith.constant dense<0.000000e+00> : vector<16xf32>
    %61 = vector.multi_reduction <add>, %60, %cst_29 [1] : vector<16x16xf32> to vector<16xf32>
    %62 = vector.shape_cast %61 : vector<16xf32> to vector<16x1xf32>
    %63 = vector.broadcast %62 : vector<16x1xf32> to vector<16x16xf32>
    %64 = arith.divf %60, %63 : vector<16x16xf32>
    %65 = vector.extract_strided_slice %16 {offsets = [0, 8], sizes = [16, 8], strides = [1, 1]} : vector<16x32xf32> to vector<16x8xf32>
    %cst_30 = arith.constant dense<0.000000e+00> : vector<16x8xf32>
    %66 = tpu.matmul %64, %65, %cst_30 {dimension_numbers = #tpu.dot_dimension_numbers<[1], [0], [0], [1], [0, 0, 1, 1], [], []>} : vector<16x16xf32>, vector<16x8xf32>, vector<16x8xf32> -> vector<16x8xf32>
    %67 = vector.extract_strided_slice %14 {offsets = [0, 16], sizes = [16, 8], strides = [1, 1]} : vector<16x32xf32> to vector<16x8xf32>
    %68 = vector.extract_strided_slice %15 {offsets = [0, 16], sizes = [16, 8], strides = [1, 1]} : vector<16x32xf32> to vector<16x8xf32>
    %69 = tpu.transpose %68, [1, 0] : vector<16x8xf32> -> vector<8x16xf32>
    %cst_31 = arith.constant dense<0.000000e+00> : vector<16x16xf32>
    %70 = tpu.matmul %67, %69, %cst_31 {dimension_numbers = #tpu.dot_dimension_numbers<[1], [0], [0], [1], [0, 0, 1, 1], [], []>} : vector<16x8xf32>, vector<8x16xf32>, vector<16x16xf32> -> vector<16x16xf32>
    %cst_32 = arith.constant 0.353553385 : f32
    %71 = vector.broadcast %cst_32 : f32 to vector<16x16xf32>
    %72 = arith.mulf %70, %71 : vector<16x16xf32>
    %cst_33 = arith.constant 5.000000e-01 : f32
    %73 = vector.broadcast %cst_33 : f32 to vector<1x16xf32>
    %74 = arith.cmpf ogt, %5, %73 : vector<1x16xf32>
    %cst_34 = arith.constant -1.000000e+09 : f32
    %75 = vector.shape_cast %74 : vector<1x16xi1> to vector<1x16xi1>
    %76 = vector.broadcast %75 : vector<1x16xi1> to vector<16x16xi1>
    %77 = vector.broadcast %cst_34 : f32 to vector<16x16xf32>
    %78 = arith.select %76, %77, %72 : vector<16x16xi1>, vector<16x16xf32>
    %cst_35 = arith.constant dense<0xFF800000> : vector<16xf32>
    %79 = vector.multi_reduction <maximumf>, %78, %cst_35 [1] : vector<16x16xf32> to vector<16xf32>
    %cst_36 = arith.constant 0xFF800000 : f32
    %80 = vector.broadcast %cst_36 : f32 to vector<16xf32>
    %81 = arith.maximumf %80, %79 : vector<16xf32>
    %82 = vector.shape_cast %81 : vector<16xf32> to vector<16x1xf32>
    %83 = vector.broadcast %82 : vector<16x1xf32> to vector<16x16xf32>
    %84 = arith.subf %78, %83 : vector<16x16xf32>
    %85 = math.exp %84 : vector<16x16xf32>
    %cst_37 = arith.constant dense<0.000000e+00> : vector<16xf32>
    %86 = vector.multi_reduction <add>, %85, %cst_37 [1] : vector<16x16xf32> to vector<16xf32>
    %87 = vector.shape_cast %86 : vector<16xf32> to vector<16x1xf32>
    %88 = vector.broadcast %87 : vector<16x1xf32> to vector<16x16xf32>
    %89 = arith.divf %85, %88 : vector<16x16xf32>
    %90 = vector.extract_strided_slice %16 {offsets = [0, 16], sizes = [16, 8], strides = [1, 1]} : vector<16x32xf32> to vector<16x8xf32>
    %cst_38 = arith.constant dense<0.000000e+00> : vector<16x8xf32>
    %91 = tpu.matmul %89, %90, %cst_38 {dimension_numbers = #tpu.dot_dimension_numbers<[1], [0], [0], [1], [0, 0, 1, 1], [], []>} : vector<16x16xf32>, vector<16x8xf32>, vector<16x8xf32> -> vector<16x8xf32>
    %92 = vector.extract_strided_slice %14 {offsets = [0, 24], sizes = [16, 8], strides = [1, 1]} : vector<16x32xf32> to vector<16x8xf32>
    %93 = vector.extract_strided_slice %15 {offsets = [0, 24], sizes = [16, 8], strides = [1, 1]} : vector<16x32xf32> to vector<16x8xf32>
    %94 = tpu.transpose %93, [1, 0] : vector<16x8xf32> -> vector<8x16xf32>
    %cst_39 = arith.constant dense<0.000000e+00> : vector<16x16xf32>
    %95 = tpu.matmul %92, %94, %cst_39 {dimension_numbers = #tpu.dot_dimension_numbers<[1], [0], [0], [1], [0, 0, 1, 1], [], []>} : vector<16x8xf32>, vector<8x16xf32>, vector<16x16xf32> -> vector<16x16xf32>
    %cst_40 = arith.constant 0.353553385 : f32
    %96 = vector.broadcast %cst_40 : f32 to vector<16x16xf32>
    %97 = arith.mulf %95, %96 : vector<16x16xf32>
    %cst_41 = arith.constant 5.000000e-01 : f32
    %98 = vector.broadcast %cst_41 : f32 to vector<1x16xf32>
    %99 = arith.cmpf ogt, %5, %98 : vector<1x16xf32>
    %cst_42 = arith.constant -1.000000e+09 : f32
    %100 = vector.shape_cast %99 : vector<1x16xi1> to vector<1x16xi1>
    %101 = vector.broadcast %100 : vector<1x16xi1> to vector<16x16xi1>
    %102 = vector.broadcast %cst_42 : f32 to vector<16x16xf32>
    %103 = arith.select %101, %102, %97 : vector<16x16xi1>, vector<16x16xf32>
    %cst_43 = arith.constant dense<0xFF800000> : vector<16xf32>
    %104 = vector.multi_reduction <maximumf>, %103, %cst_43 [1] : vector<16x16xf32> to vector<16xf32>
    %cst_44 = arith.constant 0xFF800000 : f32
    %105 = vector.broadcast %cst_44 : f32 to vector<16xf32>
    %106 = arith.maximumf %105, %104 : vector<16xf32>
    %107 = vector.shape_cast %106 : vector<16xf32> to vector<16x1xf32>
    %108 = vector.broadcast %107 : vector<16x1xf32> to vector<16x16xf32>
    %109 = arith.subf %103, %108 : vector<16x16xf32>
    %110 = math.exp %109 : vector<16x16xf32>
    %cst_45 = arith.constant dense<0.000000e+00> : vector<16xf32>
    %111 = vector.multi_reduction <add>, %110, %cst_45 [1] : vector<16x16xf32> to vector<16xf32>
    %112 = vector.shape_cast %111 : vector<16xf32> to vector<16x1xf32>
    %113 = vector.broadcast %112 : vector<16x1xf32> to vector<16x16xf32>
    %114 = arith.divf %110, %113 : vector<16x16xf32>
    %115 = vector.extract_strided_slice %16 {offsets = [0, 24], sizes = [16, 8], strides = [1, 1]} : vector<16x32xf32> to vector<16x8xf32>
    %cst_46 = arith.constant dense<0.000000e+00> : vector<16x8xf32>
    %116 = tpu.matmul %114, %115, %cst_46 {dimension_numbers = #tpu.dot_dimension_numbers<[1], [0], [0], [1], [0, 0, 1, 1], [], []>} : vector<16x16xf32>, vector<16x8xf32>, vector<16x8xf32> -> vector<16x8xf32>
    %117 = tpu.concatenate %41, %66, %91, %116 in 1 : vector<16x8xf32>, vector<16x8xf32>, vector<16x8xf32>, vector<16x8xf32> -> vector<16x32xf32>
    %118 = arith.truncf %117 : vector<16x32xf32> to vector<16x32xbf16>
    %c0_47 = arith.constant 0 : index
    %c0_48 = arith.constant 0 : index
    %119 = vector.load %arg7[%c0_47, %c0_48] : memref<32x32xbf16, #tpu.memory_space<vmem>>, vector<32x32xbf16>
    %cst_49 = arith.constant dense<0.000000e+00> : vector<16x32xf32>
    %120 = tpu.matmul %118, %119, %cst_49 {dimension_numbers = #tpu.dot_dimension_numbers<[1], [0], [0], [1], [0, 0, 1, 1], [], []>} : vector<16x32xbf16>, vector<32x32xbf16>, vector<16x32xf32> -> vector<16x32xf32>
    %c0_50 = arith.constant 0 : index
    %c0_51 = arith.constant 0 : index
    %121 = vector.load %arg8[%c0_50, %c0_51] : memref<1x32xf32, #tpu.memory_space<vmem>>, vector<1x32xf32>
    %122 = vector.broadcast %121 : vector<1x32xf32> to vector<16x32xf32>
    %123 = arith.addf %120, %122 : vector<16x32xf32>
    %124 = arith.addf %1, %123 : vector<16x32xf32>
    %c0_52 = arith.constant 0 : index
    %c0_53 = arith.constant 0 : index
    %125 = vector.load %arg9[%c0_52, %c0_53] : memref<1x32xf32, #tpu.memory_space<vmem>>, vector<1x32xf32>
    %c0_54 = arith.constant 0 : index
    %c0_55 = arith.constant 0 : index
    %126 = vector.load %arg10[%c0_54, %c0_55] : memref<1x32xf32, #tpu.memory_space<vmem>>, vector<1x32xf32>
    %cst_56 = arith.constant dense<0.000000e+00> : vector<16xf32>
    %127 = vector.multi_reduction <add>, %124, %cst_56 [1] : vector<16x32xf32> to vector<16xf32>
    %128 = vector.shape_cast %127 : vector<16xf32> to vector<16x1xf32>
    %cst_57 = arith.constant 3.200000e+01 : f32
    %129 = vector.broadcast %cst_57 : f32 to vector<16x1xf32>
    %130 = arith.divf %128, %129 : vector<16x1xf32>
    %131 = vector.broadcast %130 : vector<16x1xf32> to vector<16x32xf32>
    %132 = arith.subf %124, %131 : vector<16x32xf32>
    %133 = arith.mulf %132, %132 : vector<16x32xf32>
    %cst_58 = arith.constant dense<0.000000e+00> : vector<16xf32>
    %134 = vector.multi_reduction <add>, %133, %cst_58 [1] : vector<16x32xf32> to vector<16xf32>
    %135 = vector.shape_cast %134 : vector<16xf32> to vector<16x1xf32>
    %cst_59 = arith.constant 3.100000e+01 : f32
    %136 = vector.broadcast %cst_59 : f32 to vector<16x1xf32>
    %137 = arith.divf %135, %136 : vector<16x1xf32>
    %138 = vector.broadcast %130 : vector<16x1xf32> to vector<16x32xf32>
    %139 = arith.subf %124, %138 : vector<16x32xf32>
    %140 = vector.broadcast %125 : vector<1x32xf32> to vector<16x32xf32>
    %141 = arith.mulf %140, %139 : vector<16x32xf32>
    %142 = math.sqrt %137 : vector<16x1xf32>
    %cst_60 = arith.constant 9.99999997E-7 : f32
    %143 = vector.broadcast %cst_60 : f32 to vector<16x1xf32>
    %144 = arith.addf %142, %143 : vector<16x1xf32>
    %145 = vector.broadcast %144 : vector<16x1xf32> to vector<16x32xf32>
    %146 = arith.divf %141, %145 : vector<16x32xf32>
    %147 = vector.broadcast %126 : vector<1x32xf32> to vector<16x32xf32>
    %148 = arith.addf %146, %147 : vector<16x32xf32>
    %149 = arith.truncf %148 : vector<16x32xf32> to vector<16x32xbf16>
    %c0_61 = arith.constant 0 : index
    %c0_62 = arith.constant 0 : index
    %150 = vector.load %arg11[%c0_61, %c0_62] : memref<32x32xbf16, #tpu.memory_space<vmem>>, vector<32x32xbf16>
    %cst_63 = arith.constant dense<0.000000e+00> : vector<16x32xf32>
    %151 = tpu.matmul %149, %150, %cst_63 {dimension_numbers = #tpu.dot_dimension_numbers<[1], [0], [0], [1], [0, 0, 1, 1], [], []>} : vector<16x32xbf16>, vector<32x32xbf16>, vector<16x32xf32> -> vector<16x32xf32>
    %c0_64 = arith.constant 0 : index
    %c0_65 = arith.constant 0 : index
    %152 = vector.load %arg12[%c0_64, %c0_65] : memref<1x32xf32, #tpu.memory_space<vmem>>, vector<1x32xf32>
    %153 = vector.broadcast %152 : vector<1x32xf32> to vector<16x32xf32>
    %154 = arith.addf %151, %153 : vector<16x32xf32>
    %155 = arith.truncf %3 : vector<8x32xf32> to vector<8x32xbf16>
    %c0_66 = arith.constant 0 : index
    %c0_67 = arith.constant 0 : index
    %156 = vector.load %arg13[%c0_66, %c0_67] : memref<32x64xbf16, #tpu.memory_space<vmem>>, vector<32x64xbf16>
    %cst_68 = arith.constant dense<0.000000e+00> : vector<8x64xf32>
    %157 = tpu.matmul %155, %156, %cst_68 {dimension_numbers = #tpu.dot_dimension_numbers<[1], [0], [0], [1], [0, 0, 1, 1], [], []>} : vector<8x32xbf16>, vector<32x64xbf16>, vector<8x64xf32> -> vector<8x64xf32>
    %c0_69 = arith.constant 0 : index
    %c0_70 = arith.constant 0 : index
    %158 = vector.load %arg14[%c0_69, %c0_70] : memref<1x64xf32, #tpu.memory_space<vmem>>, vector<1x64xf32>
    %159 = vector.broadcast %158 : vector<1x64xf32> to vector<8x64xf32>
    %160 = arith.addf %157, %159 : vector<8x64xf32>
    %161 = vector.extract_strided_slice %160 {offsets = [0, 0], sizes = [8, 32], strides = [1, 1]} : vector<8x64xf32> to vector<8x32xf32>
    %162 = vector.extract_strided_slice %160 {offsets = [0, 32], sizes = [8, 32], strides = [1, 1]} : vector<8x64xf32> to vector<8x32xf32>
    %163 = vector.extract_strided_slice %154 {offsets = [0, 0], sizes = [16, 8], strides = [1, 1]} : vector<16x32xf32> to vector<16x8xf32>
    %164 = vector.extract_strided_slice %161 {offsets = [0, 0], sizes = [8, 8], strides = [1, 1]} : vector<8x32xf32> to vector<8x8xf32>
    %165 = tpu.transpose %164, [1, 0] : vector<8x8xf32> -> vector<8x8xf32>
    %cst_71 = arith.constant dense<0.000000e+00> : vector<16x8xf32>
    %166 = tpu.matmul %163, %165, %cst_71 {dimension_numbers = #tpu.dot_dimension_numbers<[1], [0], [0], [1], [0, 0, 1, 1], [], []>} : vector<16x8xf32>, vector<8x8xf32>, vector<16x8xf32> -> vector<16x8xf32>
    %cst_72 = arith.constant 0.353553385 : f32
    %167 = vector.broadcast %cst_72 : f32 to vector<16x8xf32>
    %168 = arith.mulf %166, %167 : vector<16x8xf32>
    %cst_73 = arith.constant 5.000000e-01 : f32
    %169 = vector.broadcast %cst_73 : f32 to vector<1x8xf32>
    %170 = arith.cmpf ogt, %7, %169 : vector<1x8xf32>
    %cst_74 = arith.constant -1.000000e+09 : f32
    %171 = vector.shape_cast %170 : vector<1x8xi1> to vector<1x8xi1>
    %172 = vector.broadcast %171 : vector<1x8xi1> to vector<16x8xi1>
    %173 = vector.broadcast %cst_74 : f32 to vector<16x8xf32>
    %174 = arith.select %172, %173, %168 : vector<16x8xi1>, vector<16x8xf32>
    %cst_75 = arith.constant dense<0xFF800000> : vector<16xf32>
    %175 = vector.multi_reduction <maximumf>, %174, %cst_75 [1] : vector<16x8xf32> to vector<16xf32>
    %cst_76 = arith.constant 0xFF800000 : f32
    %176 = vector.broadcast %cst_76 : f32 to vector<16xf32>
    %177 = arith.maximumf %176, %175 : vector<16xf32>
    %178 = vector.shape_cast %177 : vector<16xf32> to vector<16x1xf32>
    %179 = vector.broadcast %178 : vector<16x1xf32> to vector<16x8xf32>
    %180 = arith.subf %174, %179 : vector<16x8xf32>
    %181 = math.exp %180 : vector<16x8xf32>
    %cst_77 = arith.constant dense<0.000000e+00> : vector<16xf32>
    %182 = vector.multi_reduction <add>, %181, %cst_77 [1] : vector<16x8xf32> to vector<16xf32>
    %183 = vector.shape_cast %182 : vector<16xf32> to vector<16x1xf32>
    %184 = vector.broadcast %183 : vector<16x1xf32> to vector<16x8xf32>
    %185 = arith.divf %181, %184 : vector<16x8xf32>
    %186 = vector.extract_strided_slice %162 {offsets = [0, 0], sizes = [8, 8], strides = [1, 1]} : vector<8x32xf32> to vector<8x8xf32>
    %cst_78 = arith.constant dense<0.000000e+00> : vector<16x8xf32>
    %187 = tpu.matmul %185, %186, %cst_78 {dimension_numbers = #tpu.dot_dimension_numbers<[1], [0], [0], [1], [0, 0, 1, 1], [], []>} : vector<16x8xf32>, vector<8x8xf32>, vector<16x8xf32> -> vector<16x8xf32>
    %188 = vector.extract_strided_slice %154 {offsets = [0, 8], sizes = [16, 8], strides = [1, 1]} : vector<16x32xf32> to vector<16x8xf32>
    %189 = vector.extract_strided_slice %161 {offsets = [0, 8], sizes = [8, 8], strides = [1, 1]} : vector<8x32xf32> to vector<8x8xf32>
    %190 = tpu.transpose %189, [1, 0] : vector<8x8xf32> -> vector<8x8xf32>
    %cst_79 = arith.constant dense<0.000000e+00> : vector<16x8xf32>
    %191 = tpu.matmul %188, %190, %cst_79 {dimension_numbers = #tpu.dot_dimension_numbers<[1], [0], [0], [1], [0, 0, 1, 1], [], []>} : vector<16x8xf32>, vector<8x8xf32>, vector<16x8xf32> -> vector<16x8xf32>
    %cst_80 = arith.constant 0.353553385 : f32
    %192 = vector.broadcast %cst_80 : f32 to vector<16x8xf32>
    %193 = arith.mulf %191, %192 : vector<16x8xf32>
    %cst_81 = arith.constant 5.000000e-01 : f32
    %194 = vector.broadcast %cst_81 : f32 to vector<1x8xf32>
    %195 = arith.cmpf ogt, %7, %194 : vector<1x8xf32>
    %cst_82 = arith.constant -1.000000e+09 : f32
    %196 = vector.shape_cast %195 : vector<1x8xi1> to vector<1x8xi1>
    %197 = vector.broadcast %196 : vector<1x8xi1> to vector<16x8xi1>
    %198 = vector.broadcast %cst_82 : f32 to vector<16x8xf32>
    %199 = arith.select %197, %198, %193 : vector<16x8xi1>, vector<16x8xf32>
    %cst_83 = arith.constant dense<0xFF800000> : vector<16xf32>
    %200 = vector.multi_reduction <maximumf>, %199, %cst_83 [1] : vector<16x8xf32> to vector<16xf32>
    %cst_84 = arith.constant 0xFF800000 : f32
    %201 = vector.broadcast %cst_84 : f32 to vector<16xf32>
    %202 = arith.maximumf %201, %200 : vector<16xf32>
    %203 = vector.shape_cast %202 : vector<16xf32> to vector<16x1xf32>
    %204 = vector.broadcast %203 : vector<16x1xf32> to vector<16x8xf32>
    %205 = arith.subf %199, %204 : vector<16x8xf32>
    %206 = math.exp %205 : vector<16x8xf32>
    %cst_85 = arith.constant dense<0.000000e+00> : vector<16xf32>
    %207 = vector.multi_reduction <add>, %206, %cst_85 [1] : vector<16x8xf32> to vector<16xf32>
    %208 = vector.shape_cast %207 : vector<16xf32> to vector<16x1xf32>
    %209 = vector.broadcast %208 : vector<16x1xf32> to vector<16x8xf32>
    %210 = arith.divf %206, %209 : vector<16x8xf32>
    %211 = vector.extract_strided_slice %162 {offsets = [0, 8], sizes = [8, 8], strides = [1, 1]} : vector<8x32xf32> to vector<8x8xf32>
    %cst_86 = arith.constant dense<0.000000e+00> : vector<16x8xf32>
    %212 = tpu.matmul %210, %211, %cst_86 {dimension_numbers = #tpu.dot_dimension_numbers<[1], [0], [0], [1], [0, 0, 1, 1], [], []>} : vector<16x8xf32>, vector<8x8xf32>, vector<16x8xf32> -> vector<16x8xf32>
    %213 = vector.extract_strided_slice %154 {offsets = [0, 16], sizes = [16, 8], strides = [1, 1]} : vector<16x32xf32> to vector<16x8xf32>
    %214 = vector.extract_strided_slice %161 {offsets = [0, 16], sizes = [8, 8], strides = [1, 1]} : vector<8x32xf32> to vector<8x8xf32>
    %215 = tpu.transpose %214, [1, 0] : vector<8x8xf32> -> vector<8x8xf32>
    %cst_87 = arith.constant dense<0.000000e+00> : vector<16x8xf32>
    %216 = tpu.matmul %213, %215, %cst_87 {dimension_numbers = #tpu.dot_dimension_numbers<[1], [0], [0], [1], [0, 0, 1, 1], [], []>} : vector<16x8xf32>, vector<8x8xf32>, vector<16x8xf32> -> vector<16x8xf32>
    %cst_88 = arith.constant 0.353553385 : f32
    %217 = vector.broadcast %cst_88 : f32 to vector<16x8xf32>
    %218 = arith.mulf %216, %217 : vector<16x8xf32>
    %cst_89 = arith.constant 5.000000e-01 : f32
    %219 = vector.broadcast %cst_89 : f32 to vector<1x8xf32>
    %220 = arith.cmpf ogt, %7, %219 : vector<1x8xf32>
    %cst_90 = arith.constant -1.000000e+09 : f32
    %221 = vector.shape_cast %220 : vector<1x8xi1> to vector<1x8xi1>
    %222 = vector.broadcast %221 : vector<1x8xi1> to vector<16x8xi1>
    %223 = vector.broadcast %cst_90 : f32 to vector<16x8xf32>
    %224 = arith.select %222, %223, %218 : vector<16x8xi1>, vector<16x8xf32>
    %cst_91 = arith.constant dense<0xFF800000> : vector<16xf32>
    %225 = vector.multi_reduction <maximumf>, %224, %cst_91 [1] : vector<16x8xf32> to vector<16xf32>
    %cst_92 = arith.constant 0xFF800000 : f32
    %226 = vector.broadcast %cst_92 : f32 to vector<16xf32>
    %227 = arith.maximumf %226, %225 : vector<16xf32>
    %228 = vector.shape_cast %227 : vector<16xf32> to vector<16x1xf32>
    %229 = vector.broadcast %228 : vector<16x1xf32> to vector<16x8xf32>
    %230 = arith.subf %224, %229 : vector<16x8xf32>
    %231 = math.exp %230 : vector<16x8xf32>
    %cst_93 = arith.constant dense<0.000000e+00> : vector<16xf32>
    %232 = vector.multi_reduction <add>, %231, %cst_93 [1] : vector<16x8xf32> to vector<16xf32>
    %233 = vector.shape_cast %232 : vector<16xf32> to vector<16x1xf32>
    %234 = vector.broadcast %233 : vector<16x1xf32> to vector<16x8xf32>
    %235 = arith.divf %231, %234 : vector<16x8xf32>
    %236 = vector.extract_strided_slice %162 {offsets = [0, 16], sizes = [8, 8], strides = [1, 1]} : vector<8x32xf32> to vector<8x8xf32>
    %cst_94 = arith.constant dense<0.000000e+00> : vector<16x8xf32>
    %237 = tpu.matmul %235, %236, %cst_94 {dimension_numbers = #tpu.dot_dimension_numbers<[1], [0], [0], [1], [0, 0, 1, 1], [], []>} : vector<16x8xf32>, vector<8x8xf32>, vector<16x8xf32> -> vector<16x8xf32>
    %238 = vector.extract_strided_slice %154 {offsets = [0, 24], sizes = [16, 8], strides = [1, 1]} : vector<16x32xf32> to vector<16x8xf32>
    %239 = vector.extract_strided_slice %161 {offsets = [0, 24], sizes = [8, 8], strides = [1, 1]} : vector<8x32xf32> to vector<8x8xf32>
    %240 = tpu.transpose %239, [1, 0] : vector<8x8xf32> -> vector<8x8xf32>
    %cst_95 = arith.constant dense<0.000000e+00> : vector<16x8xf32>
    %241 = tpu.matmul %238, %240, %cst_95 {dimension_numbers = #tpu.dot_dimension_numbers<[1], [0], [0], [1], [0, 0, 1, 1], [], []>} : vector<16x8xf32>, vector<8x8xf32>, vector<16x8xf32> -> vector<16x8xf32>
    %cst_96 = arith.constant 0.353553385 : f32
    %242 = vector.broadcast %cst_96 : f32 to vector<16x8xf32>
    %243 = arith.mulf %241, %242 : vector<16x8xf32>
    %cst_97 = arith.constant 5.000000e-01 : f32
    %244 = vector.broadcast %cst_97 : f32 to vector<1x8xf32>
    %245 = arith.cmpf ogt, %7, %244 : vector<1x8xf32>
    %cst_98 = arith.constant -1.000000e+09 : f32
    %246 = vector.shape_cast %245 : vector<1x8xi1> to vector<1x8xi1>
    %247 = vector.broadcast %246 : vector<1x8xi1> to vector<16x8xi1>
    %248 = vector.broadcast %cst_98 : f32 to vector<16x8xf32>
    %249 = arith.select %247, %248, %243 : vector<16x8xi1>, vector<16x8xf32>
    %cst_99 = arith.constant dense<0xFF800000> : vector<16xf32>
    %250 = vector.multi_reduction <maximumf>, %249, %cst_99 [1] : vector<16x8xf32> to vector<16xf32>
    %cst_100 = arith.constant 0xFF800000 : f32
    %251 = vector.broadcast %cst_100 : f32 to vector<16xf32>
    %252 = arith.maximumf %251, %250 : vector<16xf32>
    %253 = vector.shape_cast %252 : vector<16xf32> to vector<16x1xf32>
    %254 = vector.broadcast %253 : vector<16x1xf32> to vector<16x8xf32>
    %255 = arith.subf %249, %254 : vector<16x8xf32>
    %256 = math.exp %255 : vector<16x8xf32>
    %cst_101 = arith.constant dense<0.000000e+00> : vector<16xf32>
    %257 = vector.multi_reduction <add>, %256, %cst_101 [1] : vector<16x8xf32> to vector<16xf32>
    %258 = vector.shape_cast %257 : vector<16xf32> to vector<16x1xf32>
    %259 = vector.broadcast %258 : vector<16x1xf32> to vector<16x8xf32>
    %260 = arith.divf %256, %259 : vector<16x8xf32>
    %261 = vector.extract_strided_slice %162 {offsets = [0, 24], sizes = [8, 8], strides = [1, 1]} : vector<8x32xf32> to vector<8x8xf32>
    %cst_102 = arith.constant dense<0.000000e+00> : vector<16x8xf32>
    %262 = tpu.matmul %260, %261, %cst_102 {dimension_numbers = #tpu.dot_dimension_numbers<[1], [0], [0], [1], [0, 0, 1, 1], [], []>} : vector<16x8xf32>, vector<8x8xf32>, vector<16x8xf32> -> vector<16x8xf32>
    %263 = tpu.concatenate %187, %212, %237, %262 in 1 : vector<16x8xf32>, vector<16x8xf32>, vector<16x8xf32>, vector<16x8xf32> -> vector<16x32xf32>
    %264 = arith.truncf %263 : vector<16x32xf32> to vector<16x32xbf16>
    %c0_103 = arith.constant 0 : index
    %c0_104 = arith.constant 0 : index
    %265 = vector.load %arg15[%c0_103, %c0_104] : memref<32x32xbf16, #tpu.memory_space<vmem>>, vector<32x32xbf16>
    %cst_105 = arith.constant dense<0.000000e+00> : vector<16x32xf32>
    %266 = tpu.matmul %264, %265, %cst_105 {dimension_numbers = #tpu.dot_dimension_numbers<[1], [0], [0], [1], [0, 0, 1, 1], [], []>} : vector<16x32xbf16>, vector<32x32xbf16>, vector<16x32xf32> -> vector<16x32xf32>
    %c0_106 = arith.constant 0 : index
    %c0_107 = arith.constant 0 : index
    %267 = vector.load %arg16[%c0_106, %c0_107] : memref<1x32xf32, #tpu.memory_space<vmem>>, vector<1x32xf32>
    %268 = vector.broadcast %267 : vector<1x32xf32> to vector<16x32xf32>
    %269 = arith.addf %266, %268 : vector<16x32xf32>
    %270 = arith.addf %148, %269 : vector<16x32xf32>
    %c0_108 = arith.constant 0 : index
    %c0_109 = arith.constant 0 : index
    %271 = vector.load %arg17[%c0_108, %c0_109] : memref<1x32xf32, #tpu.memory_space<vmem>>, vector<1x32xf32>
    %c0_110 = arith.constant 0 : index
    %c0_111 = arith.constant 0 : index
    %272 = vector.load %arg18[%c0_110, %c0_111] : memref<1x32xf32, #tpu.memory_space<vmem>>, vector<1x32xf32>
    %cst_112 = arith.constant dense<0.000000e+00> : vector<16xf32>
    %273 = vector.multi_reduction <add>, %270, %cst_112 [1] : vector<16x32xf32> to vector<16xf32>
    %274 = vector.shape_cast %273 : vector<16xf32> to vector<16x1xf32>
    %cst_113 = arith.constant 3.200000e+01 : f32
    %275 = vector.broadcast %cst_113 : f32 to vector<16x1xf32>
    %276 = arith.divf %274, %275 : vector<16x1xf32>
    %277 = vector.broadcast %276 : vector<16x1xf32> to vector<16x32xf32>
    %278 = arith.subf %270, %277 : vector<16x32xf32>
    %279 = arith.mulf %278, %278 : vector<16x32xf32>
    %cst_114 = arith.constant dense<0.000000e+00> : vector<16xf32>
    %280 = vector.multi_reduction <add>, %279, %cst_114 [1] : vector<16x32xf32> to vector<16xf32>
    %281 = vector.shape_cast %280 : vector<16xf32> to vector<16x1xf32>
    %cst_115 = arith.constant 3.100000e+01 : f32
    %282 = vector.broadcast %cst_115 : f32 to vector<16x1xf32>
    %283 = arith.divf %281, %282 : vector<16x1xf32>
    %284 = vector.broadcast %276 : vector<16x1xf32> to vector<16x32xf32>
    %285 = arith.subf %270, %284 : vector<16x32xf32>
    %286 = vector.broadcast %271 : vector<1x32xf32> to vector<16x32xf32>
    %287 = arith.mulf %286, %285 : vector<16x32xf32>
    %288 = math.sqrt %283 : vector<16x1xf32>
    %cst_116 = arith.constant 9.99999997E-7 : f32
    %289 = vector.broadcast %cst_116 : f32 to vector<16x1xf32>
    %290 = arith.addf %288, %289 : vector<16x1xf32>
    %291 = vector.broadcast %290 : vector<16x1xf32> to vector<16x32xf32>
    %292 = arith.divf %287, %291 : vector<16x32xf32>
    %293 = vector.broadcast %272 : vector<1x32xf32> to vector<16x32xf32>
    %294 = arith.addf %292, %293 : vector<16x32xf32>
    %295 = arith.truncf %294 : vector<16x32xf32> to vector<16x32xbf16>
    %c0_117 = arith.constant 0 : index
    %c0_118 = arith.constant 0 : index
    %296 = vector.load %arg19[%c0_117, %c0_118] : memref<32x64xbf16, #tpu.memory_space<vmem>>, vector<32x64xbf16>
    %cst_119 = arith.constant dense<0.000000e+00> : vector<16x64xf32>
    %297 = tpu.matmul %295, %296, %cst_119 {dimension_numbers = #tpu.dot_dimension_numbers<[1], [0], [0], [1], [0, 0, 1, 1], [], []>} : vector<16x32xbf16>, vector<32x64xbf16>, vector<16x64xf32> -> vector<16x64xf32>
    %c0_120 = arith.constant 0 : index
    %c0_121 = arith.constant 0 : index
    %298 = vector.load %arg20[%c0_120, %c0_121] : memref<1x64xf32, #tpu.memory_space<vmem>>, vector<1x64xf32>
    %299 = vector.broadcast %298 : vector<1x64xf32> to vector<16x64xf32>
    %300 = arith.addf %297, %299 : vector<16x64xf32>
    %cst_122 = arith.constant 0.000000e+00 : f32
    %301 = vector.broadcast %cst_122 : f32 to vector<16x64xf32>
    %302 = arith.maximumf %300, %301 : vector<16x64xf32>
    %303 = arith.truncf %302 : vector<16x64xf32> to vector<16x64xbf16>
    %c0_123 = arith.constant 0 : index
    %c0_124 = arith.constant 0 : index
    %304 = vector.load %arg21[%c0_123, %c0_124] : memref<64x32xbf16, #tpu.memory_space<vmem>>, vector<64x32xbf16>
    %cst_125 = arith.constant dense<0.000000e+00> : vector<16x32xf32>
    %305 = tpu.matmul %303, %304, %cst_125 {dimension_numbers = #tpu.dot_dimension_numbers<[1], [0], [0], [1], [0, 0, 1, 1], [], []>} : vector<16x64xbf16>, vector<64x32xbf16>, vector<16x32xf32> -> vector<16x32xf32>
    %c0_126 = arith.constant 0 : index
    %c0_127 = arith.constant 0 : index
    %306 = vector.load %arg22[%c0_126, %c0_127] : memref<1x32xf32, #tpu.memory_space<vmem>>, vector<1x32xf32>
    %307 = vector.broadcast %306 : vector<1x32xf32> to vector<16x32xf32>
    %308 = arith.addf %305, %307 : vector<16x32xf32>
    %309 = arith.addf %294, %308 : vector<16x32xf32>
    %c0_128 = arith.constant 0 : index
    %c0_129 = arith.constant 0 : index
    %310 = vector.load %arg23[%c0_128, %c0_129] : memref<1x32xf32, #tpu.memory_space<vmem>>, vector<1x32xf32>
    %c0_130 = arith.constant 0 : index
    %c0_131 = arith.constant 0 : index
    %311 = vector.load %arg24[%c0_130, %c0_131] : memref<1x32xf32, #tpu.memory_space<vmem>>, vector<1x32xf32>
    %cst_132 = arith.constant dense<0.000000e+00> : vector<16xf32>
    %312 = vector.multi_reduction <add>, %309, %cst_132 [1] : vector<16x32xf32> to vector<16xf32>
    %313 = vector.shape_cast %312 : vector<16xf32> to vector<16x1xf32>
    %cst_133 = arith.constant 3.200000e+01 : f32
    %314 = vector.broadcast %cst_133 : f32 to vector<16x1xf32>
    %315 = arith.divf %313, %314 : vector<16x1xf32>
    %316 = vector.broadcast %315 : vector<16x1xf32> to vector<16x32xf32>
    %317 = arith.subf %309, %316 : vector<16x32xf32>
    %318 = arith.mulf %317, %317 : vector<16x32xf32>
    %cst_134 = arith.constant dense<0.000000e+00> : vector<16xf32>
    %319 = vector.multi_reduction <add>, %318, %cst_134 [1] : vector<16x32xf32> to vector<16xf32>
    %320 = vector.shape_cast %319 : vector<16xf32> to vector<16x1xf32>
    %cst_135 = arith.constant 3.100000e+01 : f32
    %321 = vector.broadcast %cst_135 : f32 to vector<16x1xf32>
    %322 = arith.divf %320, %321 : vector<16x1xf32>
    %323 = vector.broadcast %315 : vector<16x1xf32> to vector<16x32xf32>
    %324 = arith.subf %309, %323 : vector<16x32xf32>
    %325 = vector.broadcast %310 : vector<1x32xf32> to vector<16x32xf32>
    %326 = arith.mulf %325, %324 : vector<16x32xf32>
    %327 = math.sqrt %322 : vector<16x1xf32>
    %cst_136 = arith.constant 9.99999997E-7 : f32
    %328 = vector.broadcast %cst_136 : f32 to vector<16x1xf32>
    %329 = arith.addf %327, %328 : vector<16x1xf32>
    %330 = vector.broadcast %329 : vector<16x1xf32> to vector<16x32xf32>
    %331 = arith.divf %326, %330 : vector<16x32xf32>
    %332 = vector.broadcast %311 : vector<1x32xf32> to vector<16x32xf32>
    %333 = arith.addf %331, %332 : vector<16x32xf32>
    %c0_137 = arith.constant 0 : index
    %c0_138 = arith.constant 0 : index
    %c0_139 = arith.constant 0 : index
    %334 = vector.load %arg25[%c0_137, %c0_138, %c0_139] : memref<1x16x32xf32, #tpu.memory_space<vmem>>, vector<1x16x32xf32>
    %335 = vector.shape_cast %334 : vector<1x16x32xf32> to vector<16x32xf32>
    %336 = vector.shape_cast %333 : vector<16x32xf32> to vector<1x16x32xf32>
    tpu.vector_store %arg25[%c0_137, %c0_138, %c0_139], %336 {strides = array<i32>} : memref<1x16x32xf32, #tpu.memory_space<vmem>>, vector<1x16x32xf32>,
    return
  }
  func.func @transform_0(%arg0: i32) -> (i32, i32, i32) {
    %c0_i32 = arith.constant 0 : i32
    %c0_i32_0 = arith.constant 0 : i32
    %c0_i32_1 = arith.constant 0 : i32
    return %arg0, %c0_i32, %c0_i32_0 : i32, i32, i32
  }
  func.func @transform_1(%arg0: i32) -> (i32, i32, i32) {
    %c0_i32 = arith.constant 0 : i32
    %c0_i32_0 = arith.constant 0 : i32
    %c0_i32_1 = arith.constant 0 : i32
    return %arg0, %c0_i32, %c0_i32_0 : i32, i32, i32
  }
  func.func @transform_2(%arg0: i32) -> (i32, i32, i32) {
    %c0_i32 = arith.constant 0 : i32
    %c0_i32_0 = arith.constant 0 : i32
    %c0_i32_1 = arith.constant 0 : i32
    return %arg0, %c0_i32, %c0_i32_0 : i32, i32, i32
  }
  func.func @transform_3(%arg0: i32) -> (i32, i32, i32) {
    %c0_i32 = arith.constant 0 : i32
    %c0_i32_0 = arith.constant 0 : i32
    %c0_i32_1 = arith.constant 0 : i32
    return %arg0, %c0_i32, %c0_i32_0 : i32, i32, i32
  }
  func.func @transform_4(%arg0: i32) -> (i32, i32) {
    %c0_i32 = arith.constant 0 : i32
    %c0_i32_0 = arith.constant 0 : i32
    %c0_i32_1 = arith.constant 0 : i32
    return %c0_i32, %c0_i32_0 : i32, i32
  }
  func.func @transform_5(%arg0: i32) -> (i32, i32) {
    %c0_i32 = arith.constant 0 : i32
    %c0_i32_0 = arith.constant 0 : i32
    %c0_i32_1 = arith.constant 0 : i32
    return %c0_i32, %c0_i32_0 : i32, i32
  }
  func.func @transform_6(%arg0: i32) -> (i32, i32) {
    %c0_i32 = arith.constant 0 : i32
    %c0_i32_0 = arith.constant 0 : i32
    %c0_i32_1 = arith.constant 0 : i32
    return %c0_i32, %c0_i32_0 : i32, i32
  }
  func.func @transform_7(%arg0: i32) -> (i32, i32) {
    %c0_i32 = arith.constant 0 : i32
    %c0_i32_0 = arith.constant 0 : i32
    %c0_i32_1 = arith.constant 0 : i32
    return %c0_i32, %c0_i32_0 : i32, i32
  }
  func.func @transform_8(%arg0: i32) -> (i32, i32) {
    %c0_i32 = arith.constant 0 : i32
    %c0_i32_0 = arith.constant 0 : i32
    %c0_i32_1 = arith.constant 0 : i32
    return %c0_i32, %c0_i32_0 : i32, i32
  }
  func.func @transform_9(%arg0: i32) -> (i32, i32) {
    %c0_i32 = arith.constant 0 : i32
    %c0_i32_0 = arith.constant 0 : i32
    %c0_i32_1 = arith.constant 0 : i32
    return %c0_i32, %c0_i32_0 : i32, i32
  }
  func.func @transform_10(%arg0: i32) -> (i32, i32) {
    %c0_i32 = arith.constant 0 : i32
    %c0_i32_0 = arith.constant 0 : i32
    %c0_i32_1 = arith.constant 0 : i32
    return %c0_i32, %c0_i32_0 : i32, i32
  }
  func.func @transform_11(%arg0: i32) -> (i32, i32) {
    %c0_i32 = arith.constant 0 : i32
    %c0_i32_0 = arith.constant 0 : i32
    %c0_i32_1 = arith.constant 0 : i32
    return %c0_i32, %c0_i32_0 : i32, i32
  }
  func.func @transform_12(%arg0: i32) -> (i32, i32) {
    %c0_i32 = arith.constant 0 : i32
    %c0_i32_0 = arith.constant 0 : i32
    %c0_i32_1 = arith.constant 0 : i32
    return %c0_i32, %c0_i32_0 : i32, i32
  }
  func.func @transform_13(%arg0: i32) -> (i32, i32) {
    %c0_i32 = arith.constant 0 : i32
    %c0_i32_0 = arith.constant 0 : i32
    %c0_i32_1 = arith.constant 0 : i32
    return %c0_i32, %c0_i32_0 : i32, i32
  }
  func.func @transform_14(%arg0: i32) -> (i32, i32) {
    %c0_i32 = arith.constant 0 : i32
    %c0_i32_0 = arith.constant 0 : i32
    %c0_i32_1 = arith.constant 0 : i32
    return %c0_i32, %c0_i32_0 : i32, i32
  }
  func.func @transform_15(%arg0: i32) -> (i32, i32) {
    %c0_i32 = arith.constant 0 : i32
    %c0_i32_0 = arith.constant 0 : i32
    %c0_i32_1 = arith.constant 0 : i32
    return %c0_i32, %c0_i32_0 : i32, i32
  }
  func.func @transform_16(%arg0: i32) -> (i32, i32) {
    %c0_i32 = arith.constant 0 : i32
    %c0_i32_0 = arith.constant 0 : i32
    %c0_i32_1 = arith.constant 0 : i32
    return %c0_i32, %c0_i32_0 : i32, i32
  }
  func.func @transform_17(%arg0: i32) -> (i32, i32) {
    %c0_i32 = arith.constant 0 : i32
    %c0_i32_0 = arith.constant 0 : i32
    %c0_i32_1 = arith.constant 0 : i32
    return %c0_i32, %c0_i32_0 : i32, i32
  }
  func.func @transform_18(%arg0: i32) -> (i32, i32) {
    %c0_i32 = arith.constant 0 : i32
    %c0_i32_0 = arith.constant 0 : i32
    %c0_i32_1 = arith.constant 0 : i32
    return %c0_i32, %c0_i32_0 : i32, i32
  }
  func.func @transform_19(%arg0: i32) -> (i32, i32) {
    %c0_i32 = arith.constant 0 : i32
    %c0_i32_0 = arith.constant 0 : i32
    %c0_i32_1 = arith.constant 0 : i32
    return %c0_i32, %c0_i32_0 : i32, i32
  }
  func.func @transform_20(%arg0: i32) -> (i32, i32) {
    %c0_i32 = arith.constant 0 : i32
    %c0_i32_0 = arith.constant 0 : i32
    %c0_i32_1 = arith.constant 0 : i32
    return %c0_i32, %c0_i32_0 : i32, i32
  }
  func.func @transform_21(%arg0: i32) -> (i32, i32) {
    %c0_i32 = arith.constant 0 : i32
    %c0_i32_0 = arith.constant 0 : i32
    %c0_i32_1 = arith.constant 0 : i32
    return %c0_i32, %c0_i32_0 : i32, i32
  }
  func.func @transform_22(%arg0: i32) -> (i32, i32) {
    %c0_i32 = arith.constant 0 : i32
    %c0_i32_0 = arith.constant 0 : i32
    %c0_i32_1 = arith.constant 0 : i32
    return %c0_i32, %c0_i32_0 : i32, i32
  }
  func.func @transform_23(%arg0: i32) -> (i32, i32) {
    %c0_i32 = arith.constant 0 : i32
    %c0_i32_0 = arith.constant 0 : i32
    %c0_i32_1 = arith.constant 0 : i32
    return %c0_i32, %c0_i32_0 : i32, i32
  }
  func.func @transform_24(%arg0: i32) -> (i32, i32, i32) {
    %c0_i32 = arith.constant 0 : i32
    %c0_i32_0 = arith.constant 0 : i32
    %c0_i32_1 = arith.constant 0 : i32
    return %arg0, %c0_i32, %c0_i32_0 : i32, i32, i32
  }
}

module attributes {stable_mosaic.version = 11 : i64} {
  func.func @_tail_kernel(%arg0: i32, %arg1: memref<1x8x32xf32, #tpu.memory_space<vmem>>, %arg2: memref<1x8x1xf32, #tpu.memory_space<vmem>>, %arg3: memref<1x16x32xf32, #tpu.memory_space<vmem>>, %arg4: memref<1x16x1xf32, #tpu.memory_space<vmem>>, %arg5: memref<32x16xbf16, #tpu.memory_space<vmem>>, %arg6: memref<1x16xf32, #tpu.memory_space<vmem>>, %arg7: memref<16x1xbf16, #tpu.memory_space<vmem>>, %arg8: memref<1x1xf32, #tpu.memory_space<vmem>>, %arg9: memref<32x64xbf16, #tpu.memory_space<vmem>>, %arg10: memref<1x64xf32, #tpu.memory_space<vmem>>, %arg11: memref<32x16xbf16, #tpu.memory_space<vmem>>, %arg12: memref<1x16xf32, #tpu.memory_space<vmem>>, %arg13: memref<16x1xbf16, #tpu.memory_space<vmem>>, %arg14: memref<1x1xf32, #tpu.memory_space<vmem>>, %arg15: memref<32x64xbf16, #tpu.memory_space<vmem>>, %arg16: memref<1x64xf32, #tpu.memory_space<vmem>>, %arg17: memref<1x64xf32, #tpu.memory_space<vmem>>, %arg18: memref<1x64xf32, #tpu.memory_space<vmem>>, %arg19: memref<64x10xbf16, #tpu.memory_space<vmem>>, %arg20: memref<1x10xf32, #tpu.memory_space<vmem>>, %arg21: memref<1x64xf32, #tpu.memory_space<vmem>>, %arg22: memref<1x64xf32, #tpu.memory_space<vmem>>, %arg23: memref<64x10xbf16, #tpu.memory_space<vmem>>, %arg24: memref<1x10xf32, #tpu.memory_space<vmem>>, %arg25: memref<1x1x10xf32, #tpu.memory_space<vmem>>, %arg26: memref<1x1x10xf32, #tpu.memory_space<vmem>>) attributes {dimension_semantics = [#tpu.dimension_semantics<parallel>], iteration_bounds = array<i64: 2>, scalar_prefetch = 0 : i64, scratch_operands = 0 : i64, tpu.core_type = #tpu.core_type<tc>, window_params = [{transform_indices = @transform_0, window_bounds = array<i64: 1, 8, 32>}, {transform_indices = @transform_1, window_bounds = array<i64: 1, 8, 1>}, {transform_indices = @transform_2, window_bounds = array<i64: 1, 16, 32>}, {transform_indices = @transform_3, window_bounds = array<i64: 1, 16, 1>}, {pipeline_mode = #tpu.pipeline_mode<synchronous>, transform_indices = @transform_4, window_bounds = array<i64: 32, 16>}, {pipeline_mode = #tpu.pipeline_mode<synchronous>, transform_indices = @transform_5, window_bounds = array<i64: 1, 16>}, {pipeline_mode = #tpu.pipeline_mode<synchronous>, transform_indices = @transform_6, window_bounds = array<i64: 16, 1>}, {pipeline_mode = #tpu.pipeline_mode<synchronous>, transform_indices = @transform_7, window_bounds = array<i64: 1, 1>}, {pipeline_mode = #tpu.pipeline_mode<synchronous>, transform_indices = @transform_8, window_bounds = array<i64: 32, 64>}, {pipeline_mode = #tpu.pipeline_mode<synchronous>, transform_indices = @transform_9, window_bounds = array<i64: 1, 64>}, {pipeline_mode = #tpu.pipeline_mode<synchronous>, transform_indices = @transform_10, window_bounds = array<i64: 32, 16>}, {pipeline_mode = #tpu.pipeline_mode<synchronous>, transform_indices = @transform_11, window_bounds = array<i64: 1, 16>}, {pipeline_mode = #tpu.pipeline_mode<synchronous>, transform_indices = @transform_12, window_bounds = array<i64: 16, 1>}, {pipeline_mode = #tpu.pipeline_mode<synchronous>, transform_indices = @transform_13, window_bounds = array<i64: 1, 1>}, {pipeline_mode = #tpu.pipeline_mode<synchronous>, transform_indices = @transform_14, window_bounds = array<i64: 32, 64>}, {pipeline_mode = #tpu.pipeline_mode<synchronous>, transform_indices = @transform_15, window_bounds = array<i64: 1, 64>}, {pipeline_mode = #tpu.pipeline_mode<synchronous>, transform_indices = @transform_16, window_bounds = array<i64: 1, 64>}, {pipeline_mode = #tpu.pipeline_mode<synchronous>, transform_indices = @transform_17, window_bounds = array<i64: 1, 64>}, {pipeline_mode = #tpu.pipeline_mode<synchronous>, transform_indices = @transform_18, window_bounds = array<i64: 64, 10>}, {pipeline_mode = #tpu.pipeline_mode<synchronous>, transform_indices = @transform_19, window_bounds = array<i64: 1, 10>}, {pipeline_mode = #tpu.pipeline_mode<synchronous>, transform_indices = @transform_20, window_bounds = array<i64: 1, 64>}, {pipeline_mode = #tpu.pipeline_mode<synchronous>, transform_indices = @transform_21, window_bounds = array<i64: 1, 64>}, {pipeline_mode = #tpu.pipeline_mode<synchronous>, transform_indices = @transform_22, window_bounds = array<i64: 64, 10>}, {pipeline_mode = #tpu.pipeline_mode<synchronous>, transform_indices = @transform_23, window_bounds = array<i64: 1, 10>}, {transform_indices = @transform_24, window_bounds = array<i64: 1, 1, 10>}, {transform_indices = @transform_25, window_bounds = array<i64: 1, 1, 10>}]} {
    %c0 = arith.constant 0 : index
    %c0_0 = arith.constant 0 : index
    %c0_1 = arith.constant 0 : index
    %0 = vector.load %arg1[%c0, %c0_0, %c0_1] : memref<1x8x32xf32, #tpu.memory_space<vmem>>, vector<1x8x32xf32>
    %1 = vector.shape_cast %0 : vector<1x8x32xf32> to vector<8x32xf32>
    %c0_2 = arith.constant 0 : index
    %c0_3 = arith.constant 0 : index
    %c0_4 = arith.constant 0 : index
    %2 = vector.load %arg2[%c0_2, %c0_3, %c0_4] : memref<1x8x1xf32, #tpu.memory_space<vmem>>, vector<1x8x1xf32>
    %3 = vector.shape_cast %2 : vector<1x8x1xf32> to vector<8x1xf32>
    %4 = arith.truncf %1 : vector<8x32xf32> to vector<8x32xbf16>
    %c0_5 = arith.constant 0 : index
    %c0_6 = arith.constant 0 : index
    %5 = vector.load %arg5[%c0_5, %c0_6] : memref<32x16xbf16, #tpu.memory_space<vmem>>, vector<32x16xbf16>
    %cst = arith.constant dense<0.000000e+00> : vector<8x16xf32>
    %6 = tpu.matmul %4, %5, %cst {dimension_numbers = #tpu.dot_dimension_numbers<[1], [0], [0], [1], [0, 0, 1, 1], [], []>} : vector<8x32xbf16>, vector<32x16xbf16>, vector<8x16xf32> -> vector<8x16xf32>
    %c0_7 = arith.constant 0 : index
    %c0_8 = arith.constant 0 : index
    %7 = vector.load %arg6[%c0_7, %c0_8] : memref<1x16xf32, #tpu.memory_space<vmem>>, vector<1x16xf32>
    %8 = vector.broadcast %7 : vector<1x16xf32> to vector<8x16xf32>
    %9 = arith.addf %6, %8 : vector<8x16xf32>
    %cst_9 = arith.constant 0.000000e+00 : f32
    %10 = vector.broadcast %cst_9 : f32 to vector<8x16xf32>
    %11 = arith.maximumf %9, %10 : vector<8x16xf32>
    %12 = arith.truncf %11 : vector<8x16xf32> to vector<8x16xbf16>
    %c0_10 = arith.constant 0 : index
    %c0_11 = arith.constant 0 : index
    %13 = vector.load %arg7[%c0_10, %c0_11] : memref<16x1xbf16, #tpu.memory_space<vmem>>, vector<16x1xbf16>
    %cst_12 = arith.constant dense<0.000000e+00> : vector<8x1xf32>
    %14 = tpu.matmul %12, %13, %cst_12 {dimension_numbers = #tpu.dot_dimension_numbers<[1], [0], [0], [1], [0, 0, 1, 1], [], []>} : vector<8x16xbf16>, vector<16x1xbf16>, vector<8x1xf32> -> vector<8x1xf32>
    %c0_13 = arith.constant 0 : index
    %c0_14 = arith.constant 0 : index
    %15 = vector.load %arg8[%c0_13, %c0_14] : memref<1x1xf32, #tpu.memory_space<vmem>>, vector<1x1xf32>
    %16 = vector.broadcast %15 : vector<1x1xf32> to vector<8x1xf32>
    %17 = arith.addf %14, %16 : vector<8x1xf32>
    %cst_15 = arith.constant 5.000000e-01 : f32
    %18 = vector.broadcast %cst_15 : f32 to vector<8x1xf32>
    %19 = arith.cmpf ogt, %3, %18 : vector<8x1xf32>
    %cst_16 = arith.constant -1.000000e+09 : f32
    %20 = vector.broadcast %cst_16 : f32 to vector<8x1xf32>
    %21 = arith.select %19, %20, %17 : vector<8x1xi1>, vector<8x1xf32>
    %cst_17 = arith.constant dense<0xFF800000> : vector<1xf32>
    %22 = vector.multi_reduction <maximumf>, %21, %cst_17 [0] : vector<8x1xf32> to vector<1xf32>
    %cst_18 = arith.constant 0xFF800000 : f32
    %23 = vector.broadcast %cst_18 : f32 to vector<1xf32>
    %24 = arith.maximumf %23, %22 : vector<1xf32>
    %25 = vector.shape_cast %24 : vector<1xf32> to vector<1x1xf32>
    %26 = vector.broadcast %25 : vector<1x1xf32> to vector<8x1xf32>
    %27 = arith.subf %21, %26 : vector<8x1xf32>
    %28 = math.exp %27 : vector<8x1xf32>
    %cst_19 = arith.constant dense<0.000000e+00> : vector<1xf32>
    %29 = vector.multi_reduction <add>, %28, %cst_19 [0] : vector<8x1xf32> to vector<1xf32>
    %30 = vector.shape_cast %29 : vector<1xf32> to vector<1x1xf32>
    %31 = vector.broadcast %30 : vector<1x1xf32> to vector<8x1xf32>
    %32 = arith.divf %28, %31 : vector<8x1xf32>
    %33 = tpu.transpose %32, [1, 0] : vector<8x1xf32> -> vector<1x8xf32>
    %cst_20 = arith.constant dense<0.000000e+00> : vector<1x32xf32>
    %34 = tpu.matmul %33, %1, %cst_20 {dimension_numbers = #tpu.dot_dimension_numbers<[1], [0], [0], [1], [0, 0, 1, 1], [], []>} : vector<1x8xf32>, vector<8x32xf32>, vector<1x32xf32> -> vector<1x32xf32>
    %35 = arith.truncf %34 : vector<1x32xf32> to vector<1x32xbf16>
    %c0_21 = arith.constant 0 : index
    %c0_22 = arith.constant 0 : index
    %36 = vector.load %arg9[%c0_21, %c0_22] : memref<32x64xbf16, #tpu.memory_space<vmem>>, vector<32x64xbf16>
    %cst_23 = arith.constant dense<0.000000e+00> : vector<1x64xf32>
    %37 = tpu.matmul %35, %36, %cst_23 {dimension_numbers = #tpu.dot_dimension_numbers<[1], [0], [0], [1], [0, 0, 1, 1], [], []>} : vector<1x32xbf16>, vector<32x64xbf16>, vector<1x64xf32> -> vector<1x64xf32>
    %c0_24 = arith.constant 0 : index
    %c0_25 = arith.constant 0 : index
    %38 = vector.load %arg10[%c0_24, %c0_25] : memref<1x64xf32, #tpu.memory_space<vmem>>, vector<1x64xf32>
    %39 = arith.addf %37, %38 : vector<1x64xf32>
    %c0_26 = arith.constant 0 : index
    %c0_27 = arith.constant 0 : index
    %c0_28 = arith.constant 0 : index
    %40 = vector.load %arg3[%c0_26, %c0_27, %c0_28] : memref<1x16x32xf32, #tpu.memory_space<vmem>>, vector<1x16x32xf32>
    %41 = vector.shape_cast %40 : vector<1x16x32xf32> to vector<16x32xf32>
    %c0_29 = arith.constant 0 : index
    %c0_30 = arith.constant 0 : index
    %c0_31 = arith.constant 0 : index
    %42 = vector.load %arg4[%c0_29, %c0_30, %c0_31] : memref<1x16x1xf32, #tpu.memory_space<vmem>>, vector<1x16x1xf32>
    %43 = vector.shape_cast %42 : vector<1x16x1xf32> to vector<16x1xf32>
    %44 = arith.truncf %41 : vector<16x32xf32> to vector<16x32xbf16>
    %c0_32 = arith.constant 0 : index
    %c0_33 = arith.constant 0 : index
    %45 = vector.load %arg11[%c0_32, %c0_33] : memref<32x16xbf16, #tpu.memory_space<vmem>>, vector<32x16xbf16>
    %cst_34 = arith.constant dense<0.000000e+00> : vector<16x16xf32>
    %46 = tpu.matmul %44, %45, %cst_34 {dimension_numbers = #tpu.dot_dimension_numbers<[1], [0], [0], [1], [0, 0, 1, 1], [], []>} : vector<16x32xbf16>, vector<32x16xbf16>, vector<16x16xf32> -> vector<16x16xf32>
    %c0_35 = arith.constant 0 : index
    %c0_36 = arith.constant 0 : index
    %47 = vector.load %arg12[%c0_35, %c0_36] : memref<1x16xf32, #tpu.memory_space<vmem>>, vector<1x16xf32>
    %48 = vector.broadcast %47 : vector<1x16xf32> to vector<16x16xf32>
    %49 = arith.addf %46, %48 : vector<16x16xf32>
    %cst_37 = arith.constant 0.000000e+00 : f32
    %50 = vector.broadcast %cst_37 : f32 to vector<16x16xf32>
    %51 = arith.maximumf %49, %50 : vector<16x16xf32>
    %52 = arith.truncf %51 : vector<16x16xf32> to vector<16x16xbf16>
    %c0_38 = arith.constant 0 : index
    %c0_39 = arith.constant 0 : index
    %53 = vector.load %arg13[%c0_38, %c0_39] : memref<16x1xbf16, #tpu.memory_space<vmem>>, vector<16x1xbf16>
    %cst_40 = arith.constant dense<0.000000e+00> : vector<16x1xf32>
    %54 = tpu.matmul %52, %53, %cst_40 {dimension_numbers = #tpu.dot_dimension_numbers<[1], [0], [0], [1], [0, 0, 1, 1], [], []>} : vector<16x16xbf16>, vector<16x1xbf16>, vector<16x1xf32> -> vector<16x1xf32>
    %c0_41 = arith.constant 0 : index
    %c0_42 = arith.constant 0 : index
    %55 = vector.load %arg14[%c0_41, %c0_42] : memref<1x1xf32, #tpu.memory_space<vmem>>, vector<1x1xf32>
    %56 = vector.broadcast %55 : vector<1x1xf32> to vector<16x1xf32>
    %57 = arith.addf %54, %56 : vector<16x1xf32>
    %cst_43 = arith.constant 5.000000e-01 : f32
    %58 = vector.broadcast %cst_43 : f32 to vector<16x1xf32>
    %59 = arith.cmpf ogt, %43, %58 : vector<16x1xf32>
    %cst_44 = arith.constant -1.000000e+09 : f32
    %60 = vector.broadcast %cst_44 : f32 to vector<16x1xf32>
    %61 = arith.select %59, %60, %57 : vector<16x1xi1>, vector<16x1xf32>
    %cst_45 = arith.constant dense<0xFF800000> : vector<1xf32>
    %62 = vector.multi_reduction <maximumf>, %61, %cst_45 [0] : vector<16x1xf32> to vector<1xf32>
    %cst_46 = arith.constant 0xFF800000 : f32
    %63 = vector.broadcast %cst_46 : f32 to vector<1xf32>
    %64 = arith.maximumf %63, %62 : vector<1xf32>
    %65 = vector.shape_cast %64 : vector<1xf32> to vector<1x1xf32>
    %66 = vector.broadcast %65 : vector<1x1xf32> to vector<16x1xf32>
    %67 = arith.subf %61, %66 : vector<16x1xf32>
    %68 = math.exp %67 : vector<16x1xf32>
    %cst_47 = arith.constant dense<0.000000e+00> : vector<1xf32>
    %69 = vector.multi_reduction <add>, %68, %cst_47 [0] : vector<16x1xf32> to vector<1xf32>
    %70 = vector.shape_cast %69 : vector<1xf32> to vector<1x1xf32>
    %71 = vector.broadcast %70 : vector<1x1xf32> to vector<16x1xf32>
    %72 = arith.divf %68, %71 : vector<16x1xf32>
    %73 = tpu.transpose %72, [1, 0] : vector<16x1xf32> -> vector<1x16xf32>
    %cst_48 = arith.constant dense<0.000000e+00> : vector<1x32xf32>
    %74 = tpu.matmul %73, %41, %cst_48 {dimension_numbers = #tpu.dot_dimension_numbers<[1], [0], [0], [1], [0, 0, 1, 1], [], []>} : vector<1x16xf32>, vector<16x32xf32>, vector<1x32xf32> -> vector<1x32xf32>
    %75 = arith.truncf %74 : vector<1x32xf32> to vector<1x32xbf16>
    %c0_49 = arith.constant 0 : index
    %c0_50 = arith.constant 0 : index
    %76 = vector.load %arg15[%c0_49, %c0_50] : memref<32x64xbf16, #tpu.memory_space<vmem>>, vector<32x64xbf16>
    %cst_51 = arith.constant dense<0.000000e+00> : vector<1x64xf32>
    %77 = tpu.matmul %75, %76, %cst_51 {dimension_numbers = #tpu.dot_dimension_numbers<[1], [0], [0], [1], [0, 0, 1, 1], [], []>} : vector<1x32xbf16>, vector<32x64xbf16>, vector<1x64xf32> -> vector<1x64xf32>
    %c0_52 = arith.constant 0 : index
    %c0_53 = arith.constant 0 : index
    %78 = vector.load %arg16[%c0_52, %c0_53] : memref<1x64xf32, #tpu.memory_space<vmem>>, vector<1x64xf32>
    %79 = arith.addf %77, %78 : vector<1x64xf32>
    %80 = arith.addf %39, %79 : vector<1x64xf32>
    %c0_54 = arith.constant 0 : index
    %c0_55 = arith.constant 0 : index
    %81 = vector.load %arg17[%c0_54, %c0_55] : memref<1x64xf32, #tpu.memory_space<vmem>>, vector<1x64xf32>
    %c0_56 = arith.constant 0 : index
    %c0_57 = arith.constant 0 : index
    %82 = vector.load %arg18[%c0_56, %c0_57] : memref<1x64xf32, #tpu.memory_space<vmem>>, vector<1x64xf32>
    %cst_58 = arith.constant dense<0.000000e+00> : vector<1xf32>
    %83 = vector.multi_reduction <add>, %80, %cst_58 [1] : vector<1x64xf32> to vector<1xf32>
    %84 = vector.shape_cast %83 : vector<1xf32> to vector<1x1xf32>
    %cst_59 = arith.constant 6.400000e+01 : f32
    %85 = vector.broadcast %cst_59 : f32 to vector<1x1xf32>
    %86 = arith.divf %84, %85 : vector<1x1xf32>
    %87 = vector.broadcast %86 : vector<1x1xf32> to vector<1x64xf32>
    %88 = arith.subf %80, %87 : vector<1x64xf32>
    %89 = arith.mulf %88, %88 : vector<1x64xf32>
    %cst_60 = arith.constant dense<0.000000e+00> : vector<1xf32>
    %90 = vector.multi_reduction <add>, %89, %cst_60 [1] : vector<1x64xf32> to vector<1xf32>
    %91 = vector.shape_cast %90 : vector<1xf32> to vector<1x1xf32>
    %cst_61 = arith.constant 6.300000e+01 : f32
    %92 = vector.broadcast %cst_61 : f32 to vector<1x1xf32>
    %93 = arith.divf %91, %92 : vector<1x1xf32>
    %94 = vector.broadcast %86 : vector<1x1xf32> to vector<1x64xf32>
    %95 = arith.subf %80, %94 : vector<1x64xf32>
    %96 = arith.mulf %81, %95 : vector<1x64xf32>
    %97 = math.sqrt %93 : vector<1x1xf32>
    %cst_62 = arith.constant 9.99999997E-7 : f32
    %98 = vector.broadcast %cst_62 : f32 to vector<1x1xf32>
    %99 = arith.addf %97, %98 : vector<1x1xf32>
    %100 = vector.broadcast %99 : vector<1x1xf32> to vector<1x64xf32>
    %101 = arith.divf %96, %100 : vector<1x64xf32>
    %102 = arith.addf %101, %82 : vector<1x64xf32>
    %103 = arith.truncf %102 : vector<1x64xf32> to vector<1x64xbf16>
    %c0_63 = arith.constant 0 : index
    %c0_64 = arith.constant 0 : index
    %104 = vector.load %arg19[%c0_63, %c0_64] : memref<64x10xbf16, #tpu.memory_space<vmem>>, vector<64x10xbf16>
    %cst_65 = arith.constant dense<0.000000e+00> : vector<1x10xf32>
    %105 = tpu.matmul %103, %104, %cst_65 {dimension_numbers = #tpu.dot_dimension_numbers<[1], [0], [0], [1], [0, 0, 1, 1], [], []>} : vector<1x64xbf16>, vector<64x10xbf16>, vector<1x10xf32> -> vector<1x10xf32>
    %c0_66 = arith.constant 0 : index
    %c0_67 = arith.constant 0 : index
    %106 = vector.load %arg20[%c0_66, %c0_67] : memref<1x10xf32, #tpu.memory_space<vmem>>, vector<1x10xf32>
    %107 = arith.addf %105, %106 : vector<1x10xf32>
    %c0_68 = arith.constant 0 : index
    %c0_69 = arith.constant 0 : index
    %c0_70 = arith.constant 0 : index
    %108 = vector.load %arg25[%c0_68, %c0_69, %c0_70] : memref<1x1x10xf32, #tpu.memory_space<vmem>>, vector<1x1x10xf32>
    %109 = vector.shape_cast %108 : vector<1x1x10xf32> to vector<1x10xf32>
    %110 = vector.shape_cast %107 : vector<1x10xf32> to vector<1x1x10xf32>
    tpu.vector_store %arg25[%c0_68, %c0_69, %c0_70], %110 {strides = array<i32>} : memref<1x1x10xf32, #tpu.memory_space<vmem>>, vector<1x1x10xf32>,
    %111 = math.tanh %39 : vector<1x64xf32>
    %112 = arith.negf %79 : vector<1x64xf32>
    %113 = math.exp %112 : vector<1x64xf32>
    %cst_71 = arith.constant 1.000000e+00 : f32
    %114 = vector.broadcast %cst_71 : f32 to vector<1x64xf32>
    %115 = arith.addf %114, %113 : vector<1x64xf32>
    %116 = arith.divf %114, %115 : vector<1x64xf32>
    %117 = arith.mulf %111, %116 : vector<1x64xf32>
    %c0_72 = arith.constant 0 : index
    %c0_73 = arith.constant 0 : index
    %118 = vector.load %arg21[%c0_72, %c0_73] : memref<1x64xf32, #tpu.memory_space<vmem>>, vector<1x64xf32>
    %c0_74 = arith.constant 0 : index
    %c0_75 = arith.constant 0 : index
    %119 = vector.load %arg22[%c0_74, %c0_75] : memref<1x64xf32, #tpu.memory_space<vmem>>, vector<1x64xf32>
    %cst_76 = arith.constant dense<0.000000e+00> : vector<1xf32>
    %120 = vector.multi_reduction <add>, %117, %cst_76 [1] : vector<1x64xf32> to vector<1xf32>
    %121 = vector.shape_cast %120 : vector<1xf32> to vector<1x1xf32>
    %cst_77 = arith.constant 6.400000e+01 : f32
    %122 = vector.broadcast %cst_77 : f32 to vector<1x1xf32>
    %123 = arith.divf %121, %122 : vector<1x1xf32>
    %124 = vector.broadcast %123 : vector<1x1xf32> to vector<1x64xf32>
    %125 = arith.subf %117, %124 : vector<1x64xf32>
    %126 = arith.mulf %125, %125 : vector<1x64xf32>
    %cst_78 = arith.constant dense<0.000000e+00> : vector<1xf32>
    %127 = vector.multi_reduction <add>, %126, %cst_78 [1] : vector<1x64xf32> to vector<1xf32>
    %128 = vector.shape_cast %127 : vector<1xf32> to vector<1x1xf32>
    %cst_79 = arith.constant 6.300000e+01 : f32
    %129 = vector.broadcast %cst_79 : f32 to vector<1x1xf32>
    %130 = arith.divf %128, %129 : vector<1x1xf32>
    %131 = vector.broadcast %123 : vector<1x1xf32> to vector<1x64xf32>
    %132 = arith.subf %117, %131 : vector<1x64xf32>
    %133 = arith.mulf %118, %132 : vector<1x64xf32>
    %134 = math.sqrt %130 : vector<1x1xf32>
    %cst_80 = arith.constant 9.99999997E-7 : f32
    %135 = vector.broadcast %cst_80 : f32 to vector<1x1xf32>
    %136 = arith.addf %134, %135 : vector<1x1xf32>
    %137 = vector.broadcast %136 : vector<1x1xf32> to vector<1x64xf32>
    %138 = arith.divf %133, %137 : vector<1x64xf32>
    %139 = arith.addf %138, %119 : vector<1x64xf32>
    %140 = arith.truncf %139 : vector<1x64xf32> to vector<1x64xbf16>
    %c0_81 = arith.constant 0 : index
    %c0_82 = arith.constant 0 : index
    %141 = vector.load %arg23[%c0_81, %c0_82] : memref<64x10xbf16, #tpu.memory_space<vmem>>, vector<64x10xbf16>
    %cst_83 = arith.constant dense<0.000000e+00> : vector<1x10xf32>
    %142 = tpu.matmul %140, %141, %cst_83 {dimension_numbers = #tpu.dot_dimension_numbers<[1], [0], [0], [1], [0, 0, 1, 1], [], []>} : vector<1x64xbf16>, vector<64x10xbf16>, vector<1x10xf32> -> vector<1x10xf32>
    %c0_84 = arith.constant 0 : index
    %c0_85 = arith.constant 0 : index
    %143 = vector.load %arg24[%c0_84, %c0_85] : memref<1x10xf32, #tpu.memory_space<vmem>>, vector<1x10xf32>
    %144 = arith.addf %142, %143 : vector<1x10xf32>
    %c0_86 = arith.constant 0 : index
    %c0_87 = arith.constant 0 : index
    %c0_88 = arith.constant 0 : index
    %145 = vector.load %arg26[%c0_86, %c0_87, %c0_88] : memref<1x1x10xf32, #tpu.memory_space<vmem>>, vector<1x1x10xf32>
    %146 = vector.shape_cast %145 : vector<1x1x10xf32> to vector<1x10xf32>
    %147 = vector.shape_cast %144 : vector<1x10xf32> to vector<1x1x10xf32>
    tpu.vector_store %arg26[%c0_86, %c0_87, %c0_88], %147 {strides = array<i32>} : memref<1x1x10xf32, #tpu.memory_space<vmem>>, vector<1x1x10xf32>,
    return
  }
  func.func @transform_0(%arg0: i32) -> (i32, i32, i32) {
    %c0_i32 = arith.constant 0 : i32
    %c0_i32_0 = arith.constant 0 : i32
    %c0_i32_1 = arith.constant 0 : i32
    return %arg0, %c0_i32, %c0_i32_0 : i32, i32, i32
  }
  func.func @transform_1(%arg0: i32) -> (i32, i32, i32) {
    %c0_i32 = arith.constant 0 : i32
    %c0_i32_0 = arith.constant 0 : i32
    %c0_i32_1 = arith.constant 0 : i32
    return %arg0, %c0_i32, %c0_i32_0 : i32, i32, i32
  }
  func.func @transform_2(%arg0: i32) -> (i32, i32, i32) {
    %c0_i32 = arith.constant 0 : i32
    %c0_i32_0 = arith.constant 0 : i32
    %c0_i32_1 = arith.constant 0 : i32
    return %arg0, %c0_i32, %c0_i32_0 : i32, i32, i32
  }
  func.func @transform_3(%arg0: i32) -> (i32, i32, i32) {
    %c0_i32 = arith.constant 0 : i32
    %c0_i32_0 = arith.constant 0 : i32
    %c0_i32_1 = arith.constant 0 : i32
    return %arg0, %c0_i32, %c0_i32_0 : i32, i32, i32
  }
  func.func @transform_4(%arg0: i32) -> (i32, i32) {
    %c0_i32 = arith.constant 0 : i32
    %c0_i32_0 = arith.constant 0 : i32
    %c0_i32_1 = arith.constant 0 : i32
    return %c0_i32, %c0_i32_0 : i32, i32
  }
  func.func @transform_5(%arg0: i32) -> (i32, i32) {
    %c0_i32 = arith.constant 0 : i32
    %c0_i32_0 = arith.constant 0 : i32
    %c0_i32_1 = arith.constant 0 : i32
    return %c0_i32, %c0_i32_0 : i32, i32
  }
  func.func @transform_6(%arg0: i32) -> (i32, i32) {
    %c0_i32 = arith.constant 0 : i32
    %c0_i32_0 = arith.constant 0 : i32
    %c0_i32_1 = arith.constant 0 : i32
    return %c0_i32, %c0_i32_0 : i32, i32
  }
  func.func @transform_7(%arg0: i32) -> (i32, i32) {
    %c0_i32 = arith.constant 0 : i32
    %c0_i32_0 = arith.constant 0 : i32
    %c0_i32_1 = arith.constant 0 : i32
    return %c0_i32, %c0_i32_0 : i32, i32
  }
  func.func @transform_8(%arg0: i32) -> (i32, i32) {
    %c0_i32 = arith.constant 0 : i32
    %c0_i32_0 = arith.constant 0 : i32
    %c0_i32_1 = arith.constant 0 : i32
    return %c0_i32, %c0_i32_0 : i32, i32
  }
  func.func @transform_9(%arg0: i32) -> (i32, i32) {
    %c0_i32 = arith.constant 0 : i32
    %c0_i32_0 = arith.constant 0 : i32
    %c0_i32_1 = arith.constant 0 : i32
    return %c0_i32, %c0_i32_0 : i32, i32
  }
  func.func @transform_10(%arg0: i32) -> (i32, i32) {
    %c0_i32 = arith.constant 0 : i32
    %c0_i32_0 = arith.constant 0 : i32
    %c0_i32_1 = arith.constant 0 : i32
    return %c0_i32, %c0_i32_0 : i32, i32
  }
  func.func @transform_11(%arg0: i32) -> (i32, i32) {
    %c0_i32 = arith.constant 0 : i32
    %c0_i32_0 = arith.constant 0 : i32
    %c0_i32_1 = arith.constant 0 : i32
    return %c0_i32, %c0_i32_0 : i32, i32
  }
  func.func @transform_12(%arg0: i32) -> (i32, i32) {
    %c0_i32 = arith.constant 0 : i32
    %c0_i32_0 = arith.constant 0 : i32
    %c0_i32_1 = arith.constant 0 : i32
    return %c0_i32, %c0_i32_0 : i32, i32
  }
  func.func @transform_13(%arg0: i32) -> (i32, i32) {
    %c0_i32 = arith.constant 0 : i32
    %c0_i32_0 = arith.constant 0 : i32
    %c0_i32_1 = arith.constant 0 : i32
    return %c0_i32, %c0_i32_0 : i32, i32
  }
  func.func @transform_14(%arg0: i32) -> (i32, i32) {
    %c0_i32 = arith.constant 0 : i32
    %c0_i32_0 = arith.constant 0 : i32
    %c0_i32_1 = arith.constant 0 : i32
    return %c0_i32, %c0_i32_0 : i32, i32
  }
  func.func @transform_15(%arg0: i32) -> (i32, i32) {
    %c0_i32 = arith.constant 0 : i32
    %c0_i32_0 = arith.constant 0 : i32
    %c0_i32_1 = arith.constant 0 : i32
    return %c0_i32, %c0_i32_0 : i32, i32
  }
  func.func @transform_16(%arg0: i32) -> (i32, i32) {
    %c0_i32 = arith.constant 0 : i32
    %c0_i32_0 = arith.constant 0 : i32
    %c0_i32_1 = arith.constant 0 : i32
    return %c0_i32, %c0_i32_0 : i32, i32
  }
  func.func @transform_17(%arg0: i32) -> (i32, i32) {
    %c0_i32 = arith.constant 0 : i32
    %c0_i32_0 = arith.constant 0 : i32
    %c0_i32_1 = arith.constant 0 : i32
    return %c0_i32, %c0_i32_0 : i32, i32
  }
  func.func @transform_18(%arg0: i32) -> (i32, i32) {
    %c0_i32 = arith.constant 0 : i32
    %c0_i32_0 = arith.constant 0 : i32
    %c0_i32_1 = arith.constant 0 : i32
    return %c0_i32, %c0_i32_0 : i32, i32
  }
  func.func @transform_19(%arg0: i32) -> (i32, i32) {
    %c0_i32 = arith.constant 0 : i32
    %c0_i32_0 = arith.constant 0 : i32
    %c0_i32_1 = arith.constant 0 : i32
    return %c0_i32, %c0_i32_0 : i32, i32
  }
  func.func @transform_20(%arg0: i32) -> (i32, i32) {
    %c0_i32 = arith.constant 0 : i32
    %c0_i32_0 = arith.constant 0 : i32
    %c0_i32_1 = arith.constant 0 : i32
    return %c0_i32, %c0_i32_0 : i32, i32
  }
  func.func @transform_21(%arg0: i32) -> (i32, i32) {
    %c0_i32 = arith.constant 0 : i32
    %c0_i32_0 = arith.constant 0 : i32
    %c0_i32_1 = arith.constant 0 : i32
    return %c0_i32, %c0_i32_0 : i32, i32
  }
  func.func @transform_22(%arg0: i32) -> (i32, i32) {
    %c0_i32 = arith.constant 0 : i32
    %c0_i32_0 = arith.constant 0 : i32
    %c0_i32_1 = arith.constant 0 : i32
    return %c0_i32, %c0_i32_0 : i32, i32
  }
  func.func @transform_23(%arg0: i32) -> (i32, i32) {
    %c0_i32 = arith.constant 0 : i32
    %c0_i32_0 = arith.constant 0 : i32
    %c0_i32_1 = arith.constant 0 : i32
    return %c0_i32, %c0_i32_0 : i32, i32
  }
  func.func @transform_24(%arg0: i32) -> (i32, i32, i32) {
    %c0_i32 = arith.constant 0 : i32
    %c0_i32_0 = arith.constant 0 : i32
    %c0_i32_1 = arith.constant 0 : i32
    return %arg0, %c0_i32, %c0_i32_0 : i32, i32, i32
  }
  func.func @transform_25(%arg0: i32) -> (i32, i32, i32) {
    %c0_i32 = arith.constant 0 : i32
    %c0_i32_0 = arith.constant 0 : i32
    %c0_i32_1 = arith.constant 0 : i32
    return %arg0, %c0_i32, %c0_i32_0 : i32, i32, i32
  }
}

</mosaic_0001>

<llo_original>
// kernel: _lambda_.8
$region0: #{_lambda_.8}
  #allocation0 [shape = 'u32[]', space=smem, size = 0x4, offset = 0x4, fixed_abs, tag = 'smem constant byte address 0x4 - core index']
  #allocation1 [shape = 'u32[144,128]{1,0:T(1,128)}', space=vmem, size = 0x12000, scoped, tag = 'internal scratch']
  %s0 = inlined_call_operand.vmem [shape: f32[32,64], index: 0, kind: input, shape index: {}]
  %s1 = inlined_call_operand.vmem [shape: bf16[64,32], index: 1, kind: input, shape index: {}]
  %s2 = inlined_call_operand.vmem [shape: f32[1,32], index: 2, kind: input, shape index: {}]
  %s3 = inlined_call_operand.vmem [shape: f32[32,32], index: 3, kind: output, shape index: {}]
  %s4 = sld [smem:[#allocation0]]
  $region22: #{_lambda_.8} parent=0
    _
  %s6 = ssub.s32 1, %s4
  %s7 = scalar_select 0, %s6, %s4
  // Predicated region
  $region2: #{_lambda_.8} parent=0 // pred_check
    _
  $region3: #{_lambda_.8} parent=0 // pred_check_branch
    %9 = sbr.rel (0) target = $region5
  $region4: #{_lambda_.8} parent=0 // pred_region
    _
  $region5: #{_lambda_.8} parent=0 // pred_fallthru
    _
  // Predicated region
  $region6: #{_lambda_.8} parent=0 // pred_check
    _
  $region7: #{_lambda_.8} parent=0 // pred_check_branch
    %11 = sbr.rel (0) target = $region9
  $region8: #{_lambda_.8} parent=0 // pred_region
    _
  $region9: #{_lambda_.8} parent=0 // pred_fallthru
    _
  // Predicated region
  $region10: #{_lambda_.8} parent=0 // pred_check
    _
  $region11: #{_lambda_.8} parent=0 // pred_check_branch
    %13 = sbr.rel (0) target = $region13
  $region12: #{_lambda_.8} parent=0 // pred_region
    _
  $region13: #{_lambda_.8} parent=0 // pred_fallthru
    _
  %v15 = vld [vmem:[%s0] sm:$0xff]
  %v16 = vld [vmem:[%s0 + $0x8] sm:$0xff]
  %v17 = vld [vmem:[%s0 + $0x10] sm:$0xff]
  %v18 = vld [vmem:[%s0 + $0x18] sm:$0xff]
  %v19 = vpack.c.bf16 %v16, %v15
  %v20 = vpack.c.bf16 %v18, %v17
  %v21 = vld [vmem:[%s1] sm:$0xf]
  %v22 = vld [vmem:[%s1 + $0x4] sm:$0xf]
  %v23 = vld [vmem:[%s1 + $0x8] sm:$0xf]
  %v24 = vld [vmem:[%s1 + $0xc] sm:$0xf]
  %v25 = vld [vmem:[%s1 + $0x10] sm:$0xf]
  %v26 = vld [vmem:[%s1 + $0x14] sm:$0xf]
  %v27 = vld [vmem:[%s1 + $0x18] sm:$0xf]
  %v28 = vld [vmem:[%s1 + $0x1c] sm:$0xf]
  %v29 = vld [vmem:[%s2] sm:$0x1]
  %v31 = vlaneseq
  %v32 = vshrl.u32 %v31, 7
  %v33 = vsub.s32 0, %v32
  %v34 = vrot.slane %v29, %v33
  %v44 = vunpack.c.l.b16 %v21
  %v45 = vunpack.c.l.b16 %v22
  %v46 = vunpack.c.l.b16 %v23
  %v47 = vunpack.c.l.b16 %v24
  %v48 = vunpack.c.l.b16 %v25
  %v49 = vunpack.c.l.b16 %v26
  %v50 = vunpack.c.l.b16 %v27
  %v51 = vunpack.c.l.b16 %v28
  %v52 = vpack.c.b16 %v45, %v44
  %v53 = vpack.c.b16 %v47, %v46
  %v54 = vpack.c.b16 %v49, %v48
  %v55 = vpack.c.b16 %v51, %v50
  %vm60 = vcmask 523264
  %v62 = vsel %vm60, %v19, 0
  %v65 = vsel %vm60, %v20, 0
  %67 = vmatprep.subr.bf16.mxu0 0
  %68 = vmatpush1.bf16.msra.mxu0 0
  %69 = vmatprep.subr.bf16.mxu0 0
  %70 = vmatpush1.bf16.msra.mxu0 0
  %71 = vmatprep.subr.bf16.mxu0 0
  %72 = vmatpush1.bf16.msra.mxu0 0
  %73 = vmatprep.subr.bf16.mxu0 0
  %74 = vmatpush1.bf16.msra.mxu0 0
  %75 = vmatprep.subr.bf16.mxu0 0
  %76 = vmatpush1.bf16.msra.mxu0 %v55
  %77 = vmatprep.subr.bf16.mxu0 0
  %78 = vmatpush1.bf16.msra.mxu0 %v54
  %79 = vmatprep.subr.bf16.mxu0 0
  %80 = vmatpush1.bf16.msra.mxu0 %v53
  %81 = vmatprep.subr.bf16.mxu0 0
  %82 = vmatpush1.bf16.msra.mxu0 %v52
  %83 = vmatprep.subr.bf16.mxu0 0
  %84 = vmatpush2.bf16.msra.mxu0 0
  %85 = vmatprep.subr.bf16.mxu0 0
  %86 = vmatpush2.bf16.msra.mxu0 0
  %87 = vmatprep.subr.bf16.mxu0 0
  %88 = vmatpush2.bf16.msra.mxu0 0
  %89 = vmatprep.subr.bf16.mxu0 0
  %90 = vmatpush2.bf16.msra.mxu0 0
  %91 = vmatprep.subr.bf16.mxu0 0
  %92 = vmatpush2.bf16.msra.mxu0 0
  %93 = vmatprep.subr.bf16.mxu0 0
  %94 = vmatpush2.bf16.msra.mxu0 0
  %95 = vmatprep.subr.bf16.mxu0 0
  %96 = vmatpush2.bf16.msra.mxu0 0
  %97 = vmatprep.subr.bf16.mxu0 0
  %98 = vmatpush2.bf16.msra.mxu0 0
  %99 = vmatprep.mubr.bf16.mxu0 0
  %100 = vmatmul.mubr.bf16.gmra.mxu0 %v62
  %v101 = vpop.f32.mrf.mxu0
  %v102 = vadd.f32 %v34, %v101
  %v103 = vpop.f32.mrf.mxu0
  %v104 = vpop.f32.mrf.mxu0
  %v105 = vadd.f32 %v34, %v104
  %v106 = vpop.f32.mrf.mxu0
  %107 = vmatprep.mubr.bf16.mxu0 0
  %108 = vmatmul.mubr.bf16.gmra.mxu0 %v65
  %v109 = vpop.f32.mrf.mxu0
  %v110 = vadd.f32 %v34, %v109
  %v111 = vpop.f32.mrf.mxu0
  %v112 = vpop.f32.mrf.mxu0
  %v113 = vadd.f32 %v34, %v112
  %v114 = vpop.f32.mrf.mxu0
  %115 = vdwg.mxu0
  %vm116 = vcmask 261120
  %117 = vst.msk [vmem:[%s3] sm:$0xff] %vm116, %v102
  %118 = vst.msk [vmem:[%s3 + $0x8] sm:$0xff] %vm116, %v105
  %119 = vst.msk [vmem:[%s3 + $0x10] sm:$0xff] %vm116, %v110
  %120 = vst.msk [vmem:[%s3 + $0x18] sm:$0xff] %vm116, %v113
  // Predicated region
  $region14: #{_lambda_.8} parent=0 // pred_check
    _
  $region15: #{_lambda_.8} parent=0 // pred_check_branch
    %122 = sbr.rel (0) target = $region17
  $region16: #{_lambda_.8} parent=0 // pred_region
    _
  $region17: #{_lambda_.8} parent=0 // pred_fallthru
    _
  // Predicated region
  $region18: #{_lambda_.8} parent=0 // pred_check
    _
  $region19: #{_lambda_.8} parent=0 // pred_check_branch
    %124 = sbr.rel (0) target = $region21
  $region20: #{_lambda_.8} parent=0 // pred_region
    _
  $region21: #{_lambda_.8} parent=0 // pred_fallthru
    _

// kernel: _lambda_.7
$region0: #{_lambda_.7}
  #allocation0 [shape = 'u32[]', space=smem, size = 0x4, offset = 0x4, fixed_abs, tag = 'smem constant byte address 0x4 - core index']
  #allocation1 [shape = 'u32[144,128]{1,0:T(1,128)}', space=vmem, size = 0x12000, scoped, tag = 'internal scratch']
  %s0 = inlined_call_operand.vmem [shape: f32[2,8,32], index: 0, kind: input, shape index: {}]
  %s1 = inlined_call_operand.vmem [shape: f32[32,128], index: 1, kind: input, shape index: {}]
  %s2 = inlined_call_operand.vmem [shape: f32[32,128], index: 2, kind: input, shape index: {}]
  %s3 = inlined_call_operand.vmem [shape: f32[1,128], index: 3, kind: input, shape index: {}]
  %s4 = inlined_call_operand.vmem [shape: f32[8,2,32], index: 4, kind: output, shape index: {}]
  %s5 = sld [smem:[#allocation0]]
  $region26: #{_lambda_.7} parent=0
    _
  %s7 = ssub.s32 1, %s5
  %s8 = scalar_select 0, %s7, %s5
  // Predicated region
  $region2: #{_lambda_.7} parent=0 // pred_check
    _
  $region3: #{_lambda_.7} parent=0 // pred_check_branch
    %10 = sbr.rel (0) target = $region5
  $region4: #{_lambda_.7} parent=0 // pred_region
    _
  $region5: #{_lambda_.7} parent=0 // pred_fallthru
    _
  // Predicated region
  $region6: #{_lambda_.7} parent=0 // pred_check
    _
  $region7: #{_lambda_.7} parent=0 // pred_check_branch
    %12 = sbr.rel (0) target = $region9
  $region8: #{_lambda_.7} parent=0 // pred_region
    _
  $region9: #{_lambda_.7} parent=0 // pred_fallthru
    _
  // Predicated region
  $region10: #{_lambda_.7} parent=0 // pred_check
    _
  $region11: #{_lambda_.7} parent=0 // pred_check_branch
    %14 = sbr.rel (0) target = $region13
  $region12: #{_lambda_.7} parent=0 // pred_region
    _
  $region13: #{_lambda_.7} parent=0 // pred_fallthru
    _
  // Predicated region
  $region14: #{_lambda_.7} parent=0 // pred_check
    _
  $region15: #{_lambda_.7} parent=0 // pred_check_branch
    %16 = sbr.rel (0) target = $region17
  $region16: #{_lambda_.7} parent=0 // pred_region
    _
  $region17: #{_lambda_.7} parent=0 // pred_fallthru
    _
  %v17 = vld [vmem:[%s0] sm:$0xff]
  %v18 = vld [vmem:[%s0 + $0x8] sm:$0xff]
  %v19 = vld [vmem:[%s1] sm:$0xff]
  %v20 = vld [vmem:[%s1 + $0x8] sm:$0xff]
  %v21 = vld [vmem:[%s1 + $0x10] sm:$0xff]
  %v22 = vld [vmem:[%s1 + $0x18] sm:$0xff]
  %v23 = vld [vmem:[%s2] sm:$0xff]
  %v24 = vld [vmem:[%s2 + $0x8] sm:$0xff]
  %v25 = vld [vmem:[%s2 + $0x10] sm:$0xff]
  %v26 = vld [vmem:[%s2 + $0x18] sm:$0xff]
  %v27 = vld [vmem:[%s3] sm:$0x1]
  %v29 = vlaneseq
  %v30 = vshrl.u32 %v29, 7
  %v31 = vsub.s32 0, %v30
  %v32 = vrot.slane %v27, %v31
  %v36 = vrot.slane %v18, 7
  %vm37 = vcmask 1041409
  %v38 = vsel %vm37, %v36, %v17
  %vm39 = vcmask 261120
  %v40 = vsel %vm39, %v38, 0
  %42 = vmatprep.subr.mxu0 0.0
  %43 = vmatpush1.msra.mxu0 0.0
  %44 = vmatprep.subr.mxu0 0.0
  %45 = vmatpush1.msra.mxu0 0.0
  %46 = vmatprep.subr.mxu0 0.0
  %47 = vmatpush1.msra.mxu0 0.0
  %48 = vmatprep.subr.mxu0 0.0
  %49 = vmatpush1.msra.mxu0 0.0
  %50 = vmatprep.subr.mxu0 0.0
  %51 = vmatpush1.msra.mxu0 0.0
  %52 = vmatprep.subr.mxu0 0.0
  %53 = vmatpush1.msra.mxu0 0.0
  %54 = vmatprep.subr.mxu0 0.0
  %55 = vmatpush1.msra.mxu0 0.0
  %56 = vmatprep.subr.mxu0 0.0
  %57 = vmatpush1.msra.mxu0 0.0
  %58 = vmatprep.subr.mxu0 0.0
  %59 = vmatpush1.msra.mxu0 0.0
  %60 = vmatprep.subr.mxu0 0.0
  %61 = vmatpush1.msra.mxu0 0.0
  %62 = vmatprep.subr.mxu0 0.0
  %63 = vmatpush1.msra.mxu0 0.0
  %64 = vmatprep.subr.mxu0 0.0
  %65 = vmatpush1.msra.mxu0 0.0
  %66 = vmatprep.subr.mxu0 0.0
  %67 = vmatpush1.msra.mxu0 %v22
  %68 = vmatprep.subr.mxu0 0.0
  %69 = vmatpush1.msra.mxu0 %v21
  %70 = vmatprep.subr.mxu0 0.0
  %71 = vmatpush1.msra.mxu0 %v20
  %72 = vmatprep.subr.mxu0 0.0
  %73 = vmatpush1.msra.mxu0 %v19
  %74 = vmatprep.subr.mxu0 0.0
  %75 = vmatpush2.msra.mxu0 0.0
  %76 = vmatprep.subr.mxu0 0.0
  %77 = vmatpush2.msra.mxu0 0.0
  %78 = vmatprep.subr.mxu0 0.0
  %79 = vmatpush2.msra.mxu0 0.0
  %80 = vmatprep.subr.mxu0 0.0
  %81 = vmatpush2.msra.mxu0 0.0
  %82 = vmatprep.subr.mxu0 0.0
  %83 = vmatpush2.msra.mxu0 0.0
  %84 = vmatprep.subr.mxu0 0.0
  %85 = vmatpush2.msra.mxu0 0.0
  %86 = vmatprep.subr.mxu0 0.0
  %87 = vmatpush2.msra.mxu0 0.0
  %88 = vmatprep.subr.mxu0 0.0
  %89 = vmatpush2.msra.mxu0 0.0
  %90 = vmatprep.subr.mxu0 0.0
  %91 = vmatpush2.msra.mxu0 0.0
  %92 = vmatprep.subr.mxu0 0.0
  %93 = vmatpush2.msra.mxu0 0.0
  %94 = vmatprep.subr.mxu0 0.0
  %95 = vmatpush2.msra.mxu0 0.0
  %96 = vmatprep.subr.mxu0 0.0
  %97 = vmatpush2.msra.mxu0 0.0
  %98 = vmatprep.subr.mxu0 0.0
  %99 = vmatpush2.msra.mxu0 0.0
  %100 = vmatprep.subr.mxu0 0.0
  %101 = vmatpush2.msra.mxu0 0.0
  %102 = vmatprep.subr.mxu0 0.0
  %103 = vmatpush2.msra.mxu0 0.0
  %104 = vmatprep.subr.mxu0 0.0
  %105 = vmatpush2.msra.mxu0 0.0
  %106 = vmatprep.mubr.f32.mxu0 0.0
  %107 = vmatmul.mubr.f32.gmra.mxu0 %v40
  %v108 = vpop.f32.mrf.mxu0
  %v109 = vadd.f32 %v32, %v108
  %v110 = vpop.f32.mrf.mxu0
  %111 = vdwg.mxu0
  %v113 = vsel %vm39, 0.0, 0
  %115 = vmatprep.subr.mxu0 0.0
  %116 = vmatpush1.msra.mxu0 0.0
  %117 = vmatprep.subr.mxu0 0.0
  %118 = vmatpush1.msra.mxu0 0.0
  %119 = vmatprep.subr.mxu0 0.0
  %120 = vmatpush1.msra.mxu0 0.0
  %121 = vmatprep.subr.mxu0 0.0
  %122 = vmatpush1.msra.mxu0 0.0
  %123 = vmatprep.subr.mxu0 0.0
  %124 = vmatpush1.msra.mxu0 0.0
  %125 = vmatprep.subr.mxu0 0.0
  %126 = vmatpush1.msra.mxu0 0.0
  %127 = vmatprep.subr.mxu0 0.0
  %128 = vmatpush1.msra.mxu0 0.0
  %129 = vmatprep.subr.mxu0 0.0
  %130 = vmatpush1.msra.mxu0 0.0
  %131 = vmatprep.subr.mxu0 0.0
  %132 = vmatpush1.msra.mxu0 0.0
  %133 = vmatprep.subr.mxu0 0.0
  %134 = vmatpush1.msra.mxu0 0.0
  %135 = vmatprep.subr.mxu0 0.0
  %136 = vmatpush1.msra.mxu0 0.0
  %137 = vmatprep.subr.mxu0 0.0
  %138 = vmatpush1.msra.mxu0 0.0
  %139 = vmatprep.subr.mxu0 0.0
  %140 = vmatpush1.msra.mxu0 %v26
  %141 = vmatprep.subr.mxu0 0.0
  %142 = vmatpush1.msra.mxu0 %v25
  %143 = vmatprep.subr.mxu0 0.0
  %144 = vmatpush1.msra.mxu0 %v24
  %145 = vmatprep.subr.mxu0 0.0
  %146 = vmatpush1.msra.mxu0 %v23
  %147 = vmatprep.subr.mxu0 0.0
  %148 = vmatpush2.msra.mxu0 0.0
  %149 = vmatprep.subr.mxu0 0.0
  %150 = vmatpush2.msra.mxu0 0.0
  %151 = vmatprep.subr.mxu0 0.0
  %152 = vmatpush2.msra.mxu0 0.0
  %153 = vmatprep.subr.mxu0 0.0
  %154 = vmatpush2.msra.mxu0 0.0
  %155 = vmatprep.subr.mxu0 0.0
  %156 = vmatpush2.msra.mxu0 0.0
  %157 = vmatprep.subr.mxu0 0.0
  %158 = vmatpush2.msra.mxu0 0.0
  %159 = vmatprep.subr.mxu0 0.0
  %160 = vmatpush2.msra.mxu0 0.0
  %161 = vmatprep.subr.mxu0 0.0
  %162 = vmatpush2.msra.mxu0 0.0
  %163 = vmatprep.subr.mxu0 0.0
  %164 = vmatpush2.msra.mxu0 0.0
  %165 = vmatprep.subr.mxu0 0.0
  %166 = vmatpush2.msra.mxu0 0.0
  %167 = vmatprep.subr.mxu0 0.0
  %168 = vmatpush2.msra.mxu0 0.0
  %169 = vmatprep.subr.mxu0 0.0
  %170 = vmatpush2.msra.mxu0 0.0
  %171 = vmatprep.subr.mxu0 0.0
  %172 = vmatpush2.msra.mxu0 0.0
  %173 = vmatprep.subr.mxu0 0.0
  %174 = vmatpush2.msra.mxu0 0.0
  %175 = vmatprep.subr.mxu0 0.0
  %176 = vmatpush2.msra.mxu0 0.0
  %177 = vmatprep.subr.mxu0 0.0
  %178 = vmatpush2.msra.mxu0 0.0
  %179 = vmatprep.mubr.f32.mxu0 0.0
  %180 = vmatmul.mubr.f32.gmra.mxu0 %v113
  %v181 = vpop.f32.mrf.mxu0
  %v182 = vadd.f32 0.0, %v181
  %v183 = vpop.f32.mrf.mxu0
  %184 = vdwg.mxu0
  %v185 = vadd.f32 %v109, %v182
  %v186 = vxor.u32 %v185, 2147483648
  %v187 = vmul.f32 %v186, 1.442695
  %v188 = vpow.pop %v187
  %v189 = vadd.f32 %v188, 1.0
  %v190 = vrcp.pop %v189
  %v191 = vmul.f32 1.0, %v190
  %v192 = vtanh.pop %v185
  %v193 = vmul.f32 %v191, 0.0
  %195 = vrot.lane.b32.xlu0 %v192, 64
  %v196 = vpop.permute.xlu0 %195
  %v198 = vmul.f32 %v191, %v196
  %200 = vrot.lane.b32.xlu0 %v198, 32
  %v201 = vpop.permute.xlu0 %200
  %v203 = vadd.f32 %v193, %v201
  %v204 = vtanh.pop %v203
  %206 = vrot.lane.b32.xlu0 %v204, 64
  %v207 = vpop.permute.xlu0 %206
  %v209 = vmul.f32 %v191, %v207
  %211 = vrot.lane.b32.xlu0 %v209, 32
  %v212 = vpop.permute.xlu0 %211
  %vm214 = vcmask 254976
  %215 = vst.msk [vmem:[%s4] sm:$0x3] %vm214, %v212
  %v216 = vrot.slane %v17, 1
  %v217 = vsel %vm37, %v18, %v216
  %v218 = vsel %vm39, %v217, 0
  %220 = vmatprep.subr.mxu0 0.0
  %221 = vmatpush1.msra.mxu0 0.0
  %222 = vmatprep.subr.mxu0 0.0
  %223 = vmatpush1.msra.mxu0 0.0
  %224 = vmatprep.subr.mxu0 0.0
  %225 = vmatpush1.msra.mxu0 0.0
  %226 = vmatprep.subr.mxu0 0.0
  %227 = vmatpush1.msra.mxu0 0.0
  %228 = vmatprep.subr.mxu0 0.0
  %229 = vmatpush1.msra.mxu0 0.0
  %230 = vmatprep.subr.mxu0 0.0
  %231 = vmatpush1.msra.mxu0 0.0
  %232 = vmatprep.subr.mxu0 0.0
  %233 = vmatpush1.msra.mxu0 0.0
  %234 = vmatprep.subr.mxu0 0.0
  %235 = vmatpush1.msra.mxu0 0.0
  %236 = vmatprep.subr.mxu0 0.0
  %237 = vmatpush1.msra.mxu0 0.0
  %238 = vmatprep.subr.mxu0 0.0
  %239 = vmatpush1.msra.mxu0 0.0
  %240 = vmatprep.subr.mxu0 0.0
  %241 = vmatpush1.msra.mxu0 0.0
  %242 = vmatprep.subr.mxu0 0.0
  %243 = vmatpush1.msra.mxu0 0.0
  %244 = vmatprep.subr.mxu0 0.0
  %245 = vmatpush1.msra.mxu0 %v22
  %246 = vmatprep.subr.mxu0 0.0
  %247 = vmatpush1.msra.mxu0 %v21
  %248 = vmatprep.subr.mxu0 0.0
  %249 = vmatpush1.msra.mxu0 %v20
  %250 = vmatprep.subr.mxu0 0.0
  %251 = vmatpush1.msra.mxu0 %v19
  %252 = vmatprep.subr.mxu0 0.0
  %253 = vmatpush2.msra.mxu0 0.0
  %254 = vmatprep.subr.mxu0 0.0
  %255 = vmatpush2.msra.mxu0 0.0
  %256 = vmatprep.subr.mxu0 0.0
  %257 = vmatpush2.msra.mxu0 0.0
  %258 = vmatprep.subr.mxu0 0.0
  %259 = vmatpush2.msra.mxu0 0.0
  %260 = vmatprep.subr.mxu0 0.0
  %261 = vmatpush2.msra.mxu0 0.0
  %262 = vmatprep.subr.mxu0 0.0
  %263 = vmatpush2.msra.mxu0 0.0
  %264 = vmatprep.subr.mxu0 0.0
  %265 = vmatpush2.msra.mxu0 0.0
  %266 = vmatprep.subr.mxu0 0.0
  %267 = vmatpush2.msra.mxu0 0.0
  %268 = vmatprep.subr.mxu0 0.0
  %269 = vmatpush2.msra.mxu0 0.0
  %270 = vmatprep.subr.mxu0 0.0
  %271 = vmatpush2.msra.mxu0 0.0
  %272 = vmatprep.subr.mxu0 0.0
  %273 = vmatpush2.msra.mxu0 0.0
  %274 = vmatprep.subr.mxu0 0.0
  %275 = vmatpush2.msra.mxu0 0.0
  %276 = vmatprep.subr.mxu0 0.0
  %277 = vmatpush2.msra.mxu0 0.0
  %278 = vmatprep.subr.mxu0 0.0
  %279 = vmatpush2.msra.mxu0 0.0
  %280 = vmatprep.subr.mxu0 0.0
  %281 = vmatpush2.msra.mxu0 0.0
  %282 = vmatprep.subr.mxu0 0.0
  %283 = vmatpush2.msra.mxu0 0.0
  %284 = vmatprep.mubr.f32.mxu0 0.0
  %285 = vmatmul.mubr.f32.gmra.mxu0 %v218
  %v286 = vpop.f32.mrf.mxu0
  %v287 = vadd.f32 %v32, %v286
  %v288 = vpop.f32.mrf.mxu0
  %289 = vdwg.mxu0
  %v290 = vsel %vm39, %v212, 0
  %292 = vmatprep.subr.mxu0 0.0
  %293 = vmatpush1.msra.mxu0 0.0
  %294 = vmatprep.subr.mxu0 0.0
  %295 = vmatpush1.msra.mxu0 0.0
  %296 = vmatprep.subr.mxu0 0.0
  %297 = vmatpush1.msra.mxu0 0.0
  %298 = vmatprep.subr.mxu0 0.0
  %299 = vmatpush1.msra.mxu0 0.0
  %300 = vmatprep.subr.mxu0 0.0
  %301 = vmatpush1.msra.mxu0 0.0
  %302 = vmatprep.subr.mxu0 0.0
  %303 = vmatpush1.msra.mxu0 0.0
  %304 = vmatprep.subr.mxu0 0.0
  %305 = vmatpush1.msra.mxu0 0.0
  %306 = vmatprep.subr.mxu0 0.0
  %307 = vmatpush1.msra.mxu0 0.0
  %308 = vmatprep.subr.mxu0 0.0
  %309 = vmatpush1.msra.mxu0 0.0
  %310 = vmatprep.subr.mxu0 0.0
  %311 = vmatpush1.msra.mxu0 0.0
  %312 = vmatprep.subr.mxu0 0.0
  %313 = vmatpush1.msra.mxu0 0.0
  %314 = vmatprep.subr.mxu0 0.0
  %315 = vmatpush1.msra.mxu0 0.0
  %316 = vmatprep.subr.mxu0 0.0
  %317 = vmatpush1.msra.mxu0 %v26
  %318 = vmatprep.subr.mxu0 0.0
  %319 = vmatpush1.msra.mxu0 %v25
  %320 = vmatprep.subr.mxu0 0.0
  %321 = vmatpush1.msra.mxu0 %v24
  %322 = vmatprep.subr.mxu0 0.0
  %323 = vmatpush1.msra.mxu0 %v23
  %324 = vmatprep.subr.mxu0 0.0
  %325 = vmatpush2.msra.mxu0 0.0
  %326 = vmatprep.subr.mxu0 0.0
  %327 = vmatpush2.msra.mxu0 0.0
  %328 = vmatprep.subr.mxu0 0.0
  %329 = vmatpush2.msra.mxu0 0.0
  %330 = vmatprep.subr.mxu0 0.0
  %331 = vmatpush2.msra.mxu0 0.0
  %332 = vmatprep.subr.mxu0 0.0
  %333 = vmatpush2.msra.mxu0 0.0
  %334 = vmatprep.subr.mxu0 0.0
  %335 = vmatpush2.msra.mxu0 0.0
  %336 = vmatprep.subr.mxu0 0.0
  %337 = vmatpush2.msra.mxu0 0.0
  %338 = vmatprep.subr.mxu0 0.0
  %339 = vmatpush2.msra.mxu0 0.0
  %340 = vmatprep.subr.mxu0 0.0
  %341 = vmatpush2.msra.mxu0 0.0
  %342 = vmatprep.subr.mxu0 0.0
  %343 = vmatpush2.msra.mxu0 0.0
  %344 = vmatprep.subr.mxu0 0.0
  %345 = vmatpush2.msra.mxu0 0.0
  %346 = vmatprep.subr.mxu0 0.0
  %347 = vmatpush2.msra.mxu0 0.0
  %348 = vmatprep.subr.mxu0 0.0
  %349 = vmatpush2.msra.mxu0 0.0
  %350 = vmatprep.subr.mxu0 0.0
  %351 = vmatpush2.msra.mxu0 0.0
  %352 = vmatprep.subr.mxu0 0.0
  %353 = vmatpush2.msra.mxu0 0.0
  %354 = vmatprep.subr.mxu0 0.0
  %355 = vmatpush2.msra.mxu0 0.0
  %356 = vmatprep.mubr.f32.mxu0 0.0
  %357 = vmatmul.mubr.f32.gmra.mxu0 %v290
  %v358 = vpop.f32.mrf.mxu0
  %v359 = vadd.f32 0.0, %v358
  %v360 = vpop.f32.mrf.mxu0
  %361 = vdwg.mxu0
  %v362 = vadd.f32 %v287, %v359
  %v363 = vxor.u32 %v362, 2147483648
  %v364 = vmul.f32 %v363, 1.442695
  %v365 = vpow.pop %v364
  %v366 = vadd.f32 %v365, 1.0
  %v367 = vrcp.pop %v366
  %v368 = vmul.f32 1.0, %v367
  %v369 = vtanh.pop %v362
  %v370 = vmul.f32 %v368, %v203
  %372 = vrot.lane.b32.xlu0 %v369, 64
  %v373 = vpop.permute.xlu0 %372
  %v375 = vmul.f32 %v368, %v373
  %377 = vrot.lane.b32.xlu0 %v375, 32
  %v378 = vpop.permute.xlu0 %377
  %v380 = vadd.f32 %v370, %v378
  %v381 = vtanh.pop %v380
  %383 = vrot.lane.b32.xlu0 %v381, 64
  %v384 = vpop.permute.xlu0 %383
  %v386 = vmul.f32 %v368, %v384
  %388 = vrot.lane.b32.xlu0 %v386, 32
  %v389 = vpop.permute.xlu0 %388
  %s391 = scalar_lea.vmem %s4, 2
  %392 = vst.msk [vmem:[%s391] sm:$0x3] %vm214, %v389
  %v393 = vrot.slane %v17, 2
  %v394 = vrot.slane %v18, 1
  %v395 = vsel %vm37, %v394, %v393
  %v396 = vsel %vm39, %v395, 0
  %398 = vmatprep.subr.mxu0 0.0
  %399 = vmatpush1.msra.mxu0 0.0
  %400 = vmatprep.subr.mxu0 0.0
  %401 = vmatpush1.msra.mxu0 0.0
  %402 = vmatprep.subr.mxu0 0.0
  %403 = vmatpush1.msra.mxu0 0.0
  %404 = vmatprep.subr.mxu0 0.0
  %405 = vmatpush1.msra.mxu0 0.0
  %406 = vmatprep.subr.mxu0 0.0
  %407 = vmatpush1.msra.mxu0 0.0
  %408 = vmatprep.subr.mxu0 0.0
  %409 = vmatpush1.msra.mxu0 0.0
  %410 = vmatprep.subr.mxu0 0.0
  %411 = vmatpush1.msra.mxu0 0.0
  %412 = vmatprep.subr.mxu0 0.0
  %413 = vmatpush1.msra.mxu0 0.0
  %414 = vmatprep.subr.mxu0 0.0
  %415 = vmatpush1.msra.mxu0 0.0
  %416 = vmatprep.subr.mxu0 0.0
  %417 = vmatpush1.msra.mxu0 0.0
  %418 = vmatprep.subr.mxu0 0.0
  %419 = vmatpush1.msra.mxu0 0.0
  %420 = vmatprep.subr.mxu0 0.0
  %421 = vmatpush1.msra.mxu0 0.0
  %422 = vmatprep.subr.mxu0 0.0
  %423 = vmatpush1.msra.mxu0 %v22
  %424 = vmatprep.subr.mxu0 0.0
  %425 = vmatpush1.msra.mxu0 %v21
  %426 = vmatprep.subr.mxu0 0.0
  %427 = vmatpush1.msra.mxu0 %v20
  %428 = vmatprep.subr.mxu0 0.0
  %429 = vmatpush1.msra.mxu0 %v19
  %430 = vmatprep.subr.mxu0 0.0
  %431 = vmatpush2.msra.mxu0 0.0
  %432 = vmatprep.subr.mxu0 0.0
  %433 = vmatpush2.msra.mxu0 0.0
  %434 = vmatprep.subr.mxu0 0.0
  %435 = vmatpush2.msra.mxu0 0.0
  %436 = vmatprep.subr.mxu0 0.0
  %437 = vmatpush2.msra.mxu0 0.0
  %438 = vmatprep.subr.mxu0 0.0
  %439 = vmatpush2.msra.mxu0 0.0
  %440 = vmatprep.subr.mxu0 0.0
  %441 = vmatpush2.msra.mxu0 0.0
  %442 = vmatprep.subr.mxu0 0.0
  %443 = vmatpush2.msra.mxu0 0.0
  %444 = vmatprep.subr.mxu0 0.0
  %445 = vmatpush2.msra.mxu0 0.0
  %446 = vmatprep.subr.mxu0 0.0
  %447 = vmatpush2.msra.mxu0 0.0
  %448 = vmatprep.subr.mxu0 0.0
  %449 = vmatpush2.msra.mxu0 0.0
  %450 = vmatprep.subr.mxu0 0.0
  %451 = vmatpush2.msra.mxu0 0.0
  %452 = vmatprep.subr.mxu0 0.0
  %453 = vmatpush2.msra.mxu0 0.0
  %454 = vmatprep.subr.mxu0 0.0
  %455 = vmatpush2.msra.mxu0 0.0
  %456 = vmatprep.subr.mxu0 0.0
  %457 = vmatpush2.msra.mxu0 0.0
  %458 = vmatprep.subr.mxu0 0.0
  %459 = vmatpush2.msra.mxu0 0.0
  %460 = vmatprep.subr.mxu0 0.0
  %461 = vmatpush2.msra.mxu0 0.0
  %462 = vmatprep.mubr.f32.mxu0 0.0
  %463 = vmatmul.mubr.f32.gmra.mxu0 %v396
  %v464 = vpop.f32.mrf.mxu0
  %v465 = vadd.f32 %v32, %v464
  %v466 = vpop.f32.mrf.mxu0
  %467 = vdwg.mxu0
  %v468 = vsel %vm39, %v389, 0
  %470 = vmatprep.subr.mxu0 0.0
  %471 = vmatpush1.msra.mxu0 0.0
  %472 = vmatprep.subr.mxu0 0.0
  %473 = vmatpush1.msra.mxu0 0.0
  %474 = vmatprep.subr.mxu0 0.0
  %475 = vmatpush1.msra.mxu0 0.0
  %476 = vmatprep.subr.mxu0 0.0
  %477 = vmatpush1.msra.mxu0 0.0
  %478 = vmatprep.subr.mxu0 0.0
  %479 = vmatpush1.msra.mxu0 0.0
  %480 = vmatprep.subr.mxu0 0.0
  %481 = vmatpush1.msra.mxu0 0.0
  %482 = vmatprep.subr.mxu0 0.0
  %483 = vmatpush1.msra.mxu0 0.0
  %484 = vmatprep.subr.mxu0 0.0
  %485 = vmatpush1.msra.mxu0 0.0
  %486 = vmatprep.subr.mxu0 0.0
  %487 = vmatpush1.msra.mxu0 0.0
  %488 = vmatprep.subr.mxu0 0.0
  %489 = vmatpush1.msra.mxu0 0.0
  %490 = vmatprep.subr.mxu0 0.0
  %491 = vmatpush1.msra.mxu0 0.0
  %492 = vmatprep.subr.mxu0 0.0
  %493 = vmatpush1.msra.mxu0 0.0
  %494 = vmatprep.subr.mxu0 0.0
  %495 = vmatpush1.msra.mxu0 %v26
  %496 = vmatprep.subr.mxu0 0.0
  %497 = vmatpush1.msra.mxu0 %v25
  %498 = vmatprep.subr.mxu0 0.0
  %499 = vmatpush1.msra.mxu0 %v24
  %500 = vmatprep.subr.mxu0 0.0
  %501 = vmatpush1.msra.mxu0 %v23
  %502 = vmatprep.subr.mxu0 0.0
  %503 = vmatpush2.msra.mxu0 0.0
  %504 = vmatprep.subr.mxu0 0.0
  %505 = vmatpush2.msra.mxu0 0.0
  %506 = vmatprep.subr.mxu0 0.0
  %507 = vmatpush2.msra.mxu0 0.0
  %508 = vmatprep.subr.mxu0 0.0
  %509 = vmatpush2.msra.mxu0 0.0
  %510 = vmatprep.subr.mxu0 0.0
  %511 = vmatpush2.msra.mxu0 0.0
  %512 = vmatprep.subr.mxu0 0.0
  %513 = vmatpush2.msra.mxu0 0.0
  %514 = vmatprep.subr.mxu0 0.0
  %515 = vmatpush2.msra.mxu0 0.0
  %516 = vmatprep.subr.mxu0 0.0
  %517 = vmatpush2.msra.mxu0 0.0
  %518 = vmatprep.subr.mxu0 0.0
  %519 = vmatpush2.msra.mxu0 0.0
  %520 = vmatprep.subr.mxu0 0.0
  %521 = vmatpush2.msra.mxu0 0.0
  %522 = vmatprep.subr.mxu0 0.0
  %523 = vmatpush2.msra.mxu0 0.0
  %524 = vmatprep.subr.mxu0 0.0
  %525 = vmatpush2.msra.mxu0 0.0
  %526 = vmatprep.subr.mxu0 0.0
  %527 = vmatpush2.msra.mxu0 0.0
  %528 = vmatprep.subr.mxu0 0.0
  %529 = vmatpush2.msra.mxu0 0.0
  %530 = vmatprep.subr.mxu0 0.0
  %531 = vmatpush2.msra.mxu0 0.0
  %532 = vmatprep.subr.mxu0 0.0
  %533 = vmatpush2.msra.mxu0 0.0
  %534 = vmatprep.mubr.f32.mxu0 0.0
  %535 = vmatmul.mubr.f32.gmra.mxu0 %v468
  %v536 = vpop.f32.mrf.mxu0
  %v537 = vadd.f32 0.0, %v536
  %v538 = vpop.f32.mrf.mxu0
  %539 = vdwg.mxu0
  %v540 = vadd.f32 %v465, %v537
  %v541 = vxor.u32 %v540, 2147483648
  %v542 = vmul.f32 %v541, 1.442695
  %v543 = vpow.pop %v542
  %v544 = vadd.f32 %v543, 1.0
  %v545 = vrcp.pop %v544
  %v546 = vmul.f32 1.0, %v545
  %v547 = vtanh.pop %v540
  %v548 = vmul.f32 %v546, %v380
  %550 = vrot.lane.b32.xlu0 %v547, 64
  %v551 = vpop.permute.xlu0 %550
  %v553 = vmul.f32 %v546, %v551
  %555 = vrot.lane.b32.xlu0 %v553, 32
  %v556 = vpop.permute.xlu0 %555
  %v558 = vadd.f32 %v548, %v556
  %v559 = vtanh.pop %v558
  %561 = vrot.lane.b32.xlu0 %v559, 64
  %v562 = vpop.permute.xlu0 %561
  %v564 = vmul.f32 %v546, %v562
  %566 = vrot.lane.b32.xlu0 %v564, 32
  %v567 = vpop.permute.xlu0 %566
  %s569 = scalar_lea.vmem %s4, 4
  %570 = vst.msk [vmem:[%s569] sm:$0x3] %vm214, %v567
  %v571 = vrot.slane %v17, 3
  %v572 = vrot.slane %v18, 2
  %v573 = vsel %vm37, %v572, %v571
  %v574 = vsel %vm39, %v573, 0
  %576 = vmatprep.subr.mxu0 0.0
  %577 = vmatpush1.msra.mxu0 0.0
  %578 = vmatprep.subr.mxu0 0.0
  %579 = vmatpush1.msra.mxu0 0.0
  %580 = vmatprep.subr.mxu0 0.0
  %581 = vmatpush1.msra.mxu0 0.0
  %582 = vmatprep.subr.mxu0 0.0
  %583 = vmatpush1.msra.mxu0 0.0
  %584 = vmatprep.subr.mxu0 0.0
  %585 = vmatpush1.msra.mxu0 0.0
  %586 = vmatprep.subr.mxu0 0.0
  %587 = vmatpush1.msra.mxu0 0.0
  %588 = vmatprep.subr.mxu0 0.0
  %589 = vmatpush1.msra.mxu0 0.0
  %590 = vmatprep.subr.mxu0 0.0
  %591 = vmatpush1.msra.mxu0 0.0
  %592 = vmatprep.subr.mxu0 0.0
  %593 = vmatpush1.msra.mxu0 0.0
  %594 = vmatprep.subr.mxu0 0.0
  %595 = vmatpush1.msra.mxu0 0.0
  %596 = vmatprep.subr.mxu0 0.0
  %597 = vmatpush1.msra.mxu0 0.0
  %598 = vmatprep.subr.mxu0 0.0
  %599 = vmatpush1.msra.mxu0 0.0
  %600 = vmatprep.subr.mxu0 0.0
  %601 = vmatpush1.msra.mxu0 %v22
  %602 = vmatprep.subr.mxu0 0.0
  %603 = vmatpush1.msra.mxu0 %v21
  %604 = vmatprep.subr.mxu0 0.0
  %605 = vmatpush1.msra.mxu0 %v20
  %606 = vmatprep.subr.mxu0 0.0
  %607 = vmatpush1.msra.mxu0 %v19
  %608 = vmatprep.subr.mxu0 0.0
  %609 = vmatpush2.msra.mxu0 0.0
  %610 = vmatprep.subr.mxu0 0.0
  %611 = vmatpush2.msra.mxu0 0.0
  %612 = vmatprep.subr.mxu0 0.0
  %613 = vmatpush2.msra.mxu0 0.0
  %614 = vmatprep.subr.mxu0 0.0
  %615 = vmatpush2.msra.mxu0 0.0
  %616 = vmatprep.subr.mxu0 0.0
  %617 = vmatpush2.msra.mxu0 0.0
  %618 = vmatprep.subr.mxu0 0.0
  %619 = vmatpush2.msra.mxu0 0.0
  %620 = vmatprep.subr.mxu0 0.0
  %621 = vmatpush2.msra.mxu0 0.0
  %622 = vmatprep.subr.mxu0 0.0
  %623 = vmatpush2.msra.mxu0 0.0
  %624 = vmatprep.subr.mxu0 0.0
  %625 = vmatpush2.msra.mxu0 0.0
  %626 = vmatprep.subr.mxu0 0.0
  %627 = vmatpush2.msra.mxu0 0.0
  %628 = vmatprep.subr.mxu0 0.0
  %629 = vmatpush2.msra.mxu0 0.0
  %630 = vmatprep.subr.mxu0 0.0
  %631 = vmatpush2.msra.mxu0 0.0
  %632 = vmatprep.subr.mxu0 0.0
  %633 = vmatpush2.msra.mxu0 0.0
  %634 = vmatprep.subr.mxu0 0.0
  %635 = vmatpush2.msra.mxu0 0.0
  %636 = vmatprep.subr.mxu0 0.0
  %637 = vmatpush2.msra.mxu0 0.0
  %638 = vmatprep.subr.mxu0 0.0
  %639 = vmatpush2.msra.mxu0 0.0
  %640 = vmatprep.mubr.f32.mxu0 0.0
  %641 = vmatmul.mubr.f32.gmra.mxu0 %v574
  %v642 = vpop.f32.mrf.mxu0
  %v643 = vadd.f32 %v32, %v642
  %v644 = vpop.f32.mrf.mxu0
  %645 = vdwg.mxu0
  %v646 = vsel %vm39, %v567, 0
  %648 = vmatprep.subr.mxu0 0.0
  %649 = vmatpush1.msra.mxu0 0.0
  %650 = vmatprep.subr.mxu0 0.0
  %651 = vmatpush1.msra.mxu0 0.0
  %652 = vmatprep.subr.mxu0 0.0
  %653 = vmatpush1.msra.mxu0 0.0
  %654 = vmatprep.subr.mxu0 0.0
  %655 = vmatpush1.msra.mxu0 0.0
  %656 = vmatprep.subr.mxu0 0.0
  %657 = vmatpush1.msra.mxu0 0.0
  %658 = vmatprep.subr.mxu0 0.0
  %659 = vmatpush1.msra.mxu0 0.0
  %660 = vmatprep.subr.mxu0 0.0
  %661 = vmatpush1.msra.mxu0 0.0
  %662 = vmatprep.subr.mxu0 0.0
  %663 = vmatpush1.msra.mxu0 0.0
  %664 = vmatprep.subr.mxu0 0.0
  %665 = vmatpush1.msra.mxu0 0.0
  %666 = vmatprep.subr.mxu0 0.0
  %667 = vmatpush1.msra.mxu0 0.0
  %668 = vmatprep.subr.mxu0 0.0
  %669 = vmatpush1.msra.mxu0 0.0
  %670 = vmatprep.subr.mxu0 0.0
  %671 = vmatpush1.msra.mxu0 0.0
  %672 = vmatprep.subr.mxu0 0.0
  %673 = vmatpush1.msra.mxu0 %v26
  %674 = vmatprep.subr.mxu0 0.0
  %675 = vmatpush1.msra.mxu0 %v25
  %676 = vmatprep.subr.mxu0 0.0
  %677 = vmatpush1.msra.mxu0 %v24
  %678 = vmatprep.subr.mxu0 0.0
  %679 = vmatpush1.msra.mxu0 %v23
  %680 = vmatprep.subr.mxu0 0.0
  %681 = vmatpush2.msra.mxu0 0.0
  %682 = vmatprep.subr.mxu0 0.0
  %683 = vmatpush2.msra.mxu0 0.0
  %684 = vmatprep.subr.mxu0 0.0
  %685 = vmatpush2.msra.mxu0 0.0
  %686 = vmatprep.subr.mxu0 0.0
  %687 = vmatpush2.msra.mxu0 0.0
  %688 = vmatprep.subr.mxu0 0.0
  %689 = vmatpush2.msra.mxu0 0.0
  %690 = vmatprep.subr.mxu0 0.0
  %691 = vmatpush2.msra.mxu0 0.0
  %692 = vmatprep.subr.mxu0 0.0
  %693 = vmatpush2.msra.mxu0 0.0
  %694 = vmatprep.subr.mxu0 0.0
  %695 = vmatpush2.msra.mxu0 0.0
  %696 = vmatprep.subr.mxu0 0.0
  %697 = vmatpush2.msra.mxu0 0.0
  %698 = vmatprep.subr.mxu0 0.0
  %699 = vmatpush2.msra.mxu0 0.0
  %700 = vmatprep.subr.mxu0 0.0
  %701 = vmatpush2.msra.mxu0 0.0
  %702 = vmatprep.subr.mxu0 0.0
  %703 = vmatpush2.msra.mxu0 0.0
  %704 = vmatprep.subr.mxu0 0.0
  %705 = vmatpush2.msra.mxu0 0.0
  %706 = vmatprep.subr.mxu0 0.0
  %707 = vmatpush2.msra.mxu0 0.0
  %708 = vmatprep.subr.mxu0 0.0
  %709 = vmatpush2.msra.mxu0 0.0
  %710 = vmatprep.subr.mxu0 0.0
  %711 = vmatpush2.msra.mxu0 0.0
  %712 = vmatprep.mubr.f32.mxu0 0.0
  %713 = vmatmul.mubr.f32.gmra.mxu0 %v646
  %v714 = vpop.f32.mrf.mxu0
  %v715 = vadd.f32 0.0, %v714
  %v716 = vpop.f32.mrf.mxu0
  %717 = vdwg.mxu0
  %v718 = vadd.f32 %v643, %v715
  %v719 = vxor.u32 %v718, 2147483648
  %v720 = vmul.f32 %v719, 1.442695
  %v721 = vpow.pop %v720
  %v722 = vadd.f32 %v721, 1.0
  %v723 = vrcp.pop %v722
  %v724 = vmul.f32 1.0, %v723
  %v725 = vtanh.pop %v718
  %v726 = vmul.f32 %v724, %v558
  %728 = vrot.lane.b32.xlu0 %v725, 64
  %v729 = vpop.permute.xlu0 %728
  %v731 = vmul.f32 %v724, %v729
  %733 = vrot.lane.b32.xlu0 %v731, 32
  %v734 = vpop.permute.xlu0 %733
  %v736 = vadd.f32 %v726, %v734
  %v737 = vtanh.pop %v736
  %739 = vrot.lane.b32.xlu0 %v737, 64
  %v740 = vpop.permute.xlu0 %739
  %v742 = vmul.f32 %v724, %v740
  %744 = vrot.lane.b32.xlu0 %v742, 32
  %v745 = vpop.permute.xlu0 %744
  %s747 = scalar_lea.vmem %s4, 6
  %748 = vst.msk [vmem:[%s747] sm:$0x3] %vm214, %v745
  %v749 = vrot.slane %v17, 4
  %v750 = vrot.slane %v18, 3
  %v751 = vsel %vm37, %v750, %v749
  %v752 = vsel %vm39, %v751, 0
  %754 = vmatprep.subr.mxu0 0.0
  %755 = vmatpush1.msra.mxu0 0.0
  %756 = vmatprep.subr.mxu0 0.0
  %757 = vmatpush1.msra.mxu0 0.0
  %758 = vmatprep.subr.mxu0 0.0
  %759 = vmatpush1.msra.mxu0 0.0
  %760 = vmatprep.subr.mxu0 0.0
  %761 = vmatpush1.msra.mxu0 0.0
  %762 = vmatprep.subr.mxu0 0.0
  %763 = vmatpush1.msra.mxu0 0.0
  %764 = vmatprep.subr.mxu0 0.0
  %765 = vmatpush1.msra.mxu0 0.0
  %766 = vmatprep.subr.mxu0 0.0
  %767 = vmatpush1.msra.mxu0 0.0
  %768 = vmatprep.subr.mxu0 0.0
  %769 = vmatpush1.msra.mxu0 0.0
  %770 = vmatprep.subr.mxu0 0.0
  %771 = vmatpush1.msra.mxu0 0.0
  %772 = vmatprep.subr.mxu0 0.0
  %773 = vmatpush1.msra.mxu0 0.0
  %774 = vmatprep.subr.mxu0 0.0
  %775 = vmatpush1.msra.mxu0 0.0
  %776 = vmatprep.subr.mxu0 0.0
  %777 = vmatpush1.msra.mxu0 0.0
  %778 = vmatprep.subr.mxu0 0.0
  %779 = vmatpush1.msra.mxu0 %v22
  %780 = vmatprep.subr.mxu0 0.0
  %781 = vmatpush1.msra.mxu0 %v21
  %782 = vmatprep.subr.mxu0 0.0
  %783 = vmatpush1.msra.mxu0 %v20
  %784 = vmatprep.subr.mxu0 0.0
  %785 = vmatpush1.msra.mxu0 %v19
  %786 = vmatprep.subr.mxu0 0.0
  %787 = vmatpush2.msra.mxu0 0.0
  %788 = vmatprep.subr.mxu0 0.0
  %789 = vmatpush2.msra.mxu0 0.0
  %790 = vmatprep.subr.mxu0 0.0
  %791 = vmatpush2.msra.mxu0 0.0
  %792 = vmatprep.subr.mxu0 0.0
  %793 = vmatpush2.msra.mxu0 0.0
  %794 = vmatprep.subr.mxu0 0.0
  %795 = vmatpush2.msra.mxu0 0.0
  %796 = vmatprep.subr.mxu0 0.0
  %797 = vmatpush2.msra.mxu0 0.0
  %798 = vmatprep.subr.mxu0 0.0
  %799 = vmatpush2.msra.mxu0 0.0
  %800 = vmatprep.subr.mxu0 0.0
  %801 = vmatpush2.msra.mxu0 0.0
  %802 = vmatprep.subr.mxu0 0.0
  %803 = vmatpush2.msra.mxu0 0.0
  %804 = vmatprep.subr.mxu0 0.0
  %805 = vmatpush2.msra.mxu0 0.0
  %806 = vmatprep.subr.mxu0 0.0
  %807 = vmatpush2.msra.mxu0 0.0
  %808 = vmatprep.subr.mxu0 0.0
  %809 = vmatpush2.msra.mxu0 0.0
  %810 = vmatprep.subr.mxu0 0.0
  %811 = vmatpush2.msra.mxu0 0.0
  %812 = vmatprep.subr.mxu0 0.0
  %813 = vmatpush2.msra.mxu0 0.0
  %814 = vmatprep.subr.mxu0 0.0
  %815 = vmatpush2.msra.mxu0 0.0
  %816 = vmatprep.subr.mxu0 0.0
  %817 = vmatpush2.msra.mxu0 0.0
  %818 = vmatprep.mubr.f32.mxu0 0.0
  %819 = vmatmul.mubr.f32.gmra.mxu0 %v752
  %v820 = vpop.f32.mrf.mxu0
  %v821 = vadd.f32 %v32, %v820
  %v822 = vpop.f32.mrf.mxu0
  %823 = vdwg.mxu0
  %v824 = vsel %vm39, %v745, 0
  %826 = vmatprep.subr.mxu0 0.0
  %827 = vmatpush1.msra.mxu0 0.0
  %828 = vmatprep.subr.mxu0 0.0
  %829 = vmatpush1.msra.mxu0 0.0
  %830 = vmatprep.subr.mxu0 0.0
  %831 = vmatpush1.msra.mxu0 0.0
  %832 = vmatprep.subr.mxu0 0.0
  %833 = vmatpush1.msra.mxu0 0.0
  %834 = vmatprep.subr.mxu0 0.0
  %835 = vmatpush1.msra.mxu0 0.0
  %836 = vmatprep.subr.mxu0 0.0
  %837 = vmatpush1.msra.mxu0 0.0
  %838 = vmatprep.subr.mxu0 0.0
  %839 = vmatpush1.msra.mxu0 0.0
  %840 = vmatprep.subr.mxu0 0.0
  %841 = vmatpush1.msra.mxu0 0.0
  %842 = vmatprep.subr.mxu0 0.0
  %843 = vmatpush1.msra.mxu0 0.0
  %844 = vmatprep.subr.mxu0 0.0
  %845 = vmatpush1.msra.mxu0 0.0
  %846 = vmatprep.subr.mxu0 0.0
  %847 = vmatpush1.msra.mxu0 0.0
  %848 = vmatprep.subr.mxu0 0.0
  %849 = vmatpush1.msra.mxu0 0.0
  %850 = vmatprep.subr.mxu0 0.0
  %851 = vmatpush1.msra.mxu0 %v26
  %852 = vmatprep.subr.mxu0 0.0
  %853 = vmatpush1.msra.mxu0 %v25
  %854 = vmatprep.subr.mxu0 0.0
  %855 = vmatpush1.msra.mxu0 %v24
  %856 = vmatprep.subr.mxu0 0.0
  %857 = vmatpush1.msra.mxu0 %v23
  %858 = vmatprep.subr.mxu0 0.0
  %859 = vmatpush2.msra.mxu0 0.0
  %860 = vmatprep.subr.mxu0 0.0
  %861 = vmatpush2.msra.mxu0 0.0
  %862 = vmatprep.subr.mxu0 0.0
  %863 = vmatpush2.msra.mxu0 0.0
  %864 = vmatprep.subr.mxu0 0.0
  %865 = vmatpush2.msra.mxu0 0.0
  %866 = vmatprep.subr.mxu0 0.0
  %867 = vmatpush2.msra.mxu0 0.0
  %868 = vmatprep.subr.mxu0 0.0
  %869 = vmatpush2.msra.mxu0 0.0
  %870 = vmatprep.subr.mxu0 0.0
  %871 = vmatpush2.msra.mxu0 0.0
  %872 = vmatprep.subr.mxu0 0.0
  %873 = vmatpush2.msra.mxu0 0.0
  %874 = vmatprep.subr.mxu0 0.0
  %875 = vmatpush2.msra.mxu0 0.0
  %876 = vmatprep.subr.mxu0 0.0
  %877 = vmatpush2.msra.mxu0 0.0
  %878 = vmatprep.subr.mxu0 0.0
  %879 = vmatpush2.msra.mxu0 0.0
  %880 = vmatprep.subr.mxu0 0.0
  %881 = vmatpush2.msra.mxu0 0.0
  %882 = vmatprep.subr.mxu0 0.0
  %883 = vmatpush2.msra.mxu0 0.0
  %884 = vmatprep.subr.mxu0 0.0
  %885 = vmatpush2.msra.mxu0 0.0
  %886 = vmatprep.subr.mxu0 0.0
  %887 = vmatpush2.msra.mxu0 0.0
  %888 = vmatprep.subr.mxu0 0.0
  %889 = vmatpush2.msra.mxu0 0.0
  %890 = vmatprep.mubr.f32.mxu0 0.0
  %891 = vmatmul.mubr.f32.gmra.mxu0 %v824
  %v892 = vpop.f32.mrf.mxu0
  %v893 = vadd.f32 0.0, %v892
  %v894 = vpop.f32.mrf.mxu0
  %895 = vdwg.mxu0
  %v896 = vadd.f32 %v821, %v893
  %v897 = vxor.u32 %v896, 2147483648
  %v898 = vmul.f32 %v897, 1.442695
  %v899 = vpow.pop %v898
  %v900 = vadd.f32 %v899, 1.0
  %v901 = vrcp.pop %v900
  %v902 = vmul.f32 1.0, %v901
  %v903 = vtanh.pop %v896
  %v904 = vmul.f32 %v902, %v736
  %906 = vrot.lane.b32.xlu0 %v903, 64
  %v907 = vpop.permute.xlu0 %906
  %v909 = vmul.f32 %v902, %v907
  %911 = vrot.lane.b32.xlu0 %v909, 32
  %v912 = vpop.permute.xlu0 %911
  %v914 = vadd.f32 %v904, %v912
  %v915 = vtanh.pop %v914
  %917 = vrot.lane.b32.xlu0 %v915, 64
  %v918 = vpop.permute.xlu0 %917
  %v920 = vmul.f32 %v902, %v918
  %922 = vrot.lane.b32.xlu0 %v920, 32
  %v923 = vpop.permute.xlu0 %922
  %s925 = scalar_lea.vmem %s4, 8
  %926 = vst.msk [vmem:[%s925] sm:$0x3] %vm214, %v923
  %v927 = vrot.slane %v17, 5
  %v928 = vrot.slane %v18, 4
  %v929 = vsel %vm37, %v928, %v927
  %v930 = vsel %vm39, %v929, 0
  %932 = vmatprep.subr.mxu0 0.0
  %933 = vmatpush1.msra.mxu0 0.0
  %934 = vmatprep.subr.mxu0 0.0
  %935 = vmatpush1.msra.mxu0 0.0
  %936 = vmatprep.subr.mxu0 0.0
  %937 = vmatpush1.msra.mxu0 0.0
  %938 = vmatprep.subr.mxu0 0.0
  %939 = vmatpush1.msra.mxu0 0.0
  %940 = vmatprep.subr.mxu0 0.0
  %941 = vmatpush1.msra.mxu0 0.0
  %942 = vmatprep.subr.mxu0 0.0
  %943 = vmatpush1.msra.mxu0 0.0
  %944 = vmatprep.subr.mxu0 0.0
  %945 = vmatpush1.msra.mxu0 0.0
  %946 = vmatprep.subr.mxu0 0.0
  %947 = vmatpush1.msra.mxu0 0.0
  %948 = vmatprep.subr.mxu0 0.0
  %949 = vmatpush1.msra.mxu0 0.0
  %950 = vmatprep.subr.mxu0 0.0
  %951 = vmatpush1.msra.mxu0 0.0
  %952 = vmatprep.subr.mxu0 0.0
  %953 = vmatpush1.msra.mxu0 0.0
  %954 = vmatprep.subr.mxu0 0.0
  %955 = vmatpush1.msra.mxu0 0.0
  %956 = vmatprep.subr.mxu0 0.0
  %957 = vmatpush1.msra.mxu0 %v22
  %958 = vmatprep.subr.mxu0 0.0
  %959 = vmatpush1.msra.mxu0 %v21
  %960 = vmatprep.subr.mxu0 0.0
  %961 = vmatpush1.msra.mxu0 %v20
  %962 = vmatprep.subr.mxu0 0.0
  %963 = vmatpush1.msra.mxu0 %v19
  %964 = vmatprep.subr.mxu0 0.0
  %965 = vmatpush2.msra.mxu0 0.0
  %966 = vmatprep.subr.mxu0 0.0
  %967 = vmatpush2.msra.mxu0 0.0
  %968 = vmatprep.subr.mxu0 0.0
  %969 = vmatpush2.msra.mxu0 0.0
  %970 = vmatprep.subr.mxu0 0.0
  %971 = vmatpush2.msra.mxu0 0.0
  %972 = vmatprep.subr.mxu0 0.0
  %973 = vmatpush2.msra.mxu0 0.0
  %974 = vmatprep.subr.mxu0 0.0
  %975 = vmatpush2.msra.mxu0 0.0
  %976 = vmatprep.subr.mxu0 0.0
  %977 = vmatpush2.msra.mxu0 0.0
  %978 = vmatprep.subr.mxu0 0.0
  %979 = vmatpush2.msra.mxu0 0.0
  %980 = vmatprep.subr.mxu0 0.0
  %981 = vmatpush2.msra.mxu0 0.0
  %982 = vmatprep.subr.mxu0 0.0
  %983 = vmatpush2.msra.mxu0 0.0
  %984 = vmatprep.subr.mxu0 0.0
  %985 = vmatpush2.msra.mxu0 0.0
  %986 = vmatprep.subr.mxu0 0.0
  %987 = vmatpush2.msra.mxu0 0.0
  %988 = vmatprep.subr.mxu0 0.0
  %989 = vmatpush2.msra.mxu0 0.0
  %990 = vmatprep.subr.mxu0 0.0
  %991 = vmatpush2.msra.mxu0 0.0
  %992 = vmatprep.subr.mxu0 0.0
  %993 = vmatpush2.msra.mxu0 0.0
  %994 = vmatprep.subr.mxu0 0.0
  %995 = vmatpush2.msra.mxu0 0.0
  %996 = vmatprep.mubr.f32.mxu0 0.0
  %997 = vmatmul.mubr.f32.gmra.mxu0 %v930
  %v998 = vpop.f32.mrf.mxu0
  %v999 = vadd.f32 %v32, %v998
  %v1000 = vpop.f32.mrf.mxu0
  %1001 = vdwg.mxu0
  %v1002 = vsel %vm39, %v923, 0
  %1004 = vmatprep.subr.mxu0 0.0
  %1005 = vmatpush1.msra.mxu0 0.0
  %1006 = vmatprep.subr.mxu0 0.0
  %1007 = vmatpush1.msra.mxu0 0.0
  %1008 = vmatprep.subr.mxu0 0.0
  %1009 = vmatpush1.msra.mxu0 0.0
  %1010 = vmatprep.subr.mxu0 0.0
  %1011 = vmatpush1.msra.mxu0 0.0
  %1012 = vmatprep.subr.mxu0 0.0
  %1013 = vmatpush1.msra.mxu0 0.0
  %1014 = vmatprep.subr.mxu0 0.0
  %1015 = vmatpush1.msra.mxu0 0.0
  %1016 = vmatprep.subr.mxu0 0.0
  %1017 = vmatpush1.msra.mxu0 0.0
  %1018 = vmatprep.subr.mxu0 0.0
  %1019 = vmatpush1.msra.mxu0 0.0
  %1020 = vmatprep.subr.mxu0 0.0
  %1021 = vmatpush1.msra.mxu0 0.0
  %1022 = vmatprep.subr.mxu0 0.0
  %1023 = vmatpush1.msra.mxu0 0.0
  %1024 = vmatprep.subr.mxu0 0.0
  %1025 = vmatpush1.msra.mxu0 0.0
  %1026 = vmatprep.subr.mxu0 0.0
  %1027 = vmatpush1.msra.mxu0 0.0
  %1028 = vmatprep.subr.mxu0 0.0
  %1029 = vmatpush1.msra.mxu0 %v26
  %1030 = vmatprep.subr.mxu0 0.0
  %1031 = vmatpush1.msra.mxu0 %v25
  %1032 = vmatprep.subr.mxu0 0.0
  %1033 = vmatpush1.msra.mxu0 %v24
  %1034 = vmatprep.subr.mxu0 0.0
  %1035 = vmatpush1.msra.mxu0 %v23
  %1036 = vmatprep.subr.mxu0 0.0
  %1037 = vmatpush2.msra.mxu0 0.0
  %1038 = vmatprep.subr.mxu0 0.0
  %1039 = vmatpush2.msra.mxu0 0.0
  %1040 = vmatprep.subr.mxu0 0.0
  %1041 = vmatpush2.msra.mxu0 0.0
  %1042 = vmatprep.subr.mxu0 0.0
  %1043 = vmatpush2.msra.mxu0 0.0
  %1044 = vmatprep.subr.mxu0 0.0
  %1045 = vmatpush2.msra.mxu0 0.0
  %1046 = vmatprep.subr.mxu0 0.0
  %1047 = vmatpush2.msra.mxu0 0.0
  %1048 = vmatprep.subr.mxu0 0.0
  %1049 = vmatpush2.msra.mxu0 0.0
  %1050 = vmatprep.subr.mxu0 0.0
  %1051 = vmatpush2.msra.mxu0 0.0
  %1052 = vmatprep.subr.mxu0 0.0
  %1053 = vmatpush2.msra.mxu0 0.0
  %1054 = vmatprep.subr.mxu0 0.0
  %1055 = vmatpush2.msra.mxu0 0.0
  %1056 = vmatprep.subr.mxu0 0.0
  %1057 = vmatpush2.msra.mxu0 0.0
  %1058 = vmatprep.subr.mxu0 0.0
  %1059 = vmatpush2.msra.mxu0 0.0
  %1060 = vmatprep.subr.mxu0 0.0
  %1061 = vmatpush2.msra.mxu0 0.0
  %1062 = vmatprep.subr.mxu0 0.0
  %1063 = vmatpush2.msra.mxu0 0.0
  %1064 = vmatprep.subr.mxu0 0.0
  %1065 = vmatpush2.msra.mxu0 0.0
  %1066 = vmatprep.subr.mxu0 0.0
  %1067 = vmatpush2.msra.mxu0 0.0
  %1068 = vmatprep.mubr.f32.mxu0 0.0
  %1069 = vmatmul.mubr.f32.gmra.mxu0 %v1002
  %v1070 = vpop.f32.mrf.mxu0
  %v1071 = vadd.f32 0.0, %v1070
  %v1072 = vpop.f32.mrf.mxu0
  %1073 = vdwg.mxu0
  %v1074 = vadd.f32 %v999, %v1071
  %v1075 = vxor.u32 %v1074, 2147483648
  %v1076 = vmul.f32 %v1075, 1.442695
  %v1077 = vpow.pop %v1076
  %v1078 = vadd.f32 %v1077, 1.0
  %v1079 = vrcp.pop %v1078
  %v1080 = vmul.f32 1.0, %v1079
  %v1081 = vtanh.pop %v1074
  %v1082 = vmul.f32 %v1080, %v914
  %1084 = vrot.lane.b32.xlu0 %v1081, 64
  %v1085 = vpop.permute.xlu0 %1084
  %v1087 = vmul.f32 %v1080, %v1085
  %1089 = vrot.lane.b32.xlu0 %v1087, 32
  %v1090 = vpop.permute.xlu0 %1089
  %v1092 = vadd.f32 %v1082, %v1090
  %v1093 = vtanh.pop %v1092
  %1095 = vrot.lane.b32.xlu0 %v1093, 64
  %v1096 = vpop.permute.xlu0 %1095
  %v1098 = vmul.f32 %v1080, %v1096
  %1100 = vrot.lane.b32.xlu0 %v1098, 32
  %v1101 = vpop.permute.xlu0 %1100
  %s1103 = scalar_lea.vmem %s4, 10
  %1104 = vst.msk [vmem:[%s1103] sm:$0x3] %vm214, %v1101
  %v1105 = vrot.slane %v17, 6
  %v1106 = vrot.slane %v18, 5
  %v1107 = vsel %vm37, %v1106, %v1105
  %v1108 = vsel %vm39, %v1107, 0
  %1110 = vmatprep.subr.mxu0 0.0
  %1111 = vmatpush1.msra.mxu0 0.0
  %1112 = vmatprep.subr.mxu0 0.0
  %1113 = vmatpush1.msra.mxu0 0.0
  %1114 = vmatprep.subr.mxu0 0.0
  %1115 = vmatpush1.msra.mxu0 0.0
  %1116 = vmatprep.subr.mxu0 0.0
  %1117 = vmatpush1.msra.mxu0 0.0
  %1118 = vmatprep.subr.mxu0 0.0
  %1119 = vmatpush1.msra.mxu0 0.0
  %1120 = vmatprep.subr.mxu0 0.0
  %1121 = vmatpush1.msra.mxu0 0.0
  %1122 = vmatprep.subr.mxu0 0.0
  %1123 = vmatpush1.msra.mxu0 0.0
  %1124 = vmatprep.subr.mxu0 0.0
  %1125 = vmatpush1.msra.mxu0 0.0
  %1126 = vmatprep.subr.mxu0 0.0
  %1127 = vmatpush1.msra.mxu0 0.0
  %1128 = vmatprep.subr.mxu0 0.0
  %1129 = vmatpush1.msra.mxu0 0.0
  %1130 = vmatprep.subr.mxu0 0.0
  %1131 = vmatpush1.msra.mxu0 0.0
  %1132 = vmatprep.subr.mxu0 0.0
  %1133 = vmatpush1.msra.mxu0 0.0
  %1134 = vmatprep.subr.mxu0 0.0
  %1135 = vmatpush1.msra.mxu0 %v22
  %1136 = vmatprep.subr.mxu0 0.0
  %1137 = vmatpush1.msra.mxu0 %v21
  %1138 = vmatprep.subr.mxu0 0.0
  %1139 = vmatpush1.msra.mxu0 %v20
  %1140 = vmatprep.subr.mxu0 0.0
  %1141 = vmatpush1.msra.mxu0 %v19
  %1142 = vmatprep.subr.mxu0 0.0
  %1143 = vmatpush2.msra.mxu0 0.0
  %1144 = vmatprep.subr.mxu0 0.0
  %1145 = vmatpush2.msra.mxu0 0.0
  %1146 = vmatprep.subr.mxu0 0.0
  %1147 = vmatpush2.msra.mxu0 0.0
  %1148 = vmatprep.subr.mxu0 0.0
  %1149 = vmatpush2.msra.mxu0 0.0
  %1150 = vmatprep.subr.mxu0 0.0
  %1151 = vmatpush2.msra.mxu0 0.0
  %1152 = vmatprep.subr.mxu0 0.0
  %1153 = vmatpush2.msra.mxu0 0.0
  %1154 = vmatprep.subr.mxu0 0.0
  %1155 = vmatpush2.msra.mxu0 0.0
  %1156 = vmatprep.subr.mxu0 0.0
  %1157 = vmatpush2.msra.mxu0 0.0
  %1158 = vmatprep.subr.mxu0 0.0
  %1159 = vmatpush2.msra.mxu0 0.0
  %1160 = vmatprep.subr.mxu0 0.0
  %1161 = vmatpush2.msra.mxu0 0.0
  %1162 = vmatprep.subr.mxu0 0.0
  %1163 = vmatpush2.msra.mxu0 0.0
  %1164 = vmatprep.subr.mxu0 0.0
  %1165 = vmatpush2.msra.mxu0 0.0
  %1166 = vmatprep.subr.mxu0 0.0
  %1167 = vmatpush2.msra.mxu0 0.0
  %1168 = vmatprep.subr.mxu0 0.0
  %1169 = vmatpush2.msra.mxu0 0.0
  %1170 = vmatprep.subr.mxu0 0.0
  %1171 = vmatpush2.msra.mxu0 0.0
  %1172 = vmatprep.subr.mxu0 0.0
  %1173 = vmatpush2.msra.mxu0 0.0
  %1174 = vmatprep.mubr.f32.mxu0 0.0
  %1175 = vmatmul.mubr.f32.gmra.mxu0 %v1108
  %v1176 = vpop.f32.mrf.mxu0
  %v1177 = vadd.f32 %v32, %v1176
  %v1178 = vpop.f32.mrf.mxu0
  %1179 = vdwg.mxu0
  %v1180 = vsel %vm39, %v1101, 0
  %1182 = vmatprep.subr.mxu0 0.0
  %1183 = vmatpush1.msra.mxu0 0.0
  %1184 = vmatprep.subr.mxu0 0.0
  %1185 = vmatpush1.msra.mxu0 0.0
  %1186 = vmatprep.subr.mxu0 0.0
  %1187 = vmatpush1.msra.mxu0 0.0
  %1188 = vmatprep.subr.mxu0 0.0
  %1189 = vmatpush1.msra.mxu0 0.0
  %1190 = vmatprep.subr.mxu0 0.0
  %1191 = vmatpush1.msra.mxu0 0.0
  %1192 = vmatprep.subr.mxu0 0.0
  %1193 = vmatpush1.msra.mxu0 0.0
  %1194 = vmatprep.subr.mxu0 0.0
  %1195 = vmatpush1.msra.mxu0 0.0
  %1196 = vmatprep.subr.mxu0 0.0
  %1197 = vmatpush1.msra.mxu0 0.0
  %1198 = vmatprep.subr.mxu0 0.0
  %1199 = vmatpush1.msra.mxu0 0.0
  %1200 = vmatprep.subr.mxu0 0.0
  %1201 = vmatpush1.msra.mxu0 0.0
  %1202 = vmatprep.subr.mxu0 0.0
  %1203 = vmatpush1.msra.mxu0 0.0
  %1204 = vmatprep.subr.mxu0 0.0
  %1205 = vmatpush1.msra.mxu0 0.0
  %1206 = vmatprep.subr.mxu0 0.0
  %1207 = vmatpush1.msra.mxu0 %v26
  %1208 = vmatprep.subr.mxu0 0.0
  %1209 = vmatpush1.msra.mxu0 %v25
  %1210 = vmatprep.subr.mxu0 0.0
  %1211 = vmatpush1.msra.mxu0 %v24
  %1212 = vmatprep.subr.mxu0 0.0
  %1213 = vmatpush1.msra.mxu0 %v23
  %1214 = vmatprep.subr.mxu0 0.0
  %1215 = vmatpush2.msra.mxu0 0.0
  %1216 = vmatprep.subr.mxu0 0.0
  %1217 = vmatpush2.msra.mxu0 0.0
  %1218 = vmatprep.subr.mxu0 0.0
  %1219 = vmatpush2.msra.mxu0 0.0
  %1220 = vmatprep.subr.mxu0 0.0
  %1221 = vmatpush2.msra.mxu0 0.0
  %1222 = vmatprep.subr.mxu0 0.0
  %1223 = vmatpush2.msra.mxu0 0.0
  %1224 = vmatprep.subr.mxu0 0.0
  %1225 = vmatpush2.msra.mxu0 0.0
  %1226 = vmatprep.subr.mxu0 0.0
  %1227 = vmatpush2.msra.mxu0 0.0
  %1228 = vmatprep.subr.mxu0 0.0
  %1229 = vmatpush2.msra.mxu0 0.0
  %1230 = vmatprep.subr.mxu0 0.0
  %1231 = vmatpush2.msra.mxu0 0.0
  %1232 = vmatprep.subr.mxu0 0.0
  %1233 = vmatpush2.msra.mxu0 0.0
  %1234 = vmatprep.subr.mxu0 0.0
  %1235 = vmatpush2.msra.mxu0 0.0
  %1236 = vmatprep.subr.mxu0 0.0
  %1237 = vmatpush2.msra.mxu0 0.0
  %1238 = vmatprep.subr.mxu0 0.0
  %1239 = vmatpush2.msra.mxu0 0.0
  %1240 = vmatprep.subr.mxu0 0.0
  %1241 = vmatpush2.msra.mxu0 0.0
  %1242 = vmatprep.subr.mxu0 0.0
  %1243 = vmatpush2.msra.mxu0 0.0
  %1244 = vmatprep.subr.mxu0 0.0
  %1245 = vmatpush2.msra.mxu0 0.0
  %1246 = vmatprep.mubr.f32.mxu0 0.0
  %1247 = vmatmul.mubr.f32.gmra.mxu0 %v1180
  %v1248 = vpop.f32.mrf.mxu0
  %v1249 = vadd.f32 0.0, %v1248
  %v1250 = vpop.f32.mrf.mxu0
  %1251 = vdwg.mxu0
  %v1252 = vadd.f32 %v1177, %v1249
  %v1253 = vxor.u32 %v1252, 2147483648
  %v1254 = vmul.f32 %v1253, 1.442695
  %v1255 = vpow.pop %v1254
  %v1256 = vadd.f32 %v1255, 1.0
  %v1257 = vrcp.pop %v1256
  %v1258 = vmul.f32 1.0, %v1257
  %v1259 = vtanh.pop %v1252
  %v1260 = vmul.f32 %v1258, %v1092
  %1262 = vrot.lane.b32.xlu0 %v1259, 64
  %v1263 = vpop.permute.xlu0 %1262
  %v1265 = vmul.f32 %v1258, %v1263
  %1267 = vrot.lane.b32.xlu0 %v1265, 32
  %v1268 = vpop.permute.xlu0 %1267
  %v1270 = vadd.f32 %v1260, %v1268
  %v1271 = vtanh.pop %v1270
  %1273 = vrot.lane.b32.xlu0 %v1271, 64
  %v1274 = vpop.permute.xlu0 %1273
  %v1276 = vmul.f32 %v1258, %v1274
  %1278 = vrot.lane.b32.xlu0 %v1276, 32
  %v1279 = vpop.permute.xlu0 %1278
  %s1281 = scalar_lea.vmem %s4, 12
  %1282 = vst.msk [vmem:[%s1281] sm:$0x3] %vm214, %v1279
  %v1283 = vrot.slane %v17, 7
  %v1284 = vrot.slane %v18, 6
  %v1285 = vsel %vm37, %v1284, %v1283
  %v1286 = vsel %vm39, %v1285, 0
  %1288 = vmatprep.subr.mxu0 0.0
  %1289 = vmatpush1.msra.mxu0 0.0
  %1290 = vmatprep.subr.mxu0 0.0
  %1291 = vmatpush1.msra.mxu0 0.0
  %1292 = vmatprep.subr.mxu0 0.0
  %1293 = vmatpush1.msra.mxu0 0.0
  %1294 = vmatprep.subr.mxu0 0.0
  %1295 = vmatpush1.msra.mxu0 0.0
  %1296 = vmatprep.subr.mxu0 0.0
  %1297 = vmatpush1.msra.mxu0 0.0
  %1298 = vmatprep.subr.mxu0 0.0
  %1299 = vmatpush1.msra.mxu0 0.0
  %1300 = vmatprep.subr.mxu0 0.0
  %1301 = vmatpush1.msra.mxu0 0.0
  %1302 = vmatprep.subr.mxu0 0.0
  %1303 = vmatpush1.msra.mxu0 0.0
  %1304 = vmatprep.subr.mxu0 0.0
  %1305 = vmatpush1.msra.mxu0 0.0
  %1306 = vmatprep.subr.mxu0 0.0
  %1307 = vmatpush1.msra.mxu0 0.0
  %1308 = vmatprep.subr.mxu0 0.0
  %1309 = vmatpush1.msra.mxu0 0.0
  %1310 = vmatprep.subr.mxu0 0.0
  %1311 = vmatpush1.msra.mxu0 0.0
  %1312 = vmatprep.subr.mxu0 0.0
  %1313 = vmatpush1.msra.mxu0 %v22
  %1314 = vmatprep.subr.mxu0 0.0
  %1315 = vmatpush1.msra.mxu0 %v21
  %1316 = vmatprep.subr.mxu0 0.0
  %1317 = vmatpush1.msra.mxu0 %v20
  %1318 = vmatprep.subr.mxu0 0.0
  %1319 = vmatpush1.msra.mxu0 %v19
  %1320 = vmatprep.subr.mxu0 0.0
  %1321 = vmatpush2.msra.mxu0 0.0
  %1322 = vmatprep.subr.mxu0 0.0
  %1323 = vmatpush2.msra.mxu0 0.0
  %1324 = vmatprep.subr.mxu0 0.0
  %1325 = vmatpush2.msra.mxu0 0.0
  %1326 = vmatprep.subr.mxu0 0.0
  %1327 = vmatpush2.msra.mxu0 0.0
  %1328 = vmatprep.subr.mxu0 0.0
  %1329 = vmatpush2.msra.mxu0 0.0
  %1330 = vmatprep.subr.mxu0 0.0
  %1331 = vmatpush2.msra.mxu0 0.0
  %1332 = vmatprep.subr.mxu0 0.0
  %1333 = vmatpush2.msra.mxu0 0.0
  %1334 = vmatprep.subr.mxu0 0.0
  %1335 = vmatpush2.msra.mxu0 0.0
  %1336 = vmatprep.subr.mxu0 0.0
  %1337 = vmatpush2.msra.mxu0 0.0
  %1338 = vmatprep.subr.mxu0 0.0
  %1339 = vmatpush2.msra.mxu0 0.0
  %1340 = vmatprep.subr.mxu0 0.0
  %1341 = vmatpush2.msra.mxu0 0.0
  %1342 = vmatprep.subr.mxu0 0.0
  %1343 = vmatpush2.msra.mxu0 0.0
  %1344 = vmatprep.subr.mxu0 0.0
  %1345 = vmatpush2.msra.mxu0 0.0
  %1346 = vmatprep.subr.mxu0 0.0
  %1347 = vmatpush2.msra.mxu0 0.0
  %1348 = vmatprep.subr.mxu0 0.0
  %1349 = vmatpush2.msra.mxu0 0.0
  %1350 = vmatprep.subr.mxu0 0.0
  %1351 = vmatpush2.msra.mxu0 0.0
  %1352 = vmatprep.mubr.f32.mxu0 0.0
  %1353 = vmatmul.mubr.f32.gmra.mxu0 %v1286
  %v1354 = vpop.f32.mrf.mxu0
  %v1355 = vadd.f32 %v32, %v1354
  %v1356 = vpop.f32.mrf.mxu0
  %1357 = vdwg.mxu0
  %v1358 = vsel %vm39, %v1279, 0
  %1360 = vmatprep.subr.mxu0 0.0
  %1361 = vmatpush1.msra.mxu0 0.0
  %1362 = vmatprep.subr.mxu0 0.0
  %1363 = vmatpush1.msra.mxu0 0.0
  %1364 = vmatprep.subr.mxu0 0.0
  %1365 = vmatpush1.msra.mxu0 0.0
  %1366 = vmatprep.subr.mxu0 0.0
  %1367 = vmatpush1.msra.mxu0 0.0
  %1368 = vmatprep.subr.mxu0 0.0
  %1369 = vmatpush1.msra.mxu0 0.0
  %1370 = vmatprep.subr.mxu0 0.0
  %1371 = vmatpush1.msra.mxu0 0.0
  %1372 = vmatprep.subr.mxu0 0.0
  %1373 = vmatpush1.msra.mxu0 0.0
  %1374 = vmatprep.subr.mxu0 0.0
  %1375 = vmatpush1.msra.mxu0 0.0
  %1376 = vmatprep.subr.mxu0 0.0
  %1377 = vmatpush1.msra.mxu0 0.0
  %1378 = vmatprep.subr.mxu0 0.0
  %1379 = vmatpush1.msra.mxu0 0.0
  %1380 = vmatprep.subr.mxu0 0.0
  %1381 = vmatpush1.msra.mxu0 0.0
  %1382 = vmatprep.subr.mxu0 0.0
  %1383 = vmatpush1.msra.mxu0 0.0
  %1384 = vmatprep.subr.mxu0 0.0
  %1385 = vmatpush1.msra.mxu0 %v26
  %1386 = vmatprep.subr.mxu0 0.0
  %1387 = vmatpush1.msra.mxu0 %v25
  %1388 = vmatprep.subr.mxu0 0.0
  %1389 = vmatpush1.msra.mxu0 %v24
  %1390 = vmatprep.subr.mxu0 0.0
  %1391 = vmatpush1.msra.mxu0 %v23
  %1392 = vmatprep.subr.mxu0 0.0
  %1393 = vmatpush2.msra.mxu0 0.0
  %1394 = vmatprep.subr.mxu0 0.0
  %1395 = vmatpush2.msra.mxu0 0.0
  %1396 = vmatprep.subr.mxu0 0.0
  %1397 = vmatpush2.msra.mxu0 0.0
  %1398 = vmatprep.subr.mxu0 0.0
  %1399 = vmatpush2.msra.mxu0 0.0
  %1400 = vmatprep.subr.mxu0 0.0
  %1401 = vmatpush2.msra.mxu0 0.0
  %1402 = vmatprep.subr.mxu0 0.0
  %1403 = vmatpush2.msra.mxu0 0.0
  %1404 = vmatprep.subr.mxu0 0.0
  %1405 = vmatpush2.msra.mxu0 0.0
  %1406 = vmatprep.subr.mxu0 0.0
  %1407 = vmatpush2.msra.mxu0 0.0
  %1408 = vmatprep.subr.mxu0 0.0
  %1409 = vmatpush2.msra.mxu0 0.0
  %1410 = vmatprep.subr.mxu0 0.0
  %1411 = vmatpush2.msra.mxu0 0.0
  %1412 = vmatprep.subr.mxu0 0.0
  %1413 = vmatpush2.msra.mxu0 0.0
  %1414 = vmatprep.subr.mxu0 0.0
  %1415 = vmatpush2.msra.mxu0 0.0
  %1416 = vmatprep.subr.mxu0 0.0
  %1417 = vmatpush2.msra.mxu0 0.0
  %1418 = vmatprep.subr.mxu0 0.0
  %1419 = vmatpush2.msra.mxu0 0.0
  %1420 = vmatprep.subr.mxu0 0.0
  %1421 = vmatpush2.msra.mxu0 0.0
  %1422 = vmatprep.subr.mxu0 0.0
  %1423 = vmatpush2.msra.mxu0 0.0
  %1424 = vmatprep.mubr.f32.mxu0 0.0
  %1425 = vmatmul.mubr.f32.gmra.mxu0 %v1358
  %v1426 = vpop.f32.mrf.mxu0
  %v1427 = vadd.f32 0.0, %v1426
  %v1428 = vpop.f32.mrf.mxu0
  %1429 = vdwg.mxu0
  %v1430 = vadd.f32 %v1355, %v1427
  %v1431 = vxor.u32 %v1430, 2147483648
  %v1432 = vmul.f32 %v1431, 1.442695
  %v1433 = vpow.pop %v1432
  %v1434 = vadd.f32 %v1433, 1.0
  %v1435 = vrcp.pop %v1434
  %v1436 = vmul.f32 1.0, %v1435
  %v1437 = vtanh.pop %v1430
  %v1438 = vmul.f32 %v1436, %v1270
  %1440 = vrot.lane.b32.xlu0 %v1437, 64
  %v1441 = vpop.permute.xlu0 %1440
  %v1443 = vmul.f32 %v1436, %v1441
  %1445 = vrot.lane.b32.xlu0 %v1443, 32
  %v1446 = vpop.permute.xlu0 %1445
  %v1448 = vadd.f32 %v1438, %v1446
  %v1449 = vtanh.pop %v1448
  %1451 = vrot.lane.b32.xlu0 %v1449, 64
  %v1452 = vpop.permute.xlu0 %1451
  %v1454 = vmul.f32 %v1436, %v1452
  %1456 = vrot.lane.b32.xlu0 %v1454, 32
  %v1457 = vpop.permute.xlu0 %1456
  %s1459 = scalar_lea.vmem %s4, 14
  %1460 = vst.msk [vmem:[%s1459] sm:$0x3] %vm214, %v1457
  // Predicated region
  $region18: #{_lambda_.7} parent=0 // pred_check
    _
  $region19: #{_lambda_.7} parent=0 // pred_check_branch
    %1462 = sbr.rel (0) target = $region21
  $region20: #{_lambda_.7} parent=0 // pred_region
    _
  $region21: #{_lambda_.7} parent=0 // pred_fallthru
    _
  // Predicated region
  $region22: #{_lambda_.7} parent=0 // pred_check
    _
  $region23: #{_lambda_.7} parent=0 // pred_check_branch
    %1464 = sbr.rel (0) target = $region25
  $region24: #{_lambda_.7} parent=0 // pred_region
    _
  $region25: #{_lambda_.7} parent=0 // pred_fallthru
    _

// kernel: _lambda_.9
$region0: #{_lambda_.9}
  #allocation0 [shape = 'u32[]', space=smem, size = 0x4, offset = 0x4, fixed_abs, tag = 'smem constant byte address 0x4 - core index']
  #allocation1 [shape = 'u32[144,128]{1,0:T(1,128)}', space=vmem, size = 0x12000, scoped, tag = 'internal scratch']
  %s0 = inlined_call_operand.vmem [shape: f32[2,8,32], index: 0, kind: input, shape index: {}]
  %s1 = inlined_call_operand.vmem [shape: f32[2,1,8], index: 1, kind: input, shape index: {}]
  %s2 = inlined_call_operand.vmem [shape: bf16[32,96], index: 2, kind: input, shape index: {}]
  %s3 = inlined_call_operand.vmem [shape: f32[1,96], index: 3, kind: input, shape index: {}]
  %s4 = inlined_call_operand.vmem [shape: bf16[32,32], index: 4, kind: input, shape index: {}]
  %s5 = inlined_call_operand.vmem [shape: f32[1,32], index: 5, kind: input, shape index: {}]
  %s6 = inlined_call_operand.vmem [shape: f32[1,32], index: 6, kind: input, shape index: {}]
  %s7 = inlined_call_operand.vmem [shape: f32[1,32], index: 7, kind: input, shape index: {}]
  %s8 = inlined_call_operand.vmem [shape: bf16[32,64], index: 8, kind: input, shape index: {}]
  %s9 = inlined_call_operand.vmem [shape: f32[1,64], index: 9, kind: input, shape index: {}]
  %s10 = inlined_call_operand.vmem [shape: bf16[64,32], index: 10, kind: input, shape index: {}]
  %s11 = inlined_call_operand.vmem [shape: f32[1,32], index: 11, kind: input, shape index: {}]
  %s12 = inlined_call_operand.vmem [shape: f32[1,32], index: 12, kind: input, shape index: {}]
  %s13 = inlined_call_operand.vmem [shape: f32[1,32], index: 13, kind: input, shape index: {}]
  %s14 = inlined_call_operand.vmem [shape: f32[2,8,32], index: 14, kind: output, shape index: {}]
  %s15 = sld [smem:[#allocation0]]
  $region89: #{_lambda_.9} parent=0
    _
  %s17 = ssub.s32 1, %s15
  %s18 = scalar_select 0, %s17, %s15
  loop: start=0, step=1, limit=4
  $region2: #{_lambda_.9} parent=0 // loop_pre_header
    _
  $region3: #{_lambda_.9} parent=0 // loop_header
    %s20 = sphi 0, %s24
    %p21 = scmp.ge.s32.totalorder %s20, 4
    %s30 = sphi 0, %s32
    %s33 = sphi 0, %s30
    %s34 = sphi 0, %s33
    %s50 = sphi 0, %s34
    %s56 = sphi 0, %s58
    %s59 = sphi 0, %s56
    %s60 = sphi 0, %s59
    %s76 = sphi 0, %s60
    %s80 = sphi 0, %s80
    %s82 = sphi 0, %s80
    %s83 = sphi 0, %s82
    %s97 = sphi 0, %s83
    %s101 = sphi 0, %s101
    %s103 = sphi 0, %s101
    %s104 = sphi 0, %s103
    %s118 = sphi 0, %s104
    %s122 = sphi 0, %s122
    %s124 = sphi 0, %s122
    %s125 = sphi 0, %s124
    %s139 = sphi 0, %s125
    %s143 = sphi 0, %s143
    %s145 = sphi 0, %s143
    %s146 = sphi 0, %s145
    %s160 = sphi 0, %s146
    %s164 = sphi 0, %s164
    %s166 = sphi 0, %s164
    %s167 = sphi 0, %s166
    %s181 = sphi 0, %s167
    %s185 = sphi 0, %s185
    %s187 = sphi 0, %s185
    %s188 = sphi 0, %s187
    %s202 = sphi 0, %s188
    %s206 = sphi 0, %s206
    %s208 = sphi 0, %s206
    %s209 = sphi 0, %s208
    %s223 = sphi 0, %s209
    %s227 = sphi 0, %s227
    %s229 = sphi 0, %s227
    %s230 = sphi 0, %s229
    %s244 = sphi 0, %s230
    %s248 = sphi 0, %s248
    %s250 = sphi 0, %s248
    %s251 = sphi 0, %s250
    %s265 = sphi 0, %s251
    %s269 = sphi 0, %s269
    %s271 = sphi 0, %s269
    %s272 = sphi 0, %s271
    %s286 = sphi 0, %s272
    %s290 = sphi 0, %s290
    %s292 = sphi 0, %s290
    %s293 = sphi 0, %s292
    %s307 = sphi 0, %s293
    %s311 = sphi 0, %s311
    %s313 = sphi 0, %s311
    %s314 = sphi 0, %s313
    %s328 = sphi 0, %s314
    %s334 = sphi 0, %s336
    %s337 = sphi 0, %s334
    %s338 = sphi 0, %s337
    %s354 = sphi 0, %s338
  $region4: #{_lambda_.9} parent=0 // loop_header_branch
    %23 = sbr.rel (%p21) target = $region8
  $region5: #{_lambda_.9} parent=0 // loop_body
    %s25 = ssub.s32 %s20, 1
    %s26 = ssub.s32 %s20, 2
    %s27 = sadd.s32 %s20, 1
    %s28 = ssub.s32 %s20, %s27
    %p29 = scmp.eq.s32.totalorder %s28, 0
    %s31 = sadd.s32 %s30, 1
    %s32 = scalar_select %p29, %s30, %s31
    %p35 = pneg %p29
    %p36 = scmp.eq.s32.totalorder %s20, 1
    %p37 = por %p35, %p36
    %p38 = scmp.ne.s32.totalorder %s30, %s33
    %p39 = scmp.eq.s32.totalorder %s20, 0
    %p40 = por %p38, %p39
    %p41 = scmp.ne.s32.totalorder %s30, %s33
    %p42 = scmp.eq.s32.totalorder %s25, 1
    %p43 = por %p41, %p42
    %p44 = scmp.ne.s32.totalorder %s33, %s34
    %p45 = scmp.eq.s32.totalorder %s25, 0
    %p46 = por %p44, %p45
    %p47 = scmp.ne.s32.totalorder %s33, %s34
    %p48 = scmp.eq.s32.totalorder %s26, 1
    %p49 = por %p47, %p48
    %p51 = scmp.ne.s32.totalorder %s34, %s50
    %p52 = scmp.eq.s32.totalorder %s26, 0
    %p53 = por %p51, %p52
    %s54 = ssub.s32 %s20, %s27
    %p55 = scmp.eq.s32.totalorder %s54, 0
    %s57 = sadd.s32 %s56, 1
    %s58 = scalar_select %p55, %s56, %s57
    %p61 = pneg %p55
    %p62 = scmp.eq.s32.totalorder %s20, 1
    %p63 = por %p61, %p62
    %p64 = scmp.ne.s32.totalorder %s56, %s59
    %p65 = scmp.eq.s32.totalorder %s20, 0
    %p66 = por %p64, %p65
    %p67 = scmp.ne.s32.totalorder %s56, %s59
    %p68 = scmp.eq.s32.totalorder %s25, 1
    %p69 = por %p67, %p68
    %p70 = scmp.ne.s32.totalorder %s59, %s60
    %p71 = scmp.eq.s32.totalorder %s25, 0
    %p72 = por %p70, %p71
    %p73 = scmp.ne.s32.totalorder %s59, %s60
    %p74 = scmp.eq.s32.totalorder %s26, 1
    %p75 = por %p73, %p74
    %p77 = scmp.ne.s32.totalorder %s60, %s76
    %p78 = scmp.eq.s32.totalorder %s26, 0
    %p79 = por %p77, %p78
    %s81 = sadd.s32 %s80, 1
    %p84 = scmp.eq.s32.totalorder %s20, 1
    %p85 = scmp.ne.s32.totalorder %s80, %s82
    %p86 = scmp.eq.s32.totalorder %s20, 0
    %p87 = por %p85, %p86
    %p88 = scmp.ne.s32.totalorder %s80, %s82
    %p89 = scmp.eq.s32.totalorder %s25, 1
    %p90 = por %p88, %p89
    %p91 = scmp.ne.s32.totalorder %s82, %s83
    %p92 = scmp.eq.s32.totalorder %s25, 0
    %p93 = por %p91, %p92
    %p94 = scmp.ne.s32.totalorder %s82, %s83
    %p95 = scmp.eq.s32.totalorder %s26, 1
    %p96 = por %p94, %p95
    %p98 = scmp.ne.s32.totalorder %s83, %s97
    %p99 = scmp.eq.s32.totalorder %s26, 0
    %p100 = por %p98, %p99
    %s102 = sadd.s32 %s101, 1
    %p105 = scmp.eq.s32.totalorder %s20, 1
    %p106 = scmp.ne.s32.totalorder %s101, %s103
    %p107 = scmp.eq.s32.totalorder %s20, 0
    %p108 = por %p106, %p107
    %p109 = scmp.ne.s32.totalorder %s101, %s103
    %p110 = scmp.eq.s32.totalorder %s25, 1
    %p111 = por %p109, %p110
    %p112 = scmp.ne.s32.totalorder %s103, %s104
    %p113 = scmp.eq.s32.totalorder %s25, 0
    %p114 = por %p112, %p113
    %p115 = scmp.ne.s32.totalorder %s103, %s104
    %p116 = scmp.eq.s32.totalorder %s26, 1
    %p117 = por %p115, %p116
    %p119 = scmp.ne.s32.totalorder %s104, %s118
    %p120 = scmp.eq.s32.totalorder %s26, 0
    %p121 = por %p119, %p120
    %s123 = sadd.s32 %s122, 1
    %p126 = scmp.eq.s32.totalorder %s20, 1
    %p127 = scmp.ne.s32.totalorder %s122, %s124
    %p128 = scmp.eq.s32.totalorder %s20, 0
    %p129 = por %p127, %p128
    %p130 = scmp.ne.s32.totalorder %s122, %s124
    %p131 = scmp.eq.s32.totalorder %s25, 1
    %p132 = por %p130, %p131
    %p133 = scmp.ne.s32.totalorder %s124, %s125
    %p134 = scmp.eq.s32.totalorder %s25, 0
    %p135 = por %p133, %p134
    %p136 = scmp.ne.s32.totalorder %s124, %s125
    %p137 = scmp.eq.s32.totalorder %s26, 1
    %p138 = por %p136, %p137
    %p140 = scmp.ne.s32.totalorder %s125, %s139
    %p141 = scmp.eq.s32.totalorder %s26, 0
    %p142 = por %p140, %p141
    %s144 = sadd.s32 %s143, 1
    %p147 = scmp.eq.s32.totalorder %s20, 1
    %p148 = scmp.ne.s32.totalorder %s143, %s145
    %p149 = scmp.eq.s32.totalorder %s20, 0
    %p150 = por %p148, %p149
    %p151 = scmp.ne.s32.totalorder %s143, %s145
    %p152 = scmp.eq.s32.totalorder %s25, 1
    %p153 = por %p151, %p152
    %p154 = scmp.ne.s32.totalorder %s145, %s146
    %p155 = scmp.eq.s32.totalorder %s25, 0
    %p156 = por %p154, %p155
    %p157 = scmp.ne.s32.totalorder %s145, %s146
    %p158 = scmp.eq.s32.totalorder %s26, 1
    %p159 = por %p157, %p158
    %p161 = scmp.ne.s32.totalorder %s146, %s160
    %p162 = scmp.eq.s32.totalorder %s26, 0
    %p163 = por %p161, %p162
    %s165 = sadd.s32 %s164, 1
    %p168 = scmp.eq.s32.totalorder %s20, 1
    %p169 = scmp.ne.s32.totalorder %s164, %s166
    %p170 = scmp.eq.s32.totalorder %s20, 0
    %p171 = por %p169, %p170
    %p172 = scmp.ne.s32.totalorder %s164, %s166
    %p173 = scmp.eq.s32.totalorder %s25, 1
    %p174 = por %p172, %p173
    %p175 = scmp.ne.s32.totalorder %s166, %s167
    %p176 = scmp.eq.s32.totalorder %s25, 0
    %p177 = por %p175, %p176
    %p178 = scmp.ne.s32.totalorder %s166, %s167
    %p179 = scmp.eq.s32.totalorder %s26, 1
    %p180 = por %p178, %p179
    %p182 = scmp.ne.s32.totalorder %s167, %s181
    %p183 = scmp.eq.s32.totalorder %s26, 0
    %p184 = por %p182, %p183
    %s186 = sadd.s32 %s185, 1
    %p189 = scmp.eq.s32.totalorder %s20, 1
    %p190 = scmp.ne.s32.totalorder %s185, %s187
    %p191 = scmp.eq.s32.totalorder %s20, 0
    %p192 = por %p190, %p191
    %p193 = scmp.ne.s32.totalorder %s185, %s187
    %p194 = scmp.eq.s32.totalorder %s25, 1
    %p195 = por %p193, %p194
    %p196 = scmp.ne.s32.totalorder %s187, %s188
    %p197 = scmp.eq.s32.totalorder %s25, 0
    %p198 = por %p196, %p197
    %p199 = scmp.ne.s32.totalorder %s187, %s188
    %p200 = scmp.eq.s32.totalorder %s26, 1
    %p201 = por %p199, %p200
    %p203 = scmp.ne.s32.totalorder %s188, %s202
    %p204 = scmp.eq.s32.totalorder %s26, 0
    %p205 = por %p203, %p204
    %s207 = sadd.s32 %s206, 1
    %p210 = scmp.eq.s32.totalorder %s20, 1
    %p211 = scmp.ne.s32.totalorder %s206, %s208
    %p212 = scmp.eq.s32.totalorder %s20, 0
    %p213 = por %p211, %p212
    %p214 = scmp.ne.s32.totalorder %s206, %s208
    %p215 = scmp.eq.s32.totalorder %s25, 1
    %p216 = por %p214, %p215
    %p217 = scmp.ne.s32.totalorder %s208, %s209
    %p218 = scmp.eq.s32.totalorder %s25, 0
    %p219 = por %p217, %p218
    %p220 = scmp.ne.s32.totalorder %s208, %s209
    %p221 = scmp.eq.s32.totalorder %s26, 1
    %p222 = por %p220, %p221
    %p224 = scmp.ne.s32.totalorder %s209, %s223
    %p225 = scmp.eq.s32.totalorder %s26, 0
    %p226 = por %p224, %p225
    %s228 = sadd.s32 %s227, 1
    %p231 = scmp.eq.s32.totalorder %s20, 1
    %p232 = scmp.ne.s32.totalorder %s227, %s229
    %p233 = scmp.eq.s32.totalorder %s20, 0
    %p234 = por %p232, %p233
    %p235 = scmp.ne.s32.totalorder %s227, %s229
    %p236 = scmp.eq.s32.totalorder %s25, 1
    %p237 = por %p235, %p236
    %p238 = scmp.ne.s32.totalorder %s229, %s230
    %p239 = scmp.eq.s32.totalorder %s25, 0
    %p240 = por %p238, %p239
    %p241 = scmp.ne.s32.totalorder %s229, %s230
    %p242 = scmp.eq.s32.totalorder %s26, 1
    %p243 = por %p241, %p242
    %p245 = scmp.ne.s32.totalorder %s230, %s244
    %p246 = scmp.eq.s32.totalorder %s26, 0
    %p247 = por %p245, %p246
    %s249 = sadd.s32 %s248, 1
    %p252 = scmp.eq.s32.totalorder %s20, 1
    %p253 = scmp.ne.s32.totalorder %s248, %s250
    %p254 = scmp.eq.s32.totalorder %s20, 0
    %p255 = por %p253, %p254
    %p256 = scmp.ne.s32.totalorder %s248, %s250
    %p257 = scmp.eq.s32.totalorder %s25, 1
    %p258 = por %p256, %p257
    %p259 = scmp.ne.s32.totalorder %s250, %s251
    %p260 = scmp.eq.s32.totalorder %s25, 0
    %p261 = por %p259, %p260
    %p262 = scmp.ne.s32.totalorder %s250, %s251
    %p263 = scmp.eq.s32.totalorder %s26, 1
    %p264 = por %p262, %p263
    %p266 = scmp.ne.s32.totalorder %s251, %s265
    %p267 = scmp.eq.s32.totalorder %s26, 0
    %p268 = por %p266, %p267
    %s270 = sadd.s32 %s269, 1
    %p273 = scmp.eq.s32.totalorder %s20, 1
    %p274 = scmp.ne.s32.totalorder %s269, %s271
    %p275 = scmp.eq.s32.totalorder %s20, 0
    %p276 = por %p274, %p275
    %p277 = scmp.ne.s32.totalorder %s269, %s271
    %p278 = scmp.eq.s32.totalorder %s25, 1
    %p279 = por %p277, %p278
    %p280 = scmp.ne.s32.totalorder %s271, %s272
    %p281 = scmp.eq.s32.totalorder %s25, 0
    %p282 = por %p280, %p281
    %p283 = scmp.ne.s32.totalorder %s271, %s272
    %p284 = scmp.eq.s32.totalorder %s26, 1
    %p285 = por %p283, %p284
    %p287 = scmp.ne.s32.totalorder %s272, %s286
    %p288 = scmp.eq.s32.totalorder %s26, 0
    %p289 = por %p287, %p288
    %s291 = sadd.s32 %s290, 1
    %p294 = scmp.eq.s32.totalorder %s20, 1
    %p295 = scmp.ne.s32.totalorder %s290, %s292
    %p296 = scmp.eq.s32.totalorder %s20, 0
    %p297 = por %p295, %p296
    %p298 = scmp.ne.s32.totalorder %s290, %s292
    %p299 = scmp.eq.s32.totalorder %s25, 1
    %p300 = por %p298, %p299
    %p301 = scmp.ne.s32.totalorder %s292, %s293
    %p302 = scmp.eq.s32.totalorder %s25, 0
    %p303 = por %p301, %p302
    %p304 = scmp.ne.s32.totalorder %s292, %s293
    %p305 = scmp.eq.s32.totalorder %s26, 1
    %p306 = por %p304, %p305
    %p308 = scmp.ne.s32.totalorder %s293, %s307
    %p309 = scmp.eq.s32.totalorder %s26, 0
    %p310 = por %p308, %p309
    %s312 = sadd.s32 %s311, 1
    %p315 = scmp.eq.s32.totalorder %s20, 1
    %p316 = scmp.ne.s32.totalorder %s311, %s313
    %p317 = scmp.eq.s32.totalorder %s20, 0
    %p318 = por %p316, %p317
    %p319 = scmp.ne.s32.totalorder %s311, %s313
    %p320 = scmp.eq.s32.totalorder %s25, 1
    %p321 = por %p319, %p320
    %p322 = scmp.ne.s32.totalorder %s313, %s314
    %p323 = scmp.eq.s32.totalorder %s25, 0
    %p324 = por %p322, %p323
    %p325 = scmp.ne.s32.totalorder %s313, %s314
    %p326 = scmp.eq.s32.totalorder %s26, 1
    %p327 = por %p325, %p326
    %p329 = scmp.ne.s32.totalorder %s314, %s328
    %p330 = scmp.eq.s32.totalorder %s26, 0
    %p331 = por %p329, %p330
    %s332 = ssub.s32 %s20, %s27
    %p333 = scmp.eq.s32.totalorder %s332, 0
    %s335 = sadd.s32 %s334, 1
    %s336 = scalar_select %p333, %s334, %s335
    %p339 = pneg %p333
    %p340 = scmp.eq.s32.totalorder %s20, 1
    %p341 = por %p339, %p340
    %p342 = scmp.ne.s32.totalorder %s334, %s337
    %p343 = scmp.eq.s32.totalorder %s20, 0
    %p344 = por %p342, %p343
    %p345 = scmp.ne.s32.totalorder %s334, %s337
    %p346 = scmp.eq.s32.totalorder %s25, 1
    %p347 = por %p345, %p346
    %p348 = scmp.ne.s32.totalorder %s337, %s338
    %p349 = scmp.eq.s32.totalorder %s25, 0
    %p350 = por %p348, %p349
    %p351 = scmp.ne.s32.totalorder %s337, %s338
    %p352 = scmp.eq.s32.totalorder %s26, 1
    %p353 = por %p351, %p352
    %p355 = scmp.ne.s32.totalorder %s338, %s354
    %p356 = scmp.eq.s32.totalorder %s26, 0
    %p357 = por %p355, %p356
    %p358 = scmp.le.s32.totalorder 1, %s20
    %p359 = scmp.lt.s32.totalorder %s20, 3
    %p360 = pnand %p358, %p359
    %p361 = pneg %p360
    // Predicated region
    $region9: #{_lambda_.9} parent=5 // pred_check
      _
    $region10: #{_lambda_.9} parent=5 // pred_check_branch
      %363 = sbr.rel (%p360) target = $region12
    $region11: #{_lambda_.9} parent=5 // pred_region
      %s364 = ssub.s32 %s20, 1
      // Predicated region
      $region13: #{_lambda_.9} parent=11 // pred_check
        %p365 = pneg %p93
      $region14: #{_lambda_.9} parent=11 // pred_check_branch
        %367 = sbr.rel (%p365) target = $region16
      $region15: #{_lambda_.9} parent=11 // pred_region
        _
      $region16: #{_lambda_.9} parent=11 // pred_fallthru
        _
      // Predicated region
      $region17: #{_lambda_.9} parent=11 // pred_check
        %p368 = pneg %p114
      $region18: #{_lambda_.9} parent=11 // pred_check_branch
        %370 = sbr.rel (%p368) target = $region20
      $region19: #{_lambda_.9} parent=11 // pred_region
        _
      $region20: #{_lambda_.9} parent=11 // pred_fallthru
        _
      // Predicated region
      $region21: #{_lambda_.9} parent=11 // pred_check
        %p371 = pneg %p135
      $region22: #{_lambda_.9} parent=11 // pred_check_branch
        %373 = sbr.rel (%p371) target = $region24
      $region23: #{_lambda_.9} parent=11 // pred_region
        _
      $region24: #{_lambda_.9} parent=11 // pred_fallthru
        _
      // Predicated region
      $region25: #{_lambda_.9} parent=11 // pred_check
        %p374 = pneg %p156
      $region26: #{_lambda_.9} parent=11 // pred_check_branch
        %376 = sbr.rel (%p374) target = $region28
      $region27: #{_lambda_.9} parent=11 // pred_region
        _
      $region28: #{_lambda_.9} parent=11 // pred_fallthru
        _
      // Predicated region
      $region29: #{_lambda_.9} parent=11 // pred_check
        %p377 = pneg %p177
      $region30: #{_lambda_.9} parent=11 // pred_check_branch
        %379 = sbr.rel (%p377) target = $region32
      $region31: #{_lambda_.9} parent=11 // pred_region
        _
      $region32: #{_lambda_.9} parent=11 // pred_fallthru
        _
      // Predicated region
      $region33: #{_lambda_.9} parent=11 // pred_check
        %p380 = pneg %p198
      $region34: #{_lambda_.9} parent=11 // pred_check_branch
        %382 = sbr.rel (%p380) target = $region36
      $region35: #{_lambda_.9} parent=11 // pred_region
        _
      $region36: #{_lambda_.9} parent=11 // pred_fallthru
        _
      // Predicated region
      $region37: #{_lambda_.9} parent=11 // pred_check
        %p383 = pneg %p219
      $region38: #{_lambda_.9} parent=11 // pred_check_branch
        %385 = sbr.rel (%p383) target = $region40
      $region39: #{_lambda_.9} parent=11 // pred_region
        _
      $region40: #{_lambda_.9} parent=11 // pred_fallthru
        _
      // Predicated region
      $region41: #{_lambda_.9} parent=11 // pred_check
        %p386 = pneg %p240
      $region42: #{_lambda_.9} parent=11 // pred_check_branch
        %388 = sbr.rel (%p386) target = $region44
      $region43: #{_lambda_.9} parent=11 // pred_region
        _
      $region44: #{_lambda_.9} parent=11 // pred_fallthru
        _
      // Predicated region
      $region45: #{_lambda_.9} parent=11 // pred_check
        %p389 = pneg %p261
      $region46: #{_lambda_.9} parent=11 // pred_check_branch
        %391 = sbr.rel (%p389) target = $region48
      $region47: #{_lambda_.9} parent=11 // pred_region
        _
      $region48: #{_lambda_.9} parent=11 // pred_fallthru
        _
      // Predicated region
      $region49: #{_lambda_.9} parent=11 // pred_check
        %p392 = pneg %p282
      $region50: #{_lambda_.9} parent=11 // pred_check_branch
        %394 = sbr.rel (%p392) target = $region52
      $region51: #{_lambda_.9} parent=11 // pred_region
        _
      $region52: #{_lambda_.9} parent=11 // pred_fallthru
        _
      // Predicated region
      $region53: #{_lambda_.9} parent=11 // pred_check
        %p395 = pneg %p303
      $region54: #{_lambda_.9} parent=11 // pred_check_branch
        %397 = sbr.rel (%p395) target = $region56
      $region55: #{_lambda_.9} parent=11 // pred_region
        _
      $region56: #{_lambda_.9} parent=11 // pred_fallthru
        _
      // Predicated region
      $region57: #{_lambda_.9} parent=11 // pred_check
        %p398 = pneg %p324
      $region58: #{_lambda_.9} parent=11 // pred_check_branch
        %400 = sbr.rel (%p398) target = $region60
      $region59: #{_lambda_.9} parent=11 // pred_region
        _
      $region60: #{_lambda_.9} parent=11 // pred_fallthru
        _
    $region12: #{_lambda_.9} parent=5 // pred_fallthru
      _
    %p401 = scmp.lt.s32.totalorder %s20, 2
    // Predicated region
    $region61: #{_lambda_.9} parent=5 // pred_check
      %p402 = pneg %p401
    $region62: #{_lambda_.9} parent=5 // pred_check_branch
      %404 = sbr.rel (%p402) target = $region64
    $region63: #{_lambda_.9} parent=5 // pred_region
      // Predicated region
      $region65: #{_lambda_.9} parent=63 // pred_check
        %p405 = pneg %p40
      $region66: #{_lambda_.9} parent=63 // pred_check_branch
        %407 = sbr.rel (%p405) target = $region68
      $region67: #{_lambda_.9} parent=63 // pred_region
        %p408 = scmp.lt.s32.totalorder %s20, 1
        %s409 = scalar_select %p408, %s20, 1
        %s410 = smul.addr %s409, 8
        %s411 = scalar_lea.vmem %s0, %s410
      $region68: #{_lambda_.9} parent=63 // pred_fallthru
        _
      // Predicated region
      $region69: #{_lambda_.9} parent=63 // pred_check
        %p412 = pneg %p66
      $region70: #{_lambda_.9} parent=63 // pred_check_branch
        %414 = sbr.rel (%p412) target = $region72
      $region71: #{_lambda_.9} parent=63 // pred_region
        %p415 = scmp.lt.s32.totalorder %s20, 1
        %s416 = scalar_select %p415, %s20, 1
        %s417 = scalar_lea.vmem %s1, %s416
      $region72: #{_lambda_.9} parent=63 // pred_fallthru
        _
    $region64: #{_lambda_.9} parent=5 // pred_fallthru
      _
    %p418 = scmp.le.s32.totalorder 1, %s20
    %p419 = scmp.lt.s32.totalorder %s20, 3
    %p420 = pnand %p418, %p419
    %p421 = pneg %p420
    // Predicated region
    $region73: #{_lambda_.9} parent=5 // pred_check
      _
    $region74: #{_lambda_.9} parent=5 // pred_check_branch
      %423 = sbr.rel (%p420) target = $region76
    $region75: #{_lambda_.9} parent=5 // pred_region
      %s424 = ssub.s32 %s20, 1
      %p425 = scmp.lt.s32.totalorder %s25, 1
      %s426 = scalar_select %p425, %s25, 1
      %s427 = smul.addr %s426, 8
      %s428 = scalar_lea.vmem %s0, %s427
      %p429 = pneg %p46
      %p430 = pneg %p43
      %p431 = scmp.lt.s32.totalorder %s25, 1
      %s432 = scalar_select %p431, %s25, 1
      %s433 = scalar_lea.vmem %s1, %s432
      %p434 = pneg %p72
      %p435 = pneg %p69
      %p436 = pneg %p93
      %p437 = pneg %p90
      %p438 = pneg %p114
      %p439 = pneg %p111
      %p440 = pneg %p135
      %p441 = pneg %p132
      %p442 = pneg %p156
      %p443 = pneg %p153
      %p444 = pneg %p177
      %p445 = pneg %p174
      %p446 = pneg %p198
      %p447 = pneg %p195
      %p448 = pneg %p219
      %p449 = pneg %p216
      %p450 = pneg %p240
      %p451 = pneg %p237
      %p452 = pneg %p261
      %p453 = pneg %p258
      %p454 = pneg %p282
      %p455 = pneg %p279
      %p456 = pneg %p303
      %p457 = pneg %p300
      %p458 = pneg %p324
      %p459 = pneg %p321
      %p460 = pneg %p350
      %p461 = pneg %p347
      %p462 = scmp.lt.s32.totalorder %s25, 1
      %s463 = scalar_select %p462, %s25, 1
      %s464 = smul.addr %s463, 8
      %s465 = scalar_lea.vmem %s14, %s464
      %p466 = scmp.lt.s32.totalorder %s25, 1
      %s467 = scalar_select %p466, %s25, 1
      %s468 = smul.addr %s467, 8
      %s469 = scalar_lea.vmem %s0, %s468
      %p470 = scmp.lt.s32.totalorder %s25, 1
      %s471 = scalar_select %p470, %s25, 1
      %s472 = scalar_lea.vmem %s1, %s471
      %p473 = scmp.lt.s32.totalorder %s25, 1
      %s474 = scalar_select %p473, %s25, 1
      %s475 = smul.addr %s474, 8
      %s476 = scalar_lea.vmem %s14, %s475
      %v478 = vld [vmem:[%s469] sm:$0xff]
      %v479 = vld [vmem:[%s472] sm:$0x1]
      %v480 = vpack.c.bf16 %v478, %v478
      %v481 = vld [vmem:[%s2] sm:$0xf]
      %v482 = vld [vmem:[%s2 + $0x4] sm:$0xf]
      %v483 = vld [vmem:[%s2 + $0x8] sm:$0xf]
      %v484 = vld [vmem:[%s2 + $0xc] sm:$0xf]
      %v485 = vld [vmem:[%s3] sm:$0x1]
      %v487 = vlaneseq
      %v488 = vshrl.u32 %v487, 7
      %v489 = vsub.s32 0, %v488
      %v490 = vrot.slane %v485, %v489
      %v496 = vunpack.c.l.b16 %v481
      %v497 = vunpack.c.l.b16 %v482
      %v498 = vunpack.c.l.b16 %v483
      %v499 = vunpack.c.l.b16 %v484
      %v500 = vpack.c.b16 %v497, %v496
      %v501 = vpack.c.b16 %v499, %v498
      %vm504 = vcmask 261120
      %v506 = vsel %vm504, %v480, 0
      %508 = vmatprep.subr.bf16.mxu0 0
      %509 = vmatpush1.bf16.msra.mxu0 0
      %510 = vmatprep.subr.bf16.mxu0 0
      %511 = vmatpush1.bf16.msra.mxu0 0
      %512 = vmatprep.subr.bf16.mxu0 0
      %513 = vmatpush1.bf16.msra.mxu0 0
      %514 = vmatprep.subr.bf16.mxu0 0
      %515 = vmatpush1.bf16.msra.mxu0 0
      %516 = vmatprep.subr.bf16.mxu0 0
      %517 = vmatpush1.bf16.msra.mxu0 0
      %518 = vmatprep.subr.bf16.mxu0 0
      %519 = vmatpush1.bf16.msra.mxu0 0
      %520 = vmatprep.subr.bf16.mxu0 0
      %521 = vmatpush1.bf16.msra.mxu0 %v501
      %522 = vmatprep.subr.bf16.mxu0 0
      %523 = vmatpush1.bf16.msra.mxu0 %v500
      %524 = vmatprep.subr.bf16.mxu0 0
      %525 = vmatpush2.bf16.msra.mxu0 0
      %526 = vmatprep.subr.bf16.mxu0 0
      %527 = vmatpush2.bf16.msra.mxu0 0
      %528 = vmatprep.subr.bf16.mxu0 0
      %529 = vmatpush2.bf16.msra.mxu0 0
      %530 = vmatprep.subr.bf16.mxu0 0
      %531 = vmatpush2.bf16.msra.mxu0 0
      %532 = vmatprep.subr.bf16.mxu0 0
      %533 = vmatpush2.bf16.msra.mxu0 0
      %534 = vmatprep.subr.bf16.mxu0 0
      %535 = vmatpush2.bf16.msra.mxu0 0
      %536 = vmatprep.subr.bf16.mxu0 0
      %537 = vmatpush2.bf16.msra.mxu0 0
      %538 = vmatprep.subr.bf16.mxu0 0
      %539 = vmatpush2.bf16.msra.mxu0 0
      %540 = vmatprep.mubr.bf16.mxu0 0
      %541 = vmatmul.mubr.bf16.gmra.mxu0 %v506
      %v542 = vpop.f32.mrf.mxu0
      %v543 = vadd.f32 %v490, %v542
      %v544 = vpop.f32.mrf.mxu0
      %v545 = vpop.f32.mrf.mxu0
      %v546 = vpop.f32.mrf.mxu0
      %547 = vdwg.mxu0
      %549 = vrot.lane.b32.xlu0 %v543, 96
      %v550 = vpop.permute.xlu0 %549
      %vm551 = vcmask 64512
      %v552 = vsel %vm551, %v543, 0
      %v554 = vsel %vm551, %v550, 0
      %556 = vmatprep.subr.mxu0 0.0
      %557 = vmatpush1.xpose.msra.mxu0 0.0
      %558 = vmatprep.subr.mxu0 0.0
      %559 = vmatpush1.xpose.msra.mxu0 0.0
      %560 = vmatprep.subr.mxu0 0.0
      %561 = vmatpush1.xpose.msra.mxu0 0.0
      %562 = vmatprep.subr.mxu0 0.0
      %563 = vmatpush1.xpose.msra.mxu0 0.0
      %564 = vmatprep.subr.mxu0 0.0
      %565 = vmatpush1.xpose.msra.mxu0 0.0
      %566 = vmatprep.subr.mxu0 0.0
      %567 = vmatpush1.xpose.msra.mxu0 0.0
      %568 = vmatprep.subr.mxu0 0.0
      %569 = vmatpush1.xpose.msra.mxu0 0.0
      %570 = vmatprep.subr.mxu0 0.0
      %571 = vmatpush1.xpose.msra.mxu0 0.0
      %572 = vmatprep.subr.mxu0 0.0
      %573 = vmatpush1.xpose.msra.mxu0 0.0
      %574 = vmatprep.subr.mxu0 0.0
      %575 = vmatpush1.xpose.msra.mxu0 0.0
      %576 = vmatprep.subr.mxu0 0.0
      %577 = vmatpush1.xpose.msra.mxu0 0.0
      %578 = vmatprep.subr.mxu0 0.0
      %579 = vmatpush1.xpose.msra.mxu0 0.0
      %580 = vmatprep.subr.mxu0 0.0
      %581 = vmatpush1.xpose.msra.mxu0 0.0
      %582 = vmatprep.subr.mxu0 0.0
      %583 = vmatpush1.xpose.msra.mxu0 0.0
      %584 = vmatprep.subr.mxu0 0.0
      %585 = vmatpush1.xpose.msra.mxu0 0.0
      %586 = vmatprep.subr.mxu0 0.0
      %587 = vmatpush1.xpose.msra.mxu0 %v554
      %588 = vmatprep.subr.mxu0 0.0
      %589 = vmatpush2.xpose.msra.mxu0 0.0
      %590 = vmatprep.subr.mxu0 0.0
      %591 = vmatpush2.xpose.msra.mxu0 0.0
      %592 = vmatprep.subr.mxu0 0.0
      %593 = vmatpush2.xpose.msra.mxu0 0.0
      %594 = vmatprep.subr.mxu0 0.0
      %595 = vmatpush2.xpose.msra.mxu0 0.0
      %596 = vmatprep.subr.mxu0 0.0
      %597 = vmatpush2.xpose.msra.mxu0 0.0
      %598 = vmatprep.subr.mxu0 0.0
      %599 = vmatpush2.xpose.msra.mxu0 0.0
      %600 = vmatprep.subr.mxu0 0.0
      %601 = vmatpush2.xpose.msra.mxu0 0.0
      %602 = vmatprep.subr.mxu0 0.0
      %603 = vmatpush2.xpose.msra.mxu0 0.0
      %604 = vmatprep.subr.mxu0 0.0
      %605 = vmatpush2.xpose.msra.mxu0 0.0
      %606 = vmatprep.subr.mxu0 0.0
      %607 = vmatpush2.xpose.msra.mxu0 0.0
      %608 = vmatprep.subr.mxu0 0.0
      %609 = vmatpush2.xpose.msra.mxu0 0.0
      %610 = vmatprep.subr.mxu0 0.0
      %611 = vmatpush2.xpose.msra.mxu0 0.0
      %612 = vmatprep.subr.mxu0 0.0
      %613 = vmatpush2.xpose.msra.mxu0 0.0
      %614 = vmatprep.subr.mxu0 0.0
      %615 = vmatpush2.xpose.msra.mxu0 0.0
      %616 = vmatprep.subr.mxu0 0.0
      %617 = vmatpush2.xpose.msra.mxu0 0.0
      %618 = vmatprep.subr.mxu0 0.0
      %619 = vmatpush2.xpose.msra.mxu0 0.0
      %620 = vmatprep.mubr.f32.mxu0 0.0
      %621 = vmatmul.mubr.f32.gmra.mxu0 %v552
      %v622 = vpop.f32.mrf.mxu0
      %v623 = vadd.f32 0.0, %v622
      %v624 = vpop.f32.mrf.mxu0
      %625 = vdwg.mxu0
      %v626 = vmul.f32 %v623, 0.35355338
      %vm627 = vcmp.gt.f32.partialorder %v479, 0.5
      %v628 = vsel %vm627, 1, 0
      %v629 = vlaneseq
      %v630 = vshrl.u32 %v629, 7
      %v631 = vsub.s32 0, %v630
      %v632 = vrot.slane %v628, %v631
      %vm633 = vcmp.eq.s32.totalorder %v632, 1
      %v634 = vsel %vm633, -1e+09, %v626
      %v635 = vsel %vm551, %v634, -inf
      %636 = vmax.xlane.f32.xlu0 %v635
      %v637 = vpop.xlane.xlu0 %636
      %v638 = vsub.f32 %v634, %v637
      %v639 = vmul.f32 %v638, 1.442695
      %v640 = vpow.pop %v639
      %v641 = vsel %vm551, %v640, 0.0
      %642 = vadd.xlane.f32.xlu0 %v641
      %v643 = vpop.xlane.xlu0 %642
      %v644 = vrcp.pop %v643
      %v645 = vmul.f32 %v640, %v644
      %646 = vrot.lane.b32.xlu0 %v543, 64
      %v647 = vpop.permute.xlu0 %646
      %v650 = vsel %vm551, %v645, 0
      %652 = vmatprep.subr.mxu0 0.0
      %653 = vmatpush1.msra.mxu0 0.0
      %654 = vmatprep.subr.mxu0 0.0
      %655 = vmatpush1.msra.mxu0 0.0
      %656 = vmatprep.subr.mxu0 0.0
      %657 = vmatpush1.msra.mxu0 0.0
      %658 = vmatprep.subr.mxu0 0.0
      %659 = vmatpush1.msra.mxu0 0.0
      %660 = vmatprep.subr.mxu0 0.0
      %661 = vmatpush1.msra.mxu0 0.0
      %662 = vmatprep.subr.mxu0 0.0
      %663 = vmatpush1.msra.mxu0 0.0
      %664 = vmatprep.subr.mxu0 0.0
      %665 = vmatpush1.msra.mxu0 0.0
      %666 = vmatprep.subr.mxu0 0.0
      %667 = vmatpush1.msra.mxu0 0.0
      %668 = vmatprep.subr.mxu0 0.0
      %669 = vmatpush1.msra.mxu0 0.0
      %670 = vmatprep.subr.mxu0 0.0
      %671 = vmatpush1.msra.mxu0 0.0
      %672 = vmatprep.subr.mxu0 0.0
      %673 = vmatpush1.msra.mxu0 0.0
      %674 = vmatprep.subr.mxu0 0.0
      %675 = vmatpush1.msra.mxu0 0.0
      %676 = vmatprep.subr.mxu0 0.0
      %677 = vmatpush1.msra.mxu0 0.0
      %678 = vmatprep.subr.mxu0 0.0
      %679 = vmatpush1.msra.mxu0 0.0
      %680 = vmatprep.subr.mxu0 0.0
      %681 = vmatpush1.msra.mxu0 0.0
      %682 = vmatprep.subr.mxu0 0.0
      %683 = vmatpush1.msra.mxu0 %v647
      %684 = vmatprep.subr.mxu0 0.0
      %685 = vmatpush2.msra.mxu0 0.0
      %686 = vmatprep.subr.mxu0 0.0
      %687 = vmatpush2.msra.mxu0 0.0
      %688 = vmatprep.subr.mxu0 0.0
      %689 = vmatpush2.msra.mxu0 0.0
      %690 = vmatprep.subr.mxu0 0.0
      %691 = vmatpush2.msra.mxu0 0.0
      %692 = vmatprep.subr.mxu0 0.0
      %693 = vmatpush2.msra.mxu0 0.0
      %694 = vmatprep.subr.mxu0 0.0
      %695 = vmatpush2.msra.mxu0 0.0
      %696 = vmatprep.subr.mxu0 0.0
      %697 = vmatpush2.msra.mxu0 0.0
      %698 = vmatprep.subr.mxu0 0.0
      %699 = vmatpush2.msra.mxu0 0.0
      %700 = vmatprep.subr.mxu0 0.0
      %701 = vmatpush2.msra.mxu0 0.0
      %702 = vmatprep.subr.mxu0 0.0
      %703 = vmatpush2.msra.mxu0 0.0
      %704 = vmatprep.subr.mxu0 0.0
      %705 = vmatpush2.msra.mxu0 0.0
      %706 = vmatprep.subr.mxu0 0.0
      %707 = vmatpush2.msra.mxu0 0.0
      %708 = vmatprep.subr.mxu0 0.0
      %709 = vmatpush2.msra.mxu0 0.0
      %710 = vmatprep.subr.mxu0 0.0
      %711 = vmatpush2.msra.mxu0 0.0
      %712 = vmatprep.subr.mxu0 0.0
      %713 = vmatpush2.msra.mxu0 0.0
      %714 = vmatprep.subr.mxu0 0.0
      %715 = vmatpush2.msra.mxu0 0.0
      %716 = vmatprep.mubr.f32.mxu0 0.0
      %717 = vmatmul.mubr.f32.gmra.mxu0 %v650
      %v718 = vpop.f32.mrf.mxu0
      %v719 = vadd.f32 0.0, %v718
      %v720 = vpop.f32.mrf.mxu0
      %721 = vdwg.mxu0
      %722 = vrot.lane.b32.xlu0 %v543, 120
      %v723 = vpop.permute.xlu0 %722
      %724 = vrot.lane.b32.xlu0 %v543, 88
      %v725 = vpop.permute.xlu0 %724
      %v726 = vsel %vm551, %v723, 0
      %v728 = vsel %vm551, %v725, 0
      %730 = vmatprep.subr.mxu0 0.0
      %731 = vmatpush1.xpose.msra.mxu0 0.0
      %732 = vmatprep.subr.mxu0 0.0
      %733 = vmatpush1.xpose.msra.mxu0 0.0
      %734 = vmatprep.subr.mxu0 0.0
      %735 = vmatpush1.xpose.msra.mxu0 0.0
      %736 = vmatprep.subr.mxu0 0.0
      %737 = vmatpush1.xpose.msra.mxu0 0.0
      %738 = vmatprep.subr.mxu0 0.0
      %739 = vmatpush1.xpose.msra.mxu0 0.0
      %740 = vmatprep.subr.mxu0 0.0
      %741 = vmatpush1.xpose.msra.mxu0 0.0
      %742 = vmatprep.subr.mxu0 0.0
      %743 = vmatpush1.xpose.msra.mxu0 0.0
      %744 = vmatprep.subr.mxu0 0.0
      %745 = vmatpush1.xpose.msra.mxu0 0.0
      %746 = vmatprep.subr.mxu0 0.0
      %747 = vmatpush1.xpose.msra.mxu0 0.0
      %748 = vmatprep.subr.mxu0 0.0
      %749 = vmatpush1.xpose.msra.mxu0 0.0
      %750 = vmatprep.subr.mxu0 0.0
      %751 = vmatpush1.xpose.msra.mxu0 0.0
      %752 = vmatprep.subr.mxu0 0.0
      %753 = vmatpush1.xpose.msra.mxu0 0.0
      %754 = vmatprep.subr.mxu0 0.0
      %755 = vmatpush1.xpose.msra.mxu0 0.0
      %756 = vmatprep.subr.mxu0 0.0
      %757 = vmatpush1.xpose.msra.mxu0 0.0
      %758 = vmatprep.subr.mxu0 0.0
      %759 = vmatpush1.xpose.msra.mxu0 0.0
      %760 = vmatprep.subr.mxu0 0.0
      %761 = vmatpush1.xpose.msra.mxu0 %v728
      %762 = vmatprep.subr.mxu0 0.0
      %763 = vmatpush2.xpose.msra.mxu0 0.0
      %764 = vmatprep.subr.mxu0 0.0
      %765 = vmatpush2.xpose.msra.mxu0 0.0
      %766 = vmatprep.subr.mxu0 0.0
      %767 = vmatpush2.xpose.msra.mxu0 0.0
      %768 = vmatprep.subr.mxu0 0.0
      %769 = vmatpush2.xpose.msra.mxu0 0.0
      %770 = vmatprep.subr.mxu0 0.0
      %771 = vmatpush2.xpose.msra.mxu0 0.0
      %772 = vmatprep.subr.mxu0 0.0
      %773 = vmatpush2.xpose.msra.mxu0 0.0
      %774 = vmatprep.subr.mxu0 0.0
      %775 = vmatpush2.xpose.msra.mxu0 0.0
      %776 = vmatprep.subr.mxu0 0.0
      %777 = vmatpush2.xpose.msra.mxu0 0.0
      %778 = vmatprep.subr.mxu0 0.0
      %779 = vmatpush2.xpose.msra.mxu0 0.0
      %780 = vmatprep.subr.mxu0 0.0
      %781 = vmatpush2.xpose.msra.mxu0 0.0
      %782 = vmatprep.subr.mxu0 0.0
      %783 = vmatpush2.xpose.msra.mxu0 0.0
      %784 = vmatprep.subr.mxu0 0.0
      %785 = vmatpush2.xpose.msra.mxu0 0.0
      %786 = vmatprep.subr.mxu0 0.0
      %787 = vmatpush2.xpose.msra.mxu0 0.0
      %788 = vmatprep.subr.mxu0 0.0
      %789 = vmatpush2.xpose.msra.mxu0 0.0
      %790 = vmatprep.subr.mxu0 0.0
      %791 = vmatpush2.xpose.msra.mxu0 0.0
      %792 = vmatprep.subr.mxu0 0.0
      %793 = vmatpush2.xpose.msra.mxu0 0.0
      %794 = vmatprep.mubr.f32.mxu0 0.0
      %795 = vmatmul.mubr.f32.gmra.mxu0 %v726
      %v796 = vpop.f32.mrf.mxu0
      %v797 = vadd.f32 0.0, %v796
      %v798 = vpop.f32.mrf.mxu0
      %799 = vdwg.mxu0
      %v800 = vmul.f32 %v797, 0.35355338
      %v801 = vsel %vm633, -1e+09, %v800
      %v802 = vsel %vm551, %v801, -inf
      %803 = vmax.xlane.f32.xlu0 %v802
      %v804 = vpop.xlane.xlu0 %803
      %v805 = vsub.f32 %v801, %v804
      %v806 = vmul.f32 %v805, 1.442695
      %v807 = vpow.pop %v806
      %v808 = vsel %vm551, %v807, 0.0
      %809 = vadd.xlane.f32.xlu0 %v808
      %v810 = vpop.xlane.xlu0 %809
      %v811 = vrcp.pop %v810
      %v812 = vmul.f32 %v807, %v811
      %813 = vrot.lane.b32.xlu0 %v543, 56
      %v814 = vpop.permute.xlu0 %813
      %v817 = vsel %vm551, %v812, 0
      %819 = vmatprep.subr.mxu0 0.0
      %820 = vmatpush1.msra.mxu0 0.0
      %821 = vmatprep.subr.mxu0 0.0
      %822 = vmatpush1.msra.mxu0 0.0
      %823 = vmatprep.subr.mxu0 0.0
      %824 = vmatpush1.msra.mxu0 0.0
      %825 = vmatprep.subr.mxu0 0.0
      %826 = vmatpush1.msra.mxu0 0.0
      %827 = vmatprep.subr.mxu0 0.0
      %828 = vmatpush1.msra.mxu0 0.0
      %829 = vmatprep.subr.mxu0 0.0
      %830 = vmatpush1.msra.mxu0 0.0
      %831 = vmatprep.subr.mxu0 0.0
      %832 = vmatpush1.msra.mxu0 0.0
      %833 = vmatprep.subr.mxu0 0.0
      %834 = vmatpush1.msra.mxu0 0.0
      %835 = vmatprep.subr.mxu0 0.0
      %836 = vmatpush1.msra.mxu0 0.0
      %837 = vmatprep.subr.mxu0 0.0
      %838 = vmatpush1.msra.mxu0 0.0
      %839 = vmatprep.subr.mxu0 0.0
      %840 = vmatpush1.msra.mxu0 0.0
      %841 = vmatprep.subr.mxu0 0.0
      %842 = vmatpush1.msra.mxu0 0.0
      %843 = vmatprep.subr.mxu0 0.0
      %844 = vmatpush1.msra.mxu0 0.0
      %845 = vmatprep.subr.mxu0 0.0
      %846 = vmatpush1.msra.mxu0 0.0
      %847 = vmatprep.subr.mxu0 0.0
      %848 = vmatpush1.msra.mxu0 0.0
      %849 = vmatprep.subr.mxu0 0.0
      %850 = vmatpush1.msra.mxu0 %v814
      %851 = vmatprep.subr.mxu0 0.0
      %852 = vmatpush2.msra.mxu0 0.0
      %853 = vmatprep.subr.mxu0 0.0
      %854 = vmatpush2.msra.mxu0 0.0
      %855 = vmatprep.subr.mxu0 0.0
      %856 = vmatpush2.msra.mxu0 0.0
      %857 = vmatprep.subr.mxu0 0.0
      %858 = vmatpush2.msra.mxu0 0.0
      %859 = vmatprep.subr.mxu0 0.0
      %860 = vmatpush2.msra.mxu0 0.0
      %861 = vmatprep.subr.mxu0 0.0
      %862 = vmatpush2.msra.mxu0 0.0
      %863 = vmatprep.subr.mxu0 0.0
      %864 = vmatpush2.msra.mxu0 0.0
      %865 = vmatprep.subr.mxu0 0.0
      %866 = vmatpush2.msra.mxu0 0.0
      %867 = vmatprep.subr.mxu0 0.0
      %868 = vmatpush2.msra.mxu0 0.0
      %869 = vmatprep.subr.mxu0 0.0
      %870 = vmatpush2.msra.mxu0 0.0
      %871 = vmatprep.subr.mxu0 0.0
      %872 = vmatpush2.msra.mxu0 0.0
      %873 = vmatprep.subr.mxu0 0.0
      %874 = vmatpush2.msra.mxu0 0.0
      %875 = vmatprep.subr.mxu0 0.0
      %876 = vmatpush2.msra.mxu0 0.0
      %877 = vmatprep.subr.mxu0 0.0
      %878 = vmatpush2.msra.mxu0 0.0
      %879 = vmatprep.subr.mxu0 0.0
      %880 = vmatpush2.msra.mxu0 0.0
      %881 = vmatprep.subr.mxu0 0.0
      %882 = vmatpush2.msra.mxu0 0.0
      %883 = vmatprep.mubr.f32.mxu0 0.0
      %884 = vmatmul.mubr.f32.gmra.mxu0 %v817
      %v885 = vpop.f32.mrf.mxu0
      %v886 = vadd.f32 0.0, %v885
      %v887 = vpop.f32.mrf.mxu0
      %888 = vdwg.mxu0
      %889 = vrot.lane.b32.xlu0 %v543, 112
      %v890 = vpop.permute.xlu0 %889
      %891 = vrot.lane.b32.xlu0 %v543, 80
      %v892 = vpop.permute.xlu0 %891
      %v893 = vsel %vm551, %v890, 0
      %v895 = vsel %vm551, %v892, 0
      %897 = vmatprep.subr.mxu0 0.0
      %898 = vmatpush1.xpose.msra.mxu0 0.0
      %899 = vmatprep.subr.mxu0 0.0
      %900 = vmatpush1.xpose.msra.mxu0 0.0
      %901 = vmatprep.subr.mxu0 0.0
      %902 = vmatpush1.xpose.msra.mxu0 0.0
      %903 = vmatprep.subr.mxu0 0.0
      %904 = vmatpush1.xpose.msra.mxu0 0.0
      %905 = vmatprep.subr.mxu0 0.0
      %906 = vmatpush1.xpose.msra.mxu0 0.0
      %907 = vmatprep.subr.mxu0 0.0
      %908 = vmatpush1.xpose.msra.mxu0 0.0
      %909 = vmatprep.subr.mxu0 0.0
      %910 = vmatpush1.xpose.msra.mxu0 0.0
      %911 = vmatprep.subr.mxu0 0.0
      %912 = vmatpush1.xpose.msra.mxu0 0.0
      %913 = vmatprep.subr.mxu0 0.0
      %914 = vmatpush1.xpose.msra.mxu0 0.0
      %915 = vmatprep.subr.mxu0 0.0
      %916 = vmatpush1.xpose.msra.mxu0 0.0
      %917 = vmatprep.subr.mxu0 0.0
      %918 = vmatpush1.xpose.msra.mxu0 0.0
      %919 = vmatprep.subr.mxu0 0.0
      %920 = vmatpush1.xpose.msra.mxu0 0.0
      %921 = vmatprep.subr.mxu0 0.0
      %922 = vmatpush1.xpose.msra.mxu0 0.0
      %923 = vmatprep.subr.mxu0 0.0
      %924 = vmatpush1.xpose.msra.mxu0 0.0
      %925 = vmatprep.subr.mxu0 0.0
      %926 = vmatpush1.xpose.msra.mxu0 0.0
      %927 = vmatprep.subr.mxu0 0.0
      %928 = vmatpush1.xpose.msra.mxu0 %v895
      %929 = vmatprep.subr.mxu0 0.0
      %930 = vmatpush2.xpose.msra.mxu0 0.0
      %931 = vmatprep.subr.mxu0 0.0
      %932 = vmatpush2.xpose.msra.mxu0 0.0
      %933 = vmatprep.subr.mxu0 0.0
      %934 = vmatpush2.xpose.msra.mxu0 0.0
      %935 = vmatprep.subr.mxu0 0.0
      %936 = vmatpush2.xpose.msra.mxu0 0.0
      %937 = vmatprep.subr.mxu0 0.0
      %938 = vmatpush2.xpose.msra.mxu0 0.0
      %939 = vmatprep.subr.mxu0 0.0
      %940 = vmatpush2.xpose.msra.mxu0 0.0
      %941 = vmatprep.subr.mxu0 0.0
      %942 = vmatpush2.xpose.msra.mxu0 0.0
      %943 = vmatprep.subr.mxu0 0.0
      %944 = vmatpush2.xpose.msra.mxu0 0.0
      %945 = vmatprep.subr.mxu0 0.0
      %946 = vmatpush2.xpose.msra.mxu0 0.0
      %947 = vmatprep.subr.mxu0 0.0
      %948 = vmatpush2.xpose.msra.mxu0 0.0
      %949 = vmatprep.subr.mxu0 0.0
      %950 = vmatpush2.xpose.msra.mxu0 0.0
      %951 = vmatprep.subr.mxu0 0.0
      %952 = vmatpush2.xpose.msra.mxu0 0.0
      %953 = vmatprep.subr.mxu0 0.0
      %954 = vmatpush2.xpose.msra.mxu0 0.0
      %955 = vmatprep.subr.mxu0 0.0
      %956 = vmatpush2.xpose.msra.mxu0 0.0
      %957 = vmatprep.subr.mxu0 0.0
      %958 = vmatpush2.xpose.msra.mxu0 0.0
      %959 = vmatprep.subr.mxu0 0.0
      %960 = vmatpush2.xpose.msra.mxu0 0.0
      %961 = vmatprep.mubr.f32.mxu0 0.0
      %962 = vmatmul.mubr.f32.gmra.mxu0 %v893
      %v963 = vpop.f32.mrf.mxu0
      %v964 = vadd.f32 0.0, %v963
      %v965 = vpop.f32.mrf.mxu0
      %966 = vdwg.mxu0
      %v967 = vmul.f32 %v964, 0.35355338
      %v968 = vsel %vm633, -1e+09, %v967
      %v969 = vsel %vm551, %v968, -inf
      %970 = vmax.xlane.f32.xlu0 %v969
      %v971 = vpop.xlane.xlu0 %970
      %v972 = vsub.f32 %v968, %v971
      %v973 = vmul.f32 %v972, 1.442695
      %v974 = vpow.pop %v973
      %v975 = vsel %vm551, %v974, 0.0
      %976 = vadd.xlane.f32.xlu0 %v975
      %v977 = vpop.xlane.xlu0 %976
      %v978 = vrcp.pop %v977
      %v979 = vmul.f32 %v974, %v978
      %980 = vrot.lane.b32.xlu0 %v543, 48
      %v981 = vpop.permute.xlu0 %980
      %v984 = vsel %vm551, %v979, 0
      %986 = vmatprep.subr.mxu0 0.0
      %987 = vmatpush1.msra.mxu0 0.0
      %988 = vmatprep.subr.mxu0 0.0
      %989 = vmatpush1.msra.mxu0 0.0
      %990 = vmatprep.subr.mxu0 0.0
      %991 = vmatpush1.msra.mxu0 0.0
      %992 = vmatprep.subr.mxu0 0.0
      %993 = vmatpush1.msra.mxu0 0.0
      %994 = vmatprep.subr.mxu0 0.0
      %995 = vmatpush1.msra.mxu0 0.0
      %996 = vmatprep.subr.mxu0 0.0
      %997 = vmatpush1.msra.mxu0 0.0
      %998 = vmatprep.subr.mxu0 0.0
      %999 = vmatpush1.msra.mxu0 0.0
      %1000 = vmatprep.subr.mxu0 0.0
      %1001 = vmatpush1.msra.mxu0 0.0
      %1002 = vmatprep.subr.mxu0 0.0
      %1003 = vmatpush1.msra.mxu0 0.0
      %1004 = vmatprep.subr.mxu0 0.0
      %1005 = vmatpush1.msra.mxu0 0.0
      %1006 = vmatprep.subr.mxu0 0.0
      %1007 = vmatpush1.msra.mxu0 0.0
      %1008 = vmatprep.subr.mxu0 0.0
      %1009 = vmatpush1.msra.mxu0 0.0
      %1010 = vmatprep.subr.mxu0 0.0
      %1011 = vmatpush1.msra.mxu0 0.0
      %1012 = vmatprep.subr.mxu0 0.0
      %1013 = vmatpush1.msra.mxu0 0.0
      %1014 = vmatprep.subr.mxu0 0.0
      %1015 = vmatpush1.msra.mxu0 0.0
      %1016 = vmatprep.subr.mxu0 0.0
      %1017 = vmatpush1.msra.mxu0 %v981
      %1018 = vmatprep.subr.mxu0 0.0
      %1019 = vmatpush2.msra.mxu0 0.0
      %1020 = vmatprep.subr.mxu0 0.0
      %1021 = vmatpush2.msra.mxu0 0.0
      %1022 = vmatprep.subr.mxu0 0.0
      %1023 = vmatpush2.msra.mxu0 0.0
      %1024 = vmatprep.subr.mxu0 0.0
      %1025 = vmatpush2.msra.mxu0 0.0
      %1026 = vmatprep.subr.mxu0 0.0
      %1027 = vmatpush2.msra.mxu0 0.0
      %1028 = vmatprep.subr.mxu0 0.0
      %1029 = vmatpush2.msra.mxu0 0.0
      %1030 = vmatprep.subr.mxu0 0.0
      %1031 = vmatpush2.msra.mxu0 0.0
      %1032 = vmatprep.subr.mxu0 0.0
      %1033 = vmatpush2.msra.mxu0 0.0
      %1034 = vmatprep.subr.mxu0 0.0
      %1035 = vmatpush2.msra.mxu0 0.0
      %1036 = vmatprep.subr.mxu0 0.0
      %1037 = vmatpush2.msra.mxu0 0.0
      %1038 = vmatprep.subr.mxu0 0.0
      %1039 = vmatpush2.msra.mxu0 0.0
      %1040 = vmatprep.subr.mxu0 0.0
      %1041 = vmatpush2.msra.mxu0 0.0
      %1042 = vmatprep.subr.mxu0 0.0
      %1043 = vmatpush2.msra.mxu0 0.0
      %1044 = vmatprep.subr.mxu0 0.0
      %1045 = vmatpush2.msra.mxu0 0.0
      %1046 = vmatprep.subr.mxu0 0.0
      %1047 = vmatpush2.msra.mxu0 0.0
      %1048 = vmatprep.subr.mxu0 0.0
      %1049 = vmatpush2.msra.mxu0 0.0
      %1050 = vmatprep.mubr.f32.mxu0 0.0
      %1051 = vmatmul.mubr.f32.gmra.mxu0 %v984
      %v1052 = vpop.f32.mrf.mxu0
      %v1053 = vadd.f32 0.0, %v1052
      %v1054 = vpop.f32.mrf.mxu0
      %1055 = vdwg.mxu0
      %1056 = vrot.lane.b32.xlu0 %v543, 104
      %v1057 = vpop.permute.xlu0 %1056
      %1058 = vrot.lane.b32.xlu0 %v543, 72
      %v1059 = vpop.permute.xlu0 %1058
      %v1060 = vsel %vm551, %v1057, 0
      %v1062 = vsel %vm551, %v1059, 0
      %1064 = vmatprep.subr.mxu0 0.0
      %1065 = vmatpush1.xpose.msra.mxu0 0.0
      %1066 = vmatprep.subr.mxu0 0.0
      %1067 = vmatpush1.xpose.msra.mxu0 0.0
      %1068 = vmatprep.subr.mxu0 0.0
      %1069 = vmatpush1.xpose.msra.mxu0 0.0
      %1070 = vmatprep.subr.mxu0 0.0
      %1071 = vmatpush1.xpose.msra.mxu0 0.0
      %1072 = vmatprep.subr.mxu0 0.0
      %1073 = vmatpush1.xpose.msra.mxu0 0.0
      %1074 = vmatprep.subr.mxu0 0.0
      %1075 = vmatpush1.xpose.msra.mxu0 0.0
      %1076 = vmatprep.subr.mxu0 0.0
      %1077 = vmatpush1.xpose.msra.mxu0 0.0
      %1078 = vmatprep.subr.mxu0 0.0
      %1079 = vmatpush1.xpose.msra.mxu0 0.0
      %1080 = vmatprep.subr.mxu0 0.0
      %1081 = vmatpush1.xpose.msra.mxu0 0.0
      %1082 = vmatprep.subr.mxu0 0.0
      %1083 = vmatpush1.xpose.msra.mxu0 0.0
      %1084 = vmatprep.subr.mxu0 0.0
      %1085 = vmatpush1.xpose.msra.mxu0 0.0
      %1086 = vmatprep.subr.mxu0 0.0
      %1087 = vmatpush1.xpose.msra.mxu0 0.0
      %1088 = vmatprep.subr.mxu0 0.0
      %1089 = vmatpush1.xpose.msra.mxu0 0.0
      %1090 = vmatprep.subr.mxu0 0.0
      %1091 = vmatpush1.xpose.msra.mxu0 0.0
      %1092 = vmatprep.subr.mxu0 0.0
      %1093 = vmatpush1.xpose.msra.mxu0 0.0
      %1094 = vmatprep.subr.mxu0 0.0
      %1095 = vmatpush1.xpose.msra.mxu0 %v1062
      %1096 = vmatprep.subr.mxu0 0.0
      %1097 = vmatpush2.xpose.msra.mxu0 0.0
      %1098 = vmatprep.subr.mxu0 0.0
      %1099 = vmatpush2.xpose.msra.mxu0 0.0
      %1100 = vmatprep.subr.mxu0 0.0
      %1101 = vmatpush2.xpose.msra.mxu0 0.0
      %1102 = vmatprep.subr.mxu0 0.0
      %1103 = vmatpush2.xpose.msra.mxu0 0.0
      %1104 = vmatprep.subr.mxu0 0.0
      %1105 = vmatpush2.xpose.msra.mxu0 0.0
      %1106 = vmatprep.subr.mxu0 0.0
      %1107 = vmatpush2.xpose.msra.mxu0 0.0
      %1108 = vmatprep.subr.mxu0 0.0
      %1109 = vmatpush2.xpose.msra.mxu0 0.0
      %1110 = vmatprep.subr.mxu0 0.0
      %1111 = vmatpush2.xpose.msra.mxu0 0.0
      %1112 = vmatprep.subr.mxu0 0.0
      %1113 = vmatpush2.xpose.msra.mxu0 0.0
      %1114 = vmatprep.subr.mxu0 0.0
      %1115 = vmatpush2.xpose.msra.mxu0 0.0
      %1116 = vmatprep.subr.mxu0 0.0
      %1117 = vmatpush2.xpose.msra.mxu0 0.0
      %1118 = vmatprep.subr.mxu0 0.0
      %1119 = vmatpush2.xpose.msra.mxu0 0.0
      %1120 = vmatprep.subr.mxu0 0.0
      %1121 = vmatpush2.xpose.msra.mxu0 0.0
      %1122 = vmatprep.subr.mxu0 0.0
      %1123 = vmatpush2.xpose.msra.mxu0 0.0
      %1124 = vmatprep.subr.mxu0 0.0
      %1125 = vmatpush2.xpose.msra.mxu0 0.0
      %1126 = vmatprep.subr.mxu0 0.0
      %1127 = vmatpush2.xpose.msra.mxu0 0.0
      %1128 = vmatprep.mubr.f32.mxu0 0.0
      %1129 = vmatmul.mubr.f32.gmra.mxu0 %v1060
      %v1130 = vpop.f32.mrf.mxu0
      %v1131 = vadd.f32 0.0, %v1130
      %v1132 = vpop.f32.mrf.mxu0
      %1133 = vdwg.mxu0
      %v1134 = vmul.f32 %v1131, 0.35355338
      %v1135 = vsel %vm633, -1e+09, %v1134
      %v1136 = vsel %vm551, %v1135, -inf
      %1137 = vmax.xlane.f32.xlu0 %v1136
      %v1138 = vpop.xlane.xlu0 %1137
      %v1139 = vsub.f32 %v1135, %v1138
      %v1140 = vmul.f32 %v1139, 1.442695
      %v1141 = vpow.pop %v1140
      %v1142 = vsel %vm551, %v1141, 0.0
      %1143 = vadd.xlane.f32.xlu0 %v1142
      %v1144 = vpop.xlane.xlu0 %1143
      %v1145 = vrcp.pop %v1144
      %v1146 = vmul.f32 %v1141, %v1145
      %1147 = vrot.lane.b32.xlu0 %v543, 40
      %v1148 = vpop.permute.xlu0 %1147
      %v1151 = vsel %vm551, %v1146, 0
      %1153 = vmatprep.subr.mxu0 0.0
      %1154 = vmatpush1.msra.mxu0 0.0
      %1155 = vmatprep.subr.mxu0 0.0
      %1156 = vmatpush1.msra.mxu0 0.0
      %1157 = vmatprep.subr.mxu0 0.0
      %1158 = vmatpush1.msra.mxu0 0.0
      %1159 = vmatprep.subr.mxu0 0.0
      %1160 = vmatpush1.msra.mxu0 0.0
      %1161 = vmatprep.subr.mxu0 0.0
      %1162 = vmatpush1.msra.mxu0 0.0
      %1163 = vmatprep.subr.mxu0 0.0
      %1164 = vmatpush1.msra.mxu0 0.0
      %1165 = vmatprep.subr.mxu0 0.0
      %1166 = vmatpush1.msra.mxu0 0.0
      %1167 = vmatprep.subr.mxu0 0.0
      %1168 = vmatpush1.msra.mxu0 0.0
      %1169 = vmatprep.subr.mxu0 0.0
      %1170 = vmatpush1.msra.mxu0 0.0
      %1171 = vmatprep.subr.mxu0 0.0
      %1172 = vmatpush1.msra.mxu0 0.0
      %1173 = vmatprep.subr.mxu0 0.0
      %1174 = vmatpush1.msra.mxu0 0.0
      %1175 = vmatprep.subr.mxu0 0.0
      %1176 = vmatpush1.msra.mxu0 0.0
      %1177 = vmatprep.subr.mxu0 0.0
      %1178 = vmatpush1.msra.mxu0 0.0
      %1179 = vmatprep.subr.mxu0 0.0
      %1180 = vmatpush1.msra.mxu0 0.0
      %1181 = vmatprep.subr.mxu0 0.0
      %1182 = vmatpush1.msra.mxu0 0.0
      %1183 = vmatprep.subr.mxu0 0.0
      %1184 = vmatpush1.msra.mxu0 %v1148
      %1185 = vmatprep.subr.mxu0 0.0
      %1186 = vmatpush2.msra.mxu0 0.0
      %1187 = vmatprep.subr.mxu0 0.0
      %1188 = vmatpush2.msra.mxu0 0.0
      %1189 = vmatprep.subr.mxu0 0.0
      %1190 = vmatpush2.msra.mxu0 0.0
      %1191 = vmatprep.subr.mxu0 0.0
      %1192 = vmatpush2.msra.mxu0 0.0
      %1193 = vmatprep.subr.mxu0 0.0
      %1194 = vmatpush2.msra.mxu0 0.0
      %1195 = vmatprep.subr.mxu0 0.0
      %1196 = vmatpush2.msra.mxu0 0.0
      %1197 = vmatprep.subr.mxu0 0.0
      %1198 = vmatpush2.msra.mxu0 0.0
      %1199 = vmatprep.subr.mxu0 0.0
      %1200 = vmatpush2.msra.mxu0 0.0
      %1201 = vmatprep.subr.mxu0 0.0
      %1202 = vmatpush2.msra.mxu0 0.0
      %1203 = vmatprep.subr.mxu0 0.0
      %1204 = vmatpush2.msra.mxu0 0.0
      %1205 = vmatprep.subr.mxu0 0.0
      %1206 = vmatpush2.msra.mxu0 0.0
      %1207 = vmatprep.subr.mxu0 0.0
      %1208 = vmatpush2.msra.mxu0 0.0
      %1209 = vmatprep.subr.mxu0 0.0
      %1210 = vmatpush2.msra.mxu0 0.0
      %1211 = vmatprep.subr.mxu0 0.0
      %1212 = vmatpush2.msra.mxu0 0.0
      %1213 = vmatprep.subr.mxu0 0.0
      %1214 = vmatpush2.msra.mxu0 0.0
      %1215 = vmatprep.subr.mxu0 0.0
      %1216 = vmatpush2.msra.mxu0 0.0
      %1217 = vmatprep.mubr.f32.mxu0 0.0
      %1218 = vmatmul.mubr.f32.gmra.mxu0 %v1151
      %v1219 = vpop.f32.mrf.mxu0
      %v1220 = vadd.f32 0.0, %v1219
      %v1221 = vpop.f32.mrf.mxu0
      %1222 = vdwg.mxu0
      %1224 = vrot.lane.b32.xlu0 %v886, 8
      %v1225 = vpop.permute.xlu0 %1224
      %1228 = vrot.lane.b32.xlu0 %v1053, 16
      %v1229 = vpop.permute.xlu0 %1228
      %1232 = vrot.lane.b32.xlu0 %v1220, 24
      %v1233 = vpop.permute.xlu0 %1232
      %v1235 = vsel %vm551, %v719, %v1225
      %vm1236 = vcmask 130048
      %v1237 = vsel %vm1236, %v1235, %v1229
      %vm1238 = vcmask 195584
      %v1239 = vsel %vm1238, %v1237, %v1233
      %v1240 = vpack.c.bf16 %v1239, %v1239
      %v1241 = vld [vmem:[%s4] sm:$0xf]
      %v1242 = vld [vmem:[%s4 + $0x4] sm:$0xf]
      %v1243 = vld [vmem:[%s4 + $0x8] sm:$0xf]
      %v1244 = vld [vmem:[%s4 + $0xc] sm:$0xf]
      %v1245 = vld [vmem:[%s5] sm:$0x1]
      %v1247 = vlaneseq
      %v1248 = vshrl.u32 %v1247, 7
      %v1249 = vsub.s32 0, %v1248
      %v1250 = vrot.slane %v1245, %v1249
      %v1256 = vunpack.c.l.b16 %v1241
      %v1257 = vunpack.c.l.b16 %v1242
      %v1258 = vunpack.c.l.b16 %v1243
      %v1259 = vunpack.c.l.b16 %v1244
      %v1260 = vpack.c.b16 %v1257, %v1256
      %v1261 = vpack.c.b16 %v1259, %v1258
      %v1265 = vsel %vm504, %v1240, 0
      %1267 = vmatprep.subr.bf16.mxu0 0
      %1268 = vmatpush1.bf16.msra.mxu0 0
      %1269 = vmatprep.subr.bf16.mxu0 0
      %1270 = vmatpush1.bf16.msra.mxu0 0
      %1271 = vmatprep.subr.bf16.mxu0 0
      %1272 = vmatpush1.bf16.msra.mxu0 0
      %1273 = vmatprep.subr.bf16.mxu0 0
      %1274 = vmatpush1.bf16.msra.mxu0 0
      %1275 = vmatprep.subr.bf16.mxu0 0
      %1276 = vmatpush1.bf16.msra.mxu0 0
      %1277 = vmatprep.subr.bf16.mxu0 0
      %1278 = vmatpush1.bf16.msra.mxu0 0
      %1279 = vmatprep.subr.bf16.mxu0 0
      %1280 = vmatpush1.bf16.msra.mxu0 %v1261
      %1281 = vmatprep.subr.bf16.mxu0 0
      %1282 = vmatpush1.bf16.msra.mxu0 %v1260
      %1283 = vmatprep.subr.bf16.mxu0 0
      %1284 = vmatpush2.bf16.msra.mxu0 0
      %1285 = vmatprep.subr.bf16.mxu0 0
      %1286 = vmatpush2.bf16.msra.mxu0 0
      %1287 = vmatprep.subr.bf16.mxu0 0
      %1288 = vmatpush2.bf16.msra.mxu0 0
      %1289 = vmatprep.subr.bf16.mxu0 0
      %1290 = vmatpush2.bf16.msra.mxu0 0
      %1291 = vmatprep.subr.bf16.mxu0 0
      %1292 = vmatpush2.bf16.msra.mxu0 0
      %1293 = vmatprep.subr.bf16.mxu0 0
      %1294 = vmatpush2.bf16.msra.mxu0 0
      %1295 = vmatprep.subr.bf16.mxu0 0
      %1296 = vmatpush2.bf16.msra.mxu0 0
      %1297 = vmatprep.subr.bf16.mxu0 0
      %1298 = vmatpush2.bf16.msra.mxu0 0
      %1299 = vmatprep.mubr.bf16.mxu0 0
      %1300 = vmatmul.mubr.bf16.gmra.mxu0 %v1265
      %v1301 = vpop.f32.mrf.mxu0
      %v1302 = vadd.f32 %v1250, %v1301
      %v1303 = vpop.f32.mrf.mxu0
      %v1304 = vpop.f32.mrf.mxu0
      %v1305 = vpop.f32.mrf.mxu0
      %1306 = vdwg.mxu0
      %v1307 = vadd.f32 %v478, %v1302
      %v1308 = vld [vmem:[%s6] sm:$0x1]
      %v1309 = vld [vmem:[%s7] sm:$0x1]
      %v1310 = vsel %vm504, %v1307, 0.0
      %1311 = vadd.xlane.f32.xlu0 %v1310
      %v1312 = vpop.xlane.xlu0 %1311
      %v1313 = vrcp.pop 32.0
      %v1314 = vmul.f32 %v1312, %v1313
      %v1315 = vsub.f32 %v1307, %v1314
      %v1316 = vmul.f32 %v1315, %v1315
      %v1317 = vsel %vm504, %v1316, 0.0
      %1318 = vadd.xlane.f32.xlu0 %v1317
      %v1319 = vpop.xlane.xlu0 %1318
      %v1320 = vrcp.pop 31.0
      %v1321 = vmul.f32 %v1319, %v1320
      %v1323 = vlaneseq
      %v1324 = vshrl.u32 %v1323, 7
      %v1325 = vsub.s32 0, %v1324
      %v1326 = vrot.slane %v1308, %v1325
      %v1328 = vmul.f32 %v1326, %v1315
      %v1329 = vrsqrt.pop %v1321
      %v1330 = vmul.f32 %v1321, %v1329
      %vm1331 = vcmp.eq.f32.partialorder %v1321, inf
      %v1332 = vsel %vm1331, %v1321, %v1330
      %vm1333 = vcmp.eq.f32.partialorder %v1321, 0.0
      %v1334 = vand.u32 %v1321, 2147483648
      %v1335 = vsel %vm1333, %v1334, %v1332
      %v1336 = vadd.f32 %v1335, 1e-06
      %v1337 = vrcp.pop %v1336
      %v1338 = vmul.f32 %v1328, %v1337
      %v1340 = vlaneseq
      %v1341 = vshrl.u32 %v1340, 7
      %v1342 = vsub.s32 0, %v1341
      %v1343 = vrot.slane %v1309, %v1342
      %v1345 = vadd.f32 %v1338, %v1343
      %v1346 = vpack.c.bf16 %v1345, %v1345
      %v1347 = vld [vmem:[%s8] sm:$0xf]
      %v1348 = vld [vmem:[%s8 + $0x4] sm:$0xf]
      %v1349 = vld [vmem:[%s8 + $0x8] sm:$0xf]
      %v1350 = vld [vmem:[%s8 + $0xc] sm:$0xf]
      %v1351 = vld [vmem:[%s9] sm:$0x1]
      %v1353 = vlaneseq
      %v1354 = vshrl.u32 %v1353, 7
      %v1355 = vsub.s32 0, %v1354
      %v1356 = vrot.slane %v1351, %v1355
      %v1362 = vunpack.c.l.b16 %v1347
      %v1363 = vunpack.c.l.b16 %v1348
      %v1364 = vunpack.c.l.b16 %v1349
      %v1365 = vunpack.c.l.b16 %v1350
      %v1366 = vpack.c.b16 %v1363, %v1362
      %v1367 = vpack.c.b16 %v1365, %v1364
      %v1371 = vsel %vm504, %v1346, 0
      %1373 = vmatprep.subr.bf16.mxu0 0
      %1374 = vmatpush1.bf16.msra.mxu0 0
      %1375 = vmatprep.subr.bf16.mxu0 0
      %1376 = vmatpush1.bf16.msra.mxu0 0
      %1377 = vmatprep.subr.bf16.mxu0 0
      %1378 = vmatpush1.bf16.msra.mxu0 0
      %1379 = vmatprep.subr.bf16.mxu0 0
      %1380 = vmatpush1.bf16.msra.mxu0 0
      %1381 = vmatprep.subr.bf16.mxu0 0
      %1382 = vmatpush1.bf16.msra.mxu0 0
      %1383 = vmatprep.subr.bf16.mxu0 0
      %1384 = vmatpush1.bf16.msra.mxu0 0
      %1385 = vmatprep.subr.bf16.mxu0 0
      %1386 = vmatpush1.bf16.msra.mxu0 %v1367
      %1387 = vmatprep.subr.bf16.mxu0 0
      %1388 = vmatpush1.bf16.msra.mxu0 %v1366
      %1389 = vmatprep.subr.bf16.mxu0 0
      %1390 = vmatpush2.bf16.msra.mxu0 0
      %1391 = vmatprep.subr.bf16.mxu0 0
      %1392 = vmatpush2.bf16.msra.mxu0 0
      %1393 = vmatprep.subr.bf16.mxu0 0
      %1394 = vmatpush2.bf16.msra.mxu0 0
      %1395 = vmatprep.subr.bf16.mxu0 0
      %1396 = vmatpush2.bf16.msra.mxu0 0
      %1397 = vmatprep.subr.bf16.mxu0 0
      %1398 = vmatpush2.bf16.msra.mxu0 0
      %1399 = vmatprep.subr.bf16.mxu0 0
      %1400 = vmatpush2.bf16.msra.mxu0 0
      %1401 = vmatprep.subr.bf16.mxu0 0
      %1402 = vmatpush2.bf16.msra.mxu0 0
      %1403 = vmatprep.subr.bf16.mxu0 0
      %1404 = vmatpush2.bf16.msra.mxu0 0
      %1405 = vmatprep.mubr.bf16.mxu0 0
      %1406 = vmatmul.mubr.bf16.gmra.mxu0 %v1371
      %v1407 = vpop.f32.mrf.mxu0
      %v1408 = vadd.f32 %v1356, %v1407
      %v1409 = vpop.f32.mrf.mxu0
      %v1410 = vpop.f32.mrf.mxu0
      %v1411 = vpop.f32.mrf.mxu0
      %1412 = vdwg.mxu0
      %v1413 = vmax.f32 %v1408, 0.0
      %v1414 = vpack.c.bf16 %v1413, %v1413
      %v1415 = vld [vmem:[%s10] sm:$0xf]
      %v1416 = vld [vmem:[%s10 + $0x4] sm:$0xf]
      %v1417 = vld [vmem:[%s10 + $0x8] sm:$0xf]
      %v1418 = vld [vmem:[%s10 + $0xc] sm:$0xf]
      %v1419 = vld [vmem:[%s10 + $0x10] sm:$0xf]
      %v1420 = vld [vmem:[%s10 + $0x14] sm:$0xf]
      %v1421 = vld [vmem:[%s10 + $0x18] sm:$0xf]
      %v1422 = vld [vmem:[%s10 + $0x1c] sm:$0xf]
      %v1423 = vld [vmem:[%s11] sm:$0x1]
      %v1425 = vlaneseq
      %v1426 = vshrl.u32 %v1425, 7
      %v1427 = vsub.s32 0, %v1426
      %v1428 = vrot.slane %v1423, %v1427
      %v1438 = vunpack.c.l.b16 %v1415
      %v1439 = vunpack.c.l.b16 %v1416
      %v1440 = vunpack.c.l.b16 %v1417
      %v1441 = vunpack.c.l.b16 %v1418
      %v1442 = vunpack.c.l.b16 %v1419
      %v1443 = vunpack.c.l.b16 %v1420
      %v1444 = vunpack.c.l.b16 %v1421
      %v1445 = vunpack.c.l.b16 %v1422
      %v1446 = vpack.c.b16 %v1439, %v1438
      %v1447 = vpack.c.b16 %v1441, %v1440
      %v1448 = vpack.c.b16 %v1443, %v1442
      %v1449 = vpack.c.b16 %v1445, %v1444
      %vm1454 = vcmask 523264
      %v1456 = vsel %vm1454, %v1414, 0
      %1458 = vmatprep.subr.bf16.mxu0 0
      %1459 = vmatpush1.bf16.msra.mxu0 0
      %1460 = vmatprep.subr.bf16.mxu0 0
      %1461 = vmatpush1.bf16.msra.mxu0 0
      %1462 = vmatprep.subr.bf16.mxu0 0
      %1463 = vmatpush1.bf16.msra.mxu0 0
      %1464 = vmatprep.subr.bf16.mxu0 0
      %1465 = vmatpush1.bf16.msra.mxu0 0
      %1466 = vmatprep.subr.bf16.mxu0 0
      %1467 = vmatpush1.bf16.msra.mxu0 %v1449
      %1468 = vmatprep.subr.bf16.mxu0 0
      %1469 = vmatpush1.bf16.msra.mxu0 %v1448
      %1470 = vmatprep.subr.bf16.mxu0 0
      %1471 = vmatpush1.bf16.msra.mxu0 %v1447
      %1472 = vmatprep.subr.bf16.mxu0 0
      %1473 = vmatpush1.bf16.msra.mxu0 %v1446
      %1474 = vmatprep.subr.bf16.mxu0 0
      %1475 = vmatpush2.bf16.msra.mxu0 0
      %1476 = vmatprep.subr.bf16.mxu0 0
      %1477 = vmatpush2.bf16.msra.mxu0 0
      %1478 = vmatprep.subr.bf16.mxu0 0
      %1479 = vmatpush2.bf16.msra.mxu0 0
      %1480 = vmatprep.subr.bf16.mxu0 0
      %1481 = vmatpush2.bf16.msra.mxu0 0
      %1482 = vmatprep.subr.bf16.mxu0 0
      %1483 = vmatpush2.bf16.msra.mxu0 0
      %1484 = vmatprep.subr.bf16.mxu0 0
      %1485 = vmatpush2.bf16.msra.mxu0 0
      %1486 = vmatprep.subr.bf16.mxu0 0
      %1487 = vmatpush2.bf16.msra.mxu0 0
      %1488 = vmatprep.subr.bf16.mxu0 0
      %1489 = vmatpush2.bf16.msra.mxu0 0
      %1490 = vmatprep.mubr.bf16.mxu0 0
      %1491 = vmatmul.mubr.bf16.gmra.mxu0 %v1456
      %v1492 = vpop.f32.mrf.mxu0
      %v1493 = vadd.f32 %v1428, %v1492
      %v1494 = vpop.f32.mrf.mxu0
      %v1495 = vpop.f32.mrf.mxu0
      %v1496 = vpop.f32.mrf.mxu0
      %1497 = vdwg.mxu0
      %v1498 = vadd.f32 %v1345, %v1493
      %v1499 = vld [vmem:[%s12] sm:$0x1]
      %v1500 = vld [vmem:[%s13] sm:$0x1]
      %v1501 = vsel %vm504, %v1498, 0.0
      %1502 = vadd.xlane.f32.xlu0 %v1501
      %v1503 = vpop.xlane.xlu0 %1502
      %v1504 = vmul.f32 %v1503, %v1313
      %v1505 = vsub.f32 %v1498, %v1504
      %v1506 = vmul.f32 %v1505, %v1505
      %v1507 = vsel %vm504, %v1506, 0.0
      %1508 = vadd.xlane.f32.xlu0 %v1507
      %v1509 = vpop.xlane.xlu0 %1508
      %v1510 = vmul.f32 %v1509, %v1320
      %v1512 = vlaneseq
      %v1513 = vshrl.u32 %v1512, 7
      %v1514 = vsub.s32 0, %v1513
      %v1515 = vrot.slane %v1499, %v1514
      %v1517 = vmul.f32 %v1515, %v1505
      %v1518 = vrsqrt.pop %v1510
      %v1519 = vmul.f32 %v1510, %v1518
      %vm1520 = vcmp.eq.f32.partialorder %v1510, inf
      %v1521 = vsel %vm1520, %v1510, %v1519
      %vm1522 = vcmp.eq.f32.partialorder %v1510, 0.0
      %v1523 = vand.u32 %v1510, 2147483648
      %v1524 = vsel %vm1522, %v1523, %v1521
      %v1525 = vadd.f32 %v1524, 1e-06
      %v1526 = vrcp.pop %v1525
      %v1527 = vmul.f32 %v1517, %v1526
      %v1529 = vlaneseq
      %v1530 = vshrl.u32 %v1529, 7
      %v1531 = vsub.s32 0, %v1530
      %v1532 = vrot.slane %v1500, %v1531
      %v1534 = vadd.f32 %v1527, %v1532
      %1535 = vst.msk [vmem:[%s476] sm:$0xff] %vm504, %v1534
      %p1536 = scmp.lt.s32.totalorder %s25, 1
      %s1537 = scalar_select %p1536, %s25, 1
      %s1538 = smul.addr %s1537, 8
      %s1539 = scalar_lea.vmem %s14, %s1538
      // Predicated region
      $region77: #{_lambda_.9} parent=75 // pred_check
        %p1540 = pneg %p347
      $region78: #{_lambda_.9} parent=75 // pred_check_branch
        %1542 = sbr.rel (%p1540) target = $region80
      $region79: #{_lambda_.9} parent=75 // pred_region
        _
      $region80: #{_lambda_.9} parent=75 // pred_fallthru
        _
    $region76: #{_lambda_.9} parent=5 // pred_fallthru
      _
    %p1543 = scmp.le.s32.totalorder 2, %s20
    // Predicated region
    $region81: #{_lambda_.9} parent=5 // pred_check
      %p1544 = pneg %p1543
    $region82: #{_lambda_.9} parent=5 // pred_check_branch
      %1546 = sbr.rel (%p1544) target = $region84
    $region83: #{_lambda_.9} parent=5 // pred_region
      %s1547 = ssub.s32 %s20, 2
      // Predicated region
      $region85: #{_lambda_.9} parent=83 // pred_check
        %p1548 = pneg %p353
      $region86: #{_lambda_.9} parent=83 // pred_check_branch
        %1550 = sbr.rel (%p1548) target = $region88
      $region87: #{_lambda_.9} parent=83 // pred_region
        %p1551 = scmp.lt.s32.totalorder %s26, 1
        %s1552 = scalar_select %p1551, %s26, 1
        %s1553 = smul.addr %s1552, 8
        %s1554 = scalar_lea.vmem %s14, %s1553
      $region88: #{_lambda_.9} parent=83 // pred_fallthru
        _
    $region84: #{_lambda_.9} parent=5 // pred_fallthru
      _
  $region6: #{_lambda_.9} parent=0 // loop_footer
    %s24 = sadd.s32 1, %s20
  $region7: #{_lambda_.9} parent=0 // loop_footer_branch
    %19 = sbr.rel target = $region3
  $region8: #{_lambda_.9} parent=0 // loop_exit
    _

// kernel: _lambda_.11
$region0: #{_lambda_.11}
  #allocation0 [shape = 'u32[]', space=smem, size = 0x4, offset = 0x4, fixed_abs, tag = 'smem constant byte address 0x4 - core index']
  #allocation1 [shape = 'u32[144,128]{1,0:T(1,128)}', space=vmem, size = 0x12000, scoped, tag = 'internal scratch']
  %s0 = inlined_call_operand.vmem [shape: f32[2,16,32], index: 0, kind: input, shape index: {}]
  %s1 = inlined_call_operand.vmem [shape: f32[2,8,32], index: 1, kind: input, shape index: {}]
  %s2 = inlined_call_operand.vmem [shape: f32[2,1,16], index: 2, kind: input, shape index: {}]
  %s3 = inlined_call_operand.vmem [shape: f32[2,1,8], index: 3, kind: input, shape index: {}]
  %s4 = inlined_call_operand.vmem [shape: bf16[32,96], index: 4, kind: input, shape index: {}]
  %s5 = inlined_call_operand.vmem [shape: f32[1,96], index: 5, kind: input, shape index: {}]
  %s6 = inlined_call_operand.vmem [shape: bf16[32,32], index: 6, kind: input, shape index: {}]
  %s7 = inlined_call_operand.vmem [shape: f32[1,32], index: 7, kind: input, shape index: {}]
  %s8 = inlined_call_operand.vmem [shape: f32[1,32], index: 8, kind: input, shape index: {}]
  %s9 = inlined_call_operand.vmem [shape: f32[1,32], index: 9, kind: input, shape index: {}]
  %s10 = inlined_call_operand.vmem [shape: bf16[32,32], index: 10, kind: input, shape index: {}]
  %s11 = inlined_call_operand.vmem [shape: f32[1,32], index: 11, kind: input, shape index: {}]
  %s12 = inlined_call_operand.vmem [shape: bf16[32,64], index: 12, kind: input, shape index: {}]
  %s13 = inlined_call_operand.vmem [shape: f32[1,64], index: 13, kind: input, shape index: {}]
  %s14 = inlined_call_operand.vmem [shape: bf16[32,32], index: 14, kind: input, shape index: {}]
  %s15 = inlined_call_operand.vmem [shape: f32[1,32], index: 15, kind: input, shape index: {}]
  %s16 = inlined_call_operand.vmem [shape: f32[1,32], index: 16, kind: input, shape index: {}]
  %s17 = inlined_call_operand.vmem [shape: f32[1,32], index: 17, kind: input, shape index: {}]
  %s18 = inlined_call_operand.vmem [shape: bf16[32,64], index: 18, kind: input, shape index: {}]
  %s19 = inlined_call_operand.vmem [shape: f32[1,64], index: 19, kind: input, shape index: {}]
  %s20 = inlined_call_operand.vmem [shape: bf16[64,32], index: 20, kind: input, shape index: {}]
  %s21 = inlined_call_operand.vmem [shape: f32[1,32], index: 21, kind: input, shape index: {}]
  %s22 = inlined_call_operand.vmem [shape: f32[1,32], index: 22, kind: input, shape index: {}]
  %s23 = inlined_call_operand.vmem [shape: f32[1,32], index: 23, kind: input, shape index: {}]
  %s24 = inlined_call_operand.vmem [shape: f32[2,16,32], index: 24, kind: output, shape index: {}]
  %s25 = sld [smem:[#allocation0]]
  $region129: #{_lambda_.11} parent=0
    _
  %s27 = ssub.s32 1, %s25
  %s28 = scalar_select 0, %s27, %s25
  loop: start=0, step=1, limit=4
  $region2: #{_lambda_.11} parent=0 // loop_pre_header
    _
  $region3: #{_lambda_.11} parent=0 // loop_header
    %s30 = sphi 0, %s34
    %p31 = scmp.ge.s32.totalorder %s30, 4
    %s40 = sphi 0, %s42
    %s43 = sphi 0, %s40
    %s44 = sphi 0, %s43
    %s60 = sphi 0, %s44
    %s66 = sphi 0, %s68
    %s69 = sphi 0, %s66
    %s70 = sphi 0, %s69
    %s86 = sphi 0, %s70
    %s92 = sphi 0, %s94
    %s95 = sphi 0, %s92
    %s96 = sphi 0, %s95
    %s112 = sphi 0, %s96
    %s118 = sphi 0, %s120
    %s121 = sphi 0, %s118
    %s122 = sphi 0, %s121
    %s138 = sphi 0, %s122
    %s142 = sphi 0, %s142
    %s144 = sphi 0, %s142
    %s145 = sphi 0, %s144
    %s159 = sphi 0, %s145
    %s163 = sphi 0, %s163
    %s165 = sphi 0, %s163
    %s166 = sphi 0, %s165
    %s180 = sphi 0, %s166
    %s184 = sphi 0, %s184
    %s186 = sphi 0, %s184
    %s187 = sphi 0, %s186
    %s201 = sphi 0, %s187
    %s205 = sphi 0, %s205
    %s207 = sphi 0, %s205
    %s208 = sphi 0, %s207
    %s222 = sphi 0, %s208
    %s226 = sphi 0, %s226
    %s228 = sphi 0, %s226
    %s229 = sphi 0, %s228
    %s243 = sphi 0, %s229
    %s247 = sphi 0, %s247
    %s249 = sphi 0, %s247
    %s250 = sphi 0, %s249
    %s264 = sphi 0, %s250
    %s268 = sphi 0, %s268
    %s270 = sphi 0, %s268
    %s271 = sphi 0, %s270
    %s285 = sphi 0, %s271
    %s289 = sphi 0, %s289
    %s291 = sphi 0, %s289
    %s292 = sphi 0, %s291
    %s306 = sphi 0, %s292
    %s310 = sphi 0, %s310
    %s312 = sphi 0, %s310
    %s313 = sphi 0, %s312
    %s327 = sphi 0, %s313
    %s331 = sphi 0, %s331
    %s333 = sphi 0, %s331
    %s334 = sphi 0, %s333
    %s348 = sphi 0, %s334
    %s352 = sphi 0, %s352
    %s354 = sphi 0, %s352
    %s355 = sphi 0, %s354
    %s369 = sphi 0, %s355
    %s373 = sphi 0, %s373
    %s375 = sphi 0, %s373
    %s376 = sphi 0, %s375
    %s390 = sphi 0, %s376
    %s394 = sphi 0, %s394
    %s396 = sphi 0, %s394
    %s397 = sphi 0, %s396
    %s411 = sphi 0, %s397
    %s415 = sphi 0, %s415
    %s417 = sphi 0, %s415
    %s418 = sphi 0, %s417
    %s432 = sphi 0, %s418
    %s436 = sphi 0, %s436
    %s438 = sphi 0, %s436
    %s439 = sphi 0, %s438
    %s453 = sphi 0, %s439
    %s457 = sphi 0, %s457
    %s459 = sphi 0, %s457
    %s460 = sphi 0, %s459
    %s474 = sphi 0, %s460
    %s478 = sphi 0, %s478
    %s480 = sphi 0, %s478
    %s481 = sphi 0, %s480
    %s495 = sphi 0, %s481
    %s499 = sphi 0, %s499
    %s501 = sphi 0, %s499
    %s502 = sphi 0, %s501
    %s516 = sphi 0, %s502
    %s520 = sphi 0, %s520
    %s522 = sphi 0, %s520
    %s523 = sphi 0, %s522
    %s537 = sphi 0, %s523
    %s541 = sphi 0, %s541
    %s543 = sphi 0, %s541
    %s544 = sphi 0, %s543
    %s558 = sphi 0, %s544
    %s564 = sphi 0, %s566
    %s567 = sphi 0, %s564
    %s568 = sphi 0, %s567
    %s584 = sphi 0, %s568
  $region4: #{_lambda_.11} parent=0 // loop_header_branch
    %33 = sbr.rel (%p31) target = $region8
  $region5: #{_lambda_.11} parent=0 // loop_body
    %s35 = ssub.s32 %s30, 1
    %s36 = ssub.s32 %s30, 2
    %s37 = sadd.s32 %s30, 1
    %s38 = ssub.s32 %s30, %s37
    %p39 = scmp.eq.s32.totalorder %s38, 0
    %s41 = sadd.s32 %s40, 1
    %s42 = scalar_select %p39, %s40, %s41
    %p45 = pneg %p39
    %p46 = scmp.eq.s32.totalorder %s30, 1
    %p47 = por %p45, %p46
    %p48 = scmp.ne.s32.totalorder %s40, %s43
    %p49 = scmp.eq.s32.totalorder %s30, 0
    %p50 = por %p48, %p49
    %p51 = scmp.ne.s32.totalorder %s40, %s43
    %p52 = scmp.eq.s32.totalorder %s35, 1
    %p53 = por %p51, %p52
    %p54 = scmp.ne.s32.totalorder %s43, %s44
    %p55 = scmp.eq.s32.totalorder %s35, 0
    %p56 = por %p54, %p55
    %p57 = scmp.ne.s32.totalorder %s43, %s44
    %p58 = scmp.eq.s32.totalorder %s36, 1
    %p59 = por %p57, %p58
    %p61 = scmp.ne.s32.totalorder %s44, %s60
    %p62 = scmp.eq.s32.totalorder %s36, 0
    %p63 = por %p61, %p62
    %s64 = ssub.s32 %s30, %s37
    %p65 = scmp.eq.s32.totalorder %s64, 0
    %s67 = sadd.s32 %s66, 1
    %s68 = scalar_select %p65, %s66, %s67
    %p71 = pneg %p65
    %p72 = scmp.eq.s32.totalorder %s30, 1
    %p73 = por %p71, %p72
    %p74 = scmp.ne.s32.totalorder %s66, %s69
    %p75 = scmp.eq.s32.totalorder %s30, 0
    %p76 = por %p74, %p75
    %p77 = scmp.ne.s32.totalorder %s66, %s69
    %p78 = scmp.eq.s32.totalorder %s35, 1
    %p79 = por %p77, %p78
    %p80 = scmp.ne.s32.totalorder %s69, %s70
    %p81 = scmp.eq.s32.totalorder %s35, 0
    %p82 = por %p80, %p81
    %p83 = scmp.ne.s32.totalorder %s69, %s70
    %p84 = scmp.eq.s32.totalorder %s36, 1
    %p85 = por %p83, %p84
    %p87 = scmp.ne.s32.totalorder %s70, %s86
    %p88 = scmp.eq.s32.totalorder %s36, 0
    %p89 = por %p87, %p88
    %s90 = ssub.s32 %s30, %s37
    %p91 = scmp.eq.s32.totalorder %s90, 0
    %s93 = sadd.s32 %s92, 1
    %s94 = scalar_select %p91, %s92, %s93
    %p97 = pneg %p91
    %p98 = scmp.eq.s32.totalorder %s30, 1
    %p99 = por %p97, %p98
    %p100 = scmp.ne.s32.totalorder %s92, %s95
    %p101 = scmp.eq.s32.totalorder %s30, 0
    %p102 = por %p100, %p101
    %p103 = scmp.ne.s32.totalorder %s92, %s95
    %p104 = scmp.eq.s32.totalorder %s35, 1
    %p105 = por %p103, %p104
    %p106 = scmp.ne.s32.totalorder %s95, %s96
    %p107 = scmp.eq.s32.totalorder %s35, 0
    %p108 = por %p106, %p107
    %p109 = scmp.ne.s32.totalorder %s95, %s96
    %p110 = scmp.eq.s32.totalorder %s36, 1
    %p111 = por %p109, %p110
    %p113 = scmp.ne.s32.totalorder %s96, %s112
    %p114 = scmp.eq.s32.totalorder %s36, 0
    %p115 = por %p113, %p114
    %s116 = ssub.s32 %s30, %s37
    %p117 = scmp.eq.s32.totalorder %s116, 0
    %s119 = sadd.s32 %s118, 1
    %s120 = scalar_select %p117, %s118, %s119
    %p123 = pneg %p117
    %p124 = scmp.eq.s32.totalorder %s30, 1
    %p125 = por %p123, %p124
    %p126 = scmp.ne.s32.totalorder %s118, %s121
    %p127 = scmp.eq.s32.totalorder %s30, 0
    %p128 = por %p126, %p127
    %p129 = scmp.ne.s32.totalorder %s118, %s121
    %p130 = scmp.eq.s32.totalorder %s35, 1
    %p131 = por %p129, %p130
    %p132 = scmp.ne.s32.totalorder %s121, %s122
    %p133 = scmp.eq.s32.totalorder %s35, 0
    %p134 = por %p132, %p133
    %p135 = scmp.ne.s32.totalorder %s121, %s122
    %p136 = scmp.eq.s32.totalorder %s36, 1
    %p137 = por %p135, %p136
    %p139 = scmp.ne.s32.totalorder %s122, %s138
    %p140 = scmp.eq.s32.totalorder %s36, 0
    %p141 = por %p139, %p140
    %s143 = sadd.s32 %s142, 1
    %p146 = scmp.eq.s32.totalorder %s30, 1
    %p147 = scmp.ne.s32.totalorder %s142, %s144
    %p148 = scmp.eq.s32.totalorder %s30, 0
    %p149 = por %p147, %p148
    %p150 = scmp.ne.s32.totalorder %s142, %s144
    %p151 = scmp.eq.s32.totalorder %s35, 1
    %p152 = por %p150, %p151
    %p153 = scmp.ne.s32.totalorder %s144, %s145
    %p154 = scmp.eq.s32.totalorder %s35, 0
    %p155 = por %p153, %p154
    %p156 = scmp.ne.s32.totalorder %s144, %s145
    %p157 = scmp.eq.s32.totalorder %s36, 1
    %p158 = por %p156, %p157
    %p160 = scmp.ne.s32.totalorder %s145, %s159
    %p161 = scmp.eq.s32.totalorder %s36, 0
    %p162 = por %p160, %p161
    %s164 = sadd.s32 %s163, 1
    %p167 = scmp.eq.s32.totalorder %s30, 1
    %p168 = scmp.ne.s32.totalorder %s163, %s165
    %p169 = scmp.eq.s32.totalorder %s30, 0
    %p170 = por %p168, %p169
    %p171 = scmp.ne.s32.totalorder %s163, %s165
    %p172 = scmp.eq.s32.totalorder %s35, 1
    %p173 = por %p171, %p172
    %p174 = scmp.ne.s32.totalorder %s165, %s166
    %p175 = scmp.eq.s32.totalorder %s35, 0
    %p176 = por %p174, %p175
    %p177 = scmp.ne.s32.totalorder %s165, %s166
    %p178 = scmp.eq.s32.totalorder %s36, 1
    %p179 = por %p177, %p178
    %p181 = scmp.ne.s32.totalorder %s166, %s180
    %p182 = scmp.eq.s32.totalorder %s36, 0
    %p183 = por %p181, %p182
    %s185 = sadd.s32 %s184, 1
    %p188 = scmp.eq.s32.totalorder %s30, 1
    %p189 = scmp.ne.s32.totalorder %s184, %s186
    %p190 = scmp.eq.s32.totalorder %s30, 0
    %p191 = por %p189, %p190
    %p192 = scmp.ne.s32.totalorder %s184, %s186
    %p193 = scmp.eq.s32.totalorder %s35, 1
    %p194 = por %p192, %p193
    %p195 = scmp.ne.s32.totalorder %s186, %s187
    %p196 = scmp.eq.s32.totalorder %s35, 0
    %p197 = por %p195, %p196
    %p198 = scmp.ne.s32.totalorder %s186, %s187
    %p199 = scmp.eq.s32.totalorder %s36, 1
    %p200 = por %p198, %p199
    %p202 = scmp.ne.s32.totalorder %s187, %s201
    %p203 = scmp.eq.s32.totalorder %s36, 0
    %p204 = por %p202, %p203
    %s206 = sadd.s32 %s205, 1
    %p209 = scmp.eq.s32.totalorder %s30, 1
    %p210 = scmp.ne.s32.totalorder %s205, %s207
    %p211 = scmp.eq.s32.totalorder %s30, 0
    %p212 = por %p210, %p211
    %p213 = scmp.ne.s32.totalorder %s205, %s207
    %p214 = scmp.eq.s32.totalorder %s35, 1
    %p215 = por %p213, %p214
    %p216 = scmp.ne.s32.totalorder %s207, %s208
    %p217 = scmp.eq.s32.totalorder %s35, 0
    %p218 = por %p216, %p217
    %p219 = scmp.ne.s32.totalorder %s207, %s208
    %p220 = scmp.eq.s32.totalorder %s36, 1
    %p221 = por %p219, %p220
    %p223 = scmp.ne.s32.totalorder %s208, %s222
    %p224 = scmp.eq.s32.totalorder %s36, 0
    %p225 = por %p223, %p224
    %s227 = sadd.s32 %s226, 1
    %p230 = scmp.eq.s32.totalorder %s30, 1
    %p231 = scmp.ne.s32.totalorder %s226, %s228
    %p232 = scmp.eq.s32.totalorder %s30, 0
    %p233 = por %p231, %p232
    %p234 = scmp.ne.s32.totalorder %s226, %s228
    %p235 = scmp.eq.s32.totalorder %s35, 1
    %p236 = por %p234, %p235
    %p237 = scmp.ne.s32.totalorder %s228, %s229
    %p238 = scmp.eq.s32.totalorder %s35, 0
    %p239 = por %p237, %p238
    %p240 = scmp.ne.s32.totalorder %s228, %s229
    %p241 = scmp.eq.s32.totalorder %s36, 1
    %p242 = por %p240, %p241
    %p244 = scmp.ne.s32.totalorder %s229, %s243
    %p245 = scmp.eq.s32.totalorder %s36, 0
    %p246 = por %p244, %p245
    %s248 = sadd.s32 %s247, 1
    %p251 = scmp.eq.s32.totalorder %s30, 1
    %p252 = scmp.ne.s32.totalorder %s247, %s249
    %p253 = scmp.eq.s32.totalorder %s30, 0
    %p254 = por %p252, %p253
    %p255 = scmp.ne.s32.totalorder %s247, %s249
    %p256 = scmp.eq.s32.totalorder %s35, 1
    %p257 = por %p255, %p256
    %p258 = scmp.ne.s32.totalorder %s249, %s250
    %p259 = scmp.eq.s32.totalorder %s35, 0
    %p260 = por %p258, %p259
    %p261 = scmp.ne.s32.totalorder %s249, %s250
    %p262 = scmp.eq.s32.totalorder %s36, 1
    %p263 = por %p261, %p262
    %p265 = scmp.ne.s32.totalorder %s250, %s264
    %p266 = scmp.eq.s32.totalorder %s36, 0
    %p267 = por %p265, %p266
    %s269 = sadd.s32 %s268, 1
    %p272 = scmp.eq.s32.totalorder %s30, 1
    %p273 = scmp.ne.s32.totalorder %s268, %s270
    %p274 = scmp.eq.s32.totalorder %s30, 0
    %p275 = por %p273, %p274
    %p276 = scmp.ne.s32.totalorder %s268, %s270
    %p277 = scmp.eq.s32.totalorder %s35, 1
    %p278 = por %p276, %p277
    %p279 = scmp.ne.s32.totalorder %s270, %s271
    %p280 = scmp.eq.s32.totalorder %s35, 0
    %p281 = por %p279, %p280
    %p282 = scmp.ne.s32.totalorder %s270, %s271
    %p283 = scmp.eq.s32.totalorder %s36, 1
    %p284 = por %p282, %p283
    %p286 = scmp.ne.s32.totalorder %s271, %s285
    %p287 = scmp.eq.s32.totalorder %s36, 0
    %p288 = por %p286, %p287
    %s290 = sadd.s32 %s289, 1
    %p293 = scmp.eq.s32.totalorder %s30, 1
    %p294 = scmp.ne.s32.totalorder %s289, %s291
    %p295 = scmp.eq.s32.totalorder %s30, 0
    %p296 = por %p294, %p295
    %p297 = scmp.ne.s32.totalorder %s289, %s291
    %p298 = scmp.eq.s32.totalorder %s35, 1
    %p299 = por %p297, %p298
    %p300 = scmp.ne.s32.totalorder %s291, %s292
    %p301 = scmp.eq.s32.totalorder %s35, 0
    %p302 = por %p300, %p301
    %p303 = scmp.ne.s32.totalorder %s291, %s292
    %p304 = scmp.eq.s32.totalorder %s36, 1
    %p305 = por %p303, %p304
    %p307 = scmp.ne.s32.totalorder %s292, %s306
    %p308 = scmp.eq.s32.totalorder %s36, 0
    %p309 = por %p307, %p308
    %s311 = sadd.s32 %s310, 1
    %p314 = scmp.eq.s32.totalorder %s30, 1
    %p315 = scmp.ne.s32.totalorder %s310, %s312
    %p316 = scmp.eq.s32.totalorder %s30, 0
    %p317 = por %p315, %p316
    %p318 = scmp.ne.s32.totalorder %s310, %s312
    %p319 = scmp.eq.s32.totalorder %s35, 1
    %p320 = por %p318, %p319
    %p321 = scmp.ne.s32.totalorder %s312, %s313
    %p322 = scmp.eq.s32.totalorder %s35, 0
    %p323 = por %p321, %p322
    %p324 = scmp.ne.s32.totalorder %s312, %s313
    %p325 = scmp.eq.s32.totalorder %s36, 1
    %p326 = por %p324, %p325
    %p328 = scmp.ne.s32.totalorder %s313, %s327
    %p329 = scmp.eq.s32.totalorder %s36, 0
    %p330 = por %p328, %p329
    %s332 = sadd.s32 %s331, 1
    %p335 = scmp.eq.s32.totalorder %s30, 1
    %p336 = scmp.ne.s32.totalorder %s331, %s333
    %p337 = scmp.eq.s32.totalorder %s30, 0
    %p338 = por %p336, %p337
    %p339 = scmp.ne.s32.totalorder %s331, %s333
    %p340 = scmp.eq.s32.totalorder %s35, 1
    %p341 = por %p339, %p340
    %p342 = scmp.ne.s32.totalorder %s333, %s334
    %p343 = scmp.eq.s32.totalorder %s35, 0
    %p344 = por %p342, %p343
    %p345 = scmp.ne.s32.totalorder %s333, %s334
    %p346 = scmp.eq.s32.totalorder %s36, 1
    %p347 = por %p345, %p346
    %p349 = scmp.ne.s32.totalorder %s334, %s348
    %p350 = scmp.eq.s32.totalorder %s36, 0
    %p351 = por %p349, %p350
    %s353 = sadd.s32 %s352, 1
    %p356 = scmp.eq.s32.totalorder %s30, 1
    %p357 = scmp.ne.s32.totalorder %s352, %s354
    %p358 = scmp.eq.s32.totalorder %s30, 0
    %p359 = por %p357, %p358
    %p360 = scmp.ne.s32.totalorder %s352, %s354
    %p361 = scmp.eq.s32.totalorder %s35, 1
    %p362 = por %p360, %p361
    %p363 = scmp.ne.s32.totalorder %s354, %s355
    %p364 = scmp.eq.s32.totalorder %s35, 0
    %p365 = por %p363, %p364
    %p366 = scmp.ne.s32.totalorder %s354, %s355
    %p367 = scmp.eq.s32.totalorder %s36, 1
    %p368 = por %p366, %p367
    %p370 = scmp.ne.s32.totalorder %s355, %s369
    %p371 = scmp.eq.s32.totalorder %s36, 0
    %p372 = por %p370, %p371
    %s374 = sadd.s32 %s373, 1
    %p377 = scmp.eq.s32.totalorder %s30, 1
    %p378 = scmp.ne.s32.totalorder %s373, %s375
    %p379 = scmp.eq.s32.totalorder %s30, 0
    %p380 = por %p378, %p379
    %p381 = scmp.ne.s32.totalorder %s373, %s375
    %p382 = scmp.eq.s32.totalorder %s35, 1
    %p383 = por %p381, %p382
    %p384 = scmp.ne.s32.totalorder %s375, %s376
    %p385 = scmp.eq.s32.totalorder %s35, 0
    %p386 = por %p384, %p385
    %p387 = scmp.ne.s32.totalorder %s375, %s376
    %p388 = scmp.eq.s32.totalorder %s36, 1
    %p389 = por %p387, %p388
    %p391 = scmp.ne.s32.totalorder %s376, %s390
    %p392 = scmp.eq.s32.totalorder %s36, 0
    %p393 = por %p391, %p392
    %s395 = sadd.s32 %s394, 1
    %p398 = scmp.eq.s32.totalorder %s30, 1
    %p399 = scmp.ne.s32.totalorder %s394, %s396
    %p400 = scmp.eq.s32.totalorder %s30, 0
    %p401 = por %p399, %p400
    %p402 = scmp.ne.s32.totalorder %s394, %s396
    %p403 = scmp.eq.s32.totalorder %s35, 1
    %p404 = por %p402, %p403
    %p405 = scmp.ne.s32.totalorder %s396, %s397
    %p406 = scmp.eq.s32.totalorder %s35, 0
    %p407 = por %p405, %p406
    %p408 = scmp.ne.s32.totalorder %s396, %s397
    %p409 = scmp.eq.s32.totalorder %s36, 1
    %p410 = por %p408, %p409
    %p412 = scmp.ne.s32.totalorder %s397, %s411
    %p413 = scmp.eq.s32.totalorder %s36, 0
    %p414 = por %p412, %p413
    %s416 = sadd.s32 %s415, 1
    %p419 = scmp.eq.s32.totalorder %s30, 1
    %p420 = scmp.ne.s32.totalorder %s415, %s417
    %p421 = scmp.eq.s32.totalorder %s30, 0
    %p422 = por %p420, %p421
    %p423 = scmp.ne.s32.totalorder %s415, %s417
    %p424 = scmp.eq.s32.totalorder %s35, 1
    %p425 = por %p423, %p424
    %p426 = scmp.ne.s32.totalorder %s417, %s418
    %p427 = scmp.eq.s32.totalorder %s35, 0
    %p428 = por %p426, %p427
    %p429 = scmp.ne.s32.totalorder %s417, %s418
    %p430 = scmp.eq.s32.totalorder %s36, 1
    %p431 = por %p429, %p430
    %p433 = scmp.ne.s32.totalorder %s418, %s432
    %p434 = scmp.eq.s32.totalorder %s36, 0
    %p435 = por %p433, %p434
    %s437 = sadd.s32 %s436, 1
    %p440 = scmp.eq.s32.totalorder %s30, 1
    %p441 = scmp.ne.s32.totalorder %s436, %s438
    %p442 = scmp.eq.s32.totalorder %s30, 0
    %p443 = por %p441, %p442
    %p444 = scmp.ne.s32.totalorder %s436, %s438
    %p445 = scmp.eq.s32.totalorder %s35, 1
    %p446 = por %p444, %p445
    %p447 = scmp.ne.s32.totalorder %s438, %s439
    %p448 = scmp.eq.s32.totalorder %s35, 0
    %p449 = por %p447, %p448
    %p450 = scmp.ne.s32.totalorder %s438, %s439
    %p451 = scmp.eq.s32.totalorder %s36, 1
    %p452 = por %p450, %p451
    %p454 = scmp.ne.s32.totalorder %s439, %s453
    %p455 = scmp.eq.s32.totalorder %s36, 0
    %p456 = por %p454, %p455
    %s458 = sadd.s32 %s457, 1
    %p461 = scmp.eq.s32.totalorder %s30, 1
    %p462 = scmp.ne.s32.totalorder %s457, %s459
    %p463 = scmp.eq.s32.totalorder %s30, 0
    %p464 = por %p462, %p463
    %p465 = scmp.ne.s32.totalorder %s457, %s459
    %p466 = scmp.eq.s32.totalorder %s35, 1
    %p467 = por %p465, %p466
    %p468 = scmp.ne.s32.totalorder %s459, %s460
    %p469 = scmp.eq.s32.totalorder %s35, 0
    %p470 = por %p468, %p469
    %p471 = scmp.ne.s32.totalorder %s459, %s460
    %p472 = scmp.eq.s32.totalorder %s36, 1
    %p473 = por %p471, %p472
    %p475 = scmp.ne.s32.totalorder %s460, %s474
    %p476 = scmp.eq.s32.totalorder %s36, 0
    %p477 = por %p475, %p476
    %s479 = sadd.s32 %s478, 1
    %p482 = scmp.eq.s32.totalorder %s30, 1
    %p483 = scmp.ne.s32.totalorder %s478, %s480
    %p484 = scmp.eq.s32.totalorder %s30, 0
    %p485 = por %p483, %p484
    %p486 = scmp.ne.s32.totalorder %s478, %s480
    %p487 = scmp.eq.s32.totalorder %s35, 1
    %p488 = por %p486, %p487
    %p489 = scmp.ne.s32.totalorder %s480, %s481
    %p490 = scmp.eq.s32.totalorder %s35, 0
    %p491 = por %p489, %p490
    %p492 = scmp.ne.s32.totalorder %s480, %s481
    %p493 = scmp.eq.s32.totalorder %s36, 1
    %p494 = por %p492, %p493
    %p496 = scmp.ne.s32.totalorder %s481, %s495
    %p497 = scmp.eq.s32.totalorder %s36, 0
    %p498 = por %p496, %p497
    %s500 = sadd.s32 %s499, 1
    %p503 = scmp.eq.s32.totalorder %s30, 1
    %p504 = scmp.ne.s32.totalorder %s499, %s501
    %p505 = scmp.eq.s32.totalorder %s30, 0
    %p506 = por %p504, %p505
    %p507 = scmp.ne.s32.totalorder %s499, %s501
    %p508 = scmp.eq.s32.totalorder %s35, 1
    %p509 = por %p507, %p508
    %p510 = scmp.ne.s32.totalorder %s501, %s502
    %p511 = scmp.eq.s32.totalorder %s35, 0
    %p512 = por %p510, %p511
    %p513 = scmp.ne.s32.totalorder %s501, %s502
    %p514 = scmp.eq.s32.totalorder %s36, 1
    %p515 = por %p513, %p514
    %p517 = scmp.ne.s32.totalorder %s502, %s516
    %p518 = scmp.eq.s32.totalorder %s36, 0
    %p519 = por %p517, %p518
    %s521 = sadd.s32 %s520, 1
    %p524 = scmp.eq.s32.totalorder %s30, 1
    %p525 = scmp.ne.s32.totalorder %s520, %s522
    %p526 = scmp.eq.s32.totalorder %s30, 0
    %p527 = por %p525, %p526
    %p528 = scmp.ne.s32.totalorder %s520, %s522
    %p529 = scmp.eq.s32.totalorder %s35, 1
    %p530 = por %p528, %p529
    %p531 = scmp.ne.s32.totalorder %s522, %s523
    %p532 = scmp.eq.s32.totalorder %s35, 0
    %p533 = por %p531, %p532
    %p534 = scmp.ne.s32.totalorder %s522, %s523
    %p535 = scmp.eq.s32.totalorder %s36, 1
    %p536 = por %p534, %p535
    %p538 = scmp.ne.s32.totalorder %s523, %s537
    %p539 = scmp.eq.s32.totalorder %s36, 0
    %p540 = por %p538, %p539
    %s542 = sadd.s32 %s541, 1
    %p545 = scmp.eq.s32.totalorder %s30, 1
    %p546 = scmp.ne.s32.totalorder %s541, %s543
    %p547 = scmp.eq.s32.totalorder %s30, 0
    %p548 = por %p546, %p547
    %p549 = scmp.ne.s32.totalorder %s541, %s543
    %p550 = scmp.eq.s32.totalorder %s35, 1
    %p551 = por %p549, %p550
    %p552 = scmp.ne.s32.totalorder %s543, %s544
    %p553 = scmp.eq.s32.totalorder %s35, 0
    %p554 = por %p552, %p553
    %p555 = scmp.ne.s32.totalorder %s543, %s544
    %p556 = scmp.eq.s32.totalorder %s36, 1
    %p557 = por %p555, %p556
    %p559 = scmp.ne.s32.totalorder %s544, %s558
    %p560 = scmp.eq.s32.totalorder %s36, 0
    %p561 = por %p559, %p560
    %s562 = ssub.s32 %s30, %s37
    %p563 = scmp.eq.s32.totalorder %s562, 0
    %s565 = sadd.s32 %s564, 1
    %s566 = scalar_select %p563, %s564, %s565
    %p569 = pneg %p563
    %p570 = scmp.eq.s32.totalorder %s30, 1
    %p571 = por %p569, %p570
    %p572 = scmp.ne.s32.totalorder %s564, %s567
    %p573 = scmp.eq.s32.totalorder %s30, 0
    %p574 = por %p572, %p573
    %p575 = scmp.ne.s32.totalorder %s564, %s567
    %p576 = scmp.eq.s32.totalorder %s35, 1
    %p577 = por %p575, %p576
    %p578 = scmp.ne.s32.totalorder %s567, %s568
    %p579 = scmp.eq.s32.totalorder %s35, 0
    %p580 = por %p578, %p579
    %p581 = scmp.ne.s32.totalorder %s567, %s568
    %p582 = scmp.eq.s32.totalorder %s36, 1
    %p583 = por %p581, %p582
    %p585 = scmp.ne.s32.totalorder %s568, %s584
    %p586 = scmp.eq.s32.totalorder %s36, 0
    %p587 = por %p585, %p586
    %p588 = scmp.le.s32.totalorder 1, %s30
    %p589 = scmp.lt.s32.totalorder %s30, 3
    %p590 = pnand %p588, %p589
    %p591 = pneg %p590
    // Predicated region
    $region9: #{_lambda_.11} parent=5 // pred_check
      _
    $region10: #{_lambda_.11} parent=5 // pred_check_branch
      %593 = sbr.rel (%p590) target = $region12
    $region11: #{_lambda_.11} parent=5 // pred_region
      %s594 = ssub.s32 %s30, 1
      // Predicated region
      $region13: #{_lambda_.11} parent=11 // pred_check
        %p595 = pneg %p155
      $region14: #{_lambda_.11} parent=11 // pred_check_branch
        %597 = sbr.rel (%p595) target = $region16
      $region15: #{_lambda_.11} parent=11 // pred_region
        _
      $region16: #{_lambda_.11} parent=11 // pred_fallthru
        _
      // Predicated region
      $region17: #{_lambda_.11} parent=11 // pred_check
        %p598 = pneg %p176
      $region18: #{_lambda_.11} parent=11 // pred_check_branch
        %600 = sbr.rel (%p598) target = $region20
      $region19: #{_lambda_.11} parent=11 // pred_region
        _
      $region20: #{_lambda_.11} parent=11 // pred_fallthru
        _
      // Predicated region
      $region21: #{_lambda_.11} parent=11 // pred_check
        %p601 = pneg %p197
      $region22: #{_lambda_.11} parent=11 // pred_check_branch
        %603 = sbr.rel (%p601) target = $region24
      $region23: #{_lambda_.11} parent=11 // pred_region
        _
      $region24: #{_lambda_.11} parent=11 // pred_fallthru
        _
      // Predicated region
      $region25: #{_lambda_.11} parent=11 // pred_check
        %p604 = pneg %p218
      $region26: #{_lambda_.11} parent=11 // pred_check_branch
        %606 = sbr.rel (%p604) target = $region28
      $region27: #{_lambda_.11} parent=11 // pred_region
        _
      $region28: #{_lambda_.11} parent=11 // pred_fallthru
        _
      // Predicated region
      $region29: #{_lambda_.11} parent=11 // pred_check
        %p607 = pneg %p239
      $region30: #{_lambda_.11} parent=11 // pred_check_branch
        %609 = sbr.rel (%p607) target = $region32
      $region31: #{_lambda_.11} parent=11 // pred_region
        _
      $region32: #{_lambda_.11} parent=11 // pred_fallthru
        _
      // Predicated region
      $region33: #{_lambda_.11} parent=11 // pred_check
        %p610 = pneg %p260
      $region34: #{_lambda_.11} parent=11 // pred_check_branch
        %612 = sbr.rel (%p610) target = $region36
      $region35: #{_lambda_.11} parent=11 // pred_region
        _
      $region36: #{_lambda_.11} parent=11 // pred_fallthru
        _
      // Predicated region
      $region37: #{_lambda_.11} parent=11 // pred_check
        %p613 = pneg %p281
      $region38: #{_lambda_.11} parent=11 // pred_check_branch
        %615 = sbr.rel (%p613) target = $region40
      $region39: #{_lambda_.11} parent=11 // pred_region
        _
      $region40: #{_lambda_.11} parent=11 // pred_fallthru
        _
      // Predicated region
      $region41: #{_lambda_.11} parent=11 // pred_check
        %p616 = pneg %p302
      $region42: #{_lambda_.11} parent=11 // pred_check_branch
        %618 = sbr.rel (%p616) target = $region44
      $region43: #{_lambda_.11} parent=11 // pred_region
        _
      $region44: #{_lambda_.11} parent=11 // pred_fallthru
        _
      // Predicated region
      $region45: #{_lambda_.11} parent=11 // pred_check
        %p619 = pneg %p323
      $region46: #{_lambda_.11} parent=11 // pred_check_branch
        %621 = sbr.rel (%p619) target = $region48
      $region47: #{_lambda_.11} parent=11 // pred_region
        _
      $region48: #{_lambda_.11} parent=11 // pred_fallthru
        _
      // Predicated region
      $region49: #{_lambda_.11} parent=11 // pred_check
        %p622 = pneg %p344
      $region50: #{_lambda_.11} parent=11 // pred_check_branch
        %624 = sbr.rel (%p622) target = $region52
      $region51: #{_lambda_.11} parent=11 // pred_region
        _
      $region52: #{_lambda_.11} parent=11 // pred_fallthru
        _
      // Predicated region
      $region53: #{_lambda_.11} parent=11 // pred_check
        %p625 = pneg %p365
      $region54: #{_lambda_.11} parent=11 // pred_check_branch
        %627 = sbr.rel (%p625) target = $region56
      $region55: #{_lambda_.11} parent=11 // pred_region
        _
      $region56: #{_lambda_.11} parent=11 // pred_fallthru
        _
      // Predicated region
      $region57: #{_lambda_.11} parent=11 // pred_check
        %p628 = pneg %p386
      $region58: #{_lambda_.11} parent=11 // pred_check_branch
        %630 = sbr.rel (%p628) target = $region60
      $region59: #{_lambda_.11} parent=11 // pred_region
        _
      $region60: #{_lambda_.11} parent=11 // pred_fallthru
        _
      // Predicated region
      $region61: #{_lambda_.11} parent=11 // pred_check
        %p631 = pneg %p407
      $region62: #{_lambda_.11} parent=11 // pred_check_branch
        %633 = sbr.rel (%p631) target = $region64
      $region63: #{_lambda_.11} parent=11 // pred_region
        _
      $region64: #{_lambda_.11} parent=11 // pred_fallthru
        _
      // Predicated region
      $region65: #{_lambda_.11} parent=11 // pred_check
        %p634 = pneg %p428
      $region66: #{_lambda_.11} parent=11 // pred_check_branch
        %636 = sbr.rel (%p634) target = $region68
      $region67: #{_lambda_.11} parent=11 // pred_region
        _
      $region68: #{_lambda_.11} parent=11 // pred_fallthru
        _
      // Predicated region
      $region69: #{_lambda_.11} parent=11 // pred_check
        %p637 = pneg %p449
      $region70: #{_lambda_.11} parent=11 // pred_check_branch
        %639 = sbr.rel (%p637) target = $region72
      $region71: #{_lambda_.11} parent=11 // pred_region
        _
      $region72: #{_lambda_.11} parent=11 // pred_fallthru
        _
      // Predicated region
      $region73: #{_lambda_.11} parent=11 // pred_check
        %p640 = pneg %p470
      $region74: #{_lambda_.11} parent=11 // pred_check_branch
        %642 = sbr.rel (%p640) target = $region76
      $region75: #{_lambda_.11} parent=11 // pred_region
        _
      $region76: #{_lambda_.11} parent=11 // pred_fallthru
        _
      // Predicated region
      $region77: #{_lambda_.11} parent=11 // pred_check
        %p643 = pneg %p491
      $region78: #{_lambda_.11} parent=11 // pred_check_branch
        %645 = sbr.rel (%p643) target = $region80
      $region79: #{_lambda_.11} parent=11 // pred_region
        _
      $region80: #{_lambda_.11} parent=11 // pred_fallthru
        _
      // Predicated region
      $region81: #{_lambda_.11} parent=11 // pred_check
        %p646 = pneg %p512
      $region82: #{_lambda_.11} parent=11 // pred_check_branch
        %648 = sbr.rel (%p646) target = $region84
      $region83: #{_lambda_.11} parent=11 // pred_region
        _
      $region84: #{_lambda_.11} parent=11 // pred_fallthru
        _
      // Predicated region
      $region85: #{_lambda_.11} parent=11 // pred_check
        %p649 = pneg %p533
      $region86: #{_lambda_.11} parent=11 // pred_check_branch
        %651 = sbr.rel (%p649) target = $region88
      $region87: #{_lambda_.11} parent=11 // pred_region
        _
      $region88: #{_lambda_.11} parent=11 // pred_fallthru
        _
      // Predicated region
      $region89: #{_lambda_.11} parent=11 // pred_check
        %p652 = pneg %p554
      $region90: #{_lambda_.11} parent=11 // pred_check_branch
        %654 = sbr.rel (%p652) target = $region92
      $region91: #{_lambda_.11} parent=11 // pred_region
        _
      $region92: #{_lambda_.11} parent=11 // pred_fallthru
        _
    $region12: #{_lambda_.11} parent=5 // pred_fallthru
      _
    %p655 = scmp.lt.s32.totalorder %s30, 2
    // Predicated region
    $region93: #{_lambda_.11} parent=5 // pred_check
      %p656 = pneg %p655
    $region94: #{_lambda_.11} parent=5 // pred_check_branch
      %658 = sbr.rel (%p656) target = $region96
    $region95: #{_lambda_.11} parent=5 // pred_region
      // Predicated region
      $region97: #{_lambda_.11} parent=95 // pred_check
        %p659 = pneg %p50
      $region98: #{_lambda_.11} parent=95 // pred_check_branch
        %661 = sbr.rel (%p659) target = $region100
      $region99: #{_lambda_.11} parent=95 // pred_region
        %p662 = scmp.lt.s32.totalorder %s30, 1
        %s663 = scalar_select %p662, %s30, 1
        %s664 = smul.addr %s663, 2
        %s665 = smul.addr %s664, 8
        %s666 = scalar_lea.vmem %s0, %s665
      $region100: #{_lambda_.11} parent=95 // pred_fallthru
        _
      // Predicated region
      $region101: #{_lambda_.11} parent=95 // pred_check
        %p667 = pneg %p76
      $region102: #{_lambda_.11} parent=95 // pred_check_branch
        %669 = sbr.rel (%p667) target = $region104
      $region103: #{_lambda_.11} parent=95 // pred_region
        %p670 = scmp.lt.s32.totalorder %s30, 1
        %s671 = scalar_select %p670, %s30, 1
        %s672 = smul.addr %s671, 8
        %s673 = scalar_lea.vmem %s1, %s672
      $region104: #{_lambda_.11} parent=95 // pred_fallthru
        _
      // Predicated region
      $region105: #{_lambda_.11} parent=95 // pred_check
        %p674 = pneg %p102
      $region106: #{_lambda_.11} parent=95 // pred_check_branch
        %676 = sbr.rel (%p674) target = $region108
      $region107: #{_lambda_.11} parent=95 // pred_region
        %p677 = scmp.lt.s32.totalorder %s30, 1
        %s678 = scalar_select %p677, %s30, 1
        %s679 = scalar_lea.vmem %s2, %s678
      $region108: #{_lambda_.11} parent=95 // pred_fallthru
        _
      // Predicated region
      $region109: #{_lambda_.11} parent=95 // pred_check
        %p680 = pneg %p128
      $region110: #{_lambda_.11} parent=95 // pred_check_branch
        %682 = sbr.rel (%p680) target = $region112
      $region111: #{_lambda_.11} parent=95 // pred_region
        %p683 = scmp.lt.s32.totalorder %s30, 1
        %s684 = scalar_select %p683, %s30, 1
        %s685 = scalar_lea.vmem %s3, %s684
      $region112: #{_lambda_.11} parent=95 // pred_fallthru
        _
    $region96: #{_lambda_.11} parent=5 // pred_fallthru
      _
    %p686 = scmp.le.s32.totalorder 1, %s30
    %p687 = scmp.lt.s32.totalorder %s30, 3
    %p688 = pnand %p686, %p687
    %p689 = pneg %p688
    // Predicated region
    $region113: #{_lambda_.11} parent=5 // pred_check
      _
    $region114: #{_lambda_.11} parent=5 // pred_check_branch
      %691 = sbr.rel (%p688) target = $region116
    $region115: #{_lambda_.11} parent=5 // pred_region
      %s692 = ssub.s32 %s30, 1
      %p693 = scmp.lt.s32.totalorder %s35, 1
      %s694 = scalar_select %p693, %s35, 1
      %s695 = smul.addr %s694, 2
      %s696 = smul.addr %s695, 8
      %s697 = scalar_lea.vmem %s0, %s696
      %p698 = pneg %p56
      %p699 = pneg %p53
      %p700 = scmp.lt.s32.totalorder %s35, 1
      %s701 = scalar_select %p700, %s35, 1
      %s702 = smul.addr %s701, 8
      %s703 = scalar_lea.vmem %s1, %s702
      %p704 = pneg %p82
      %p705 = pneg %p79
      %p706 = scmp.lt.s32.totalorder %s35, 1
      %s707 = scalar_select %p706, %s35, 1
      %s708 = scalar_lea.vmem %s2, %s707
      %p709 = pneg %p108
      %p710 = pneg %p105
      %p711 = scmp.lt.s32.totalorder %s35, 1
      %s712 = scalar_select %p711, %s35, 1
      %s713 = scalar_lea.vmem %s3, %s712
      %p714 = pneg %p134
      %p715 = pneg %p131
      %p716 = pneg %p155
      %p717 = pneg %p152
      %p718 = pneg %p176
      %p719 = pneg %p173
      %p720 = pneg %p197
      %p721 = pneg %p194
      %p722 = pneg %p218
      %p723 = pneg %p215
      %p724 = pneg %p239
      %p725 = pneg %p236
      %p726 = pneg %p260
      %p727 = pneg %p257
      %p728 = pneg %p281
      %p729 = pneg %p278
      %p730 = pneg %p302
      %p731 = pneg %p299
      %p732 = pneg %p323
      %p733 = pneg %p320
      %p734 = pneg %p344
      %p735 = pneg %p341
      %p736 = pneg %p365
      %p737 = pneg %p362
      %p738 = pneg %p386
      %p739 = pneg %p383
      %p740 = pneg %p407
      %p741 = pneg %p404
      %p742 = pneg %p428
      %p743 = pneg %p425
      %p744 = pneg %p449
      %p745 = pneg %p446
      %p746 = pneg %p470
      %p747 = pneg %p467
      %p748 = pneg %p491
      %p749 = pneg %p488
      %p750 = pneg %p512
      %p751 = pneg %p509
      %p752 = pneg %p533
      %p753 = pneg %p530
      %p754 = pneg %p554
      %p755 = pneg %p551
      %p756 = pneg %p580
      %p757 = pneg %p577
      %p758 = scmp.lt.s32.totalorder %s35, 1
      %s759 = scalar_select %p758, %s35, 1
      %s760 = smul.addr %s759, 2
      %s761 = smul.addr %s760, 8
      %s762 = scalar_lea.vmem %s24, %s761
      %p763 = scmp.lt.s32.totalorder %s35, 1
      %s764 = scalar_select %p763, %s35, 1
      %s765 = smul.addr %s764, 2
      %s766 = smul.addr %s765, 8
      %s767 = scalar_lea.vmem %s0, %s766
      %p768 = scmp.lt.s32.totalorder %s35, 1
      %s769 = scalar_select %p768, %s35, 1
      %s770 = smul.addr %s769, 8
      %s771 = scalar_lea.vmem %s1, %s770
      %p772 = scmp.lt.s32.totalorder %s35, 1
      %s773 = scalar_select %p772, %s35, 1
      %s774 = scalar_lea.vmem %s2, %s773
      %p775 = scmp.lt.s32.totalorder %s35, 1
      %s776 = scalar_select %p775, %s35, 1
      %s777 = scalar_lea.vmem %s3, %s776
      %p778 = scmp.lt.s32.totalorder %s35, 1
      %s779 = scalar_select %p778, %s35, 1
      %s780 = smul.addr %s779, 2
      %s781 = smul.addr %s780, 8
      %s782 = scalar_lea.vmem %s24, %s781
      %v784 = vld [vmem:[%s767] sm:$0xff]
      %v785 = vld [vmem:[%s767 + $0x8] sm:$0xff]
      %v786 = vld [vmem:[%s771] sm:$0xff]
      %v787 = vld [vmem:[%s774] sm:$0x1]
      %v788 = vld [vmem:[%s777] sm:$0x1]
      %v789 = vpack.c.bf16 %v785, %v784
      %v790 = vld [vmem:[%s4] sm:$0xf]
      %v791 = vld [vmem:[%s4 + $0x4] sm:$0xf]
      %v792 = vld [vmem:[%s4 + $0x8] sm:$0xf]
      %v793 = vld [vmem:[%s4 + $0xc] sm:$0xf]
      %v794 = vld [vmem:[%s5] sm:$0x1]
      %v796 = vlaneseq
      %v797 = vshrl.u32 %v796, 7
      %v798 = vsub.s32 0, %v797
      %v799 = vrot.slane %v794, %v798
      %v805 = vunpack.c.l.b16 %v790
      %v806 = vunpack.c.l.b16 %v791
      %v807 = vunpack.c.l.b16 %v792
      %v808 = vunpack.c.l.b16 %v793
      %v809 = vpack.c.b16 %v806, %v805
      %v810 = vpack.c.b16 %v808, %v807
      %vm813 = vcmask 261120
      %v815 = vsel %vm813, %v789, 0
      %817 = vmatprep.subr.bf16.mxu0 0
      %818 = vmatpush1.bf16.msra.mxu0 0
      %819 = vmatprep.subr.bf16.mxu0 0
      %820 = vmatpush1.bf16.msra.mxu0 0
      %821 = vmatprep.subr.bf16.mxu0 0
      %822 = vmatpush1.bf16.msra.mxu0 0
      %823 = vmatprep.subr.bf16.mxu0 0
      %824 = vmatpush1.bf16.msra.mxu0 0
      %825 = vmatprep.subr.bf16.mxu0 0
      %826 = vmatpush1.bf16.msra.mxu0 0
      %827 = vmatprep.subr.bf16.mxu0 0
      %828 = vmatpush1.bf16.msra.mxu0 0
      %829 = vmatprep.subr.bf16.mxu0 0
      %830 = vmatpush1.bf16.msra.mxu0 %v810
      %831 = vmatprep.subr.bf16.mxu0 0
      %832 = vmatpush1.bf16.msra.mxu0 %v809
      %833 = vmatprep.subr.bf16.mxu0 0
      %834 = vmatpush2.bf16.msra.mxu0 0
      %835 = vmatprep.subr.bf16.mxu0 0
      %836 = vmatpush2.bf16.msra.mxu0 0
      %837 = vmatprep.subr.bf16.mxu0 0
      %838 = vmatpush2.bf16.msra.mxu0 0
      %839 = vmatprep.subr.bf16.mxu0 0
      %840 = vmatpush2.bf16.msra.mxu0 0
      %841 = vmatprep.subr.bf16.mxu0 0
      %842 = vmatpush2.bf16.msra.mxu0 0
      %843 = vmatprep.subr.bf16.mxu0 0
      %844 = vmatpush2.bf16.msra.mxu0 0
      %845 = vmatprep.subr.bf16.mxu0 0
      %846 = vmatpush2.bf16.msra.mxu0 0
      %847 = vmatprep.subr.bf16.mxu0 0
      %848 = vmatpush2.bf16.msra.mxu0 0
      %849 = vmatprep.mubr.bf16.mxu0 0
      %850 = vmatmul.mubr.bf16.gmra.mxu0 %v815
      %v851 = vpop.f32.mrf.mxu0
      %v852 = vadd.f32 %v799, %v851
      %v853 = vpop.f32.mrf.mxu0
      %v854 = vpop.f32.mrf.mxu0
      %v855 = vadd.f32 %v799, %v854
      %v856 = vpop.f32.mrf.mxu0
      %857 = vdwg.mxu0
      %860 = vrot.lane.b32.xlu0 %v852, 96
      %v861 = vpop.permute.xlu0 %860
      %862 = vrot.lane.b32.xlu0 %v855, 96
      %v863 = vpop.permute.xlu0 %862
      %vm864 = vcmask 64512
      %v865 = vsel %vm864, %v852, 0
      %v867 = vsel %vm864, %v855, 0
      %v869 = vsel %vm864, %v861, 0
      %v871 = vsel %vm864, %v863, 0
      %873 = vmatprep.subr.mxu0 0.0
      %874 = vmatpush1.xpose.msra.mxu0 0.0
      %875 = vmatprep.subr.mxu0 0.0
      %876 = vmatpush1.xpose.msra.mxu0 0.0
      %877 = vmatprep.subr.mxu0 0.0
      %878 = vmatpush1.xpose.msra.mxu0 0.0
      %879 = vmatprep.subr.mxu0 0.0
      %880 = vmatpush1.xpose.msra.mxu0 0.0
      %881 = vmatprep.subr.mxu0 0.0
      %882 = vmatpush1.xpose.msra.mxu0 0.0
      %883 = vmatprep.subr.mxu0 0.0
      %884 = vmatpush1.xpose.msra.mxu0 0.0
      %885 = vmatprep.subr.mxu0 0.0
      %886 = vmatpush1.xpose.msra.mxu0 0.0
      %887 = vmatprep.subr.mxu0 0.0
      %888 = vmatpush1.xpose.msra.mxu0 0.0
      %889 = vmatprep.subr.mxu0 0.0
      %890 = vmatpush1.xpose.msra.mxu0 0.0
      %891 = vmatprep.subr.mxu0 0.0
      %892 = vmatpush1.xpose.msra.mxu0 0.0
      %893 = vmatprep.subr.mxu0 0.0
      %894 = vmatpush1.xpose.msra.mxu0 0.0
      %895 = vmatprep.subr.mxu0 0.0
      %896 = vmatpush1.xpose.msra.mxu0 0.0
      %897 = vmatprep.subr.mxu0 0.0
      %898 = vmatpush1.xpose.msra.mxu0 0.0
      %899 = vmatprep.subr.mxu0 0.0
      %900 = vmatpush1.xpose.msra.mxu0 0.0
      %901 = vmatprep.subr.mxu0 0.0
      %902 = vmatpush1.xpose.msra.mxu0 %v871
      %903 = vmatprep.subr.mxu0 0.0
      %904 = vmatpush1.xpose.msra.mxu0 %v869
      %905 = vmatprep.subr.mxu0 0.0
      %906 = vmatpush2.xpose.msra.mxu0 0.0
      %907 = vmatprep.subr.mxu0 0.0
      %908 = vmatpush2.xpose.msra.mxu0 0.0
      %909 = vmatprep.subr.mxu0 0.0
      %910 = vmatpush2.xpose.msra.mxu0 0.0
      %911 = vmatprep.subr.mxu0 0.0
      %912 = vmatpush2.xpose.msra.mxu0 0.0
      %913 = vmatprep.subr.mxu0 0.0
      %914 = vmatpush2.xpose.msra.mxu0 0.0
      %915 = vmatprep.subr.mxu0 0.0
      %916 = vmatpush2.xpose.msra.mxu0 0.0
      %917 = vmatprep.subr.mxu0 0.0
      %918 = vmatpush2.xpose.msra.mxu0 0.0
      %919 = vmatprep.subr.mxu0 0.0
      %920 = vmatpush2.xpose.msra.mxu0 0.0
      %921 = vmatprep.subr.mxu0 0.0
      %922 = vmatpush2.xpose.msra.mxu0 0.0
      %923 = vmatprep.subr.mxu0 0.0
      %924 = vmatpush2.xpose.msra.mxu0 0.0
      %925 = vmatprep.subr.mxu0 0.0
      %926 = vmatpush2.xpose.msra.mxu0 0.0
      %927 = vmatprep.subr.mxu0 0.0
      %928 = vmatpush2.xpose.msra.mxu0 0.0
      %929 = vmatprep.subr.mxu0 0.0
      %930 = vmatpush2.xpose.msra.mxu0 0.0
      %931 = vmatprep.subr.mxu0 0.0
      %932 = vmatpush2.xpose.msra.mxu0 0.0
      %933 = vmatprep.subr.mxu0 0.0
      %934 = vmatpush2.xpose.msra.mxu0 0.0
      %935 = vmatprep.subr.mxu0 0.0
      %936 = vmatpush2.xpose.msra.mxu0 0.0
      %937 = vmatprep.mubr.f32.mxu0 0.0
      %938 = vmatmul.mubr.f32.gmra.mxu0 %v865
      %v939 = vpop.f32.mrf.mxu0
      %v940 = vadd.f32 0.0, %v939
      %v941 = vpop.f32.mrf.mxu0
      %942 = vmatprep.mubr.f32.mxu0 0.0
      %943 = vmatmul.mubr.f32.gmra.mxu0 %v867
      %v944 = vpop.f32.mrf.mxu0
      %v945 = vadd.f32 0.0, %v944
      %v946 = vpop.f32.mrf.mxu0
      %947 = vdwg.mxu0
      %v948 = vmul.f32 %v940, 0.35355338
      %v949 = vmul.f32 %v945, 0.35355338
      %vm950 = vcmp.gt.f32.partialorder %v787, 0.5
      %v951 = vsel %vm950, 1, 0
      %v952 = vlaneseq
      %v953 = vshrl.u32 %v952, 7
      %v954 = vsub.s32 0, %v953
      %v955 = vrot.slane %v951, %v954
      %vm956 = vcmp.eq.s32.totalorder %v955, 1
      %v957 = vsel %vm956, -1e+09, %v948
      %v958 = vsel %vm956, -1e+09, %v949
      %vm959 = vcmask 130048
      %v960 = vsel %vm959, %v957, -inf
      %961 = vmax.xlane.f32.xlu0 %v960
      %v962 = vpop.xlane.xlu0 %961
      %v963 = vsel %vm959, %v958, -inf
      %964 = vmax.xlane.f32.xlu0 %v963
      %v965 = vpop.xlane.xlu0 %964
      %v966 = vsub.f32 %v957, %v962
      %v967 = vsub.f32 %v958, %v965
      %v968 = vmul.f32 %v966, 1.442695
      %v969 = vpow.pop %v968
      %v970 = vmul.f32 %v967, 1.442695
      %v971 = vpow.pop %v970
      %v972 = vsel %vm959, %v969, 0.0
      %973 = vadd.xlane.f32.xlu0 %v972
      %v974 = vpop.xlane.xlu0 %973
      %v975 = vsel %vm959, %v971, 0.0
      %976 = vadd.xlane.f32.xlu0 %v975
      %v977 = vpop.xlane.xlu0 %976
      %v978 = vrcp.pop %v974
      %v979 = vmul.f32 %v969, %v978
      %v980 = vrcp.pop %v977
      %v981 = vmul.f32 %v971, %v980
      %982 = vrot.lane.b32.xlu0 %v852, 64
      %v983 = vpop.permute.xlu0 %982
      %984 = vrot.lane.b32.xlu0 %v855, 64
      %v985 = vpop.permute.xlu0 %984
      %v989 = vsel %vm959, %v979, 0
      %v992 = vsel %vm959, %v981, 0
      %994 = vmatprep.subr.mxu0 0.0
      %995 = vmatpush1.msra.mxu0 0.0
      %996 = vmatprep.subr.mxu0 0.0
      %997 = vmatpush1.msra.mxu0 0.0
      %998 = vmatprep.subr.mxu0 0.0
      %999 = vmatpush1.msra.mxu0 0.0
      %1000 = vmatprep.subr.mxu0 0.0
      %1001 = vmatpush1.msra.mxu0 0.0
      %1002 = vmatprep.subr.mxu0 0.0
      %1003 = vmatpush1.msra.mxu0 0.0
      %1004 = vmatprep.subr.mxu0 0.0
      %1005 = vmatpush1.msra.mxu0 0.0
      %1006 = vmatprep.subr.mxu0 0.0
      %1007 = vmatpush1.msra.mxu0 0.0
      %1008 = vmatprep.subr.mxu0 0.0
      %1009 = vmatpush1.msra.mxu0 0.0
      %1010 = vmatprep.subr.mxu0 0.0
      %1011 = vmatpush1.msra.mxu0 0.0
      %1012 = vmatprep.subr.mxu0 0.0
      %1013 = vmatpush1.msra.mxu0 0.0
      %1014 = vmatprep.subr.mxu0 0.0
      %1015 = vmatpush1.msra.mxu0 0.0
      %1016 = vmatprep.subr.mxu0 0.0
      %1017 = vmatpush1.msra.mxu0 0.0
      %1018 = vmatprep.subr.mxu0 0.0
      %1019 = vmatpush1.msra.mxu0 0.0
      %1020 = vmatprep.subr.mxu0 0.0
      %1021 = vmatpush1.msra.mxu0 0.0
      %1022 = vmatprep.subr.mxu0 0.0
      %1023 = vmatpush1.msra.mxu0 %v985
      %1024 = vmatprep.subr.mxu0 0.0
      %1025 = vmatpush1.msra.mxu0 %v983
      %1026 = vmatprep.subr.mxu0 0.0
      %1027 = vmatpush2.msra.mxu0 0.0
      %1028 = vmatprep.subr.mxu0 0.0
      %1029 = vmatpush2.msra.mxu0 0.0
      %1030 = vmatprep.subr.mxu0 0.0
      %1031 = vmatpush2.msra.mxu0 0.0
      %1032 = vmatprep.subr.mxu0 0.0
      %1033 = vmatpush2.msra.mxu0 0.0
      %1034 = vmatprep.subr.mxu0 0.0
      %1035 = vmatpush2.msra.mxu0 0.0
      %1036 = vmatprep.subr.mxu0 0.0
      %1037 = vmatpush2.msra.mxu0 0.0
      %1038 = vmatprep.subr.mxu0 0.0
      %1039 = vmatpush2.msra.mxu0 0.0
      %1040 = vmatprep.subr.mxu0 0.0
      %1041 = vmatpush2.msra.mxu0 0.0
      %1042 = vmatprep.subr.mxu0 0.0
      %1043 = vmatpush2.msra.mxu0 0.0
      %1044 = vmatprep.subr.mxu0 0.0
      %1045 = vmatpush2.msra.mxu0 0.0
      %1046 = vmatprep.subr.mxu0 0.0
      %1047 = vmatpush2.msra.mxu0 0.0
      %1048 = vmatprep.subr.mxu0 0.0
      %1049 = vmatpush2.msra.mxu0 0.0
      %1050 = vmatprep.subr.mxu0 0.0
      %1051 = vmatpush2.msra.mxu0 0.0
      %1052 = vmatprep.subr.mxu0 0.0
      %1053 = vmatpush2.msra.mxu0 0.0
      %1054 = vmatprep.subr.mxu0 0.0
      %1055 = vmatpush2.msra.mxu0 0.0
      %1056 = vmatprep.subr.mxu0 0.0
      %1057 = vmatpush2.msra.mxu0 0.0
      %1058 = vmatprep.mubr.f32.mxu0 0.0
      %1059 = vmatmul.mubr.f32.gmra.mxu0 %v989
      %v1060 = vpop.f32.mrf.mxu0
      %v1061 = vadd.f32 0.0, %v1060
      %v1062 = vpop.f32.mrf.mxu0
      %1063 = vmatprep.mubr.f32.mxu0 0.0
      %1064 = vmatmul.mubr.f32.gmra.mxu0 %v992
      %v1065 = vpop.f32.mrf.mxu0
      %v1066 = vadd.f32 0.0, %v1065
      %v1067 = vpop.f32.mrf.mxu0
      %1068 = vdwg.mxu0
      %1069 = vrot.lane.b32.xlu0 %v852, 120
      %v1070 = vpop.permute.xlu0 %1069
      %1071 = vrot.lane.b32.xlu0 %v855, 120
      %v1072 = vpop.permute.xlu0 %1071
      %1073 = vrot.lane.b32.xlu0 %v852, 88
      %v1074 = vpop.permute.xlu0 %1073
      %1075 = vrot.lane.b32.xlu0 %v855, 88
      %v1076 = vpop.permute.xlu0 %1075
      %v1077 = vsel %vm864, %v1070, 0
      %v1079 = vsel %vm864, %v1072, 0
      %v1081 = vsel %vm864, %v1074, 0
      %v1083 = vsel %vm864, %v1076, 0
      %1085 = vmatprep.subr.mxu0 0.0
      %1086 = vmatpush1.xpose.msra.mxu0 0.0
      %1087 = vmatprep.subr.mxu0 0.0
      %1088 = vmatpush1.xpose.msra.mxu0 0.0
      %1089 = vmatprep.subr.mxu0 0.0
      %1090 = vmatpush1.xpose.msra.mxu0 0.0
      %1091 = vmatprep.subr.mxu0 0.0
      %1092 = vmatpush1.xpose.msra.mxu0 0.0
      %1093 = vmatprep.subr.mxu0 0.0
      %1094 = vmatpush1.xpose.msra.mxu0 0.0
      %1095 = vmatprep.subr.mxu0 0.0
      %1096 = vmatpush1.xpose.msra.mxu0 0.0
      %1097 = vmatprep.subr.mxu0 0.0
      %1098 = vmatpush1.xpose.msra.mxu0 0.0
      %1099 = vmatprep.subr.mxu0 0.0
      %1100 = vmatpush1.xpose.msra.mxu0 0.0
      %1101 = vmatprep.subr.mxu0 0.0
      %1102 = vmatpush1.xpose.msra.mxu0 0.0
      %1103 = vmatprep.subr.mxu0 0.0
      %1104 = vmatpush1.xpose.msra.mxu0 0.0
      %1105 = vmatprep.subr.mxu0 0.0
      %1106 = vmatpush1.xpose.msra.mxu0 0.0
      %1107 = vmatprep.subr.mxu0 0.0
      %1108 = vmatpush1.xpose.msra.mxu0 0.0
      %1109 = vmatprep.subr.mxu0 0.0
      %1110 = vmatpush1.xpose.msra.mxu0 0.0
      %1111 = vmatprep.subr.mxu0 0.0
      %1112 = vmatpush1.xpose.msra.mxu0 0.0
      %1113 = vmatprep.subr.mxu0 0.0
      %1114 = vmatpush1.xpose.msra.mxu0 %v1083
      %1115 = vmatprep.subr.mxu0 0.0
      %1116 = vmatpush1.xpose.msra.mxu0 %v1081
      %1117 = vmatprep.subr.mxu0 0.0
      %1118 = vmatpush2.xpose.msra.mxu0 0.0
      %1119 = vmatprep.subr.mxu0 0.0
      %1120 = vmatpush2.xpose.msra.mxu0 0.0
      %1121 = vmatprep.subr.mxu0 0.0
      %1122 = vmatpush2.xpose.msra.mxu0 0.0
      %1123 = vmatprep.subr.mxu0 0.0
      %1124 = vmatpush2.xpose.msra.mxu0 0.0
      %1125 = vmatprep.subr.mxu0 0.0
      %1126 = vmatpush2.xpose.msra.mxu0 0.0
      %1127 = vmatprep.subr.mxu0 0.0
      %1128 = vmatpush2.xpose.msra.mxu0 0.0
      %1129 = vmatprep.subr.mxu0 0.0
      %1130 = vmatpush2.xpose.msra.mxu0 0.0
      %1131 = vmatprep.subr.mxu0 0.0
      %1132 = vmatpush2.xpose.msra.mxu0 0.0
      %1133 = vmatprep.subr.mxu0 0.0
      %1134 = vmatpush2.xpose.msra.mxu0 0.0
      %1135 = vmatprep.subr.mxu0 0.0
      %1136 = vmatpush2.xpose.msra.mxu0 0.0
      %1137 = vmatprep.subr.mxu0 0.0
      %1138 = vmatpush2.xpose.msra.mxu0 0.0
      %1139 = vmatprep.subr.mxu0 0.0
      %1140 = vmatpush2.xpose.msra.mxu0 0.0
      %1141 = vmatprep.subr.mxu0 0.0
      %1142 = vmatpush2.xpose.msra.mxu0 0.0
      %1143 = vmatprep.subr.mxu0 0.0
      %1144 = vmatpush2.xpose.msra.mxu0 0.0
      %1145 = vmatprep.subr.mxu0 0.0
      %1146 = vmatpush2.xpose.msra.mxu0 0.0
      %1147 = vmatprep.subr.mxu0 0.0
      %1148 = vmatpush2.xpose.msra.mxu0 0.0
      %1149 = vmatprep.mubr.f32.mxu0 0.0
      %1150 = vmatmul.mubr.f32.gmra.mxu0 %v1077
      %v1151 = vpop.f32.mrf.mxu0
      %v1152 = vadd.f32 0.0, %v1151
      %v1153 = vpop.f32.mrf.mxu0
      %1154 = vmatprep.mubr.f32.mxu0 0.0
      %1155 = vmatmul.mubr.f32.gmra.mxu0 %v1079
      %v1156 = vpop.f32.mrf.mxu0
      %v1157 = vadd.f32 0.0, %v1156
      %v1158 = vpop.f32.mrf.mxu0
      %1159 = vdwg.mxu0
      %v1160 = vmul.f32 %v1152, 0.35355338
      %v1161 = vmul.f32 %v1157, 0.35355338
      %v1162 = vsel %vm956, -1e+09, %v1160
      %v1163 = vsel %vm956, -1e+09, %v1161
      %v1164 = vsel %vm959, %v1162, -inf
      %1165 = vmax.xlane.f32.xlu0 %v1164
      %v1166 = vpop.xlane.xlu0 %1165
      %v1167 = vsel %vm959, %v1163, -inf
      %1168 = vmax.xlane.f32.xlu0 %v1167
      %v1169 = vpop.xlane.xlu0 %1168
      %v1170 = vsub.f32 %v1162, %v1166
      %v1171 = vsub.f32 %v1163, %v1169
      %v1172 = vmul.f32 %v1170, 1.442695
      %v1173 = vpow.pop %v1172
      %v1174 = vmul.f32 %v1171, 1.442695
      %v1175 = vpow.pop %v1174
      %v1176 = vsel %vm959, %v1173, 0.0
      %1177 = vadd.xlane.f32.xlu0 %v1176
      %v1178 = vpop.xlane.xlu0 %1177
      %v1179 = vsel %vm959, %v1175, 0.0
      %1180 = vadd.xlane.f32.xlu0 %v1179
      %v1181 = vpop.xlane.xlu0 %1180
      %v1182 = vrcp.pop %v1178
      %v1183 = vmul.f32 %v1173, %v1182
      %v1184 = vrcp.pop %v1181
      %v1185 = vmul.f32 %v1175, %v1184
      %1186 = vrot.lane.b32.xlu0 %v852, 56
      %v1187 = vpop.permute.xlu0 %1186
      %1188 = vrot.lane.b32.xlu0 %v855, 56
      %v1189 = vpop.permute.xlu0 %1188
      %v1193 = vsel %vm959, %v1183, 0
      %v1196 = vsel %vm959, %v1185, 0
      %1198 = vmatprep.subr.mxu0 0.0
      %1199 = vmatpush1.msra.mxu0 0.0
      %1200 = vmatprep.subr.mxu0 0.0
      %1201 = vmatpush1.msra.mxu0 0.0
      %1202 = vmatprep.subr.mxu0 0.0
      %1203 = vmatpush1.msra.mxu0 0.0
      %1204 = vmatprep.subr.mxu0 0.0
      %1205 = vmatpush1.msra.mxu0 0.0
      %1206 = vmatprep.subr.mxu0 0.0
      %1207 = vmatpush1.msra.mxu0 0.0
      %1208 = vmatprep.subr.mxu0 0.0
      %1209 = vmatpush1.msra.mxu0 0.0
      %1210 = vmatprep.subr.mxu0 0.0
      %1211 = vmatpush1.msra.mxu0 0.0
      %1212 = vmatprep.subr.mxu0 0.0
      %1213 = vmatpush1.msra.mxu0 0.0
      %1214 = vmatprep.subr.mxu0 0.0
      %1215 = vmatpush1.msra.mxu0 0.0
      %1216 = vmatprep.subr.mxu0 0.0
      %1217 = vmatpush1.msra.mxu0 0.0
      %1218 = vmatprep.subr.mxu0 0.0
      %1219 = vmatpush1.msra.mxu0 0.0
      %1220 = vmatprep.subr.mxu0 0.0
      %1221 = vmatpush1.msra.mxu0 0.0
      %1222 = vmatprep.subr.mxu0 0.0
      %1223 = vmatpush1.msra.mxu0 0.0
      %1224 = vmatprep.subr.mxu0 0.0
      %1225 = vmatpush1.msra.mxu0 0.0
      %1226 = vmatprep.subr.mxu0 0.0
      %1227 = vmatpush1.msra.mxu0 %v1189
      %1228 = vmatprep.subr.mxu0 0.0
      %1229 = vmatpush1.msra.mxu0 %v1187
      %1230 = vmatprep.subr.mxu0 0.0
      %1231 = vmatpush2.msra.mxu0 0.0
      %1232 = vmatprep.subr.mxu0 0.0
      %1233 = vmatpush2.msra.mxu0 0.0
      %1234 = vmatprep.subr.mxu0 0.0
      %1235 = vmatpush2.msra.mxu0 0.0
      %1236 = vmatprep.subr.mxu0 0.0
      %1237 = vmatpush2.msra.mxu0 0.0
      %1238 = vmatprep.subr.mxu0 0.0
      %1239 = vmatpush2.msra.mxu0 0.0
      %1240 = vmatprep.subr.mxu0 0.0
      %1241 = vmatpush2.msra.mxu0 0.0
      %1242 = vmatprep.subr.mxu0 0.0
      %1243 = vmatpush2.msra.mxu0 0.0
      %1244 = vmatprep.subr.mxu0 0.0
      %1245 = vmatpush2.msra.mxu0 0.0
      %1246 = vmatprep.subr.mxu0 0.0
      %1247 = vmatpush2.msra.mxu0 0.0
      %1248 = vmatprep.subr.mxu0 0.0
      %1249 = vmatpush2.msra.mxu0 0.0
      %1250 = vmatprep.subr.mxu0 0.0
      %1251 = vmatpush2.msra.mxu0 0.0
      %1252 = vmatprep.subr.mxu0 0.0
      %1253 = vmatpush2.msra.mxu0 0.0
      %1254 = vmatprep.subr.mxu0 0.0
      %1255 = vmatpush2.msra.mxu0 0.0
      %1256 = vmatprep.subr.mxu0 0.0
      %1257 = vmatpush2.msra.mxu0 0.0
      %1258 = vmatprep.subr.mxu0 0.0
      %1259 = vmatpush2.msra.mxu0 0.0
      %1260 = vmatprep.subr.mxu0 0.0
      %1261 = vmatpush2.msra.mxu0 0.0
      %1262 = vmatprep.mubr.f32.mxu0 0.0
      %1263 = vmatmul.mubr.f32.gmra.mxu0 %v1193
      %v1264 = vpop.f32.mrf.mxu0
      %v1265 = vadd.f32 0.0, %v1264
      %v1266 = vpop.f32.mrf.mxu0
      %1267 = vmatprep.mubr.f32.mxu0 0.0
      %1268 = vmatmul.mubr.f32.gmra.mxu0 %v1196
      %v1269 = vpop.f32.mrf.mxu0
      %v1270 = vadd.f32 0.0, %v1269
      %v1271 = vpop.f32.mrf.mxu0
      %1272 = vdwg.mxu0
      %1273 = vrot.lane.b32.xlu0 %v852, 112
      %v1274 = vpop.permute.xlu0 %1273
      %1275 = vrot.lane.b32.xlu0 %v855, 112
      %v1276 = vpop.permute.xlu0 %1275
      %1277 = vrot.lane.b32.xlu0 %v852, 80
      %v1278 = vpop.permute.xlu0 %1277
      %1279 = vrot.lane.b32.xlu0 %v855, 80
      %v1280 = vpop.permute.xlu0 %1279
      %v1281 = vsel %vm864, %v1274, 0
      %v1283 = vsel %vm864, %v1276, 0
      %v1285 = vsel %vm864, %v1278, 0
      %v1287 = vsel %vm864, %v1280, 0
      %1289 = vmatprep.subr.mxu0 0.0
      %1290 = vmatpush1.xpose.msra.mxu0 0.0
      %1291 = vmatprep.subr.mxu0 0.0
      %1292 = vmatpush1.xpose.msra.mxu0 0.0
      %1293 = vmatprep.subr.mxu0 0.0
      %1294 = vmatpush1.xpose.msra.mxu0 0.0
      %1295 = vmatprep.subr.mxu0 0.0
      %1296 = vmatpush1.xpose.msra.mxu0 0.0
      %1297 = vmatprep.subr.mxu0 0.0
      %1298 = vmatpush1.xpose.msra.mxu0 0.0
      %1299 = vmatprep.subr.mxu0 0.0
      %1300 = vmatpush1.xpose.msra.mxu0 0.0
      %1301 = vmatprep.subr.mxu0 0.0
      %1302 = vmatpush1.xpose.msra.mxu0 0.0
      %1303 = vmatprep.subr.mxu0 0.0
      %1304 = vmatpush1.xpose.msra.mxu0 0.0
      %1305 = vmatprep.subr.mxu0 0.0
      %1306 = vmatpush1.xpose.msra.mxu0 0.0
      %1307 = vmatprep.subr.mxu0 0.0
      %1308 = vmatpush1.xpose.msra.mxu0 0.0
      %1309 = vmatprep.subr.mxu0 0.0
      %1310 = vmatpush1.xpose.msra.mxu0 0.0
      %1311 = vmatprep.subr.mxu0 0.0
      %1312 = vmatpush1.xpose.msra.mxu0 0.0
      %1313 = vmatprep.subr.mxu0 0.0
      %1314 = vmatpush1.xpose.msra.mxu0 0.0
      %1315 = vmatprep.subr.mxu0 0.0
      %1316 = vmatpush1.xpose.msra.mxu0 0.0
      %1317 = vmatprep.subr.mxu0 0.0
      %1318 = vmatpush1.xpose.msra.mxu0 %v1287
      %1319 = vmatprep.subr.mxu0 0.0
      %1320 = vmatpush1.xpose.msra.mxu0 %v1285
      %1321 = vmatprep.subr.mxu0 0.0
      %1322 = vmatpush2.xpose.msra.mxu0 0.0
      %1323 = vmatprep.subr.mxu0 0.0
      %1324 = vmatpush2.xpose.msra.mxu0 0.0
      %1325 = vmatprep.subr.mxu0 0.0
      %1326 = vmatpush2.xpose.msra.mxu0 0.0
      %1327 = vmatprep.subr.mxu0 0.0
      %1328 = vmatpush2.xpose.msra.mxu0 0.0
      %1329 = vmatprep.subr.mxu0 0.0
      %1330 = vmatpush2.xpose.msra.mxu0 0.0
      %1331 = vmatprep.subr.mxu0 0.0
      %1332 = vmatpush2.xpose.msra.mxu0 0.0
      %1333 = vmatprep.subr.mxu0 0.0
      %1334 = vmatpush2.xpose.msra.mxu0 0.0
      %1335 = vmatprep.subr.mxu0 0.0
      %1336 = vmatpush2.xpose.msra.mxu0 0.0
      %1337 = vmatprep.subr.mxu0 0.0
      %1338 = vmatpush2.xpose.msra.mxu0 0.0
      %1339 = vmatprep.subr.mxu0 0.0
      %1340 = vmatpush2.xpose.msra.mxu0 0.0
      %1341 = vmatprep.subr.mxu0 0.0
      %1342 = vmatpush2.xpose.msra.mxu0 0.0
      %1343 = vmatprep.subr.mxu0 0.0
      %1344 = vmatpush2.xpose.msra.mxu0 0.0
      %1345 = vmatprep.subr.mxu0 0.0
      %1346 = vmatpush2.xpose.msra.mxu0 0.0
      %1347 = vmatprep.subr.mxu0 0.0
      %1348 = vmatpush2.xpose.msra.mxu0 0.0
      %1349 = vmatprep.subr.mxu0 0.0
      %1350 = vmatpush2.xpose.msra.mxu0 0.0
      %1351 = vmatprep.subr.mxu0 0.0
      %1352 = vmatpush2.xpose.msra.mxu0 0.0
      %1353 = vmatprep.mubr.f32.mxu0 0.0
      %1354 = vmatmul.mubr.f32.gmra.mxu0 %v1281
      %v1355 = vpop.f32.mrf.mxu0
      %v1356 = vadd.f32 0.0, %v1355
      %v1357 = vpop.f32.mrf.mxu0
      %1358 = vmatprep.mubr.f32.mxu0 0.0
      %1359 = vmatmul.mubr.f32.gmra.mxu0 %v1283
      %v1360 = vpop.f32.mrf.mxu0
      %v1361 = vadd.f32 0.0, %v1360
      %v1362 = vpop.f32.mrf.mxu0
      %1363 = vdwg.mxu0
      %v1364 = vmul.f32 %v1356, 0.35355338
      %v1365 = vmul.f32 %v1361, 0.35355338
      %v1366 = vsel %vm956, -1e+09, %v1364
      %v1367 = vsel %vm956, -1e+09, %v1365
      %v1368 = vsel %vm959, %v1366, -inf
      %1369 = vmax.xlane.f32.xlu0 %v1368
      %v1370 = vpop.xlane.xlu0 %1369
      %v1371 = vsel %vm959, %v1367, -inf
      %1372 = vmax.xlane.f32.xlu0 %v1371
      %v1373 = vpop.xlane.xlu0 %1372
      %v1374 = vsub.f32 %v1366, %v1370
      %v1375 = vsub.f32 %v1367, %v1373
      %v1376 = vmul.f32 %v1374, 1.442695
      %v1377 = vpow.pop %v1376
      %v1378 = vmul.f32 %v1375, 1.442695
      %v1379 = vpow.pop %v1378
      %v1380 = vsel %vm959, %v1377, 0.0
      %1381 = vadd.xlane.f32.xlu0 %v1380
      %v1382 = vpop.xlane.xlu0 %1381
      %v1383 = vsel %vm959, %v1379, 0.0
      %1384 = vadd.xlane.f32.xlu0 %v1383
      %v1385 = vpop.xlane.xlu0 %1384
      %v1386 = vrcp.pop %v1382
      %v1387 = vmul.f32 %v1377, %v1386
      %v1388 = vrcp.pop %v1385
      %v1389 = vmul.f32 %v1379, %v1388
      %1390 = vrot.lane.b32.xlu0 %v852, 48
      %v1391 = vpop.permute.xlu0 %1390
      %1392 = vrot.lane.b32.xlu0 %v855, 48
      %v1393 = vpop.permute.xlu0 %1392
      %v1397 = vsel %vm959, %v1387, 0
      %v1400 = vsel %vm959, %v1389, 0
      %1402 = vmatprep.subr.mxu0 0.0
      %1403 = vmatpush1.msra.mxu0 0.0
      %1404 = vmatprep.subr.mxu0 0.0
      %1405 = vmatpush1.msra.mxu0 0.0
      %1406 = vmatprep.subr.mxu0 0.0
      %1407 = vmatpush1.msra.mxu0 0.0
      %1408 = vmatprep.subr.mxu0 0.0
      %1409 = vmatpush1.msra.mxu0 0.0
      %1410 = vmatprep.subr.mxu0 0.0
      %1411 = vmatpush1.msra.mxu0 0.0
      %1412 = vmatprep.subr.mxu0 0.0
      %1413 = vmatpush1.msra.mxu0 0.0
      %1414 = vmatprep.subr.mxu0 0.0
      %1415 = vmatpush1.msra.mxu0 0.0
      %1416 = vmatprep.subr.mxu0 0.0
      %1417 = vmatpush1.msra.mxu0 0.0
      %1418 = vmatprep.subr.mxu0 0.0
      %1419 = vmatpush1.msra.mxu0 0.0
      %1420 = vmatprep.subr.mxu0 0.0
      %1421 = vmatpush1.msra.mxu0 0.0
      %1422 = vmatprep.subr.mxu0 0.0
      %1423 = vmatpush1.msra.mxu0 0.0
      %1424 = vmatprep.subr.mxu0 0.0
      %1425 = vmatpush1.msra.mxu0 0.0
      %1426 = vmatprep.subr.mxu0 0.0
      %1427 = vmatpush1.msra.mxu0 0.0
      %1428 = vmatprep.subr.mxu0 0.0
      %1429 = vmatpush1.msra.mxu0 0.0
      %1430 = vmatprep.subr.mxu0 0.0
      %1431 = vmatpush1.msra.mxu0 %v1393
      %1432 = vmatprep.subr.mxu0 0.0
      %1433 = vmatpush1.msra.mxu0 %v1391
      %1434 = vmatprep.subr.mxu0 0.0
      %1435 = vmatpush2.msra.mxu0 0.0
      %1436 = vmatprep.subr.mxu0 0.0
      %1437 = vmatpush2.msra.mxu0 0.0
      %1438 = vmatprep.subr.mxu0 0.0
      %1439 = vmatpush2.msra.mxu0 0.0
      %1440 = vmatprep.subr.mxu0 0.0
      %1441 = vmatpush2.msra.mxu0 0.0
      %1442 = vmatprep.subr.mxu0 0.0
      %1443 = vmatpush2.msra.mxu0 0.0
      %1444 = vmatprep.subr.mxu0 0.0
      %1445 = vmatpush2.msra.mxu0 0.0
      %1446 = vmatprep.subr.mxu0 0.0
      %1447 = vmatpush2.msra.mxu0 0.0
      %1448 = vmatprep.subr.mxu0 0.0
      %1449 = vmatpush2.msra.mxu0 0.0
      %1450 = vmatprep.subr.mxu0 0.0
      %1451 = vmatpush2.msra.mxu0 0.0
      %1452 = vmatprep.subr.mxu0 0.0
      %1453 = vmatpush2.msra.mxu0 0.0
      %1454 = vmatprep.subr.mxu0 0.0
      %1455 = vmatpush2.msra.mxu0 0.0
      %1456 = vmatprep.subr.mxu0 0.0
      %1457 = vmatpush2.msra.mxu0 0.0
      %1458 = vmatprep.subr.mxu0 0.0
      %1459 = vmatpush2.msra.mxu0 0.0
      %1460 = vmatprep.subr.mxu0 0.0
      %1461 = vmatpush2.msra.mxu0 0.0
      %1462 = vmatprep.subr.mxu0 0.0
      %1463 = vmatpush2.msra.mxu0 0.0
      %1464 = vmatprep.subr.mxu0 0.0
      %1465 = vmatpush2.msra.mxu0 0.0
      %1466 = vmatprep.mubr.f32.mxu0 0.0
      %1467 = vmatmul.mubr.f32.gmra.mxu0 %v1397
      %v1468 = vpop.f32.mrf.mxu0
      %v1469 = vadd.f32 0.0, %v1468
      %v1470 = vpop.f32.mrf.mxu0
      %1471 = vmatprep.mubr.f32.mxu0 0.0
      %1472 = vmatmul.mubr.f32.gmra.mxu0 %v1400
      %v1473 = vpop.f32.mrf.mxu0
      %v1474 = vadd.f32 0.0, %v1473
      %v1475 = vpop.f32.mrf.mxu0
      %1476 = vdwg.mxu0
      %1477 = vrot.lane.b32.xlu0 %v852, 104
      %v1478 = vpop.permute.xlu0 %1477
      %1479 = vrot.lane.b32.xlu0 %v855, 104
      %v1480 = vpop.permute.xlu0 %1479
      %1481 = vrot.lane.b32.xlu0 %v852, 72
      %v1482 = vpop.permute.xlu0 %1481
      %1483 = vrot.lane.b32.xlu0 %v855, 72
      %v1484 = vpop.permute.xlu0 %1483
      %v1485 = vsel %vm864, %v1478, 0
      %v1487 = vsel %vm864, %v1480, 0
      %v1489 = vsel %vm864, %v1482, 0
      %v1491 = vsel %vm864, %v1484, 0
      %1493 = vmatprep.subr.mxu0 0.0
      %1494 = vmatpush1.xpose.msra.mxu0 0.0
      %1495 = vmatprep.subr.mxu0 0.0
      %1496 = vmatpush1.xpose.msra.mxu0 0.0
      %1497 = vmatprep.subr.mxu0 0.0
      %1498 = vmatpush1.xpose.msra.mxu0 0.0
      %1499 = vmatprep.subr.mxu0 0.0
      %1500 = vmatpush1.xpose.msra.mxu0 0.0
      %1501 = vmatprep.subr.mxu0 0.0
      %1502 = vmatpush1.xpose.msra.mxu0 0.0
      %1503 = vmatprep.subr.mxu0 0.0
      %1504 = vmatpush1.xpose.msra.mxu0 0.0
      %1505 = vmatprep.subr.mxu0 0.0
      %1506 = vmatpush1.xpose.msra.mxu0 0.0
      %1507 = vmatprep.subr.mxu0 0.0
      %1508 = vmatpush1.xpose.msra.mxu0 0.0
      %1509 = vmatprep.subr.mxu0 0.0
      %1510 = vmatpush1.xpose.msra.mxu0 0.0
      %1511 = vmatprep.subr.mxu0 0.0
      %1512 = vmatpush1.xpose.msra.mxu0 0.0
      %1513 = vmatprep.subr.mxu0 0.0
      %1514 = vmatpush1.xpose.msra.mxu0 0.0
      %1515 = vmatprep.subr.mxu0 0.0
      %1516 = vmatpush1.xpose.msra.mxu0 0.0
      %1517 = vmatprep.subr.mxu0 0.0
      %1518 = vmatpush1.xpose.msra.mxu0 0.0
      %1519 = vmatprep.subr.mxu0 0.0
      %1520 = vmatpush1.xpose.msra.mxu0 0.0
      %1521 = vmatprep.subr.mxu0 0.0
      %1522 = vmatpush1.xpose.msra.mxu0 %v1491
      %1523 = vmatprep.subr.mxu0 0.0
      %1524 = vmatpush1.xpose.msra.mxu0 %v1489
      %1525 = vmatprep.subr.mxu0 0.0
      %1526 = vmatpush2.xpose.msra.mxu0 0.0
      %1527 = vmatprep.subr.mxu0 0.0
      %1528 = vmatpush2.xpose.msra.mxu0 0.0
      %1529 = vmatprep.subr.mxu0 0.0
      %1530 = vmatpush2.xpose.msra.mxu0 0.0
      %1531 = vmatprep.subr.mxu0 0.0
      %1532 = vmatpush2.xpose.msra.mxu0 0.0
      %1533 = vmatprep.subr.mxu0 0.0
      %1534 = vmatpush2.xpose.msra.mxu0 0.0
      %1535 = vmatprep.subr.mxu0 0.0
      %1536 = vmatpush2.xpose.msra.mxu0 0.0
      %1537 = vmatprep.subr.mxu0 0.0
      %1538 = vmatpush2.xpose.msra.mxu0 0.0
      %1539 = vmatprep.subr.mxu0 0.0
      %1540 = vmatpush2.xpose.msra.mxu0 0.0
      %1541 = vmatprep.subr.mxu0 0.0
      %1542 = vmatpush2.xpose.msra.mxu0 0.0
      %1543 = vmatprep.subr.mxu0 0.0
      %1544 = vmatpush2.xpose.msra.mxu0 0.0
      %1545 = vmatprep.subr.mxu0 0.0
      %1546 = vmatpush2.xpose.msra.mxu0 0.0
      %1547 = vmatprep.subr.mxu0 0.0
      %1548 = vmatpush2.xpose.msra.mxu0 0.0
      %1549 = vmatprep.subr.mxu0 0.0
      %1550 = vmatpush2.xpose.msra.mxu0 0.0
      %1551 = vmatprep.subr.mxu0 0.0
      %1552 = vmatpush2.xpose.msra.mxu0 0.0
      %1553 = vmatprep.subr.mxu0 0.0
      %1554 = vmatpush2.xpose.msra.mxu0 0.0
      %1555 = vmatprep.subr.mxu0 0.0
      %1556 = vmatpush2.xpose.msra.mxu0 0.0
      %1557 = vmatprep.mubr.f32.mxu0 0.0
      %1558 = vmatmul.mubr.f32.gmra.mxu0 %v1485
      %v1559 = vpop.f32.mrf.mxu0
      %v1560 = vadd.f32 0.0, %v1559
      %v1561 = vpop.f32.mrf.mxu0
      %1562 = vmatprep.mubr.f32.mxu0 0.0
      %1563 = vmatmul.mubr.f32.gmra.mxu0 %v1487
      %v1564 = vpop.f32.mrf.mxu0
      %v1565 = vadd.f32 0.0, %v1564
      %v1566 = vpop.f32.mrf.mxu0
      %1567 = vdwg.mxu0
      %v1568 = vmul.f32 %v1560, 0.35355338
      %v1569 = vmul.f32 %v1565, 0.35355338
      %v1570 = vsel %vm956, -1e+09, %v1568
      %v1571 = vsel %vm956, -1e+09, %v1569
      %v1572 = vsel %vm959, %v1570, -inf
      %1573 = vmax.xlane.f32.xlu0 %v1572
      %v1574 = vpop.xlane.xlu0 %1573
      %v1575 = vsel %vm959, %v1571, -inf
      %1576 = vmax.xlane.f32.xlu0 %v1575
      %v1577 = vpop.xlane.xlu0 %1576
      %v1578 = vsub.f32 %v1570, %v1574
      %v1579 = vsub.f32 %v1571, %v1577
      %v1580 = vmul.f32 %v1578, 1.442695
      %v1581 = vpow.pop %v1580
      %v1582 = vmul.f32 %v1579, 1.442695
      %v1583 = vpow.pop %v1582
      %v1584 = vsel %vm959, %v1581, 0.0
      %1585 = vadd.xlane.f32.xlu0 %v1584
      %v1586 = vpop.xlane.xlu0 %1585
      %v1587 = vsel %vm959, %v1583, 0.0
      %1588 = vadd.xlane.f32.xlu0 %v1587
      %v1589 = vpop.xlane.xlu0 %1588
      %v1590 = vrcp.pop %v1586
      %v1591 = vmul.f32 %v1581, %v1590
      %v1592 = vrcp.pop %v1589
      %v1593 = vmul.f32 %v1583, %v1592
      %1594 = vrot.lane.b32.xlu0 %v852, 40
      %v1595 = vpop.permute.xlu0 %1594
      %1596 = vrot.lane.b32.xlu0 %v855, 40
      %v1597 = vpop.permute.xlu0 %1596
      %v1601 = vsel %vm959, %v1591, 0
      %v1604 = vsel %vm959, %v1593, 0
      %1606 = vmatprep.subr.mxu0 0.0
      %1607 = vmatpush1.msra.mxu0 0.0
      %1608 = vmatprep.subr.mxu0 0.0
      %1609 = vmatpush1.msra.mxu0 0.0
      %1610 = vmatprep.subr.mxu0 0.0
      %1611 = vmatpush1.msra.mxu0 0.0
      %1612 = vmatprep.subr.mxu0 0.0
      %1613 = vmatpush1.msra.mxu0 0.0
      %1614 = vmatprep.subr.mxu0 0.0
      %1615 = vmatpush1.msra.mxu0 0.0
      %1616 = vmatprep.subr.mxu0 0.0
      %1617 = vmatpush1.msra.mxu0 0.0
      %1618 = vmatprep.subr.mxu0 0.0
      %1619 = vmatpush1.msra.mxu0 0.0
      %1620 = vmatprep.subr.mxu0 0.0
      %1621 = vmatpush1.msra.mxu0 0.0
      %1622 = vmatprep.subr.mxu0 0.0
      %1623 = vmatpush1.msra.mxu0 0.0
      %1624 = vmatprep.subr.mxu0 0.0
      %1625 = vmatpush1.msra.mxu0 0.0
      %1626 = vmatprep.subr.mxu0 0.0
      %1627 = vmatpush1.msra.mxu0 0.0
      %1628 = vmatprep.subr.mxu0 0.0
      %1629 = vmatpush1.msra.mxu0 0.0
      %1630 = vmatprep.subr.mxu0 0.0
      %1631 = vmatpush1.msra.mxu0 0.0
      %1632 = vmatprep.subr.mxu0 0.0
      %1633 = vmatpush1.msra.mxu0 0.0
      %1634 = vmatprep.subr.mxu0 0.0
      %1635 = vmatpush1.msra.mxu0 %v1597
      %1636 = vmatprep.subr.mxu0 0.0
      %1637 = vmatpush1.msra.mxu0 %v1595
      %1638 = vmatprep.subr.mxu0 0.0
      %1639 = vmatpush2.msra.mxu0 0.0
      %1640 = vmatprep.subr.mxu0 0.0
      %1641 = vmatpush2.msra.mxu0 0.0
      %1642 = vmatprep.subr.mxu0 0.0
      %1643 = vmatpush2.msra.mxu0 0.0
      %1644 = vmatprep.subr.mxu0 0.0
      %1645 = vmatpush2.msra.mxu0 0.0
      %1646 = vmatprep.subr.mxu0 0.0
      %1647 = vmatpush2.msra.mxu0 0.0
      %1648 = vmatprep.subr.mxu0 0.0
      %1649 = vmatpush2.msra.mxu0 0.0
      %1650 = vmatprep.subr.mxu0 0.0
      %1651 = vmatpush2.msra.mxu0 0.0
      %1652 = vmatprep.subr.mxu0 0.0
      %1653 = vmatpush2.msra.mxu0 0.0
      %1654 = vmatprep.subr.mxu0 0.0
      %1655 = vmatpush2.msra.mxu0 0.0
      %1656 = vmatprep.subr.mxu0 0.0
      %1657 = vmatpush2.msra.mxu0 0.0
      %1658 = vmatprep.subr.mxu0 0.0
      %1659 = vmatpush2.msra.mxu0 0.0
      %1660 = vmatprep.subr.mxu0 0.0
      %1661 = vmatpush2.msra.mxu0 0.0
      %1662 = vmatprep.subr.mxu0 0.0
      %1663 = vmatpush2.msra.mxu0 0.0
      %1664 = vmatprep.subr.mxu0 0.0
      %1665 = vmatpush2.msra.mxu0 0.0
      %1666 = vmatprep.subr.mxu0 0.0
      %1667 = vmatpush2.msra.mxu0 0.0
      %1668 = vmatprep.subr.mxu0 0.0
      %1669 = vmatpush2.msra.mxu0 0.0
      %1670 = vmatprep.mubr.f32.mxu0 0.0
      %1671 = vmatmul.mubr.f32.gmra.mxu0 %v1601
      %v1672 = vpop.f32.mrf.mxu0
      %v1673 = vadd.f32 0.0, %v1672
      %v1674 = vpop.f32.mrf.mxu0
      %1675 = vmatprep.mubr.f32.mxu0 0.0
      %1676 = vmatmul.mubr.f32.gmra.mxu0 %v1604
      %v1677 = vpop.f32.mrf.mxu0
      %v1678 = vadd.f32 0.0, %v1677
      %v1679 = vpop.f32.mrf.mxu0
      %1680 = vdwg.mxu0
      %1683 = vrot.lane.b32.xlu0 %v1265, 8
      %v1684 = vpop.permute.xlu0 %1683
      %1685 = vrot.lane.b32.xlu0 %v1270, 8
      %v1686 = vpop.permute.xlu0 %1685
      %1691 = vrot.lane.b32.xlu0 %v1469, 16
      %v1692 = vpop.permute.xlu0 %1691
      %1693 = vrot.lane.b32.xlu0 %v1474, 16
      %v1694 = vpop.permute.xlu0 %1693
      %1699 = vrot.lane.b32.xlu0 %v1673, 24
      %v1700 = vpop.permute.xlu0 %1699
      %1701 = vrot.lane.b32.xlu0 %v1678, 24
      %v1702 = vpop.permute.xlu0 %1701
      %v1705 = vsel %vm864, %v1061, %v1684
      %v1706 = vsel %vm864, %v1066, %v1686
      %v1707 = vsel %vm959, %v1705, %v1692
      %v1708 = vsel %vm959, %v1706, %v1694
      %vm1709 = vcmask 195584
      %v1710 = vsel %vm1709, %v1707, %v1700
      %v1711 = vsel %vm1709, %v1708, %v1702
      %v1712 = vpack.c.bf16 %v1711, %v1710
      %v1713 = vld [vmem:[%s6] sm:$0xf]
      %v1714 = vld [vmem:[%s6 + $0x4] sm:$0xf]
      %v1715 = vld [vmem:[%s6 + $0x8] sm:$0xf]
      %v1716 = vld [vmem:[%s6 + $0xc] sm:$0xf]
      %v1717 = vld [vmem:[%s7] sm:$0x1]
      %v1719 = vlaneseq
      %v1720 = vshrl.u32 %v1719, 7
      %v1721 = vsub.s32 0, %v1720
      %v1722 = vrot.slane %v1717, %v1721
      %v1728 = vunpack.c.l.b16 %v1713
      %v1729 = vunpack.c.l.b16 %v1714
      %v1730 = vunpack.c.l.b16 %v1715
      %v1731 = vunpack.c.l.b16 %v1716
      %v1732 = vpack.c.b16 %v1729, %v1728
      %v1733 = vpack.c.b16 %v1731, %v1730
      %v1737 = vsel %vm813, %v1712, 0
      %1739 = vmatprep.subr.bf16.mxu0 0
      %1740 = vmatpush1.bf16.msra.mxu0 0
      %1741 = vmatprep.subr.bf16.mxu0 0
      %1742 = vmatpush1.bf16.msra.mxu0 0
      %1743 = vmatprep.subr.bf16.mxu0 0
      %1744 = vmatpush1.bf16.msra.mxu0 0
      %1745 = vmatprep.subr.bf16.mxu0 0
      %1746 = vmatpush1.bf16.msra.mxu0 0
      %1747 = vmatprep.subr.bf16.mxu0 0
      %1748 = vmatpush1.bf16.msra.mxu0 0
      %1749 = vmatprep.subr.bf16.mxu0 0
      %1750 = vmatpush1.bf16.msra.mxu0 0
      %1751 = vmatprep.subr.bf16.mxu0 0
      %1752 = vmatpush1.bf16.msra.mxu0 %v1733
      %1753 = vmatprep.subr.bf16.mxu0 0
      %1754 = vmatpush1.bf16.msra.mxu0 %v1732
      %1755 = vmatprep.subr.bf16.mxu0 0
      %1756 = vmatpush2.bf16.msra.mxu0 0
      %1757 = vmatprep.subr.bf16.mxu0 0
      %1758 = vmatpush2.bf16.msra.mxu0 0
      %1759 = vmatprep.subr.bf16.mxu0 0
      %1760 = vmatpush2.bf16.msra.mxu0 0
      %1761 = vmatprep.subr.bf16.mxu0 0
      %1762 = vmatpush2.bf16.msra.mxu0 0
      %1763 = vmatprep.subr.bf16.mxu0 0
      %1764 = vmatpush2.bf16.msra.mxu0 0
      %1765 = vmatprep.subr.bf16.mxu0 0
      %1766 = vmatpush2.bf16.msra.mxu0 0
      %1767 = vmatprep.subr.bf16.mxu0 0
      %1768 = vmatpush2.bf16.msra.mxu0 0
      %1769 = vmatprep.subr.bf16.mxu0 0
      %1770 = vmatpush2.bf16.msra.mxu0 0
      %1771 = vmatprep.mubr.bf16.mxu0 0
      %1772 = vmatmul.mubr.bf16.gmra.mxu0 %v1737
      %v1773 = vpop.f32.mrf.mxu0
      %v1774 = vadd.f32 %v1722, %v1773
      %v1775 = vpop.f32.mrf.mxu0
      %v1776 = vpop.f32.mrf.mxu0
      %v1777 = vadd.f32 %v1722, %v1776
      %v1778 = vpop.f32.mrf.mxu0
      %1779 = vdwg.mxu0
      %v1780 = vadd.f32 %v784, %v1774
      %v1781 = vadd.f32 %v785, %v1777
      %v1782 = vld [vmem:[%s8] sm:$0x1]
      %v1783 = vld [vmem:[%s9] sm:$0x1]
      %v1784 = vsel %vm813, %v1780, 0.0
      %1785 = vadd.xlane.f32.xlu0 %v1784
      %v1786 = vpop.xlane.xlu0 %1785
      %v1787 = vsel %vm813, %v1781, 0.0
      %1788 = vadd.xlane.f32.xlu0 %v1787
      %v1789 = vpop.xlane.xlu0 %1788
      %v1790 = vrcp.pop 32.0
      %v1791 = vmul.f32 %v1786, %v1790
      %v1792 = vmul.f32 %v1789, %v1790
      %v1793 = vsub.f32 %v1780, %v1791
      %v1794 = vsub.f32 %v1781, %v1792
      %v1795 = vmul.f32 %v1793, %v1793
      %v1796 = vmul.f32 %v1794, %v1794
      %v1797 = vsel %vm813, %v1795, 0.0
      %1798 = vadd.xlane.f32.xlu0 %v1797
      %v1799 = vpop.xlane.xlu0 %1798
      %v1800 = vsel %vm813, %v1796, 0.0
      %1801 = vadd.xlane.f32.xlu0 %v1800
      %v1802 = vpop.xlane.xlu0 %1801
      %v1803 = vrcp.pop 31.0
      %v1804 = vmul.f32 %v1799, %v1803
      %v1805 = vmul.f32 %v1802, %v1803
      %v1807 = vlaneseq
      %v1808 = vshrl.u32 %v1807, 7
      %v1809 = vsub.s32 0, %v1808
      %v1810 = vrot.slane %v1782, %v1809
      %v1812 = vmul.f32 %v1810, %v1793
      %v1813 = vmul.f32 %v1810, %v1794
      %v1814 = vrsqrt.pop %v1804
      %v1815 = vmul.f32 %v1804, %v1814
      %vm1816 = vcmp.eq.f32.partialorder %v1804, inf
      %v1817 = vsel %vm1816, %v1804, %v1815
      %vm1818 = vcmp.eq.f32.partialorder %v1804, 0.0
      %v1819 = vand.u32 %v1804, 2147483648
      %v1820 = vsel %vm1818, %v1819, %v1817
      %v1821 = vrsqrt.pop %v1805
      %v1822 = vmul.f32 %v1805, %v1821
      %vm1823 = vcmp.eq.f32.partialorder %v1805, inf
      %v1824 = vsel %vm1823, %v1805, %v1822
      %vm1825 = vcmp.eq.f32.partialorder %v1805, 0.0
      %v1826 = vand.u32 %v1805, 2147483648
      %v1827 = vsel %vm1825, %v1826, %v1824
      %v1828 = vadd.f32 %v1820, 1e-06
      %v1829 = vadd.f32 %v1827, 1e-06
      %v1830 = vrcp.pop %v1828
      %v1831 = vmul.f32 %v1812, %v1830
      %v1832 = vrcp.pop %v1829
      %v1833 = vmul.f32 %v1813, %v1832
      %v1835 = vlaneseq
      %v1836 = vshrl.u32 %v1835, 7
      %v1837 = vsub.s32 0, %v1836
      %v1838 = vrot.slane %v1783, %v1837
      %v1840 = vadd.f32 %v1831, %v1838
      %v1841 = vadd.f32 %v1833, %v1838
      %v1842 = vpack.c.bf16 %v1841, %v1840
      %v1843 = vld [vmem:[%s10] sm:$0xf]
      %v1844 = vld [vmem:[%s10 + $0x4] sm:$0xf]
      %v1845 = vld [vmem:[%s10 + $0x8] sm:$0xf]
      %v1846 = vld [vmem:[%s10 + $0xc] sm:$0xf]
      %v1847 = vld [vmem:[%s11] sm:$0x1]
      %v1849 = vlaneseq
      %v1850 = vshrl.u32 %v1849, 7
      %v1851 = vsub.s32 0, %v1850
      %v1852 = vrot.slane %v1847, %v1851
      %v1858 = vunpack.c.l.b16 %v1843
      %v1859 = vunpack.c.l.b16 %v1844
      %v1860 = vunpack.c.l.b16 %v1845
      %v1861 = vunpack.c.l.b16 %v1846
      %v1862 = vpack.c.b16 %v1859, %v1858
      %v1863 = vpack.c.b16 %v1861, %v1860
      %v1867 = vsel %vm813, %v1842, 0
      %1869 = vmatprep.subr.bf16.mxu0 0
      %1870 = vmatpush1.bf16.msra.mxu0 0
      %1871 = vmatprep.subr.bf16.mxu0 0
      %1872 = vmatpush1.bf16.msra.mxu0 0
      %1873 = vmatprep.subr.bf16.mxu0 0
      %1874 = vmatpush1.bf16.msra.mxu0 0
      %1875 = vmatprep.subr.bf16.mxu0 0
      %1876 = vmatpush1.bf16.msra.mxu0 0
      %1877 = vmatprep.subr.bf16.mxu0 0
      %1878 = vmatpush1.bf16.msra.mxu0 0
      %1879 = vmatprep.subr.bf16.mxu0 0
      %1880 = vmatpush1.bf16.msra.mxu0 0
      %1881 = vmatprep.subr.bf16.mxu0 0
      %1882 = vmatpush1.bf16.msra.mxu0 %v1863
      %1883 = vmatprep.subr.bf16.mxu0 0
      %1884 = vmatpush1.bf16.msra.mxu0 %v1862
      %1885 = vmatprep.subr.bf16.mxu0 0
      %1886 = vmatpush2.bf16.msra.mxu0 0
      %1887 = vmatprep.subr.bf16.mxu0 0
      %1888 = vmatpush2.bf16.msra.mxu0 0
      %1889 = vmatprep.subr.bf16.mxu0 0
      %1890 = vmatpush2.bf16.msra.mxu0 0
      %1891 = vmatprep.subr.bf16.mxu0 0
      %1892 = vmatpush2.bf16.msra.mxu0 0
      %1893 = vmatprep.subr.bf16.mxu0 0
      %1894 = vmatpush2.bf16.msra.mxu0 0
      %1895 = vmatprep.subr.bf16.mxu0 0
      %1896 = vmatpush2.bf16.msra.mxu0 0
      %1897 = vmatprep.subr.bf16.mxu0 0
      %1898 = vmatpush2.bf16.msra.mxu0 0
      %1899 = vmatprep.subr.bf16.mxu0 0
      %1900 = vmatpush2.bf16.msra.mxu0 0
      %1901 = vmatprep.mubr.bf16.mxu0 0
      %1902 = vmatmul.mubr.bf16.gmra.mxu0 %v1867
      %v1903 = vpop.f32.mrf.mxu0
      %v1904 = vadd.f32 %v1852, %v1903
      %v1905 = vpop.f32.mrf.mxu0
      %v1906 = vpop.f32.mrf.mxu0
      %v1907 = vadd.f32 %v1852, %v1906
      %v1908 = vpop.f32.mrf.mxu0
      %1909 = vdwg.mxu0
      %v1910 = vpack.c.bf16 %v786, %v786
      %v1911 = vld [vmem:[%s12] sm:$0xf]
      %v1912 = vld [vmem:[%s12 + $0x4] sm:$0xf]
      %v1913 = vld [vmem:[%s12 + $0x8] sm:$0xf]
      %v1914 = vld [vmem:[%s12 + $0xc] sm:$0xf]
      %v1915 = vld [vmem:[%s13] sm:$0x1]
      %v1917 = vlaneseq
      %v1918 = vshrl.u32 %v1917, 7
      %v1919 = vsub.s32 0, %v1918
      %v1920 = vrot.slane %v1915, %v1919
      %v1926 = vunpack.c.l.b16 %v1911
      %v1927 = vunpack.c.l.b16 %v1912
      %v1928 = vunpack.c.l.b16 %v1913
      %v1929 = vunpack.c.l.b16 %v1914
      %v1930 = vpack.c.b16 %v1927, %v1926
      %v1931 = vpack.c.b16 %v1929, %v1928
      %v1935 = vsel %vm813, %v1910, 0
      %1937 = vmatprep.subr.bf16.mxu0 0
      %1938 = vmatpush1.bf16.msra.mxu0 0
      %1939 = vmatprep.subr.bf16.mxu0 0
      %1940 = vmatpush1.bf16.msra.mxu0 0
      %1941 = vmatprep.subr.bf16.mxu0 0
      %1942 = vmatpush1.bf16.msra.mxu0 0
      %1943 = vmatprep.subr.bf16.mxu0 0
      %1944 = vmatpush1.bf16.msra.mxu0 0
      %1945 = vmatprep.subr.bf16.mxu0 0
      %1946 = vmatpush1.bf16.msra.mxu0 0
      %1947 = vmatprep.subr.bf16.mxu0 0
      %1948 = vmatpush1.bf16.msra.mxu0 0
      %1949 = vmatprep.subr.bf16.mxu0 0
      %1950 = vmatpush1.bf16.msra.mxu0 %v1931
      %1951 = vmatprep.subr.bf16.mxu0 0
      %1952 = vmatpush1.bf16.msra.mxu0 %v1930
      %1953 = vmatprep.subr.bf16.mxu0 0
      %1954 = vmatpush2.bf16.msra.mxu0 0
      %1955 = vmatprep.subr.bf16.mxu0 0
      %1956 = vmatpush2.bf16.msra.mxu0 0
      %1957 = vmatprep.subr.bf16.mxu0 0
      %1958 = vmatpush2.bf16.msra.mxu0 0
      %1959 = vmatprep.subr.bf16.mxu0 0
      %1960 = vmatpush2.bf16.msra.mxu0 0
      %1961 = vmatprep.subr.bf16.mxu0 0
      %1962 = vmatpush2.bf16.msra.mxu0 0
      %1963 = vmatprep.subr.bf16.mxu0 0
      %1964 = vmatpush2.bf16.msra.mxu0 0
      %1965 = vmatprep.subr.bf16.mxu0 0
      %1966 = vmatpush2.bf16.msra.mxu0 0
      %1967 = vmatprep.subr.bf16.mxu0 0
      %1968 = vmatpush2.bf16.msra.mxu0 0
      %1969 = vmatprep.mubr.bf16.mxu0 0
      %1970 = vmatmul.mubr.bf16.gmra.mxu0 %v1935
      %v1971 = vpop.f32.mrf.mxu0
      %v1972 = vadd.f32 %v1920, %v1971
      %v1973 = vpop.f32.mrf.mxu0
      %v1974 = vpop.f32.mrf.mxu0
      %v1975 = vpop.f32.mrf.mxu0
      %1976 = vdwg.mxu0
      %v1978 = vsel %vm864, %v1904, 0
      %v1981 = vsel %vm864, %v1907, 0
      %v1984 = vsel %vm864, %v1972, 0
      %1986 = vmatprep.subr.mxu0 0.0
      %1987 = vmatpush1.xpose.msra.mxu0 0.0
      %1988 = vmatprep.subr.mxu0 0.0
      %1989 = vmatpush1.xpose.msra.mxu0 0.0
      %1990 = vmatprep.subr.mxu0 0.0
      %1991 = vmatpush1.xpose.msra.mxu0 0.0
      %1992 = vmatprep.subr.mxu0 0.0
      %1993 = vmatpush1.xpose.msra.mxu0 0.0
      %1994 = vmatprep.subr.mxu0 0.0
      %1995 = vmatpush1.xpose.msra.mxu0 0.0
      %1996 = vmatprep.subr.mxu0 0.0
      %1997 = vmatpush1.xpose.msra.mxu0 0.0
      %1998 = vmatprep.subr.mxu0 0.0
      %1999 = vmatpush1.xpose.msra.mxu0 0.0
      %2000 = vmatprep.subr.mxu0 0.0
      %2001 = vmatpush1.xpose.msra.mxu0 0.0
      %2002 = vmatprep.subr.mxu0 0.0
      %2003 = vmatpush1.xpose.msra.mxu0 0.0
      %2004 = vmatprep.subr.mxu0 0.0
      %2005 = vmatpush1.xpose.msra.mxu0 0.0
      %2006 = vmatprep.subr.mxu0 0.0
      %2007 = vmatpush1.xpose.msra.mxu0 0.0
      %2008 = vmatprep.subr.mxu0 0.0
      %2009 = vmatpush1.xpose.msra.mxu0 0.0
      %2010 = vmatprep.subr.mxu0 0.0
      %2011 = vmatpush1.xpose.msra.mxu0 0.0
      %2012 = vmatprep.subr.mxu0 0.0
      %2013 = vmatpush1.xpose.msra.mxu0 0.0
      %2014 = vmatprep.subr.mxu0 0.0
      %2015 = vmatpush1.xpose.msra.mxu0 0.0
      %2016 = vmatprep.subr.mxu0 0.0
      %2017 = vmatpush1.xpose.msra.mxu0 %v1984
      %2018 = vmatprep.subr.mxu0 0.0
      %2019 = vmatpush2.xpose.msra.mxu0 0.0
      %2020 = vmatprep.subr.mxu0 0.0
      %2021 = vmatpush2.xpose.msra.mxu0 0.0
      %2022 = vmatprep.subr.mxu0 0.0
      %2023 = vmatpush2.xpose.msra.mxu0 0.0
      %2024 = vmatprep.subr.mxu0 0.0
      %2025 = vmatpush2.xpose.msra.mxu0 0.0
      %2026 = vmatprep.subr.mxu0 0.0
      %2027 = vmatpush2.xpose.msra.mxu0 0.0
      %2028 = vmatprep.subr.mxu0 0.0
      %2029 = vmatpush2.xpose.msra.mxu0 0.0
      %2030 = vmatprep.subr.mxu0 0.0
      %2031 = vmatpush2.xpose.msra.mxu0 0.0
      %2032 = vmatprep.subr.mxu0 0.0
      %2033 = vmatpush2.xpose.msra.mxu0 0.0
      %2034 = vmatprep.subr.mxu0 0.0
      %2035 = vmatpush2.xpose.msra.mxu0 0.0
      %2036 = vmatprep.subr.mxu0 0.0
      %2037 = vmatpush2.xpose.msra.mxu0 0.0
      %2038 = vmatprep.subr.mxu0 0.0
      %2039 = vmatpush2.xpose.msra.mxu0 0.0
      %2040 = vmatprep.subr.mxu0 0.0
      %2041 = vmatpush2.xpose.msra.mxu0 0.0
      %2042 = vmatprep.subr.mxu0 0.0
      %2043 = vmatpush2.xpose.msra.mxu0 0.0
      %2044 = vmatprep.subr.mxu0 0.0
      %2045 = vmatpush2.xpose.msra.mxu0 0.0
      %2046 = vmatprep.subr.mxu0 0.0
      %2047 = vmatpush2.xpose.msra.mxu0 0.0
      %2048 = vmatprep.subr.mxu0 0.0
      %2049 = vmatpush2.xpose.msra.mxu0 0.0
      %2050 = vmatprep.mubr.f32.mxu0 0.0
      %2051 = vmatmul.mubr.f32.gmra.mxu0 %v1978
      %v2052 = vpop.f32.mrf.mxu0
      %v2053 = vadd.f32 0.0, %v2052
      %v2054 = vpop.f32.mrf.mxu0
      %2055 = vmatprep.mubr.f32.mxu0 0.0
      %2056 = vmatmul.mubr.f32.gmra.mxu0 %v1981
      %v2057 = vpop.f32.mrf.mxu0
      %v2058 = vadd.f32 0.0, %v2057
      %v2059 = vpop.f32.mrf.mxu0
      %2060 = vdwg.mxu0
      %v2061 = vmul.f32 %v2053, 0.35355338
      %v2062 = vmul.f32 %v2058, 0.35355338
      %vm2063 = vcmp.gt.f32.partialorder %v788, 0.5
      %v2064 = vsel %vm2063, 1, 0
      %v2065 = vlaneseq
      %v2066 = vshrl.u32 %v2065, 7
      %v2067 = vsub.s32 0, %v2066
      %v2068 = vrot.slane %v2064, %v2067
      %vm2069 = vcmp.eq.s32.totalorder %v2068, 1
      %v2070 = vsel %vm2069, -1e+09, %v2061
      %v2071 = vsel %vm2069, -1e+09, %v2062
      %v2072 = vsel %vm864, %v2070, -inf
      %2073 = vmax.xlane.f32.xlu0 %v2072
      %v2074 = vpop.xlane.xlu0 %2073
      %v2075 = vsel %vm864, %v2071, -inf
      %2076 = vmax.xlane.f32.xlu0 %v2075
      %v2077 = vpop.xlane.xlu0 %2076
      %v2078 = vsub.f32 %v2070, %v2074
      %v2079 = vsub.f32 %v2071, %v2077
      %v2080 = vmul.f32 %v2078, 1.442695
      %v2081 = vpow.pop %v2080
      %v2082 = vmul.f32 %v2079, 1.442695
      %v2083 = vpow.pop %v2082
      %v2084 = vsel %vm864, %v2081, 0.0
      %2085 = vadd.xlane.f32.xlu0 %v2084
      %v2086 = vpop.xlane.xlu0 %2085
      %v2087 = vsel %vm864, %v2083, 0.0
      %2088 = vadd.xlane.f32.xlu0 %v2087
      %v2089 = vpop.xlane.xlu0 %2088
      %v2090 = vrcp.pop %v2086
      %v2091 = vmul.f32 %v2081, %v2090
      %v2092 = vrcp.pop %v2089
      %v2093 = vmul.f32 %v2083, %v2092
      %2094 = vrot.lane.b32.xlu0 %v1972, 96
      %v2095 = vpop.permute.xlu0 %2094
      %v2098 = vsel %vm864, %v2091, 0
      %v2101 = vsel %vm864, %v2093, 0
      %2103 = vmatprep.subr.mxu0 0.0
      %2104 = vmatpush1.msra.mxu0 0.0
      %2105 = vmatprep.subr.mxu0 0.0
      %2106 = vmatpush1.msra.mxu0 0.0
      %2107 = vmatprep.subr.mxu0 0.0
      %2108 = vmatpush1.msra.mxu0 0.0
      %2109 = vmatprep.subr.mxu0 0.0
      %2110 = vmatpush1.msra.mxu0 0.0
      %2111 = vmatprep.subr.mxu0 0.0
      %2112 = vmatpush1.msra.mxu0 0.0
      %2113 = vmatprep.subr.mxu0 0.0
      %2114 = vmatpush1.msra.mxu0 0.0
      %2115 = vmatprep.subr.mxu0 0.0
      %2116 = vmatpush1.msra.mxu0 0.0
      %2117 = vmatprep.subr.mxu0 0.0
      %2118 = vmatpush1.msra.mxu0 0.0
      %2119 = vmatprep.subr.mxu0 0.0
      %2120 = vmatpush1.msra.mxu0 0.0
      %2121 = vmatprep.subr.mxu0 0.0
      %2122 = vmatpush1.msra.mxu0 0.0
      %2123 = vmatprep.subr.mxu0 0.0
      %2124 = vmatpush1.msra.mxu0 0.0
      %2125 = vmatprep.subr.mxu0 0.0
      %2126 = vmatpush1.msra.mxu0 0.0
      %2127 = vmatprep.subr.mxu0 0.0
      %2128 = vmatpush1.msra.mxu0 0.0
      %2129 = vmatprep.subr.mxu0 0.0
      %2130 = vmatpush1.msra.mxu0 0.0
      %2131 = vmatprep.subr.mxu0 0.0
      %2132 = vmatpush1.msra.mxu0 0.0
      %2133 = vmatprep.subr.mxu0 0.0
      %2134 = vmatpush1.msra.mxu0 %v2095
      %2135 = vmatprep.subr.mxu0 0.0
      %2136 = vmatpush2.msra.mxu0 0.0
      %2137 = vmatprep.subr.mxu0 0.0
      %2138 = vmatpush2.msra.mxu0 0.0
      %2139 = vmatprep.subr.mxu0 0.0
      %2140 = vmatpush2.msra.mxu0 0.0
      %2141 = vmatprep.subr.mxu0 0.0
      %2142 = vmatpush2.msra.mxu0 0.0
      %2143 = vmatprep.subr.mxu0 0.0
      %2144 = vmatpush2.msra.mxu0 0.0
      %2145 = vmatprep.subr.mxu0 0.0
      %2146 = vmatpush2.msra.mxu0 0.0
      %2147 = vmatprep.subr.mxu0 0.0
      %2148 = vmatpush2.msra.mxu0 0.0
      %2149 = vmatprep.subr.mxu0 0.0
      %2150 = vmatpush2.msra.mxu0 0.0
      %2151 = vmatprep.subr.mxu0 0.0
      %2152 = vmatpush2.msra.mxu0 0.0
      %2153 = vmatprep.subr.mxu0 0.0
      %2154 = vmatpush2.msra.mxu0 0.0
      %2155 = vmatprep.subr.mxu0 0.0
      %2156 = vmatpush2.msra.mxu0 0.0
      %2157 = vmatprep.subr.mxu0 0.0
      %2158 = vmatpush2.msra.mxu0 0.0
      %2159 = vmatprep.subr.mxu0 0.0
      %2160 = vmatpush2.msra.mxu0 0.0
      %2161 = vmatprep.subr.mxu0 0.0
      %2162 = vmatpush2.msra.mxu0 0.0
      %2163 = vmatprep.subr.mxu0 0.0
      %2164 = vmatpush2.msra.mxu0 0.0
      %2165 = vmatprep.subr.mxu0 0.0
      %2166 = vmatpush2.msra.mxu0 0.0
      %2167 = vmatprep.mubr.f32.mxu0 0.0
      %2168 = vmatmul.mubr.f32.gmra.mxu0 %v2098
      %v2169 = vpop.f32.mrf.mxu0
      %v2170 = vadd.f32 0.0, %v2169
      %v2171 = vpop.f32.mrf.mxu0
      %2172 = vmatprep.mubr.f32.mxu0 0.0
      %2173 = vmatmul.mubr.f32.gmra.mxu0 %v2101
      %v2174 = vpop.f32.mrf.mxu0
      %v2175 = vadd.f32 0.0, %v2174
      %v2176 = vpop.f32.mrf.mxu0
      %2177 = vdwg.mxu0
      %2178 = vrot.lane.b32.xlu0 %v1904, 120
      %v2179 = vpop.permute.xlu0 %2178
      %2180 = vrot.lane.b32.xlu0 %v1907, 120
      %v2181 = vpop.permute.xlu0 %2180
      %2182 = vrot.lane.b32.xlu0 %v1972, 120
      %v2183 = vpop.permute.xlu0 %2182
      %v2184 = vsel %vm864, %v2179, 0
      %v2186 = vsel %vm864, %v2181, 0
      %v2188 = vsel %vm864, %v2183, 0
      %2190 = vmatprep.subr.mxu0 0.0
      %2191 = vmatpush1.xpose.msra.mxu0 0.0
      %2192 = vmatprep.subr.mxu0 0.0
      %2193 = vmatpush1.xpose.msra.mxu0 0.0
      %2194 = vmatprep.subr.mxu0 0.0
      %2195 = vmatpush1.xpose.msra.mxu0 0.0
      %2196 = vmatprep.subr.mxu0 0.0
      %2197 = vmatpush1.xpose.msra.mxu0 0.0
      %2198 = vmatprep.subr.mxu0 0.0
      %2199 = vmatpush1.xpose.msra.mxu0 0.0
      %2200 = vmatprep.subr.mxu0 0.0
      %2201 = vmatpush1.xpose.msra.mxu0 0.0
      %2202 = vmatprep.subr.mxu0 0.0
      %2203 = vmatpush1.xpose.msra.mxu0 0.0
      %2204 = vmatprep.subr.mxu0 0.0
      %2205 = vmatpush1.xpose.msra.mxu0 0.0
      %2206 = vmatprep.subr.mxu0 0.0
      %2207 = vmatpush1.xpose.msra.mxu0 0.0
      %2208 = vmatprep.subr.mxu0 0.0
      %2209 = vmatpush1.xpose.msra.mxu0 0.0
      %2210 = vmatprep.subr.mxu0 0.0
      %2211 = vmatpush1.xpose.msra.mxu0 0.0
      %2212 = vmatprep.subr.mxu0 0.0
      %2213 = vmatpush1.xpose.msra.mxu0 0.0
      %2214 = vmatprep.subr.mxu0 0.0
      %2215 = vmatpush1.xpose.msra.mxu0 0.0
      %2216 = vmatprep.subr.mxu0 0.0
      %2217 = vmatpush1.xpose.msra.mxu0 0.0
      %2218 = vmatprep.subr.mxu0 0.0
      %2219 = vmatpush1.xpose.msra.mxu0 0.0
      %2220 = vmatprep.subr.mxu0 0.0
      %2221 = vmatpush1.xpose.msra.mxu0 %v2188
      %2222 = vmatprep.subr.mxu0 0.0
      %2223 = vmatpush2.xpose.msra.mxu0 0.0
      %2224 = vmatprep.subr.mxu0 0.0
      %2225 = vmatpush2.xpose.msra.mxu0 0.0
      %2226 = vmatprep.subr.mxu0 0.0
      %2227 = vmatpush2.xpose.msra.mxu0 0.0
      %2228 = vmatprep.subr.mxu0 0.0
      %2229 = vmatpush2.xpose.msra.mxu0 0.0
      %2230 = vmatprep.subr.mxu0 0.0
      %2231 = vmatpush2.xpose.msra.mxu0 0.0
      %2232 = vmatprep.subr.mxu0 0.0
      %2233 = vmatpush2.xpose.msra.mxu0 0.0
      %2234 = vmatprep.subr.mxu0 0.0
      %2235 = vmatpush2.xpose.msra.mxu0 0.0
      %2236 = vmatprep.subr.mxu0 0.0
      %2237 = vmatpush2.xpose.msra.mxu0 0.0
      %2238 = vmatprep.subr.mxu0 0.0
      %2239 = vmatpush2.xpose.msra.mxu0 0.0
      %2240 = vmatprep.subr.mxu0 0.0
      %2241 = vmatpush2.xpose.msra.mxu0 0.0
      %2242 = vmatprep.subr.mxu0 0.0
      %2243 = vmatpush2.xpose.msra.mxu0 0.0
      %2244 = vmatprep.subr.mxu0 0.0
      %2245 = vmatpush2.xpose.msra.mxu0 0.0
      %2246 = vmatprep.subr.mxu0 0.0
      %2247 = vmatpush2.xpose.msra.mxu0 0.0
      %2248 = vmatprep.subr.mxu0 0.0
      %2249 = vmatpush2.xpose.msra.mxu0 0.0
      %2250 = vmatprep.subr.mxu0 0.0
      %2251 = vmatpush2.xpose.msra.mxu0 0.0
      %2252 = vmatprep.subr.mxu0 0.0
      %2253 = vmatpush2.xpose.msra.mxu0 0.0
      %2254 = vmatprep.mubr.f32.mxu0 0.0
      %2255 = vmatmul.mubr.f32.gmra.mxu0 %v2184
      %v2256 = vpop.f32.mrf.mxu0
      %v2257 = vadd.f32 0.0, %v2256
      %v2258 = vpop.f32.mrf.mxu0
      %2259 = vmatprep.mubr.f32.mxu0 0.0
      %2260 = vmatmul.mubr.f32.gmra.mxu0 %v2186
      %v2261 = vpop.f32.mrf.mxu0
      %v2262 = vadd.f32 0.0, %v2261
      %v2263 = vpop.f32.mrf.mxu0
      %2264 = vdwg.mxu0
      %v2265 = vmul.f32 %v2257, 0.35355338
      %v2266 = vmul.f32 %v2262, 0.35355338
      %v2267 = vsel %vm2069, -1e+09, %v2265
      %v2268 = vsel %vm2069, -1e+09, %v2266
      %v2269 = vsel %vm864, %v2267, -inf
      %2270 = vmax.xlane.f32.xlu0 %v2269
      %v2271 = vpop.xlane.xlu0 %2270
      %v2272 = vsel %vm864, %v2268, -inf
      %2273 = vmax.xlane.f32.xlu0 %v2272
      %v2274 = vpop.xlane.xlu0 %2273
      %v2275 = vsub.f32 %v2267, %v2271
      %v2276 = vsub.f32 %v2268, %v2274
      %v2277 = vmul.f32 %v2275, 1.442695
      %v2278 = vpow.pop %v2277
      %v2279 = vmul.f32 %v2276, 1.442695
      %v2280 = vpow.pop %v2279
      %v2281 = vsel %vm864, %v2278, 0.0
      %2282 = vadd.xlane.f32.xlu0 %v2281
      %v2283 = vpop.xlane.xlu0 %2282
      %v2284 = vsel %vm864, %v2280, 0.0
      %2285 = vadd.xlane.f32.xlu0 %v2284
      %v2286 = vpop.xlane.xlu0 %2285
      %v2287 = vrcp.pop %v2283
      %v2288 = vmul.f32 %v2278, %v2287
      %v2289 = vrcp.pop %v2286
      %v2290 = vmul.f32 %v2280, %v2289
      %2291 = vrot.lane.b32.xlu0 %v1972, 88
      %v2292 = vpop.permute.xlu0 %2291
      %v2295 = vsel %vm864, %v2288, 0
      %v2298 = vsel %vm864, %v2290, 0
      %2300 = vmatprep.subr.mxu0 0.0
      %2301 = vmatpush1.msra.mxu0 0.0
      %2302 = vmatprep.subr.mxu0 0.0
      %2303 = vmatpush1.msra.mxu0 0.0
      %2304 = vmatprep.subr.mxu0 0.0
      %2305 = vmatpush1.msra.mxu0 0.0
      %2306 = vmatprep.subr.mxu0 0.0
      %2307 = vmatpush1.msra.mxu0 0.0
      %2308 = vmatprep.subr.mxu0 0.0
      %2309 = vmatpush1.msra.mxu0 0.0
      %2310 = vmatprep.subr.mxu0 0.0
      %2311 = vmatpush1.msra.mxu0 0.0
      %2312 = vmatprep.subr.mxu0 0.0
      %2313 = vmatpush1.msra.mxu0 0.0
      %2314 = vmatprep.subr.mxu0 0.0
      %2315 = vmatpush1.msra.mxu0 0.0
      %2316 = vmatprep.subr.mxu0 0.0
      %2317 = vmatpush1.msra.mxu0 0.0
      %2318 = vmatprep.subr.mxu0 0.0
      %2319 = vmatpush1.msra.mxu0 0.0
      %2320 = vmatprep.subr.mxu0 0.0
      %2321 = vmatpush1.msra.mxu0 0.0
      %2322 = vmatprep.subr.mxu0 0.0
      %2323 = vmatpush1.msra.mxu0 0.0
      %2324 = vmatprep.subr.mxu0 0.0
      %2325 = vmatpush1.msra.mxu0 0.0
      %2326 = vmatprep.subr.mxu0 0.0
      %2327 = vmatpush1.msra.mxu0 0.0
      %2328 = vmatprep.subr.mxu0 0.0
      %2329 = vmatpush1.msra.mxu0 0.0
      %2330 = vmatprep.subr.mxu0 0.0
      %2331 = vmatpush1.msra.mxu0 %v2292
      %2332 = vmatprep.subr.mxu0 0.0
      %2333 = vmatpush2.msra.mxu0 0.0
      %2334 = vmatprep.subr.mxu0 0.0
      %2335 = vmatpush2.msra.mxu0 0.0
      %2336 = vmatprep.subr.mxu0 0.0
      %2337 = vmatpush2.msra.mxu0 0.0
      %2338 = vmatprep.subr.mxu0 0.0
      %2339 = vmatpush2.msra.mxu0 0.0
      %2340 = vmatprep.subr.mxu0 0.0
      %2341 = vmatpush2.msra.mxu0 0.0
      %2342 = vmatprep.subr.mxu0 0.0
      %2343 = vmatpush2.msra.mxu0 0.0
      %2344 = vmatprep.subr.mxu0 0.0
      %2345 = vmatpush2.msra.mxu0 0.0
      %2346 = vmatprep.subr.mxu0 0.0
      %2347 = vmatpush2.msra.mxu0 0.0
      %2348 = vmatprep.subr.mxu0 0.0
      %2349 = vmatpush2.msra.mxu0 0.0
      %2350 = vmatprep.subr.mxu0 0.0
      %2351 = vmatpush2.msra.mxu0 0.0
      %2352 = vmatprep.subr.mxu0 0.0
      %2353 = vmatpush2.msra.mxu0 0.0
      %2354 = vmatprep.subr.mxu0 0.0
      %2355 = vmatpush2.msra.mxu0 0.0
      %2356 = vmatprep.subr.mxu0 0.0
      %2357 = vmatpush2.msra.mxu0 0.0
      %2358 = vmatprep.subr.mxu0 0.0
      %2359 = vmatpush2.msra.mxu0 0.0
      %2360 = vmatprep.subr.mxu0 0.0
      %2361 = vmatpush2.msra.mxu0 0.0
      %2362 = vmatprep.subr.mxu0 0.0
      %2363 = vmatpush2.msra.mxu0 0.0
      %2364 = vmatprep.mubr.f32.mxu0 0.0
      %2365 = vmatmul.mubr.f32.gmra.mxu0 %v2295
      %v2366 = vpop.f32.mrf.mxu0
      %v2367 = vadd.f32 0.0, %v2366
      %v2368 = vpop.f32.mrf.mxu0
      %2369 = vmatprep.mubr.f32.mxu0 0.0
      %2370 = vmatmul.mubr.f32.gmra.mxu0 %v2298
      %v2371 = vpop.f32.mrf.mxu0
      %v2372 = vadd.f32 0.0, %v2371
      %v2373 = vpop.f32.mrf.mxu0
      %2374 = vdwg.mxu0
      %2375 = vrot.lane.b32.xlu0 %v1904, 112
      %v2376 = vpop.permute.xlu0 %2375
      %2377 = vrot.lane.b32.xlu0 %v1907, 112
      %v2378 = vpop.permute.xlu0 %2377
      %2379 = vrot.lane.b32.xlu0 %v1972, 112
      %v2380 = vpop.permute.xlu0 %2379
      %v2381 = vsel %vm864, %v2376, 0
      %v2383 = vsel %vm864, %v2378, 0
      %v2385 = vsel %vm864, %v2380, 0
      %2387 = vmatprep.subr.mxu0 0.0
      %2388 = vmatpush1.xpose.msra.mxu0 0.0
      %2389 = vmatprep.subr.mxu0 0.0
      %2390 = vmatpush1.xpose.msra.mxu0 0.0
      %2391 = vmatprep.subr.mxu0 0.0
      %2392 = vmatpush1.xpose.msra.mxu0 0.0
      %2393 = vmatprep.subr.mxu0 0.0
      %2394 = vmatpush1.xpose.msra.mxu0 0.0
      %2395 = vmatprep.subr.mxu0 0.0
      %2396 = vmatpush1.xpose.msra.mxu0 0.0
      %2397 = vmatprep.subr.mxu0 0.0
      %2398 = vmatpush1.xpose.msra.mxu0 0.0
      %2399 = vmatprep.subr.mxu0 0.0
      %2400 = vmatpush1.xpose.msra.mxu0 0.0
      %2401 = vmatprep.subr.mxu0 0.0
      %2402 = vmatpush1.xpose.msra.mxu0 0.0
      %2403 = vmatprep.subr.mxu0 0.0
      %2404 = vmatpush1.xpose.msra.mxu0 0.0
      %2405 = vmatprep.subr.mxu0 0.0
      %2406 = vmatpush1.xpose.msra.mxu0 0.0
      %2407 = vmatprep.subr.mxu0 0.0
      %2408 = vmatpush1.xpose.msra.mxu0 0.0
      %2409 = vmatprep.subr.mxu0 0.0
      %2410 = vmatpush1.xpose.msra.mxu0 0.0
      %2411 = vmatprep.subr.mxu0 0.0
      %2412 = vmatpush1.xpose.msra.mxu0 0.0
      %2413 = vmatprep.subr.mxu0 0.0
      %2414 = vmatpush1.xpose.msra.mxu0 0.0
      %2415 = vmatprep.subr.mxu0 0.0
      %2416 = vmatpush1.xpose.msra.mxu0 0.0
      %2417 = vmatprep.subr.mxu0 0.0
      %2418 = vmatpush1.xpose.msra.mxu0 %v2385
      %2419 = vmatprep.subr.mxu0 0.0
      %2420 = vmatpush2.xpose.msra.mxu0 0.0
      %2421 = vmatprep.subr.mxu0 0.0
      %2422 = vmatpush2.xpose.msra.mxu0 0.0
      %2423 = vmatprep.subr.mxu0 0.0
      %2424 = vmatpush2.xpose.msra.mxu0 0.0
      %2425 = vmatprep.subr.mxu0 0.0
      %2426 = vmatpush2.xpose.msra.mxu0 0.0
      %2427 = vmatprep.subr.mxu0 0.0
      %2428 = vmatpush2.xpose.msra.mxu0 0.0
      %2429 = vmatprep.subr.mxu0 0.0
      %2430 = vmatpush2.xpose.msra.mxu0 0.0
      %2431 = vmatprep.subr.mxu0 0.0
      %2432 = vmatpush2.xpose.msra.mxu0 0.0
      %2433 = vmatprep.subr.mxu0 0.0
      %2434 = vmatpush2.xpose.msra.mxu0 0.0
      %2435 = vmatprep.subr.mxu0 0.0
      %2436 = vmatpush2.xpose.msra.mxu0 0.0
      %2437 = vmatprep.subr.mxu0 0.0
      %2438 = vmatpush2.xpose.msra.mxu0 0.0
      %2439 = vmatprep.subr.mxu0 0.0
      %2440 = vmatpush2.xpose.msra.mxu0 0.0
      %2441 = vmatprep.subr.mxu0 0.0
      %2442 = vmatpush2.xpose.msra.mxu0 0.0
      %2443 = vmatprep.subr.mxu0 0.0
      %2444 = vmatpush2.xpose.msra.mxu0 0.0
      %2445 = vmatprep.subr.mxu0 0.0
      %2446 = vmatpush2.xpose.msra.mxu0 0.0
      %2447 = vmatprep.subr.mxu0 0.0
      %2448 = vmatpush2.xpose.msra.mxu0 0.0
      %2449 = vmatprep.subr.mxu0 0.0
      %2450 = vmatpush2.xpose.msra.mxu0 0.0
      %2451 = vmatprep.mubr.f32.mxu0 0.0
      %2452 = vmatmul.mubr.f32.gmra.mxu0 %v2381
      %v2453 = vpop.f32.mrf.mxu0
      %v2454 = vadd.f32 0.0, %v2453
      %v2455 = vpop.f32.mrf.mxu0
      %2456 = vmatprep.mubr.f32.mxu0 0.0
      %2457 = vmatmul.mubr.f32.gmra.mxu0 %v2383
      %v2458 = vpop.f32.mrf.mxu0
      %v2459 = vadd.f32 0.0, %v2458
      %v2460 = vpop.f32.mrf.mxu0
      %2461 = vdwg.mxu0
      %v2462 = vmul.f32 %v2454, 0.35355338
      %v2463 = vmul.f32 %v2459, 0.35355338
      %v2464 = vsel %vm2069, -1e+09, %v2462
      %v2465 = vsel %vm2069, -1e+09, %v2463
      %v2466 = vsel %vm864, %v2464, -inf
      %2467 = vmax.xlane.f32.xlu0 %v2466
      %v2468 = vpop.xlane.xlu0 %2467
      %v2469 = vsel %vm864, %v2465, -inf
      %2470 = vmax.xlane.f32.xlu0 %v2469
      %v2471 = vpop.xlane.xlu0 %2470
      %v2472 = vsub.f32 %v2464, %v2468
      %v2473 = vsub.f32 %v2465, %v2471
      %v2474 = vmul.f32 %v2472, 1.442695
      %v2475 = vpow.pop %v2474
      %v2476 = vmul.f32 %v2473, 1.442695
      %v2477 = vpow.pop %v2476
      %v2478 = vsel %vm864, %v2475, 0.0
      %2479 = vadd.xlane.f32.xlu0 %v2478
      %v2480 = vpop.xlane.xlu0 %2479
      %v2481 = vsel %vm864, %v2477, 0.0
      %2482 = vadd.xlane.f32.xlu0 %v2481
      %v2483 = vpop.xlane.xlu0 %2482
      %v2484 = vrcp.pop %v2480
      %v2485 = vmul.f32 %v2475, %v2484
      %v2486 = vrcp.pop %v2483
      %v2487 = vmul.f32 %v2477, %v2486
      %2488 = vrot.lane.b32.xlu0 %v1972, 80
      %v2489 = vpop.permute.xlu0 %2488
      %v2492 = vsel %vm864, %v2485, 0
      %v2495 = vsel %vm864, %v2487, 0
      %2497 = vmatprep.subr.mxu0 0.0
      %2498 = vmatpush1.msra.mxu0 0.0
      %2499 = vmatprep.subr.mxu0 0.0
      %2500 = vmatpush1.msra.mxu0 0.0
      %2501 = vmatprep.subr.mxu0 0.0
      %2502 = vmatpush1.msra.mxu0 0.0
      %2503 = vmatprep.subr.mxu0 0.0
      %2504 = vmatpush1.msra.mxu0 0.0
      %2505 = vmatprep.subr.mxu0 0.0
      %2506 = vmatpush1.msra.mxu0 0.0
      %2507 = vmatprep.subr.mxu0 0.0
      %2508 = vmatpush1.msra.mxu0 0.0
      %2509 = vmatprep.subr.mxu0 0.0
      %2510 = vmatpush1.msra.mxu0 0.0
      %2511 = vmatprep.subr.mxu0 0.0
      %2512 = vmatpush1.msra.mxu0 0.0
      %2513 = vmatprep.subr.mxu0 0.0
      %2514 = vmatpush1.msra.mxu0 0.0
      %2515 = vmatprep.subr.mxu0 0.0
      %2516 = vmatpush1.msra.mxu0 0.0
      %2517 = vmatprep.subr.mxu0 0.0
      %2518 = vmatpush1.msra.mxu0 0.0
      %2519 = vmatprep.subr.mxu0 0.0
      %2520 = vmatpush1.msra.mxu0 0.0
      %2521 = vmatprep.subr.mxu0 0.0
      %2522 = vmatpush1.msra.mxu0 0.0
      %2523 = vmatprep.subr.mxu0 0.0
      %2524 = vmatpush1.msra.mxu0 0.0
      %2525 = vmatprep.subr.mxu0 0.0
      %2526 = vmatpush1.msra.mxu0 0.0
      %2527 = vmatprep.subr.mxu0 0.0
      %2528 = vmatpush1.msra.mxu0 %v2489
      %2529 = vmatprep.subr.mxu0 0.0
      %2530 = vmatpush2.msra.mxu0 0.0
      %2531 = vmatprep.subr.mxu0 0.0
      %2532 = vmatpush2.msra.mxu0 0.0
      %2533 = vmatprep.subr.mxu0 0.0
      %2534 = vmatpush2.msra.mxu0 0.0
      %2535 = vmatprep.subr.mxu0 0.0
      %2536 = vmatpush2.msra.mxu0 0.0
      %2537 = vmatprep.subr.mxu0 0.0
      %2538 = vmatpush2.msra.mxu0 0.0
      %2539 = vmatprep.subr.mxu0 0.0
      %2540 = vmatpush2.msra.mxu0 0.0
      %2541 = vmatprep.subr.mxu0 0.0
      %2542 = vmatpush2.msra.mxu0 0.0
      %2543 = vmatprep.subr.mxu0 0.0
      %2544 = vmatpush2.msra.mxu0 0.0
      %2545 = vmatprep.subr.mxu0 0.0
      %2546 = vmatpush2.msra.mxu0 0.0
      %2547 = vmatprep.subr.mxu0 0.0
      %2548 = vmatpush2.msra.mxu0 0.0
      %2549 = vmatprep.subr.mxu0 0.0
      %2550 = vmatpush2.msra.mxu0 0.0
      %2551 = vmatprep.subr.mxu0 0.0
      %2552 = vmatpush2.msra.mxu0 0.0
      %2553 = vmatprep.subr.mxu0 0.0
      %2554 = vmatpush2.msra.mxu0 0.0
      %2555 = vmatprep.subr.mxu0 0.0
      %2556 = vmatpush2.msra.mxu0 0.0
      %2557 = vmatprep.subr.mxu0 0.0
      %2558 = vmatpush2.msra.mxu0 0.0
      %2559 = vmatprep.subr.mxu0 0.0
      %2560 = vmatpush2.msra.mxu0 0.0
      %2561 = vmatprep.mubr.f32.mxu0 0.0
      %2562 = vmatmul.mubr.f32.gmra.mxu0 %v2492
      %v2563 = vpop.f32.mrf.mxu0
      %v2564 = vadd.f32 0.0, %v2563
      %v2565 = vpop.f32.mrf.mxu0
      %2566 = vmatprep.mubr.f32.mxu0 0.0
      %2567 = vmatmul.mubr.f32.gmra.mxu0 %v2495
      %v2568 = vpop.f32.mrf.mxu0
      %v2569 = vadd.f32 0.0, %v2568
      %v2570 = vpop.f32.mrf.mxu0
      %2571 = vdwg.mxu0
      %2572 = vrot.lane.b32.xlu0 %v1904, 104
      %v2573 = vpop.permute.xlu0 %2572
      %2574 = vrot.lane.b32.xlu0 %v1907, 104
      %v2575 = vpop.permute.xlu0 %2574
      %2576 = vrot.lane.b32.xlu0 %v1972, 104
      %v2577 = vpop.permute.xlu0 %2576
      %v2578 = vsel %vm864, %v2573, 0
      %v2580 = vsel %vm864, %v2575, 0
      %v2582 = vsel %vm864, %v2577, 0
      %2584 = vmatprep.subr.mxu0 0.0
      %2585 = vmatpush1.xpose.msra.mxu0 0.0
      %2586 = vmatprep.subr.mxu0 0.0
      %2587 = vmatpush1.xpose.msra.mxu0 0.0
      %2588 = vmatprep.subr.mxu0 0.0
      %2589 = vmatpush1.xpose.msra.mxu0 0.0
      %2590 = vmatprep.subr.mxu0 0.0
      %2591 = vmatpush1.xpose.msra.mxu0 0.0
      %2592 = vmatprep.subr.mxu0 0.0
      %2593 = vmatpush1.xpose.msra.mxu0 0.0
      %2594 = vmatprep.subr.mxu0 0.0
      %2595 = vmatpush1.xpose.msra.mxu0 0.0
      %2596 = vmatprep.subr.mxu0 0.0
      %2597 = vmatpush1.xpose.msra.mxu0 0.0
      %2598 = vmatprep.subr.mxu0 0.0
      %2599 = vmatpush1.xpose.msra.mxu0 0.0
      %2600 = vmatprep.subr.mxu0 0.0
      %2601 = vmatpush1.xpose.msra.mxu0 0.0
      %2602 = vmatprep.subr.mxu0 0.0
      %2603 = vmatpush1.xpose.msra.mxu0 0.0
      %2604 = vmatprep.subr.mxu0 0.0
      %2605 = vmatpush1.xpose.msra.mxu0 0.0
      %2606 = vmatprep.subr.mxu0 0.0
      %2607 = vmatpush1.xpose.msra.mxu0 0.0
      %2608 = vmatprep.subr.mxu0 0.0
      %2609 = vmatpush1.xpose.msra.mxu0 0.0
      %2610 = vmatprep.subr.mxu0 0.0
      %2611 = vmatpush1.xpose.msra.mxu0 0.0
      %2612 = vmatprep.subr.mxu0 0.0
      %2613 = vmatpush1.xpose.msra.mxu0 0.0
      %2614 = vmatprep.subr.mxu0 0.0
      %2615 = vmatpush1.xpose.msra.mxu0 %v2582
      %2616 = vmatprep.subr.mxu0 0.0
      %2617 = vmatpush2.xpose.msra.mxu0 0.0
      %2618 = vmatprep.subr.mxu0 0.0
      %2619 = vmatpush2.xpose.msra.mxu0 0.0
      %2620 = vmatprep.subr.mxu0 0.0
      %2621 = vmatpush2.xpose.msra.mxu0 0.0
      %2622 = vmatprep.subr.mxu0 0.0
      %2623 = vmatpush2.xpose.msra.mxu0 0.0
      %2624 = vmatprep.subr.mxu0 0.0
      %2625 = vmatpush2.xpose.msra.mxu0 0.0
      %2626 = vmatprep.subr.mxu0 0.0
      %2627 = vmatpush2.xpose.msra.mxu0 0.0
      %2628 = vmatprep.subr.mxu0 0.0
      %2629 = vmatpush2.xpose.msra.mxu0 0.0
      %2630 = vmatprep.subr.mxu0 0.0
      %2631 = vmatpush2.xpose.msra.mxu0 0.0
      %2632 = vmatprep.subr.mxu0 0.0
      %2633 = vmatpush2.xpose.msra.mxu0 0.0
      %2634 = vmatprep.subr.mxu0 0.0
      %2635 = vmatpush2.xpose.msra.mxu0 0.0
      %2636 = vmatprep.subr.mxu0 0.0
      %2637 = vmatpush2.xpose.msra.mxu0 0.0
      %2638 = vmatprep.subr.mxu0 0.0
      %2639 = vmatpush2.xpose.msra.mxu0 0.0
      %2640 = vmatprep.subr.mxu0 0.0
      %2641 = vmatpush2.xpose.msra.mxu0 0.0
      %2642 = vmatprep.subr.mxu0 0.0
      %2643 = vmatpush2.xpose.msra.mxu0 0.0
      %2644 = vmatprep.subr.mxu0 0.0
      %2645 = vmatpush2.xpose.msra.mxu0 0.0
      %2646 = vmatprep.subr.mxu0 0.0
      %2647 = vmatpush2.xpose.msra.mxu0 0.0
      %2648 = vmatprep.mubr.f32.mxu0 0.0
      %2649 = vmatmul.mubr.f32.gmra.mxu0 %v2578
      %v2650 = vpop.f32.mrf.mxu0
      %v2651 = vadd.f32 0.0, %v2650
      %v2652 = vpop.f32.mrf.mxu0
      %2653 = vmatprep.mubr.f32.mxu0 0.0
      %2654 = vmatmul.mubr.f32.gmra.mxu0 %v2580
      %v2655 = vpop.f32.mrf.mxu0
      %v2656 = vadd.f32 0.0, %v2655
      %v2657 = vpop.f32.mrf.mxu0
      %2658 = vdwg.mxu0
      %v2659 = vmul.f32 %v2651, 0.35355338
      %v2660 = vmul.f32 %v2656, 0.35355338
      %v2661 = vsel %vm2069, -1e+09, %v2659
      %v2662 = vsel %vm2069, -1e+09, %v2660
      %v2663 = vsel %vm864, %v2661, -inf
      %2664 = vmax.xlane.f32.xlu0 %v2663
      %v2665 = vpop.xlane.xlu0 %2664
      %v2666 = vsel %vm864, %v2662, -inf
      %2667 = vmax.xlane.f32.xlu0 %v2666
      %v2668 = vpop.xlane.xlu0 %2667
      %v2669 = vsub.f32 %v2661, %v2665
      %v2670 = vsub.f32 %v2662, %v2668
      %v2671 = vmul.f32 %v2669, 1.442695
      %v2672 = vpow.pop %v2671
      %v2673 = vmul.f32 %v2670, 1.442695
      %v2674 = vpow.pop %v2673
      %v2675 = vsel %vm864, %v2672, 0.0
      %2676 = vadd.xlane.f32.xlu0 %v2675
      %v2677 = vpop.xlane.xlu0 %2676
      %v2678 = vsel %vm864, %v2674, 0.0
      %2679 = vadd.xlane.f32.xlu0 %v2678
      %v2680 = vpop.xlane.xlu0 %2679
      %v2681 = vrcp.pop %v2677
      %v2682 = vmul.f32 %v2672, %v2681
      %v2683 = vrcp.pop %v2680
      %v2684 = vmul.f32 %v2674, %v2683
      %2685 = vrot.lane.b32.xlu0 %v1972, 72
      %v2686 = vpop.permute.xlu0 %2685
      %v2689 = vsel %vm864, %v2682, 0
      %v2692 = vsel %vm864, %v2684, 0
      %2694 = vmatprep.subr.mxu0 0.0
      %2695 = vmatpush1.msra.mxu0 0.0
      %2696 = vmatprep.subr.mxu0 0.0
      %2697 = vmatpush1.msra.mxu0 0.0
      %2698 = vmatprep.subr.mxu0 0.0
      %2699 = vmatpush1.msra.mxu0 0.0
      %2700 = vmatprep.subr.mxu0 0.0
      %2701 = vmatpush1.msra.mxu0 0.0
      %2702 = vmatprep.subr.mxu0 0.0
      %2703 = vmatpush1.msra.mxu0 0.0
      %2704 = vmatprep.subr.mxu0 0.0
      %2705 = vmatpush1.msra.mxu0 0.0
      %2706 = vmatprep.subr.mxu0 0.0
      %2707 = vmatpush1.msra.mxu0 0.0
      %2708 = vmatprep.subr.mxu0 0.0
      %2709 = vmatpush1.msra.mxu0 0.0
      %2710 = vmatprep.subr.mxu0 0.0
      %2711 = vmatpush1.msra.mxu0 0.0
      %2712 = vmatprep.subr.mxu0 0.0
      %2713 = vmatpush1.msra.mxu0 0.0
      %2714 = vmatprep.subr.mxu0 0.0
      %2715 = vmatpush1.msra.mxu0 0.0
      %2716 = vmatprep.subr.mxu0 0.0
      %2717 = vmatpush1.msra.mxu0 0.0
      %2718 = vmatprep.subr.mxu0 0.0
      %2719 = vmatpush1.msra.mxu0 0.0
      %2720 = vmatprep.subr.mxu0 0.0
      %2721 = vmatpush1.msra.mxu0 0.0
      %2722 = vmatprep.subr.mxu0 0.0
      %2723 = vmatpush1.msra.mxu0 0.0
      %2724 = vmatprep.subr.mxu0 0.0
      %2725 = vmatpush1.msra.mxu0 %v2686
      %2726 = vmatprep.subr.mxu0 0.0
      %2727 = vmatpush2.msra.mxu0 0.0
      %2728 = vmatprep.subr.mxu0 0.0
      %2729 = vmatpush2.msra.mxu0 0.0
      %2730 = vmatprep.subr.mxu0 0.0
      %2731 = vmatpush2.msra.mxu0 0.0
      %2732 = vmatprep.subr.mxu0 0.0
      %2733 = vmatpush2.msra.mxu0 0.0
      %2734 = vmatprep.subr.mxu0 0.0
      %2735 = vmatpush2.msra.mxu0 0.0
      %2736 = vmatprep.subr.mxu0 0.0
      %2737 = vmatpush2.msra.mxu0 0.0
      %2738 = vmatprep.subr.mxu0 0.0
      %2739 = vmatpush2.msra.mxu0 0.0
      %2740 = vmatprep.subr.mxu0 0.0
      %2741 = vmatpush2.msra.mxu0 0.0
      %2742 = vmatprep.subr.mxu0 0.0
      %2743 = vmatpush2.msra.mxu0 0.0
      %2744 = vmatprep.subr.mxu0 0.0
      %2745 = vmatpush2.msra.mxu0 0.0
      %2746 = vmatprep.subr.mxu0 0.0
      %2747 = vmatpush2.msra.mxu0 0.0
      %2748 = vmatprep.subr.mxu0 0.0
      %2749 = vmatpush2.msra.mxu0 0.0
      %2750 = vmatprep.subr.mxu0 0.0
      %2751 = vmatpush2.msra.mxu0 0.0
      %2752 = vmatprep.subr.mxu0 0.0
      %2753 = vmatpush2.msra.mxu0 0.0
      %2754 = vmatprep.subr.mxu0 0.0
      %2755 = vmatpush2.msra.mxu0 0.0
      %2756 = vmatprep.subr.mxu0 0.0
      %2757 = vmatpush2.msra.mxu0 0.0
      %2758 = vmatprep.mubr.f32.mxu0 0.0
      %2759 = vmatmul.mubr.f32.gmra.mxu0 %v2689
      %v2760 = vpop.f32.mrf.mxu0
      %v2761 = vadd.f32 0.0, %v2760
      %v2762 = vpop.f32.mrf.mxu0
      %2763 = vmatprep.mubr.f32.mxu0 0.0
      %2764 = vmatmul.mubr.f32.gmra.mxu0 %v2692
      %v2765 = vpop.f32.mrf.mxu0
      %v2766 = vadd.f32 0.0, %v2765
      %v2767 = vpop.f32.mrf.mxu0
      %2768 = vdwg.mxu0
      %2771 = vrot.lane.b32.xlu0 %v2367, 8
      %v2772 = vpop.permute.xlu0 %2771
      %2773 = vrot.lane.b32.xlu0 %v2372, 8
      %v2774 = vpop.permute.xlu0 %2773
      %2779 = vrot.lane.b32.xlu0 %v2564, 16
      %v2780 = vpop.permute.xlu0 %2779
      %2781 = vrot.lane.b32.xlu0 %v2569, 16
      %v2782 = vpop.permute.xlu0 %2781
      %2787 = vrot.lane.b32.xlu0 %v2761, 24
      %v2788 = vpop.permute.xlu0 %2787
      %2789 = vrot.lane.b32.xlu0 %v2766, 24
      %v2790 = vpop.permute.xlu0 %2789
      %v2793 = vsel %vm864, %v2170, %v2772
      %v2794 = vsel %vm864, %v2175, %v2774
      %v2795 = vsel %vm959, %v2793, %v2780
      %v2796 = vsel %vm959, %v2794, %v2782
      %v2797 = vsel %vm1709, %v2795, %v2788
      %v2798 = vsel %vm1709, %v2796, %v2790
      %v2799 = vpack.c.bf16 %v2798, %v2797
      %v2800 = vld [vmem:[%s14] sm:$0xf]
      %v2801 = vld [vmem:[%s14 + $0x4] sm:$0xf]
      %v2802 = vld [vmem:[%s14 + $0x8] sm:$0xf]
      %v2803 = vld [vmem:[%s14 + $0xc] sm:$0xf]
      %v2804 = vld [vmem:[%s15] sm:$0x1]
      %v2806 = vlaneseq
      %v2807 = vshrl.u32 %v2806, 7
      %v2808 = vsub.s32 0, %v2807
      %v2809 = vrot.slane %v2804, %v2808
      %v2815 = vunpack.c.l.b16 %v2800
      %v2816 = vunpack.c.l.b16 %v2801
      %v2817 = vunpack.c.l.b16 %v2802
      %v2818 = vunpack.c.l.b16 %v2803
      %v2819 = vpack.c.b16 %v2816, %v2815
      %v2820 = vpack.c.b16 %v2818, %v2817
      %v2824 = vsel %vm813, %v2799, 0
      %2826 = vmatprep.subr.bf16.mxu0 0
      %2827 = vmatpush1.bf16.msra.mxu0 0
      %2828 = vmatprep.subr.bf16.mxu0 0
      %2829 = vmatpush1.bf16.msra.mxu0 0
      %2830 = vmatprep.subr.bf16.mxu0 0
      %2831 = vmatpush1.bf16.msra.mxu0 0
      %2832 = vmatprep.subr.bf16.mxu0 0
      %2833 = vmatpush1.bf16.msra.mxu0 0
      %2834 = vmatprep.subr.bf16.mxu0 0
      %2835 = vmatpush1.bf16.msra.mxu0 0
      %2836 = vmatprep.subr.bf16.mxu0 0
      %2837 = vmatpush1.bf16.msra.mxu0 0
      %2838 = vmatprep.subr.bf16.mxu0 0
      %2839 = vmatpush1.bf16.msra.mxu0 %v2820
      %2840 = vmatprep.subr.bf16.mxu0 0
      %2841 = vmatpush1.bf16.msra.mxu0 %v2819
      %2842 = vmatprep.subr.bf16.mxu0 0
      %2843 = vmatpush2.bf16.msra.mxu0 0
      %2844 = vmatprep.subr.bf16.mxu0 0
      %2845 = vmatpush2.bf16.msra.mxu0 0
      %2846 = vmatprep.subr.bf16.mxu0 0
      %2847 = vmatpush2.bf16.msra.mxu0 0
      %2848 = vmatprep.subr.bf16.mxu0 0
      %2849 = vmatpush2.bf16.msra.mxu0 0
      %2850 = vmatprep.subr.bf16.mxu0 0
      %2851 = vmatpush2.bf16.msra.mxu0 0
      %2852 = vmatprep.subr.bf16.mxu0 0
      %2853 = vmatpush2.bf16.msra.mxu0 0
      %2854 = vmatprep.subr.bf16.mxu0 0
      %2855 = vmatpush2.bf16.msra.mxu0 0
      %2856 = vmatprep.subr.bf16.mxu0 0
      %2857 = vmatpush2.bf16.msra.mxu0 0
      %2858 = vmatprep.mubr.bf16.mxu0 0
      %2859 = vmatmul.mubr.bf16.gmra.mxu0 %v2824
      %v2860 = vpop.f32.mrf.mxu0
      %v2861 = vadd.f32 %v2809, %v2860
      %v2862 = vpop.f32.mrf.mxu0
      %v2863 = vpop.f32.mrf.mxu0
      %v2864 = vadd.f32 %v2809, %v2863
      %v2865 = vpop.f32.mrf.mxu0
      %2866 = vdwg.mxu0
      %v2867 = vadd.f32 %v1840, %v2861
      %v2868 = vadd.f32 %v1841, %v2864
      %v2869 = vld [vmem:[%s16] sm:$0x1]
      %v2870 = vld [vmem:[%s17] sm:$0x1]
      %v2871 = vsel %vm813, %v2867, 0.0
      %2872 = vadd.xlane.f32.xlu0 %v2871
      %v2873 = vpop.xlane.xlu0 %2872
      %v2874 = vsel %vm813, %v2868, 0.0
      %2875 = vadd.xlane.f32.xlu0 %v2874
      %v2876 = vpop.xlane.xlu0 %2875
      %v2877 = vmul.f32 %v2873, %v1790
      %v2878 = vmul.f32 %v2876, %v1790
      %v2879 = vsub.f32 %v2867, %v2877
      %v2880 = vsub.f32 %v2868, %v2878
      %v2881 = vmul.f32 %v2879, %v2879
      %v2882 = vmul.f32 %v2880, %v2880
      %v2883 = vsel %vm813, %v2881, 0.0
      %2884 = vadd.xlane.f32.xlu0 %v2883
      %v2885 = vpop.xlane.xlu0 %2884
      %v2886 = vsel %vm813, %v2882, 0.0
      %2887 = vadd.xlane.f32.xlu0 %v2886
      %v2888 = vpop.xlane.xlu0 %2887
      %v2889 = vmul.f32 %v2885, %v1803
      %v2890 = vmul.f32 %v2888, %v1803
      %v2892 = vlaneseq
      %v2893 = vshrl.u32 %v2892, 7
      %v2894 = vsub.s32 0, %v2893
      %v2895 = vrot.slane %v2869, %v2894
      %v2897 = vmul.f32 %v2895, %v2879
      %v2898 = vmul.f32 %v2895, %v2880
      %v2899 = vrsqrt.pop %v2889
      %v2900 = vmul.f32 %v2889, %v2899
      %vm2901 = vcmp.eq.f32.partialorder %v2889, inf
      %v2902 = vsel %vm2901, %v2889, %v2900
      %vm2903 = vcmp.eq.f32.partialorder %v2889, 0.0
      %v2904 = vand.u32 %v2889, 2147483648
      %v2905 = vsel %vm2903, %v2904, %v2902
      %v2906 = vrsqrt.pop %v2890
      %v2907 = vmul.f32 %v2890, %v2906
      %vm2908 = vcmp.eq.f32.partialorder %v2890, inf
      %v2909 = vsel %vm2908, %v2890, %v2907
      %vm2910 = vcmp.eq.f32.partialorder %v2890, 0.0
      %v2911 = vand.u32 %v2890, 2147483648
      %v2912 = vsel %vm2910, %v2911, %v2909
      %v2913 = vadd.f32 %v2905, 1e-06
      %v2914 = vadd.f32 %v2912, 1e-06
      %v2915 = vrcp.pop %v2913
      %v2916 = vmul.f32 %v2897, %v2915
      %v2917 = vrcp.pop %v2914
      %v2918 = vmul.f32 %v2898, %v2917
      %v2920 = vlaneseq
      %v2921 = vshrl.u32 %v2920, 7
      %v2922 = vsub.s32 0, %v2921
      %v2923 = vrot.slane %v2870, %v2922
      %v2925 = vadd.f32 %v2916, %v2923
      %v2926 = vadd.f32 %v2918, %v2923
      %v2927 = vpack.c.bf16 %v2926, %v2925
      %v2928 = vld [vmem:[%s18] sm:$0xf]
      %v2929 = vld [vmem:[%s18 + $0x4] sm:$0xf]
      %v2930 = vld [vmem:[%s18 + $0x8] sm:$0xf]
      %v2931 = vld [vmem:[%s18 + $0xc] sm:$0xf]
      %v2932 = vld [vmem:[%s19] sm:$0x1]
      %v2934 = vlaneseq
      %v2935 = vshrl.u32 %v2934, 7
      %v2936 = vsub.s32 0, %v2935
      %v2937 = vrot.slane %v2932, %v2936
      %v2943 = vunpack.c.l.b16 %v2928
      %v2944 = vunpack.c.l.b16 %v2929
      %v2945 = vunpack.c.l.b16 %v2930
      %v2946 = vunpack.c.l.b16 %v2931
      %v2947 = vpack.c.b16 %v2944, %v2943
      %v2948 = vpack.c.b16 %v2946, %v2945
      %v2952 = vsel %vm813, %v2927, 0
      %2954 = vmatprep.subr.bf16.mxu0 0
      %2955 = vmatpush1.bf16.msra.mxu0 0
      %2956 = vmatprep.subr.bf16.mxu0 0
      %2957 = vmatpush1.bf16.msra.mxu0 0
      %2958 = vmatprep.subr.bf16.mxu0 0
      %2959 = vmatpush1.bf16.msra.mxu0 0
      %2960 = vmatprep.subr.bf16.mxu0 0
      %2961 = vmatpush1.bf16.msra.mxu0 0
      %2962 = vmatprep.subr.bf16.mxu0 0
      %2963 = vmatpush1.bf16.msra.mxu0 0
      %2964 = vmatprep.subr.bf16.mxu0 0
      %2965 = vmatpush1.bf16.msra.mxu0 0
      %2966 = vmatprep.subr.bf16.mxu0 0
      %2967 = vmatpush1.bf16.msra.mxu0 %v2948
      %2968 = vmatprep.subr.bf16.mxu0 0
      %2969 = vmatpush1.bf16.msra.mxu0 %v2947
      %2970 = vmatprep.subr.bf16.mxu0 0
      %2971 = vmatpush2.bf16.msra.mxu0 0
      %2972 = vmatprep.subr.bf16.mxu0 0
      %2973 = vmatpush2.bf16.msra.mxu0 0
      %2974 = vmatprep.subr.bf16.mxu0 0
      %2975 = vmatpush2.bf16.msra.mxu0 0
      %2976 = vmatprep.subr.bf16.mxu0 0
      %2977 = vmatpush2.bf16.msra.mxu0 0
      %2978 = vmatprep.subr.bf16.mxu0 0
      %2979 = vmatpush2.bf16.msra.mxu0 0
      %2980 = vmatprep.subr.bf16.mxu0 0
      %2981 = vmatpush2.bf16.msra.mxu0 0
      %2982 = vmatprep.subr.bf16.mxu0 0
      %2983 = vmatpush2.bf16.msra.mxu0 0
      %2984 = vmatprep.subr.bf16.mxu0 0
      %2985 = vmatpush2.bf16.msra.mxu0 0
      %2986 = vmatprep.mubr.bf16.mxu0 0
      %2987 = vmatmul.mubr.bf16.gmra.mxu0 %v2952
      %v2988 = vpop.f32.mrf.mxu0
      %v2989 = vadd.f32 %v2937, %v2988
      %v2990 = vpop.f32.mrf.mxu0
      %v2991 = vpop.f32.mrf.mxu0
      %v2992 = vadd.f32 %v2937, %v2991
      %v2993 = vpop.f32.mrf.mxu0
      %2994 = vdwg.mxu0
      %v2995 = vmax.f32 %v2989, 0.0
      %v2996 = vmax.f32 %v2992, 0.0
      %v2997 = vpack.c.bf16 %v2996, %v2995
      %v2998 = vld [vmem:[%s20] sm:$0xf]
      %v2999 = vld [vmem:[%s20 + $0x4] sm:$0xf]
      %v3000 = vld [vmem:[%s20 + $0x8] sm:$0xf]
      %v3001 = vld [vmem:[%s20 + $0xc] sm:$0xf]
      %v3002 = vld [vmem:[%s20 + $0x10] sm:$0xf]
      %v3003 = vld [vmem:[%s20 + $0x14] sm:$0xf]
      %v3004 = vld [vmem:[%s20 + $0x18] sm:$0xf]
      %v3005 = vld [vmem:[%s20 + $0x1c] sm:$0xf]
      %v3006 = vld [vmem:[%s21] sm:$0x1]
      %v3008 = vlaneseq
      %v3009 = vshrl.u32 %v3008, 7
      %v3010 = vsub.s32 0, %v3009
      %v3011 = vrot.slane %v3006, %v3010
      %v3021 = vunpack.c.l.b16 %v2998
      %v3022 = vunpack.c.l.b16 %v2999
      %v3023 = vunpack.c.l.b16 %v3000
      %v3024 = vunpack.c.l.b16 %v3001
      %v3025 = vunpack.c.l.b16 %v3002
      %v3026 = vunpack.c.l.b16 %v3003
      %v3027 = vunpack.c.l.b16 %v3004
      %v3028 = vunpack.c.l.b16 %v3005
      %v3029 = vpack.c.b16 %v3022, %v3021
      %v3030 = vpack.c.b16 %v3024, %v3023
      %v3031 = vpack.c.b16 %v3026, %v3025
      %v3032 = vpack.c.b16 %v3028, %v3027
      %vm3037 = vcmask 523264
      %v3039 = vsel %vm3037, %v2997, 0
      %3041 = vmatprep.subr.bf16.mxu0 0
      %3042 = vmatpush1.bf16.msra.mxu0 0
      %3043 = vmatprep.subr.bf16.mxu0 0
      %3044 = vmatpush1.bf16.msra.mxu0 0
      %3045 = vmatprep.subr.bf16.mxu0 0
      %3046 = vmatpush1.bf16.msra.mxu0 0
      %3047 = vmatprep.subr.bf16.mxu0 0
      %3048 = vmatpush1.bf16.msra.mxu0 0
      %3049 = vmatprep.subr.bf16.mxu0 0
      %3050 = vmatpush1.bf16.msra.mxu0 %v3032
      %3051 = vmatprep.subr.bf16.mxu0 0
      %3052 = vmatpush1.bf16.msra.mxu0 %v3031
      %3053 = vmatprep.subr.bf16.mxu0 0
      %3054 = vmatpush1.bf16.msra.mxu0 %v3030
      %3055 = vmatprep.subr.bf16.mxu0 0
      %3056 = vmatpush1.bf16.msra.mxu0 %v3029
      %3057 = vmatprep.subr.bf16.mxu0 0
      %3058 = vmatpush2.bf16.msra.mxu0 0
      %3059 = vmatprep.subr.bf16.mxu0 0
      %3060 = vmatpush2.bf16.msra.mxu0 0
      %3061 = vmatprep.subr.bf16.mxu0 0
      %3062 = vmatpush2.bf16.msra.mxu0 0
      %3063 = vmatprep.subr.bf16.mxu0 0
      %3064 = vmatpush2.bf16.msra.mxu0 0
      %3065 = vmatprep.subr.bf16.mxu0 0
      %3066 = vmatpush2.bf16.msra.mxu0 0
      %3067 = vmatprep.subr.bf16.mxu0 0
      %3068 = vmatpush2.bf16.msra.mxu0 0
      %3069 = vmatprep.subr.bf16.mxu0 0
      %3070 = vmatpush2.bf16.msra.mxu0 0
      %3071 = vmatprep.subr.bf16.mxu0 0
      %3072 = vmatpush2.bf16.msra.mxu0 0
      %3073 = vmatprep.mubr.bf16.mxu0 0
      %3074 = vmatmul.mubr.bf16.gmra.mxu0 %v3039
      %v3075 = vpop.f32.mrf.mxu0
      %v3076 = vadd.f32 %v3011, %v3075
      %v3077 = vpop.f32.mrf.mxu0
      %v3078 = vpop.f32.mrf.mxu0
      %v3079 = vadd.f32 %v3011, %v3078
      %v3080 = vpop.f32.mrf.mxu0
      %3081 = vdwg.mxu0
      %v3082 = vadd.f32 %v2925, %v3076
      %v3083 = vadd.f32 %v2926, %v3079
      %v3084 = vld [vmem:[%s22] sm:$0x1]
      %v3085 = vld [vmem:[%s23] sm:$0x1]
      %v3086 = vsel %vm813, %v3082, 0.0
      %3087 = vadd.xlane.f32.xlu0 %v3086
      %v3088 = vpop.xlane.xlu0 %3087
      %v3089 = vsel %vm813, %v3083, 0.0
      %3090 = vadd.xlane.f32.xlu0 %v3089
      %v3091 = vpop.xlane.xlu0 %3090
      %v3092 = vmul.f32 %v3088, %v1790
      %v3093 = vmul.f32 %v3091, %v1790
      %v3094 = vsub.f32 %v3082, %v3092
      %v3095 = vsub.f32 %v3083, %v3093
      %v3096 = vmul.f32 %v3094, %v3094
      %v3097 = vmul.f32 %v3095, %v3095
      %v3098 = vsel %vm813, %v3096, 0.0
      %3099 = vadd.xlane.f32.xlu0 %v3098
      %v3100 = vpop.xlane.xlu0 %3099
      %v3101 = vsel %vm813, %v3097, 0.0
      %3102 = vadd.xlane.f32.xlu0 %v3101
      %v3103 = vpop.xlane.xlu0 %3102
      %v3104 = vmul.f32 %v3100, %v1803
      %v3105 = vmul.f32 %v3103, %v1803
      %v3107 = vlaneseq
      %v3108 = vshrl.u32 %v3107, 7
      %v3109 = vsub.s32 0, %v3108
      %v3110 = vrot.slane %v3084, %v3109
      %v3112 = vmul.f32 %v3110, %v3094
      %v3113 = vmul.f32 %v3110, %v3095
      %v3114 = vrsqrt.pop %v3104
      %v3115 = vmul.f32 %v3104, %v3114
      %vm3116 = vcmp.eq.f32.partialorder %v3104, inf
      %v3117 = vsel %vm3116, %v3104, %v3115
      %vm3118 = vcmp.eq.f32.partialorder %v3104, 0.0
      %v3119 = vand.u32 %v3104, 2147483648
      %v3120 = vsel %vm3118, %v3119, %v3117
      %v3121 = vrsqrt.pop %v3105
      %v3122 = vmul.f32 %v3105, %v3121
      %vm3123 = vcmp.eq.f32.partialorder %v3105, inf
      %v3124 = vsel %vm3123, %v3105, %v3122
      %vm3125 = vcmp.eq.f32.partialorder %v3105, 0.0
      %v3126 = vand.u32 %v3105, 2147483648
      %v3127 = vsel %vm3125, %v3126, %v3124
      %v3128 = vadd.f32 %v3120, 1e-06
      %v3129 = vadd.f32 %v3127, 1e-06
      %v3130 = vrcp.pop %v3128
      %v3131 = vmul.f32 %v3112, %v3130
      %v3132 = vrcp.pop %v3129
      %v3133 = vmul.f32 %v3113, %v3132
      %v3135 = vlaneseq
      %v3136 = vshrl.u32 %v3135, 7
      %v3137 = vsub.s32 0, %v3136
      %v3138 = vrot.slane %v3085, %v3137
      %v3140 = vadd.f32 %v3131, %v3138
      %v3141 = vadd.f32 %v3133, %v3138
      %3142 = vst.msk [vmem:[%s782] sm:$0xff] %vm813, %v3140
      %3143 = vst.msk [vmem:[%s782 + $0x8] sm:$0xff] %vm813, %v3141
      %p3144 = scmp.lt.s32.totalorder %s35, 1
      %s3145 = scalar_select %p3144, %s35, 1
      %s3146 = smul.addr %s3145, 2
      %s3147 = smul.addr %s3146, 8
      %s3148 = scalar_lea.vmem %s24, %s3147
      // Predicated region
      $region117: #{_lambda_.11} parent=115 // pred_check
        %p3149 = pneg %p577
      $region118: #{_lambda_.11} parent=115 // pred_check_branch
        %3151 = sbr.rel (%p3149) target = $region120
      $region119: #{_lambda_.11} parent=115 // pred_region
        _
      $region120: #{_lambda_.11} parent=115 // pred_fallthru
        _
    $region116: #{_lambda_.11} parent=5 // pred_fallthru
      _
    %p3152 = scmp.le.s32.totalorder 2, %s30
    // Predicated region
    $region121: #{_lambda_.11} parent=5 // pred_check
      %p3153 = pneg %p3152
    $region122: #{_lambda_.11} parent=5 // pred_check_branch
      %3155 = sbr.rel (%p3153) target = $region124
    $region123: #{_lambda_.11} parent=5 // pred_region
      %s3156 = ssub.s32 %s30, 2
      // Predicated region
      $region125: #{_lambda_.11} parent=123 // pred_check
        %p3157 = pneg %p583
      $region126: #{_lambda_.11} parent=123 // pred_check_branch
        %3159 = sbr.rel (%p3157) target = $region128
      $region127: #{_lambda_.11} parent=123 // pred_region
        %p3160 = scmp.lt.s32.totalorder %s36, 1
        %s3161 = scalar_select %p3160, %s36, 1
        %s3162 = smul.addr %s3161, 2
        %s3163 = smul.addr %s3162, 8
        %s3164 = scalar_lea.vmem %s24, %s3163
      $region128: #{_lambda_.11} parent=123 // pred_fallthru
        _
    $region124: #{_lambda_.11} parent=5 // pred_fallthru
      _
  $region6: #{_lambda_.11} parent=0 // loop_footer
    %s34 = sadd.s32 1, %s30
  $region7: #{_lambda_.11} parent=0 // loop_footer_branch
    %29 = sbr.rel target = $region3
  $region8: #{_lambda_.11} parent=0 // loop_exit
    _

// kernel: _lambda_.13
$region0: #{_lambda_.13}
  #allocation0 [shape = 'u32[]', space=smem, size = 0x4, offset = 0x4, fixed_abs, tag = 'smem constant byte address 0x4 - core index']
  #allocation1 [shape = 'u32[144,128]{1,0:T(1,128)}', space=vmem, size = 0x12000, scoped, tag = 'internal scratch']
  #allocation2 [shape = 'f32[1,1]{1,0:T(1,128)S(1)}', space=vmem, size = 0x200, scoped, tag = 'scoped memory for _lambda_.13']
  #allocation3 [shape = 'f32[1,1]{1,0:T(1,128)S(1)}', space=vmem, size = 0x200, scoped, tag = 'scoped memory for _lambda_.13']
  %s0 = inlined_call_operand.vmem [shape: f32[2,8,32], index: 0, kind: input, shape index: {}]
  %s1 = inlined_call_operand.vmem [shape: f32[2,8,1], index: 1, kind: input, shape index: {}]
  %s2 = inlined_call_operand.vmem [shape: f32[2,16,32], index: 2, kind: input, shape index: {}]
  %s3 = inlined_call_operand.vmem [shape: f32[2,16,1], index: 3, kind: input, shape index: {}]
  %s4 = inlined_call_operand.vmem [shape: bf16[32,16], index: 4, kind: input, shape index: {}]
  %s5 = inlined_call_operand.vmem [shape: f32[1,16], index: 5, kind: input, shape index: {}]
  %s6 = inlined_call_operand.vmem [shape: bf16[16,1], index: 6, kind: input, shape index: {}]
  %s7 = inlined_call_operand.<no memory space> [shape: f32[1,1], index: 7, kind: input, shape index: {}]
  %s8 = inlined_call_operand.vmem [shape: bf16[32,64], index: 8, kind: input, shape index: {}]
  %s9 = inlined_call_operand.vmem [shape: f32[1,64], index: 9, kind: input, shape index: {}]
  %s10 = inlined_call_operand.vmem [shape: bf16[32,16], index: 10, kind: input, shape index: {}]
  %s11 = inlined_call_operand.vmem [shape: f32[1,16], index: 11, kind: input, shape index: {}]
  %s12 = inlined_call_operand.vmem [shape: bf16[16,1], index: 12, kind: input, shape index: {}]
  %s13 = inlined_call_operand.<no memory space> [shape: f32[1,1], index: 13, kind: input, shape index: {}]
  %s14 = inlined_call_operand.vmem [shape: bf16[32,64], index: 14, kind: input, shape index: {}]
  %s15 = inlined_call_operand.vmem [shape: f32[1,64], index: 15, kind: input, shape index: {}]
  %s16 = inlined_call_operand.vmem [shape: f32[1,64], index: 16, kind: input, shape index: {}]
  %s17 = inlined_call_operand.vmem [shape: f32[1,64], index: 17, kind: input, shape index: {}]
  %s18 = inlined_call_operand.vmem [shape: bf16[64,10], index: 18, kind: input, shape index: {}]
  %s19 = inlined_call_operand.vmem [shape: f32[1,10], index: 19, kind: input, shape index: {}]
  %s20 = inlined_call_operand.vmem [shape: f32[1,64], index: 20, kind: input, shape index: {}]
  %s21 = inlined_call_operand.vmem [shape: f32[1,64], index: 21, kind: input, shape index: {}]
  %s22 = inlined_call_operand.vmem [shape: bf16[64,10], index: 22, kind: input, shape index: {}]
  %s23 = inlined_call_operand.vmem [shape: f32[1,10], index: 23, kind: input, shape index: {}]
  %s24 = inlined_call_operand.hbm [shape: f32[2,1,10], index: 24, kind: output, shape index: {0}]
  %s25 = inlined_call_operand.hbm [shape: f32[2,1,10], index: 25, kind: output, shape index: {1}]
  %26 = xla_tuple %s24, %s25
  %s27 = sld [smem:[#allocation0]]
  $region137: #{_lambda_.13} parent=0
    _
  %s29 = ssub.s32 1, %s27
  %s30 = scalar_select 0, %s29, %s27
  %v31 = vstv %s7
  %32 = vst [vmem:[#allocation2] sm:$0x1] %v31
  %v33 = vstv %s13
  %34 = vst [vmem:[#allocation3] sm:$0x1] %v33
  $region1: #{_lambda_.13} parent=0
    #allocation4 [shape = 'u8[1024]{0}', space=vmem, size = 0x400, scoped, tag = 'output window, operand 0']
    #allocation5 [shape = 's32[2]{0}', space=sflag, size = 0x8, scoped, tag = 'scoped memory for _lambda_.13']
    #allocation6 [shape = 'u8[1024]{0}', space=vmem, size = 0x400, scoped, tag = 'output window, operand 1']
    #allocation7 [shape = 's32[2]{0}', space=sflag, size = 0x8, scoped, tag = 'scoped memory for _lambda_.13']
    %35 = vsyncpa [#allocation5], 0
    %s36 = scalar_lea.sflag [#allocation5], 1
    %37 = vsyncpa %s36, 0
    %38 = vsyncpa [#allocation7], 0
    %s39 = scalar_lea.sflag [#allocation7], 1
    %40 = vsyncpa %s39, 0
    loop: start=0, step=1, limit=4
    $region2: #{_lambda_.13} parent=1 // loop_pre_header
      _
    $region3: #{_lambda_.13} parent=1 // loop_header
      %s42 = sphi 0, %s46
      %p43 = scmp.ge.s32.totalorder %s42, 4
      %s52 = sphi 0, %s54
      %s55 = sphi 0, %s52
      %s56 = sphi 0, %s55
      %s72 = sphi 0, %s56
      %s78 = sphi 0, %s80
      %s81 = sphi 0, %s78
      %s82 = sphi 0, %s81
      %s98 = sphi 0, %s82
      %s104 = sphi 0, %s106
      %s107 = sphi 0, %s104
      %s108 = sphi 0, %s107
      %s124 = sphi 0, %s108
      %s130 = sphi 0, %s132
      %s133 = sphi 0, %s130
      %s134 = sphi 0, %s133
      %s150 = sphi 0, %s134
      %s154 = sphi 0, %s154
      %s156 = sphi 0, %s154
      %s157 = sphi 0, %s156
      %s171 = sphi 0, %s157
      %s175 = sphi 0, %s175
      %s177 = sphi 0, %s175
      %s178 = sphi 0, %s177
      %s192 = sphi 0, %s178
      %s196 = sphi 0, %s196
      %s198 = sphi 0, %s196
      %s199 = sphi 0, %s198
      %s213 = sphi 0, %s199
      %s217 = sphi 0, %s217
      %s219 = sphi 0, %s217
      %s220 = sphi 0, %s219
      %s234 = sphi 0, %s220
      %s238 = sphi 0, %s238
      %s240 = sphi 0, %s238
      %s241 = sphi 0, %s240
      %s255 = sphi 0, %s241
      %s259 = sphi 0, %s259
      %s261 = sphi 0, %s259
      %s262 = sphi 0, %s261
      %s276 = sphi 0, %s262
      %s280 = sphi 0, %s280
      %s282 = sphi 0, %s280
      %s283 = sphi 0, %s282
      %s297 = sphi 0, %s283
      %s301 = sphi 0, %s301
      %s303 = sphi 0, %s301
      %s304 = sphi 0, %s303
      %s318 = sphi 0, %s304
      %s322 = sphi 0, %s322
      %s324 = sphi 0, %s322
      %s325 = sphi 0, %s324
      %s339 = sphi 0, %s325
      %s343 = sphi 0, %s343
      %s345 = sphi 0, %s343
      %s346 = sphi 0, %s345
      %s360 = sphi 0, %s346
      %s364 = sphi 0, %s364
      %s366 = sphi 0, %s364
      %s367 = sphi 0, %s366
      %s381 = sphi 0, %s367
      %s385 = sphi 0, %s385
      %s387 = sphi 0, %s385
      %s388 = sphi 0, %s387
      %s402 = sphi 0, %s388
      %s406 = sphi 0, %s406
      %s408 = sphi 0, %s406
      %s409 = sphi 0, %s408
      %s423 = sphi 0, %s409
      %s427 = sphi 0, %s427
      %s429 = sphi 0, %s427
      %s430 = sphi 0, %s429
      %s444 = sphi 0, %s430
      %s448 = sphi 0, %s448
      %s450 = sphi 0, %s448
      %s451 = sphi 0, %s450
      %s465 = sphi 0, %s451
      %s469 = sphi 0, %s469
      %s471 = sphi 0, %s469
      %s472 = sphi 0, %s471
      %s486 = sphi 0, %s472
      %s490 = sphi 0, %s490
      %s492 = sphi 0, %s490
      %s493 = sphi 0, %s492
      %s507 = sphi 0, %s493
      %s511 = sphi 0, %s511
      %s513 = sphi 0, %s511
      %s514 = sphi 0, %s513
      %s528 = sphi 0, %s514
      %s532 = sphi 0, %s532
      %s534 = sphi 0, %s532
      %s535 = sphi 0, %s534
      %s549 = sphi 0, %s535
      %s553 = sphi 0, %s553
      %s555 = sphi 0, %s553
      %s556 = sphi 0, %s555
      %s570 = sphi 0, %s556
      %s576 = sphi 0, %s578
      %s579 = sphi 0, %s576
      %s580 = sphi 0, %s579
      %s596 = sphi 0, %s580
      %s602 = sphi 0, %s604
      %s605 = sphi 0, %s602
      %s606 = sphi 0, %s605
      %s622 = sphi 0, %s606
    $region4: #{_lambda_.13} parent=1 // loop_header_branch
      %45 = sbr.rel (%p43) target = $region8
    $region5: #{_lambda_.13} parent=1 // loop_body
      %s47 = ssub.s32 %s42, 1
      %s48 = ssub.s32 %s42, 2
      %s49 = sadd.s32 %s42, 1
      %s50 = ssub.s32 %s42, %s49
      %p51 = scmp.eq.s32.totalorder %s50, 0
      %s53 = sadd.s32 %s52, 1
      %s54 = scalar_select %p51, %s52, %s53
      %p57 = pneg %p51
      %p58 = scmp.eq.s32.totalorder %s42, 1
      %p59 = por %p57, %p58
      %p60 = scmp.ne.s32.totalorder %s52, %s55
      %p61 = scmp.eq.s32.totalorder %s42, 0
      %p62 = por %p60, %p61
      %p63 = scmp.ne.s32.totalorder %s52, %s55
      %p64 = scmp.eq.s32.totalorder %s47, 1
      %p65 = por %p63, %p64
      %p66 = scmp.ne.s32.totalorder %s55, %s56
      %p67 = scmp.eq.s32.totalorder %s47, 0
      %p68 = por %p66, %p67
      %p69 = scmp.ne.s32.totalorder %s55, %s56
      %p70 = scmp.eq.s32.totalorder %s48, 1
      %p71 = por %p69, %p70
      %p73 = scmp.ne.s32.totalorder %s56, %s72
      %p74 = scmp.eq.s32.totalorder %s48, 0
      %p75 = por %p73, %p74
      %s76 = ssub.s32 %s42, %s49
      %p77 = scmp.eq.s32.totalorder %s76, 0
      %s79 = sadd.s32 %s78, 1
      %s80 = scalar_select %p77, %s78, %s79
      %p83 = pneg %p77
      %p84 = scmp.eq.s32.totalorder %s42, 1
      %p85 = por %p83, %p84
      %p86 = scmp.ne.s32.totalorder %s78, %s81
      %p87 = scmp.eq.s32.totalorder %s42, 0
      %p88 = por %p86, %p87
      %p89 = scmp.ne.s32.totalorder %s78, %s81
      %p90 = scmp.eq.s32.totalorder %s47, 1
      %p91 = por %p89, %p90
      %p92 = scmp.ne.s32.totalorder %s81, %s82
      %p93 = scmp.eq.s32.totalorder %s47, 0
      %p94 = por %p92, %p93
      %p95 = scmp.ne.s32.totalorder %s81, %s82
      %p96 = scmp.eq.s32.totalorder %s48, 1
      %p97 = por %p95, %p96
      %p99 = scmp.ne.s32.totalorder %s82, %s98
      %p100 = scmp.eq.s32.totalorder %s48, 0
      %p101 = por %p99, %p100
      %s102 = ssub.s32 %s42, %s49
      %p103 = scmp.eq.s32.totalorder %s102, 0
      %s105 = sadd.s32 %s104, 1
      %s106 = scalar_select %p103, %s104, %s105
      %p109 = pneg %p103
      %p110 = scmp.eq.s32.totalorder %s42, 1
      %p111 = por %p109, %p110
      %p112 = scmp.ne.s32.totalorder %s104, %s107
      %p113 = scmp.eq.s32.totalorder %s42, 0
      %p114 = por %p112, %p113
      %p115 = scmp.ne.s32.totalorder %s104, %s107
      %p116 = scmp.eq.s32.totalorder %s47, 1
      %p117 = por %p115, %p116
      %p118 = scmp.ne.s32.totalorder %s107, %s108
      %p119 = scmp.eq.s32.totalorder %s47, 0
      %p120 = por %p118, %p119
      %p121 = scmp.ne.s32.totalorder %s107, %s108
      %p122 = scmp.eq.s32.totalorder %s48, 1
      %p123 = por %p121, %p122
      %p125 = scmp.ne.s32.totalorder %s108, %s124
      %p126 = scmp.eq.s32.totalorder %s48, 0
      %p127 = por %p125, %p126
      %s128 = ssub.s32 %s42, %s49
      %p129 = scmp.eq.s32.totalorder %s128, 0
      %s131 = sadd.s32 %s130, 1
      %s132 = scalar_select %p129, %s130, %s131
      %p135 = pneg %p129
      %p136 = scmp.eq.s32.totalorder %s42, 1
      %p137 = por %p135, %p136
      %p138 = scmp.ne.s32.totalorder %s130, %s133
      %p139 = scmp.eq.s32.totalorder %s42, 0
      %p140 = por %p138, %p139
      %p141 = scmp.ne.s32.totalorder %s130, %s133
      %p142 = scmp.eq.s32.totalorder %s47, 1
      %p143 = por %p141, %p142
      %p144 = scmp.ne.s32.totalorder %s133, %s134
      %p145 = scmp.eq.s32.totalorder %s47, 0
      %p146 = por %p144, %p145
      %p147 = scmp.ne.s32.totalorder %s133, %s134
      %p148 = scmp.eq.s32.totalorder %s48, 1
      %p149 = por %p147, %p148
      %p151 = scmp.ne.s32.totalorder %s134, %s150
      %p152 = scmp.eq.s32.totalorder %s48, 0
      %p153 = por %p151, %p152
      %s155 = sadd.s32 %s154, 1
      %p158 = scmp.eq.s32.totalorder %s42, 1
      %p159 = scmp.ne.s32.totalorder %s154, %s156
      %p160 = scmp.eq.s32.totalorder %s42, 0
      %p161 = por %p159, %p160
      %p162 = scmp.ne.s32.totalorder %s154, %s156
      %p163 = scmp.eq.s32.totalorder %s47, 1
      %p164 = por %p162, %p163
      %p165 = scmp.ne.s32.totalorder %s156, %s157
      %p166 = scmp.eq.s32.totalorder %s47, 0
      %p167 = por %p165, %p166
      %p168 = scmp.ne.s32.totalorder %s156, %s157
      %p169 = scmp.eq.s32.totalorder %s48, 1
      %p170 = por %p168, %p169
      %p172 = scmp.ne.s32.totalorder %s157, %s171
      %p173 = scmp.eq.s32.totalorder %s48, 0
      %p174 = por %p172, %p173
      %s176 = sadd.s32 %s175, 1
      %p179 = scmp.eq.s32.totalorder %s42, 1
      %p180 = scmp.ne.s32.totalorder %s175, %s177
      %p181 = scmp.eq.s32.totalorder %s42, 0
      %p182 = por %p180, %p181
      %p183 = scmp.ne.s32.totalorder %s175, %s177
      %p184 = scmp.eq.s32.totalorder %s47, 1
      %p185 = por %p183, %p184
      %p186 = scmp.ne.s32.totalorder %s177, %s178
      %p187 = scmp.eq.s32.totalorder %s47, 0
      %p188 = por %p186, %p187
      %p189 = scmp.ne.s32.totalorder %s177, %s178
      %p190 = scmp.eq.s32.totalorder %s48, 1
      %p191 = por %p189, %p190
      %p193 = scmp.ne.s32.totalorder %s178, %s192
      %p194 = scmp.eq.s32.totalorder %s48, 0
      %p195 = por %p193, %p194
      %s197 = sadd.s32 %s196, 1
      %p200 = scmp.eq.s32.totalorder %s42, 1
      %p201 = scmp.ne.s32.totalorder %s196, %s198
      %p202 = scmp.eq.s32.totalorder %s42, 0
      %p203 = por %p201, %p202
      %p204 = scmp.ne.s32.totalorder %s196, %s198
      %p205 = scmp.eq.s32.totalorder %s47, 1
      %p206 = por %p204, %p205
      %p207 = scmp.ne.s32.totalorder %s198, %s199
      %p208 = scmp.eq.s32.totalorder %s47, 0
      %p209 = por %p207, %p208
      %p210 = scmp.ne.s32.totalorder %s198, %s199
      %p211 = scmp.eq.s32.totalorder %s48, 1
      %p212 = por %p210, %p211
      %p214 = scmp.ne.s32.totalorder %s199, %s213
      %p215 = scmp.eq.s32.totalorder %s48, 0
      %p216 = por %p214, %p215
      %s218 = sadd.s32 %s217, 1
      %p221 = scmp.eq.s32.totalorder %s42, 1
      %p222 = scmp.ne.s32.totalorder %s217, %s219
      %p223 = scmp.eq.s32.totalorder %s42, 0
      %p224 = por %p222, %p223
      %p225 = scmp.ne.s32.totalorder %s217, %s219
      %p226 = scmp.eq.s32.totalorder %s47, 1
      %p227 = por %p225, %p226
      %p228 = scmp.ne.s32.totalorder %s219, %s220
      %p229 = scmp.eq.s32.totalorder %s47, 0
      %p230 = por %p228, %p229
      %p231 = scmp.ne.s32.totalorder %s219, %s220
      %p232 = scmp.eq.s32.totalorder %s48, 1
      %p233 = por %p231, %p232
      %p235 = scmp.ne.s32.totalorder %s220, %s234
      %p236 = scmp.eq.s32.totalorder %s48, 0
      %p237 = por %p235, %p236
      %s239 = sadd.s32 %s238, 1
      %p242 = scmp.eq.s32.totalorder %s42, 1
      %p243 = scmp.ne.s32.totalorder %s238, %s240
      %p244 = scmp.eq.s32.totalorder %s42, 0
      %p245 = por %p243, %p244
      %p246 = scmp.ne.s32.totalorder %s238, %s240
      %p247 = scmp.eq.s32.totalorder %s47, 1
      %p248 = por %p246, %p247
      %p249 = scmp.ne.s32.totalorder %s240, %s241
      %p250 = scmp.eq.s32.totalorder %s47, 0
      %p251 = por %p249, %p250
      %p252 = scmp.ne.s32.totalorder %s240, %s241
      %p253 = scmp.eq.s32.totalorder %s48, 1
      %p254 = por %p252, %p253
      %p256 = scmp.ne.s32.totalorder %s241, %s255
      %p257 = scmp.eq.s32.totalorder %s48, 0
      %p258 = por %p256, %p257
      %s260 = sadd.s32 %s259, 1
      %p263 = scmp.eq.s32.totalorder %s42, 1
      %p264 = scmp.ne.s32.totalorder %s259, %s261
      %p265 = scmp.eq.s32.totalorder %s42, 0
      %p266 = por %p264, %p265
      %p267 = scmp.ne.s32.totalorder %s259, %s261
      %p268 = scmp.eq.s32.totalorder %s47, 1
      %p269 = por %p267, %p268
      %p270 = scmp.ne.s32.totalorder %s261, %s262
      %p271 = scmp.eq.s32.totalorder %s47, 0
      %p272 = por %p270, %p271
      %p273 = scmp.ne.s32.totalorder %s261, %s262
      %p274 = scmp.eq.s32.totalorder %s48, 1
      %p275 = por %p273, %p274
      %p277 = scmp.ne.s32.totalorder %s262, %s276
      %p278 = scmp.eq.s32.totalorder %s48, 0
      %p279 = por %p277, %p278
      %s281 = sadd.s32 %s280, 1
      %p284 = scmp.eq.s32.totalorder %s42, 1
      %p285 = scmp.ne.s32.totalorder %s280, %s282
      %p286 = scmp.eq.s32.totalorder %s42, 0
      %p287 = por %p285, %p286
      %p288 = scmp.ne.s32.totalorder %s280, %s282
      %p289 = scmp.eq.s32.totalorder %s47, 1
      %p290 = por %p288, %p289
      %p291 = scmp.ne.s32.totalorder %s282, %s283
      %p292 = scmp.eq.s32.totalorder %s47, 0
      %p293 = por %p291, %p292
      %p294 = scmp.ne.s32.totalorder %s282, %s283
      %p295 = scmp.eq.s32.totalorder %s48, 1
      %p296 = por %p294, %p295
      %p298 = scmp.ne.s32.totalorder %s283, %s297
      %p299 = scmp.eq.s32.totalorder %s48, 0
      %p300 = por %p298, %p299
      %s302 = sadd.s32 %s301, 1
      %p305 = scmp.eq.s32.totalorder %s42, 1
      %p306 = scmp.ne.s32.totalorder %s301, %s303
      %p307 = scmp.eq.s32.totalorder %s42, 0
      %p308 = por %p306, %p307
      %p309 = scmp.ne.s32.totalorder %s301, %s303
      %p310 = scmp.eq.s32.totalorder %s47, 1
      %p311 = por %p309, %p310
      %p312 = scmp.ne.s32.totalorder %s303, %s304
      %p313 = scmp.eq.s32.totalorder %s47, 0
      %p314 = por %p312, %p313
      %p315 = scmp.ne.s32.totalorder %s303, %s304
      %p316 = scmp.eq.s32.totalorder %s48, 1
      %p317 = por %p315, %p316
      %p319 = scmp.ne.s32.totalorder %s304, %s318
      %p320 = scmp.eq.s32.totalorder %s48, 0
      %p321 = por %p319, %p320
      %s323 = sadd.s32 %s322, 1
      %p326 = scmp.eq.s32.totalorder %s42, 1
      %p327 = scmp.ne.s32.totalorder %s322, %s324
      %p328 = scmp.eq.s32.totalorder %s42, 0
      %p329 = por %p327, %p328
      %p330 = scmp.ne.s32.totalorder %s322, %s324
      %p331 = scmp.eq.s32.totalorder %s47, 1
      %p332 = por %p330, %p331
      %p333 = scmp.ne.s32.totalorder %s324, %s325
      %p334 = scmp.eq.s32.totalorder %s47, 0
      %p335 = por %p333, %p334
      %p336 = scmp.ne.s32.totalorder %s324, %s325
      %p337 = scmp.eq.s32.totalorder %s48, 1
      %p338 = por %p336, %p337
      %p340 = scmp.ne.s32.totalorder %s325, %s339
      %p341 = scmp.eq.s32.totalorder %s48, 0
      %p342 = por %p340, %p341
      %s344 = sadd.s32 %s343, 1
      %p347 = scmp.eq.s32.totalorder %s42, 1
      %p348 = scmp.ne.s32.totalorder %s343, %s345
      %p349 = scmp.eq.s32.totalorder %s42, 0
      %p350 = por %p348, %p349
      %p351 = scmp.ne.s32.totalorder %s343, %s345
      %p352 = scmp.eq.s32.totalorder %s47, 1
      %p353 = por %p351, %p352
      %p354 = scmp.ne.s32.totalorder %s345, %s346
      %p355 = scmp.eq.s32.totalorder %s47, 0
      %p356 = por %p354, %p355
      %p357 = scmp.ne.s32.totalorder %s345, %s346
      %p358 = scmp.eq.s32.totalorder %s48, 1
      %p359 = por %p357, %p358
      %p361 = scmp.ne.s32.totalorder %s346, %s360
      %p362 = scmp.eq.s32.totalorder %s48, 0
      %p363 = por %p361, %p362
      %s365 = sadd.s32 %s364, 1
      %p368 = scmp.eq.s32.totalorder %s42, 1
      %p369 = scmp.ne.s32.totalorder %s364, %s366
      %p370 = scmp.eq.s32.totalorder %s42, 0
      %p371 = por %p369, %p370
      %p372 = scmp.ne.s32.totalorder %s364, %s366
      %p373 = scmp.eq.s32.totalorder %s47, 1
      %p374 = por %p372, %p373
      %p375 = scmp.ne.s32.totalorder %s366, %s367
      %p376 = scmp.eq.s32.totalorder %s47, 0
      %p377 = por %p375, %p376
      %p378 = scmp.ne.s32.totalorder %s366, %s367
      %p379 = scmp.eq.s32.totalorder %s48, 1
      %p380 = por %p378, %p379
      %p382 = scmp.ne.s32.totalorder %s367, %s381
      %p383 = scmp.eq.s32.totalorder %s48, 0
      %p384 = por %p382, %p383
      %s386 = sadd.s32 %s385, 1
      %p389 = scmp.eq.s32.totalorder %s42, 1
      %p390 = scmp.ne.s32.totalorder %s385, %s387
      %p391 = scmp.eq.s32.totalorder %s42, 0
      %p392 = por %p390, %p391
      %p393 = scmp.ne.s32.totalorder %s385, %s387
      %p394 = scmp.eq.s32.totalorder %s47, 1
      %p395 = por %p393, %p394
      %p396 = scmp.ne.s32.totalorder %s387, %s388
      %p397 = scmp.eq.s32.totalorder %s47, 0
      %p398 = por %p396, %p397
      %p399 = scmp.ne.s32.totalorder %s387, %s388
      %p400 = scmp.eq.s32.totalorder %s48, 1
      %p401 = por %p399, %p400
      %p403 = scmp.ne.s32.totalorder %s388, %s402
      %p404 = scmp.eq.s32.totalorder %s48, 0
      %p405 = por %p403, %p404
      %s407 = sadd.s32 %s406, 1
      %p410 = scmp.eq.s32.totalorder %s42, 1
      %p411 = scmp.ne.s32.totalorder %s406, %s408
      %p412 = scmp.eq.s32.totalorder %s42, 0
      %p413 = por %p411, %p412
      %p414 = scmp.ne.s32.totalorder %s406, %s408
      %p415 = scmp.eq.s32.totalorder %s47, 1
      %p416 = por %p414, %p415
      %p417 = scmp.ne.s32.totalorder %s408, %s409
      %p418 = scmp.eq.s32.totalorder %s47, 0
      %p419 = por %p417, %p418
      %p420 = scmp.ne.s32.totalorder %s408, %s409
      %p421 = scmp.eq.s32.totalorder %s48, 1
      %p422 = por %p420, %p421
      %p424 = scmp.ne.s32.totalorder %s409, %s423
      %p425 = scmp.eq.s32.totalorder %s48, 0
      %p426 = por %p424, %p425
      %s428 = sadd.s32 %s427, 1
      %p431 = scmp.eq.s32.totalorder %s42, 1
      %p432 = scmp.ne.s32.totalorder %s427, %s429
      %p433 = scmp.eq.s32.totalorder %s42, 0
      %p434 = por %p432, %p433
      %p435 = scmp.ne.s32.totalorder %s427, %s429
      %p436 = scmp.eq.s32.totalorder %s47, 1
      %p437 = por %p435, %p436
      %p438 = scmp.ne.s32.totalorder %s429, %s430
      %p439 = scmp.eq.s32.totalorder %s47, 0
      %p440 = por %p438, %p439
      %p441 = scmp.ne.s32.totalorder %s429, %s430
      %p442 = scmp.eq.s32.totalorder %s48, 1
      %p443 = por %p441, %p442
      %p445 = scmp.ne.s32.totalorder %s430, %s444
      %p446 = scmp.eq.s32.totalorder %s48, 0
      %p447 = por %p445, %p446
      %s449 = sadd.s32 %s448, 1
      %p452 = scmp.eq.s32.totalorder %s42, 1
      %p453 = scmp.ne.s32.totalorder %s448, %s450
      %p454 = scmp.eq.s32.totalorder %s42, 0
      %p455 = por %p453, %p454
      %p456 = scmp.ne.s32.totalorder %s448, %s450
      %p457 = scmp.eq.s32.totalorder %s47, 1
      %p458 = por %p456, %p457
      %p459 = scmp.ne.s32.totalorder %s450, %s451
      %p460 = scmp.eq.s32.totalorder %s47, 0
      %p461 = por %p459, %p460
      %p462 = scmp.ne.s32.totalorder %s450, %s451
      %p463 = scmp.eq.s32.totalorder %s48, 1
      %p464 = por %p462, %p463
      %p466 = scmp.ne.s32.totalorder %s451, %s465
      %p467 = scmp.eq.s32.totalorder %s48, 0
      %p468 = por %p466, %p467
      %s470 = sadd.s32 %s469, 1
      %p473 = scmp.eq.s32.totalorder %s42, 1
      %p474 = scmp.ne.s32.totalorder %s469, %s471
      %p475 = scmp.eq.s32.totalorder %s42, 0
      %p476 = por %p474, %p475
      %p477 = scmp.ne.s32.totalorder %s469, %s471
      %p478 = scmp.eq.s32.totalorder %s47, 1
      %p479 = por %p477, %p478
      %p480 = scmp.ne.s32.totalorder %s471, %s472
      %p481 = scmp.eq.s32.totalorder %s47, 0
      %p482 = por %p480, %p481
      %p483 = scmp.ne.s32.totalorder %s471, %s472
      %p484 = scmp.eq.s32.totalorder %s48, 1
      %p485 = por %p483, %p484
      %p487 = scmp.ne.s32.totalorder %s472, %s486
      %p488 = scmp.eq.s32.totalorder %s48, 0
      %p489 = por %p487, %p488
      %s491 = sadd.s32 %s490, 1
      %p494 = scmp.eq.s32.totalorder %s42, 1
      %p495 = scmp.ne.s32.totalorder %s490, %s492
      %p496 = scmp.eq.s32.totalorder %s42, 0
      %p497 = por %p495, %p496
      %p498 = scmp.ne.s32.totalorder %s490, %s492
      %p499 = scmp.eq.s32.totalorder %s47, 1
      %p500 = por %p498, %p499
      %p501 = scmp.ne.s32.totalorder %s492, %s493
      %p502 = scmp.eq.s32.totalorder %s47, 0
      %p503 = por %p501, %p502
      %p504 = scmp.ne.s32.totalorder %s492, %s493
      %p505 = scmp.eq.s32.totalorder %s48, 1
      %p506 = por %p504, %p505
      %p508 = scmp.ne.s32.totalorder %s493, %s507
      %p509 = scmp.eq.s32.totalorder %s48, 0
      %p510 = por %p508, %p509
      %s512 = sadd.s32 %s511, 1
      %p515 = scmp.eq.s32.totalorder %s42, 1
      %p516 = scmp.ne.s32.totalorder %s511, %s513
      %p517 = scmp.eq.s32.totalorder %s42, 0
      %p518 = por %p516, %p517
      %p519 = scmp.ne.s32.totalorder %s511, %s513
      %p520 = scmp.eq.s32.totalorder %s47, 1
      %p521 = por %p519, %p520
      %p522 = scmp.ne.s32.totalorder %s513, %s514
      %p523 = scmp.eq.s32.totalorder %s47, 0
      %p524 = por %p522, %p523
      %p525 = scmp.ne.s32.totalorder %s513, %s514
      %p526 = scmp.eq.s32.totalorder %s48, 1
      %p527 = por %p525, %p526
      %p529 = scmp.ne.s32.totalorder %s514, %s528
      %p530 = scmp.eq.s32.totalorder %s48, 0
      %p531 = por %p529, %p530
      %s533 = sadd.s32 %s532, 1
      %p536 = scmp.eq.s32.totalorder %s42, 1
      %p537 = scmp.ne.s32.totalorder %s532, %s534
      %p538 = scmp.eq.s32.totalorder %s42, 0
      %p539 = por %p537, %p538
      %p540 = scmp.ne.s32.totalorder %s532, %s534
      %p541 = scmp.eq.s32.totalorder %s47, 1
      %p542 = por %p540, %p541
      %p543 = scmp.ne.s32.totalorder %s534, %s535
      %p544 = scmp.eq.s32.totalorder %s47, 0
      %p545 = por %p543, %p544
      %p546 = scmp.ne.s32.totalorder %s534, %s535
      %p547 = scmp.eq.s32.totalorder %s48, 1
      %p548 = por %p546, %p547
      %p550 = scmp.ne.s32.totalorder %s535, %s549
      %p551 = scmp.eq.s32.totalorder %s48, 0
      %p552 = por %p550, %p551
      %s554 = sadd.s32 %s553, 1
      %p557 = scmp.eq.s32.totalorder %s42, 1
      %p558 = scmp.ne.s32.totalorder %s553, %s555
      %p559 = scmp.eq.s32.totalorder %s42, 0
      %p560 = por %p558, %p559
      %p561 = scmp.ne.s32.totalorder %s553, %s555
      %p562 = scmp.eq.s32.totalorder %s47, 1
      %p563 = por %p561, %p562
      %p564 = scmp.ne.s32.totalorder %s555, %s556
      %p565 = scmp.eq.s32.totalorder %s47, 0
      %p566 = por %p564, %p565
      %p567 = scmp.ne.s32.totalorder %s555, %s556
      %p568 = scmp.eq.s32.totalorder %s48, 1
      %p569 = por %p567, %p568
      %p571 = scmp.ne.s32.totalorder %s556, %s570
      %p572 = scmp.eq.s32.totalorder %s48, 0
      %p573 = por %p571, %p572
      %s574 = ssub.s32 %s42, %s49
      %p575 = scmp.eq.s32.totalorder %s574, 0
      %s577 = sadd.s32 %s576, 1
      %s578 = scalar_select %p575, %s576, %s577
      %p581 = pneg %p575
      %p582 = scmp.eq.s32.totalorder %s42, 1
      %p583 = por %p581, %p582
      %p584 = scmp.ne.s32.totalorder %s576, %s579
      %p585 = scmp.eq.s32.totalorder %s42, 0
      %p586 = por %p584, %p585
      %p587 = scmp.ne.s32.totalorder %s576, %s579
      %p588 = scmp.eq.s32.totalorder %s47, 1
      %p589 = por %p587, %p588
      %p590 = scmp.ne.s32.totalorder %s579, %s580
      %p591 = scmp.eq.s32.totalorder %s47, 0
      %p592 = por %p590, %p591
      %p593 = scmp.ne.s32.totalorder %s579, %s580
      %p594 = scmp.eq.s32.totalorder %s48, 1
      %p595 = por %p593, %p594
      %p597 = scmp.ne.s32.totalorder %s580, %s596
      %p598 = scmp.eq.s32.totalorder %s48, 0
      %p599 = por %p597, %p598
      %s600 = ssub.s32 %s42, %s49
      %p601 = scmp.eq.s32.totalorder %s600, 0
      %s603 = sadd.s32 %s602, 1
      %s604 = scalar_select %p601, %s602, %s603
      %p607 = pneg %p601
      %p608 = scmp.eq.s32.totalorder %s42, 1
      %p609 = por %p607, %p608
      %p610 = scmp.ne.s32.totalorder %s602, %s605
      %p611 = scmp.eq.s32.totalorder %s42, 0
      %p612 = por %p610, %p611
      %p613 = scmp.ne.s32.totalorder %s602, %s605
      %p614 = scmp.eq.s32.totalorder %s47, 1
      %p615 = por %p613, %p614
      %p616 = scmp.ne.s32.totalorder %s605, %s606
      %p617 = scmp.eq.s32.totalorder %s47, 0
      %p618 = por %p616, %p617
      %p619 = scmp.ne.s32.totalorder %s605, %s606
      %p620 = scmp.eq.s32.totalorder %s48, 1
      %p621 = por %p619, %p620
      %p623 = scmp.ne.s32.totalorder %s606, %s622
      %p624 = scmp.eq.s32.totalorder %s48, 0
      %p625 = por %p623, %p624
      %p626 = scmp.le.s32.totalorder 1, %s42
      %p627 = scmp.lt.s32.totalorder %s42, 3
      %p628 = pnand %p626, %p627
      %p629 = pneg %p628
      // Predicated region
      $region9: #{_lambda_.13} parent=5 // pred_check
        _
      $region10: #{_lambda_.13} parent=5 // pred_check_branch
        %631 = sbr.rel (%p628) target = $region12
      $region11: #{_lambda_.13} parent=5 // pred_region
        %s632 = ssub.s32 %s42, 1
        // Predicated region
        $region13: #{_lambda_.13} parent=11 // pred_check
          %p633 = pneg %p167
        $region14: #{_lambda_.13} parent=11 // pred_check_branch
          %635 = sbr.rel (%p633) target = $region16
        $region15: #{_lambda_.13} parent=11 // pred_region
          _
        $region16: #{_lambda_.13} parent=11 // pred_fallthru
          _
        // Predicated region
        $region17: #{_lambda_.13} parent=11 // pred_check
          %p636 = pneg %p188
        $region18: #{_lambda_.13} parent=11 // pred_check_branch
          %638 = sbr.rel (%p636) target = $region20
        $region19: #{_lambda_.13} parent=11 // pred_region
          _
        $region20: #{_lambda_.13} parent=11 // pred_fallthru
          _
        // Predicated region
        $region21: #{_lambda_.13} parent=11 // pred_check
          %p639 = pneg %p209
        $region22: #{_lambda_.13} parent=11 // pred_check_branch
          %641 = sbr.rel (%p639) target = $region24
        $region23: #{_lambda_.13} parent=11 // pred_region
          _
        $region24: #{_lambda_.13} parent=11 // pred_fallthru
          _
        // Predicated region
        $region25: #{_lambda_.13} parent=11 // pred_check
          %p642 = pneg %p230
        $region26: #{_lambda_.13} parent=11 // pred_check_branch
          %644 = sbr.rel (%p642) target = $region28
        $region27: #{_lambda_.13} parent=11 // pred_region
          _
        $region28: #{_lambda_.13} parent=11 // pred_fallthru
          _
        // Predicated region
        $region29: #{_lambda_.13} parent=11 // pred_check
          %p645 = pneg %p251
        $region30: #{_lambda_.13} parent=11 // pred_check_branch
          %647 = sbr.rel (%p645) target = $region32
        $region31: #{_lambda_.13} parent=11 // pred_region
          _
        $region32: #{_lambda_.13} parent=11 // pred_fallthru
          _
        // Predicated region
        $region33: #{_lambda_.13} parent=11 // pred_check
          %p648 = pneg %p272
        $region34: #{_lambda_.13} parent=11 // pred_check_branch
          %650 = sbr.rel (%p648) target = $region36
        $region35: #{_lambda_.13} parent=11 // pred_region
          _
        $region36: #{_lambda_.13} parent=11 // pred_fallthru
          _
        // Predicated region
        $region37: #{_lambda_.13} parent=11 // pred_check
          %p651 = pneg %p293
        $region38: #{_lambda_.13} parent=11 // pred_check_branch
          %653 = sbr.rel (%p651) target = $region40
        $region39: #{_lambda_.13} parent=11 // pred_region
          _
        $region40: #{_lambda_.13} parent=11 // pred_fallthru
          _
        // Predicated region
        $region41: #{_lambda_.13} parent=11 // pred_check
          %p654 = pneg %p314
        $region42: #{_lambda_.13} parent=11 // pred_check_branch
          %656 = sbr.rel (%p654) target = $region44
        $region43: #{_lambda_.13} parent=11 // pred_region
          _
        $region44: #{_lambda_.13} parent=11 // pred_fallthru
          _
        // Predicated region
        $region45: #{_lambda_.13} parent=11 // pred_check
          %p657 = pneg %p335
        $region46: #{_lambda_.13} parent=11 // pred_check_branch
          %659 = sbr.rel (%p657) target = $region48
        $region47: #{_lambda_.13} parent=11 // pred_region
          _
        $region48: #{_lambda_.13} parent=11 // pred_fallthru
          _
        // Predicated region
        $region49: #{_lambda_.13} parent=11 // pred_check
          %p660 = pneg %p356
        $region50: #{_lambda_.13} parent=11 // pred_check_branch
          %662 = sbr.rel (%p660) target = $region52
        $region51: #{_lambda_.13} parent=11 // pred_region
          _
        $region52: #{_lambda_.13} parent=11 // pred_fallthru
          _
        // Predicated region
        $region53: #{_lambda_.13} parent=11 // pred_check
          %p663 = pneg %p377
        $region54: #{_lambda_.13} parent=11 // pred_check_branch
          %665 = sbr.rel (%p663) target = $region56
        $region55: #{_lambda_.13} parent=11 // pred_region
          _
        $region56: #{_lambda_.13} parent=11 // pred_fallthru
          _
        // Predicated region
        $region57: #{_lambda_.13} parent=11 // pred_check
          %p666 = pneg %p398
        $region58: #{_lambda_.13} parent=11 // pred_check_branch
          %668 = sbr.rel (%p666) target = $region60
        $region59: #{_lambda_.13} parent=11 // pred_region
          _
        $region60: #{_lambda_.13} parent=11 // pred_fallthru
          _
        // Predicated region
        $region61: #{_lambda_.13} parent=11 // pred_check
          %p669 = pneg %p419
        $region62: #{_lambda_.13} parent=11 // pred_check_branch
          %671 = sbr.rel (%p669) target = $region64
        $region63: #{_lambda_.13} parent=11 // pred_region
          _
        $region64: #{_lambda_.13} parent=11 // pred_fallthru
          _
        // Predicated region
        $region65: #{_lambda_.13} parent=11 // pred_check
          %p672 = pneg %p440
        $region66: #{_lambda_.13} parent=11 // pred_check_branch
          %674 = sbr.rel (%p672) target = $region68
        $region67: #{_lambda_.13} parent=11 // pred_region
          _
        $region68: #{_lambda_.13} parent=11 // pred_fallthru
          _
        // Predicated region
        $region69: #{_lambda_.13} parent=11 // pred_check
          %p675 = pneg %p461
        $region70: #{_lambda_.13} parent=11 // pred_check_branch
          %677 = sbr.rel (%p675) target = $region72
        $region71: #{_lambda_.13} parent=11 // pred_region
          _
        $region72: #{_lambda_.13} parent=11 // pred_fallthru
          _
        // Predicated region
        $region73: #{_lambda_.13} parent=11 // pred_check
          %p678 = pneg %p482
        $region74: #{_lambda_.13} parent=11 // pred_check_branch
          %680 = sbr.rel (%p678) target = $region76
        $region75: #{_lambda_.13} parent=11 // pred_region
          _
        $region76: #{_lambda_.13} parent=11 // pred_fallthru
          _
        // Predicated region
        $region77: #{_lambda_.13} parent=11 // pred_check
          %p681 = pneg %p503
        $region78: #{_lambda_.13} parent=11 // pred_check_branch
          %683 = sbr.rel (%p681) target = $region80
        $region79: #{_lambda_.13} parent=11 // pred_region
          _
        $region80: #{_lambda_.13} parent=11 // pred_fallthru
          _
        // Predicated region
        $region81: #{_lambda_.13} parent=11 // pred_check
          %p684 = pneg %p524
        $region82: #{_lambda_.13} parent=11 // pred_check_branch
          %686 = sbr.rel (%p684) target = $region84
        $region83: #{_lambda_.13} parent=11 // pred_region
          _
        $region84: #{_lambda_.13} parent=11 // pred_fallthru
          _
        // Predicated region
        $region85: #{_lambda_.13} parent=11 // pred_check
          %p687 = pneg %p545
        $region86: #{_lambda_.13} parent=11 // pred_check_branch
          %689 = sbr.rel (%p687) target = $region88
        $region87: #{_lambda_.13} parent=11 // pred_region
          _
        $region88: #{_lambda_.13} parent=11 // pred_fallthru
          _
        // Predicated region
        $region89: #{_lambda_.13} parent=11 // pred_check
          %p690 = pneg %p566
        $region90: #{_lambda_.13} parent=11 // pred_check_branch
          %692 = sbr.rel (%p690) target = $region92
        $region91: #{_lambda_.13} parent=11 // pred_region
          _
        $region92: #{_lambda_.13} parent=11 // pred_fallthru
          _
      $region12: #{_lambda_.13} parent=5 // pred_fallthru
        _
      %p693 = scmp.lt.s32.totalorder %s42, 2
      // Predicated region
      $region93: #{_lambda_.13} parent=5 // pred_check
        %p694 = pneg %p693
      $region94: #{_lambda_.13} parent=5 // pred_check_branch
        %696 = sbr.rel (%p694) target = $region96
      $region95: #{_lambda_.13} parent=5 // pred_region
        // Predicated region
        $region97: #{_lambda_.13} parent=95 // pred_check
          %p697 = pneg %p62
        $region98: #{_lambda_.13} parent=95 // pred_check_branch
          %699 = sbr.rel (%p697) target = $region100
        $region99: #{_lambda_.13} parent=95 // pred_region
          %p700 = scmp.lt.s32.totalorder %s42, 1
          %s701 = scalar_select %p700, %s42, 1
          %s702 = smul.addr %s701, 8
          %s703 = scalar_lea.vmem %s0, %s702
        $region100: #{_lambda_.13} parent=95 // pred_fallthru
          _
        // Predicated region
        $region101: #{_lambda_.13} parent=95 // pred_check
          %p704 = pneg %p88
        $region102: #{_lambda_.13} parent=95 // pred_check_branch
          %706 = sbr.rel (%p704) target = $region104
        $region103: #{_lambda_.13} parent=95 // pred_region
          %p707 = scmp.lt.s32.totalorder %s42, 1
          %s708 = scalar_select %p707, %s42, 1
          %s709 = smul.addr %s708, 8
          %s710 = scalar_lea.vmem %s1, %s709
        $region104: #{_lambda_.13} parent=95 // pred_fallthru
          _
        // Predicated region
        $region105: #{_lambda_.13} parent=95 // pred_check
          %p711 = pneg %p114
        $region106: #{_lambda_.13} parent=95 // pred_check_branch
          %713 = sbr.rel (%p711) target = $region108
        $region107: #{_lambda_.13} parent=95 // pred_region
          %p714 = scmp.lt.s32.totalorder %s42, 1
          %s715 = scalar_select %p714, %s42, 1
          %s716 = smul.addr %s715, 2
          %s717 = smul.addr %s716, 8
          %s718 = scalar_lea.vmem %s2, %s717
        $region108: #{_lambda_.13} parent=95 // pred_fallthru
          _
        // Predicated region
        $region109: #{_lambda_.13} parent=95 // pred_check
          %p719 = pneg %p140
        $region110: #{_lambda_.13} parent=95 // pred_check_branch
          %721 = sbr.rel (%p719) target = $region112
        $region111: #{_lambda_.13} parent=95 // pred_region
          %p722 = scmp.lt.s32.totalorder %s42, 1
          %s723 = scalar_select %p722, %s42, 1
          %s724 = smul.addr %s723, 2
          %s725 = smul.addr %s724, 8
          %s726 = scalar_lea.vmem %s3, %s725
        $region112: #{_lambda_.13} parent=95 // pred_fallthru
          _
      $region96: #{_lambda_.13} parent=5 // pred_fallthru
        _
      %p727 = scmp.le.s32.totalorder 1, %s42
      %p728 = scmp.lt.s32.totalorder %s42, 3
      %p729 = pnand %p727, %p728
      %p730 = pneg %p729
      // Predicated region
      $region113: #{_lambda_.13} parent=5 // pred_check
        _
      $region114: #{_lambda_.13} parent=5 // pred_check_branch
        %732 = sbr.rel (%p729) target = $region116
      $region115: #{_lambda_.13} parent=5 // pred_region
        %s733 = ssub.s32 %s42, 1
        %p734 = scmp.lt.s32.totalorder %s47, 1
        %s735 = scalar_select %p734, %s47, 1
        %s736 = smul.addr %s735, 8
        %s737 = scalar_lea.vmem %s0, %s736
        %p738 = pneg %p68
        %p739 = pneg %p65
        %p740 = scmp.lt.s32.totalorder %s47, 1
        %s741 = scalar_select %p740, %s47, 1
        %s742 = smul.addr %s741, 8
        %s743 = scalar_lea.vmem %s1, %s742
        %p744 = pneg %p94
        %p745 = pneg %p91
        %p746 = scmp.lt.s32.totalorder %s47, 1
        %s747 = scalar_select %p746, %s47, 1
        %s748 = smul.addr %s747, 2
        %s749 = smul.addr %s748, 8
        %s750 = scalar_lea.vmem %s2, %s749
        %p751 = pneg %p120
        %p752 = pneg %p117
        %p753 = scmp.lt.s32.totalorder %s47, 1
        %s754 = scalar_select %p753, %s47, 1
        %s755 = smul.addr %s754, 2
        %s756 = smul.addr %s755, 8
        %s757 = scalar_lea.vmem %s3, %s756
        %p758 = pneg %p146
        %p759 = pneg %p143
        %p760 = pneg %p167
        %p761 = pneg %p164
        %p762 = pneg %p188
        %p763 = pneg %p185
        %p764 = pneg %p209
        %p765 = pneg %p206
        %p766 = pneg %p230
        %p767 = pneg %p227
        %p768 = pneg %p251
        %p769 = pneg %p248
        %p770 = pneg %p272
        %p771 = pneg %p269
        %p772 = pneg %p293
        %p773 = pneg %p290
        %p774 = pneg %p314
        %p775 = pneg %p311
        %p776 = pneg %p335
        %p777 = pneg %p332
        %p778 = pneg %p356
        %p779 = pneg %p353
        %p780 = pneg %p377
        %p781 = pneg %p374
        %p782 = pneg %p398
        %p783 = pneg %p395
        %p784 = pneg %p419
        %p785 = pneg %p416
        %p786 = pneg %p440
        %p787 = pneg %p437
        %p788 = pneg %p461
        %p789 = pneg %p458
        %p790 = pneg %p482
        %p791 = pneg %p479
        %p792 = pneg %p503
        %p793 = pneg %p500
        %p794 = pneg %p524
        %p795 = pneg %p521
        %p796 = pneg %p545
        %p797 = pneg %p542
        %p798 = pneg %p566
        %p799 = pneg %p563
        %p800 = pneg %p592
        %p801 = pneg %p589
        %s802 = sand.u32 %s579, 1
        %s803 = scalar_lea.sflag [#allocation5], %s802
        %s804 = sand.u32 %s579, 1
        %s805 = scalar_lea.vmem [#allocation4], %s804
        %p806 = pneg %p618
        %p807 = pneg %p615
        %s808 = sand.u32 %s605, 1
        %s809 = scalar_lea.sflag [#allocation7], %s808
        %s810 = sand.u32 %s605, 1
        %s811 = scalar_lea.vmem [#allocation6], %s810
        %p812 = scmp.lt.s32.totalorder %s47, 1
        %s813 = scalar_select %p812, %s47, 1
        %s814 = smul.addr %s813, 8
        %s815 = scalar_lea.vmem %s0, %s814
        %p816 = scmp.lt.s32.totalorder %s47, 1
        %s817 = scalar_select %p816, %s47, 1
        %s818 = smul.addr %s817, 8
        %s819 = scalar_lea.vmem %s1, %s818
        %p820 = scmp.lt.s32.totalorder %s47, 1
        %s821 = scalar_select %p820, %s47, 1
        %s822 = smul.addr %s821, 2
        %s823 = smul.addr %s822, 8
        %s824 = scalar_lea.vmem %s2, %s823
        %p825 = scmp.lt.s32.totalorder %s47, 1
        %s826 = scalar_select %p825, %s47, 1
        %s827 = smul.addr %s826, 2
        %s828 = smul.addr %s827, 8
        %s829 = scalar_lea.vmem %s3, %s828
        %v831 = vld [vmem:[%s815] sm:$0xff]
        %v832 = vld [vmem:[%s819] sm:$0xff]
        %v833 = vpack.c.bf16 %v831, %v831
        %v834 = vld [vmem:[%s4] sm:$0xf]
        %v835 = vld [vmem:[%s4 + $0x4] sm:$0xf]
        %v836 = vld [vmem:[%s4 + $0x8] sm:$0xf]
        %v837 = vld [vmem:[%s4 + $0xc] sm:$0xf]
        %v838 = vld [vmem:[%s5] sm:$0x1]
        %v840 = vlaneseq
        %v841 = vshrl.u32 %v840, 7
        %v842 = vsub.s32 0, %v841
        %v843 = vrot.slane %v838, %v842
        %v849 = vunpack.c.l.b16 %v834
        %v850 = vunpack.c.l.b16 %v835
        %v851 = vunpack.c.l.b16 %v836
        %v852 = vunpack.c.l.b16 %v837
        %v853 = vpack.c.b16 %v850, %v849
        %v854 = vpack.c.b16 %v852, %v851
        %vm857 = vcmask 261120
        %v859 = vsel %vm857, %v833, 0
        %861 = vmatprep.subr.bf16.mxu0 0
        %862 = vmatpush1.bf16.msra.mxu0 0
        %863 = vmatprep.subr.bf16.mxu0 0
        %864 = vmatpush1.bf16.msra.mxu0 0
        %865 = vmatprep.subr.bf16.mxu0 0
        %866 = vmatpush1.bf16.msra.mxu0 0
        %867 = vmatprep.subr.bf16.mxu0 0
        %868 = vmatpush1.bf16.msra.mxu0 0
        %869 = vmatprep.subr.bf16.mxu0 0
        %870 = vmatpush1.bf16.msra.mxu0 0
        %871 = vmatprep.subr.bf16.mxu0 0
        %872 = vmatpush1.bf16.msra.mxu0 0
        %873 = vmatprep.subr.bf16.mxu0 0
        %874 = vmatpush1.bf16.msra.mxu0 %v854
        %875 = vmatprep.subr.bf16.mxu0 0
        %876 = vmatpush1.bf16.msra.mxu0 %v853
        %877 = vmatprep.subr.bf16.mxu0 0
        %878 = vmatpush2.bf16.msra.mxu0 0
        %879 = vmatprep.subr.bf16.mxu0 0
        %880 = vmatpush2.bf16.msra.mxu0 0
        %881 = vmatprep.subr.bf16.mxu0 0
        %882 = vmatpush2.bf16.msra.mxu0 0
        %883 = vmatprep.subr.bf16.mxu0 0
        %884 = vmatpush2.bf16.msra.mxu0 0
        %885 = vmatprep.subr.bf16.mxu0 0
        %886 = vmatpush2.bf16.msra.mxu0 0
        %887 = vmatprep.subr.bf16.mxu0 0
        %888 = vmatpush2.bf16.msra.mxu0 0
        %889 = vmatprep.subr.bf16.mxu0 0
        %890 = vmatpush2.bf16.msra.mxu0 0
        %891 = vmatprep.subr.bf16.mxu0 0
        %892 = vmatpush2.bf16.msra.mxu0 0
        %893 = vmatprep.mubr.bf16.mxu0 0
        %894 = vmatmul.mubr.bf16.gmra.mxu0 %v859
        %v895 = vpop.f32.mrf.mxu0
        %v896 = vadd.f32 %v843, %v895
        %v897 = vpop.f32.mrf.mxu0
        %v898 = vpop.f32.mrf.mxu0
        %v899 = vpop.f32.mrf.mxu0
        %900 = vdwg.mxu0
        %v901 = vmax.f32 %v896, 0.0
        %v902 = vpack.c.bf16 %v901, %v901
        %v903 = vld [vmem:[%s6] sm:$0xf]
        %v904 = vld [vmem:[%s6 + $0x4] sm:$0xf]
        %v905 = vld [vmem:[#allocation2] sm:$0x1]
        %v907 = vlaneseq
        %v908 = vshrl.u32 %v907, 7
        %v909 = vsub.s32 0, %v908
        %v910 = vrot.slane %v905, %v909
        %v914 = vunpack.c.l.b16 %v903
        %v915 = vunpack.c.l.b16 %v904
        %v916 = vpack.c.b16 %v915, %v914
        %vm918 = vcmask 130048
        %v920 = vsel %vm918, %v902, 0
        %922 = vmatprep.subr.bf16.mxu0 0
        %923 = vmatpush1.bf16.msra.mxu0 0
        %924 = vmatprep.subr.bf16.mxu0 0
        %925 = vmatpush1.bf16.msra.mxu0 0
        %926 = vmatprep.subr.bf16.mxu0 0
        %927 = vmatpush1.bf16.msra.mxu0 0
        %928 = vmatprep.subr.bf16.mxu0 0
        %929 = vmatpush1.bf16.msra.mxu0 0
        %930 = vmatprep.subr.bf16.mxu0 0
        %931 = vmatpush1.bf16.msra.mxu0 0
        %932 = vmatprep.subr.bf16.mxu0 0
        %933 = vmatpush1.bf16.msra.mxu0 0
        %934 = vmatprep.subr.bf16.mxu0 0
        %935 = vmatpush1.bf16.msra.mxu0 0
        %936 = vmatprep.subr.bf16.mxu0 0
        %937 = vmatpush1.bf16.msra.mxu0 %v916
        %938 = vmatprep.subr.bf16.mxu0 0
        %939 = vmatpush2.bf16.msra.mxu0 0
        %940 = vmatprep.subr.bf16.mxu0 0
        %941 = vmatpush2.bf16.msra.mxu0 0
        %942 = vmatprep.subr.bf16.mxu0 0
        %943 = vmatpush2.bf16.msra.mxu0 0
        %944 = vmatprep.subr.bf16.mxu0 0
        %945 = vmatpush2.bf16.msra.mxu0 0
        %946 = vmatprep.subr.bf16.mxu0 0
        %947 = vmatpush2.bf16.msra.mxu0 0
        %948 = vmatprep.subr.bf16.mxu0 0
        %949 = vmatpush2.bf16.msra.mxu0 0
        %950 = vmatprep.subr.bf16.mxu0 0
        %951 = vmatpush2.bf16.msra.mxu0 0
        %952 = vmatprep.subr.bf16.mxu0 0
        %953 = vmatpush2.bf16.msra.mxu0 0
        %954 = vmatprep.mubr.bf16.mxu0 0
        %955 = vmatmul.mubr.bf16.gmra.mxu0 %v920
        %v956 = vpop.f32.mrf.mxu0
        %v957 = vadd.f32 %v910, %v956
        %v958 = vpop.f32.mrf.mxu0
        %v959 = vpop.f32.mrf.mxu0
        %v960 = vpop.f32.mrf.mxu0
        %961 = vdwg.mxu0
        %vm962 = vcmp.gt.f32.partialorder %v832, 0.5
        %v963 = vsel %vm962, -1e+09, %v957
        %vm964 = vcmask 7168
        %v965 = vsel %vm964, %v963, -inf
        %v966 = vrot.slane %v965, 4
        %v967 = vmax.f32 %v965, %v966
        %v968 = vrot.slane %v967, 2
        %v969 = vmax.f32 %v967, %v968
        %v970 = vrot.slane %v969, 1
        %v971 = vmax.f32 %v969, %v970
        %v972 = vsub.f32 %v963, %v971
        %v973 = vmul.f32 %v972, 1.442695
        %v974 = vpow.pop %v973
        %v975 = vsel %vm964, %v974, 0.0
        %v976 = vrot.slane %v975, 4
        %v977 = vadd.f32 %v975, %v976
        %v978 = vrot.slane %v977, 2
        %v979 = vadd.f32 %v977, %v978
        %v980 = vrot.slane %v979, 1
        %v981 = vadd.f32 %v979, %v980
        %v982 = vrcp.pop %v981
        %v983 = vmul.f32 %v974, %v982
        %984 = vxpose.xlu0.b32.start [1/16] %v983, 128
        %985 = vxpose.xlu0.b32.cont [2/16] 0.0, 128
        %986 = vxpose.xlu0.b32.cont [3/16] 0.0, 128
        %987 = vxpose.xlu0.b32.cont [4/16] 0.0, 128
        %988 = vxpose.xlu0.b32.cont [5/16] 0.0, 128
        %989 = vxpose.xlu0.b32.cont [6/16] 0.0, 128
        %990 = vxpose.xlu0.b32.cont [7/16] 0.0, 128
        %991 = vxpose.xlu0.b32.cont [8/16] 0.0, 128
        %992 = vxpose.xlu0.b32.cont [9/16] 0.0, 128
        %993 = vxpose.xlu0.b32.cont [10/16] 0.0, 128
        %994 = vxpose.xlu0.b32.cont [11/16] 0.0, 128
        %995 = vxpose.xlu0.b32.cont [12/16] 0.0, 128
        %996 = vxpose.xlu0.b32.cont [13/16] 0.0, 128
        %997 = vxpose.xlu0.b32.cont [14/16] 0.0, 128
        %998 = vxpose.xlu0.b32.cont [15/16] 0.0, 128
        %999 = vxpose.xlu0.b32.end [16/16] 0.0, 128
        %v1000 = vpop.trf.xlu0
        %v1001 = vpop.trf.xlu0
        %v1002 = vpop.trf.xlu0
        %v1003 = vpop.trf.xlu0
        %v1004 = vpop.trf.xlu0
        %v1005 = vpop.trf.xlu0
        %v1006 = vpop.trf.xlu0
        %v1007 = vpop.trf.xlu0
        %v1008 = vpop.trf.xlu0
        %v1009 = vpop.trf.xlu0
        %v1010 = vpop.trf.xlu0
        %v1011 = vpop.trf.xlu0
        %v1012 = vpop.trf.xlu0
        %v1013 = vpop.trf.xlu0
        %v1014 = vpop.trf.xlu0
        %v1015 = vpop.trf.xlu0
        %vm1016 = vcmask 64512
        %v1018 = vsel %vm1016, %v1000, 0
        %1020 = vmatprep.subr.mxu0 0.0
        %1021 = vmatpush1.msra.mxu0 0.0
        %1022 = vmatprep.subr.mxu0 0.0
        %1023 = vmatpush1.msra.mxu0 0.0
        %1024 = vmatprep.subr.mxu0 0.0
        %1025 = vmatpush1.msra.mxu0 0.0
        %1026 = vmatprep.subr.mxu0 0.0
        %1027 = vmatpush1.msra.mxu0 0.0
        %1028 = vmatprep.subr.mxu0 0.0
        %1029 = vmatpush1.msra.mxu0 0.0
        %1030 = vmatprep.subr.mxu0 0.0
        %1031 = vmatpush1.msra.mxu0 0.0
        %1032 = vmatprep.subr.mxu0 0.0
        %1033 = vmatpush1.msra.mxu0 0.0
        %1034 = vmatprep.subr.mxu0 0.0
        %1035 = vmatpush1.msra.mxu0 0.0
        %1036 = vmatprep.subr.mxu0 0.0
        %1037 = vmatpush1.msra.mxu0 0.0
        %1038 = vmatprep.subr.mxu0 0.0
        %1039 = vmatpush1.msra.mxu0 0.0
        %1040 = vmatprep.subr.mxu0 0.0
        %1041 = vmatpush1.msra.mxu0 0.0
        %1042 = vmatprep.subr.mxu0 0.0
        %1043 = vmatpush1.msra.mxu0 0.0
        %1044 = vmatprep.subr.mxu0 0.0
        %1045 = vmatpush1.msra.mxu0 0.0
        %1046 = vmatprep.subr.mxu0 0.0
        %1047 = vmatpush1.msra.mxu0 0.0
        %1048 = vmatprep.subr.mxu0 0.0
        %1049 = vmatpush1.msra.mxu0 0.0
        %1050 = vmatprep.subr.mxu0 0.0
        %1051 = vmatpush1.msra.mxu0 %v831
        %1052 = vmatprep.subr.mxu0 0.0
        %1053 = vmatpush2.msra.mxu0 0.0
        %1054 = vmatprep.subr.mxu0 0.0
        %1055 = vmatpush2.msra.mxu0 0.0
        %1056 = vmatprep.subr.mxu0 0.0
        %1057 = vmatpush2.msra.mxu0 0.0
        %1058 = vmatprep.subr.mxu0 0.0
        %1059 = vmatpush2.msra.mxu0 0.0
        %1060 = vmatprep.subr.mxu0 0.0
        %1061 = vmatpush2.msra.mxu0 0.0
        %1062 = vmatprep.subr.mxu0 0.0
        %1063 = vmatpush2.msra.mxu0 0.0
        %1064 = vmatprep.subr.mxu0 0.0
        %1065 = vmatpush2.msra.mxu0 0.0
        %1066 = vmatprep.subr.mxu0 0.0
        %1067 = vmatpush2.msra.mxu0 0.0
        %1068 = vmatprep.subr.mxu0 0.0
        %1069 = vmatpush2.msra.mxu0 0.0
        %1070 = vmatprep.subr.mxu0 0.0
        %1071 = vmatpush2.msra.mxu0 0.0
        %1072 = vmatprep.subr.mxu0 0.0
        %1073 = vmatpush2.msra.mxu0 0.0
        %1074 = vmatprep.subr.mxu0 0.0
        %1075 = vmatpush2.msra.mxu0 0.0
        %1076 = vmatprep.subr.mxu0 0.0
        %1077 = vmatpush2.msra.mxu0 0.0
        %1078 = vmatprep.subr.mxu0 0.0
        %1079 = vmatpush2.msra.mxu0 0.0
        %1080 = vmatprep.subr.mxu0 0.0
        %1081 = vmatpush2.msra.mxu0 0.0
        %1082 = vmatprep.subr.mxu0 0.0
        %1083 = vmatpush2.msra.mxu0 0.0
        %1084 = vmatprep.mubr.f32.mxu0 0.0
        %1085 = vmatmul.mubr.f32.gmra.mxu0 %v1018
        %v1086 = vpop.f32.mrf.mxu0
        %v1087 = vadd.f32 0.0, %v1086
        %v1088 = vpop.f32.mrf.mxu0
        %1089 = vdwg.mxu0
        %v1090 = vpack.c.bf16 %v1087, %v1087
        %v1091 = vld [vmem:[%s8] sm:$0xf]
        %v1092 = vld [vmem:[%s8 + $0x4] sm:$0xf]
        %v1093 = vld [vmem:[%s8 + $0x8] sm:$0xf]
        %v1094 = vld [vmem:[%s8 + $0xc] sm:$0xf]
        %v1095 = vld [vmem:[%s9] sm:$0x1]
        %v1100 = vunpack.c.l.b16 %v1091
        %v1101 = vunpack.c.l.b16 %v1092
        %v1102 = vunpack.c.l.b16 %v1093
        %v1103 = vunpack.c.l.b16 %v1094
        %v1104 = vpack.c.b16 %v1101, %v1100
        %v1105 = vpack.c.b16 %v1103, %v1102
        %v1109 = vsel %vm857, %v1090, 0
        %1111 = vmatprep.subr.bf16.mxu0 0
        %1112 = vmatpush1.bf16.msra.mxu0 0
        %1113 = vmatprep.subr.bf16.mxu0 0
        %1114 = vmatpush1.bf16.msra.mxu0 0
        %1115 = vmatprep.subr.bf16.mxu0 0
        %1116 = vmatpush1.bf16.msra.mxu0 0
        %1117 = vmatprep.subr.bf16.mxu0 0
        %1118 = vmatpush1.bf16.msra.mxu0 0
        %1119 = vmatprep.subr.bf16.mxu0 0
        %1120 = vmatpush1.bf16.msra.mxu0 0
        %1121 = vmatprep.subr.bf16.mxu0 0
        %1122 = vmatpush1.bf16.msra.mxu0 0
        %1123 = vmatprep.subr.bf16.mxu0 0
        %1124 = vmatpush1.bf16.msra.mxu0 %v1105
        %1125 = vmatprep.subr.bf16.mxu0 0
        %1126 = vmatpush1.bf16.msra.mxu0 %v1104
        %1127 = vmatprep.subr.bf16.mxu0 0
        %1128 = vmatpush2.bf16.msra.mxu0 0
        %1129 = vmatprep.subr.bf16.mxu0 0
        %1130 = vmatpush2.bf16.msra.mxu0 0
        %1131 = vmatprep.subr.bf16.mxu0 0
        %1132 = vmatpush2.bf16.msra.mxu0 0
        %1133 = vmatprep.subr.bf16.mxu0 0
        %1134 = vmatpush2.bf16.msra.mxu0 0
        %1135 = vmatprep.subr.bf16.mxu0 0
        %1136 = vmatpush2.bf16.msra.mxu0 0
        %1137 = vmatprep.subr.bf16.mxu0 0
        %1138 = vmatpush2.bf16.msra.mxu0 0
        %1139 = vmatprep.subr.bf16.mxu0 0
        %1140 = vmatpush2.bf16.msra.mxu0 0
        %1141 = vmatprep.subr.bf16.mxu0 0
        %1142 = vmatpush2.bf16.msra.mxu0 0
        %1143 = vmatprep.mubr.bf16.mxu0 0
        %1144 = vmatmul.mubr.bf16.gmra.mxu0 %v1109
        %v1145 = vpop.f32.mrf.mxu0
        %v1146 = vadd.f32 %v1095, %v1145
        %v1147 = vpop.f32.mrf.mxu0
        %v1148 = vpop.f32.mrf.mxu0
        %v1149 = vpop.f32.mrf.mxu0
        %1150 = vdwg.mxu0
        %v1151 = vld [vmem:[%s824] sm:$0xff]
        %v1152 = vld [vmem:[%s824 + $0x8] sm:$0xff]
        %v1153 = vld [vmem:[%s829] sm:$0xff]
        %v1154 = vld [vmem:[%s829 + $0x8] sm:$0xff]
        %v1155 = vpack.c.bf16 %v1152, %v1151
        %v1156 = vld [vmem:[%s10] sm:$0xf]
        %v1157 = vld [vmem:[%s10 + $0x4] sm:$0xf]
        %v1158 = vld [vmem:[%s10 + $0x8] sm:$0xf]
        %v1159 = vld [vmem:[%s10 + $0xc] sm:$0xf]
        %v1160 = vld [vmem:[%s11] sm:$0x1]
        %v1162 = vlaneseq
        %v1163 = vshrl.u32 %v1162, 7
        %v1164 = vsub.s32 0, %v1163
        %v1165 = vrot.slane %v1160, %v1164
        %v1171 = vunpack.c.l.b16 %v1156
        %v1172 = vunpack.c.l.b16 %v1157
        %v1173 = vunpack.c.l.b16 %v1158
        %v1174 = vunpack.c.l.b16 %v1159
        %v1175 = vpack.c.b16 %v1172, %v1171
        %v1176 = vpack.c.b16 %v1174, %v1173
        %v1180 = vsel %vm857, %v1155, 0
        %1182 = vmatprep.subr.bf16.mxu0 0
        %1183 = vmatpush1.bf16.msra.mxu0 0
        %1184 = vmatprep.subr.bf16.mxu0 0
        %1185 = vmatpush1.bf16.msra.mxu0 0
        %1186 = vmatprep.subr.bf16.mxu0 0
        %1187 = vmatpush1.bf16.msra.mxu0 0
        %1188 = vmatprep.subr.bf16.mxu0 0
        %1189 = vmatpush1.bf16.msra.mxu0 0
        %1190 = vmatprep.subr.bf16.mxu0 0
        %1191 = vmatpush1.bf16.msra.mxu0 0
        %1192 = vmatprep.subr.bf16.mxu0 0
        %1193 = vmatpush1.bf16.msra.mxu0 0
        %1194 = vmatprep.subr.bf16.mxu0 0
        %1195 = vmatpush1.bf16.msra.mxu0 %v1176
        %1196 = vmatprep.subr.bf16.mxu0 0
        %1197 = vmatpush1.bf16.msra.mxu0 %v1175
        %1198 = vmatprep.subr.bf16.mxu0 0
        %1199 = vmatpush2.bf16.msra.mxu0 0
        %1200 = vmatprep.subr.bf16.mxu0 0
        %1201 = vmatpush2.bf16.msra.mxu0 0
        %1202 = vmatprep.subr.bf16.mxu0 0
        %1203 = vmatpush2.bf16.msra.mxu0 0
        %1204 = vmatprep.subr.bf16.mxu0 0
        %1205 = vmatpush2.bf16.msra.mxu0 0
        %1206 = vmatprep.subr.bf16.mxu0 0
        %1207 = vmatpush2.bf16.msra.mxu0 0
        %1208 = vmatprep.subr.bf16.mxu0 0
        %1209 = vmatpush2.bf16.msra.mxu0 0
        %1210 = vmatprep.subr.bf16.mxu0 0
        %1211 = vmatpush2.bf16.msra.mxu0 0
        %1212 = vmatprep.subr.bf16.mxu0 0
        %1213 = vmatpush2.bf16.msra.mxu0 0
        %1214 = vmatprep.mubr.bf16.mxu0 0
        %1215 = vmatmul.mubr.bf16.gmra.mxu0 %v1180
        %v1216 = vpop.f32.mrf.mxu0
        %v1217 = vadd.f32 %v1165, %v1216
        %v1218 = vpop.f32.mrf.mxu0
        %v1219 = vpop.f32.mrf.mxu0
        %v1220 = vadd.f32 %v1165, %v1219
        %v1221 = vpop.f32.mrf.mxu0
        %1222 = vdwg.mxu0
        %v1223 = vmax.f32 %v1217, 0.0
        %v1224 = vmax.f32 %v1220, 0.0
        %v1225 = vpack.c.bf16 %v1224, %v1223
        %v1226 = vld [vmem:[%s12] sm:$0xf]
        %v1227 = vld [vmem:[%s12 + $0x4] sm:$0xf]
        %v1228 = vld [vmem:[#allocation3] sm:$0x1]
        %v1230 = vlaneseq
        %v1231 = vshrl.u32 %v1230, 7
        %v1232 = vsub.s32 0, %v1231
        %v1233 = vrot.slane %v1228, %v1232
        %v1237 = vunpack.c.l.b16 %v1226
        %v1238 = vunpack.c.l.b16 %v1227
        %v1239 = vpack.c.b16 %v1238, %v1237
        %v1242 = vsel %vm918, %v1225, 0
        %1244 = vmatprep.subr.bf16.mxu0 0
        %1245 = vmatpush1.bf16.msra.mxu0 0
        %1246 = vmatprep.subr.bf16.mxu0 0
        %1247 = vmatpush1.bf16.msra.mxu0 0
        %1248 = vmatprep.subr.bf16.mxu0 0
        %1249 = vmatpush1.bf16.msra.mxu0 0
        %1250 = vmatprep.subr.bf16.mxu0 0
        %1251 = vmatpush1.bf16.msra.mxu0 0
        %1252 = vmatprep.subr.bf16.mxu0 0
        %1253 = vmatpush1.bf16.msra.mxu0 0
        %1254 = vmatprep.subr.bf16.mxu0 0
        %1255 = vmatpush1.bf16.msra.mxu0 0
        %1256 = vmatprep.subr.bf16.mxu0 0
        %1257 = vmatpush1.bf16.msra.mxu0 0
        %1258 = vmatprep.subr.bf16.mxu0 0
        %1259 = vmatpush1.bf16.msra.mxu0 %v1239
        %1260 = vmatprep.subr.bf16.mxu0 0
        %1261 = vmatpush2.bf16.msra.mxu0 0
        %1262 = vmatprep.subr.bf16.mxu0 0
        %1263 = vmatpush2.bf16.msra.mxu0 0
        %1264 = vmatprep.subr.bf16.mxu0 0
        %1265 = vmatpush2.bf16.msra.mxu0 0
        %1266 = vmatprep.subr.bf16.mxu0 0
        %1267 = vmatpush2.bf16.msra.mxu0 0
        %1268 = vmatprep.subr.bf16.mxu0 0
        %1269 = vmatpush2.bf16.msra.mxu0 0
        %1270 = vmatprep.subr.bf16.mxu0 0
        %1271 = vmatpush2.bf16.msra.mxu0 0
        %1272 = vmatprep.subr.bf16.mxu0 0
        %1273 = vmatpush2.bf16.msra.mxu0 0
        %1274 = vmatprep.subr.bf16.mxu0 0
        %1275 = vmatpush2.bf16.msra.mxu0 0
        %1276 = vmatprep.mubr.bf16.mxu0 0
        %1277 = vmatmul.mubr.bf16.gmra.mxu0 %v1242
        %v1278 = vpop.f32.mrf.mxu0
        %v1279 = vadd.f32 %v1233, %v1278
        %v1280 = vpop.f32.mrf.mxu0
        %v1281 = vpop.f32.mrf.mxu0
        %v1282 = vadd.f32 %v1233, %v1281
        %v1283 = vpop.f32.mrf.mxu0
        %1284 = vdwg.mxu0
        %vm1285 = vcmp.gt.f32.partialorder %v1153, 0.5
        %vm1286 = vcmp.gt.f32.partialorder %v1154, 0.5
        %v1287 = vsel %vm1285, -1e+09, %v1279
        %v1288 = vsel %vm1286, -1e+09, %v1282
        %v1289 = vsel %vm964, %v1287, -inf
        %v1290 = vsel %vm964, %v1288, -inf
        %v1291 = vmax.f32 %v1289, %v1290
        %v1292 = vrot.slane %v1291, 4
        %v1293 = vmax.f32 %v1291, %v1292
        %v1294 = vrot.slane %v1293, 2
        %v1295 = vmax.f32 %v1293, %v1294
        %v1296 = vrot.slane %v1295, 1
        %v1297 = vmax.f32 %v1295, %v1296
        %v1298 = vsub.f32 %v1287, %v1297
        %v1299 = vsub.f32 %v1288, %v1297
        %v1300 = vmul.f32 %v1298, 1.442695
        %v1301 = vpow.pop %v1300
        %v1302 = vmul.f32 %v1299, 1.442695
        %v1303 = vpow.pop %v1302
        %v1304 = vsel %vm964, %v1301, 0.0
        %v1305 = vsel %vm964, %v1303, 0.0
        %v1306 = vadd.f32 %v1304, %v1305
        %v1307 = vrot.slane %v1306, 4
        %v1308 = vadd.f32 %v1306, %v1307
        %v1309 = vrot.slane %v1308, 2
        %v1310 = vadd.f32 %v1308, %v1309
        %v1311 = vrot.slane %v1310, 1
        %v1312 = vadd.f32 %v1310, %v1311
        %v1313 = vrcp.pop %v1312
        %v1314 = vmul.f32 %v1301, %v1313
        %v1315 = vmul.f32 %v1303, %v1313
        %1316 = vxpose.xlu0.b32.start [1/16] %v1314, 128
        %1317 = vxpose.xlu0.b32.cont [2/16] %v1315, 128
        %1318 = vxpose.xlu0.b32.cont [3/16] 0.0, 128
        %1319 = vxpose.xlu0.b32.cont [4/16] 0.0, 128
        %1320 = vxpose.xlu0.b32.cont [5/16] 0.0, 128
        %1321 = vxpose.xlu0.b32.cont [6/16] 0.0, 128
        %1322 = vxpose.xlu0.b32.cont [7/16] 0.0, 128
        %1323 = vxpose.xlu0.b32.cont [8/16] 0.0, 128
        %1324 = vxpose.xlu0.b32.cont [9/16] 0.0, 128
        %1325 = vxpose.xlu0.b32.cont [10/16] 0.0, 128
        %1326 = vxpose.xlu0.b32.cont [11/16] 0.0, 128
        %1327 = vxpose.xlu0.b32.cont [12/16] 0.0, 128
        %1328 = vxpose.xlu0.b32.cont [13/16] 0.0, 128
        %1329 = vxpose.xlu0.b32.cont [14/16] 0.0, 128
        %1330 = vxpose.xlu0.b32.cont [15/16] 0.0, 128
        %1331 = vxpose.xlu0.b32.end [16/16] 0.0, 128
        %v1332 = vpop.trf.xlu0
        %v1333 = vpop.trf.xlu0
        %v1334 = vpop.trf.xlu0
        %v1335 = vpop.trf.xlu0
        %v1336 = vpop.trf.xlu0
        %v1337 = vpop.trf.xlu0
        %v1338 = vpop.trf.xlu0
        %v1339 = vpop.trf.xlu0
        %v1340 = vpop.trf.xlu0
        %v1341 = vpop.trf.xlu0
        %v1342 = vpop.trf.xlu0
        %v1343 = vpop.trf.xlu0
        %v1344 = vpop.trf.xlu0
        %v1345 = vpop.trf.xlu0
        %v1346 = vpop.trf.xlu0
        %v1347 = vpop.trf.xlu0
        %v1349 = vsel %vm918, %v1332, 0
        %1351 = vmatprep.subr.mxu0 0.0
        %1352 = vmatpush1.msra.mxu0 0.0
        %1353 = vmatprep.subr.mxu0 0.0
        %1354 = vmatpush1.msra.mxu0 0.0
        %1355 = vmatprep.subr.mxu0 0.0
        %1356 = vmatpush1.msra.mxu0 0.0
        %1357 = vmatprep.subr.mxu0 0.0
        %1358 = vmatpush1.msra.mxu0 0.0
        %1359 = vmatprep.subr.mxu0 0.0
        %1360 = vmatpush1.msra.mxu0 0.0
        %1361 = vmatprep.subr.mxu0 0.0
        %1362 = vmatpush1.msra.mxu0 0.0
        %1363 = vmatprep.subr.mxu0 0.0
        %1364 = vmatpush1.msra.mxu0 0.0
        %1365 = vmatprep.subr.mxu0 0.0
        %1366 = vmatpush1.msra.mxu0 0.0
        %1367 = vmatprep.subr.mxu0 0.0
        %1368 = vmatpush1.msra.mxu0 0.0
        %1369 = vmatprep.subr.mxu0 0.0
        %1370 = vmatpush1.msra.mxu0 0.0
        %1371 = vmatprep.subr.mxu0 0.0
        %1372 = vmatpush1.msra.mxu0 0.0
        %1373 = vmatprep.subr.mxu0 0.0
        %1374 = vmatpush1.msra.mxu0 0.0
        %1375 = vmatprep.subr.mxu0 0.0
        %1376 = vmatpush1.msra.mxu0 0.0
        %1377 = vmatprep.subr.mxu0 0.0
        %1378 = vmatpush1.msra.mxu0 0.0
        %1379 = vmatprep.subr.mxu0 0.0
        %1380 = vmatpush1.msra.mxu0 %v1152
        %1381 = vmatprep.subr.mxu0 0.0
        %1382 = vmatpush1.msra.mxu0 %v1151
        %1383 = vmatprep.subr.mxu0 0.0
        %1384 = vmatpush2.msra.mxu0 0.0
        %1385 = vmatprep.subr.mxu0 0.0
        %1386 = vmatpush2.msra.mxu0 0.0
        %1387 = vmatprep.subr.mxu0 0.0
        %1388 = vmatpush2.msra.mxu0 0.0
        %1389 = vmatprep.subr.mxu0 0.0
        %1390 = vmatpush2.msra.mxu0 0.0
        %1391 = vmatprep.subr.mxu0 0.0
        %1392 = vmatpush2.msra.mxu0 0.0
        %1393 = vmatprep.subr.mxu0 0.0
        %1394 = vmatpush2.msra.mxu0 0.0
        %1395 = vmatprep.subr.mxu0 0.0
        %1396 = vmatpush2.msra.mxu0 0.0
        %1397 = vmatprep.subr.mxu0 0.0
        %1398 = vmatpush2.msra.mxu0 0.0
        %1399 = vmatprep.subr.mxu0 0.0
        %1400 = vmatpush2.msra.mxu0 0.0
        %1401 = vmatprep.subr.mxu0 0.0
        %1402 = vmatpush2.msra.mxu0 0.0
        %1403 = vmatprep.subr.mxu0 0.0
        %1404 = vmatpush2.msra.mxu0 0.0
        %1405 = vmatprep.subr.mxu0 0.0
        %1406 = vmatpush2.msra.mxu0 0.0
        %1407 = vmatprep.subr.mxu0 0.0
        %1408 = vmatpush2.msra.mxu0 0.0
        %1409 = vmatprep.subr.mxu0 0.0
        %1410 = vmatpush2.msra.mxu0 0.0
        %1411 = vmatprep.subr.mxu0 0.0
        %1412 = vmatpush2.msra.mxu0 0.0
        %1413 = vmatprep.subr.mxu0 0.0
        %1414 = vmatpush2.msra.mxu0 0.0
        %1415 = vmatprep.mubr.f32.mxu0 0.0
        %1416 = vmatmul.mubr.f32.gmra.mxu0 %v1349
        %v1417 = vpop.f32.mrf.mxu0
        %v1418 = vadd.f32 0.0, %v1417
        %v1419 = vpop.f32.mrf.mxu0
        %1420 = vdwg.mxu0
        %v1421 = vpack.c.bf16 %v1418, %v1418
        %v1422 = vld [vmem:[%s14] sm:$0xf]
        %v1423 = vld [vmem:[%s14 + $0x4] sm:$0xf]
        %v1424 = vld [vmem:[%s14 + $0x8] sm:$0xf]
        %v1425 = vld [vmem:[%s14 + $0xc] sm:$0xf]
        %v1426 = vld [vmem:[%s15] sm:$0x1]
        %v1431 = vunpack.c.l.b16 %v1422
        %v1432 = vunpack.c.l.b16 %v1423
        %v1433 = vunpack.c.l.b16 %v1424
        %v1434 = vunpack.c.l.b16 %v1425
        %v1435 = vpack.c.b16 %v1432, %v1431
        %v1436 = vpack.c.b16 %v1434, %v1433
        %v1440 = vsel %vm857, %v1421, 0
        %1442 = vmatprep.subr.bf16.mxu0 0
        %1443 = vmatpush1.bf16.msra.mxu0 0
        %1444 = vmatprep.subr.bf16.mxu0 0
        %1445 = vmatpush1.bf16.msra.mxu0 0
        %1446 = vmatprep.subr.bf16.mxu0 0
        %1447 = vmatpush1.bf16.msra.mxu0 0
        %1448 = vmatprep.subr.bf16.mxu0 0
        %1449 = vmatpush1.bf16.msra.mxu0 0
        %1450 = vmatprep.subr.bf16.mxu0 0
        %1451 = vmatpush1.bf16.msra.mxu0 0
        %1452 = vmatprep.subr.bf16.mxu0 0
        %1453 = vmatpush1.bf16.msra.mxu0 0
        %1454 = vmatprep.subr.bf16.mxu0 0
        %1455 = vmatpush1.bf16.msra.mxu0 %v1436
        %1456 = vmatprep.subr.bf16.mxu0 0
        %1457 = vmatpush1.bf16.msra.mxu0 %v1435
        %1458 = vmatprep.subr.bf16.mxu0 0
        %1459 = vmatpush2.bf16.msra.mxu0 0
        %1460 = vmatprep.subr.bf16.mxu0 0
        %1461 = vmatpush2.bf16.msra.mxu0 0
        %1462 = vmatprep.subr.bf16.mxu0 0
        %1463 = vmatpush2.bf16.msra.mxu0 0
        %1464 = vmatprep.subr.bf16.mxu0 0
        %1465 = vmatpush2.bf16.msra.mxu0 0
        %1466 = vmatprep.subr.bf16.mxu0 0
        %1467 = vmatpush2.bf16.msra.mxu0 0
        %1468 = vmatprep.subr.bf16.mxu0 0
        %1469 = vmatpush2.bf16.msra.mxu0 0
        %1470 = vmatprep.subr.bf16.mxu0 0
        %1471 = vmatpush2.bf16.msra.mxu0 0
        %1472 = vmatprep.subr.bf16.mxu0 0
        %1473 = vmatpush2.bf16.msra.mxu0 0
        %1474 = vmatprep.mubr.bf16.mxu0 0
        %1475 = vmatmul.mubr.bf16.gmra.mxu0 %v1440
        %v1476 = vpop.f32.mrf.mxu0
        %v1477 = vadd.f32 %v1426, %v1476
        %v1478 = vpop.f32.mrf.mxu0
        %v1479 = vpop.f32.mrf.mxu0
        %v1480 = vpop.f32.mrf.mxu0
        %1481 = vdwg.mxu0
        %v1482 = vadd.f32 %v1146, %v1477
        %v1483 = vld [vmem:[%s16] sm:$0x1]
        %v1484 = vld [vmem:[%s17] sm:$0x1]
        %vm1485 = vcmask 516096
        %v1486 = vsel %vm1485, %v1482, 0.0
        %1487 = vadd.xlane.f32.xlu0 %v1486
        %v1488 = vpop.xlane.xlu0 %1487
        %v1489 = vrcp.pop 64.0
        %v1490 = vmul.f32 %v1488, %v1489
        %v1491 = vsub.f32 %v1482, %v1490
        %v1492 = vmul.f32 %v1491, %v1491
        %v1493 = vsel %vm1485, %v1492, 0.0
        %1494 = vadd.xlane.f32.xlu0 %v1493
        %v1495 = vpop.xlane.xlu0 %1494
        %v1496 = vrcp.pop 63.0
        %v1497 = vmul.f32 %v1495, %v1496
        %v1498 = vmul.f32 %v1483, %v1491
        %v1499 = vrsqrt.pop %v1497
        %v1500 = vmul.f32 %v1497, %v1499
        %vm1501 = vcmp.eq.f32.partialorder %v1497, inf
        %v1502 = vsel %vm1501, %v1497, %v1500
        %vm1503 = vcmp.eq.f32.partialorder %v1497, 0.0
        %v1504 = vand.u32 %v1497, 2147483648
        %v1505 = vsel %vm1503, %v1504, %v1502
        %v1506 = vadd.f32 %v1505, 1e-06
        %v1507 = vrcp.pop %v1506
        %v1508 = vmul.f32 %v1498, %v1507
        %v1509 = vadd.f32 %v1508, %v1484
        %v1510 = vpack.c.bf16 %v1509, %v1509
        %v1511 = vld [vmem:[%s18] sm:$0xf]
        %v1512 = vld [vmem:[%s18 + $0x4] sm:$0xf]
        %v1513 = vld [vmem:[%s18 + $0x8] sm:$0xf]
        %v1514 = vld [vmem:[%s18 + $0xc] sm:$0xf]
        %v1515 = vld [vmem:[%s18 + $0x10] sm:$0xf]
        %v1516 = vld [vmem:[%s18 + $0x14] sm:$0xf]
        %v1517 = vld [vmem:[%s18 + $0x18] sm:$0xf]
        %v1518 = vld [vmem:[%s18 + $0x1c] sm:$0xf]
        %v1519 = vld [vmem:[%s19] sm:$0x1]
        %v1528 = vunpack.c.l.b16 %v1511
        %v1529 = vunpack.c.l.b16 %v1512
        %v1530 = vunpack.c.l.b16 %v1513
        %v1531 = vunpack.c.l.b16 %v1514
        %v1532 = vunpack.c.l.b16 %v1515
        %v1533 = vunpack.c.l.b16 %v1516
        %v1534 = vunpack.c.l.b16 %v1517
        %v1535 = vunpack.c.l.b16 %v1518
        %v1536 = vpack.c.b16 %v1529, %v1528
        %v1537 = vpack.c.b16 %v1531, %v1530
        %v1538 = vpack.c.b16 %v1533, %v1532
        %v1539 = vpack.c.b16 %v1535, %v1534
        %vm1544 = vcmask 523264
        %v1546 = vsel %vm1544, %v1510, 0
        %1548 = vmatprep.subr.bf16.mxu0 0
        %1549 = vmatpush1.bf16.msra.mxu0 0
        %1550 = vmatprep.subr.bf16.mxu0 0
        %1551 = vmatpush1.bf16.msra.mxu0 0
        %1552 = vmatprep.subr.bf16.mxu0 0
        %1553 = vmatpush1.bf16.msra.mxu0 0
        %1554 = vmatprep.subr.bf16.mxu0 0
        %1555 = vmatpush1.bf16.msra.mxu0 0
        %1556 = vmatprep.subr.bf16.mxu0 0
        %1557 = vmatpush1.bf16.msra.mxu0 %v1539
        %1558 = vmatprep.subr.bf16.mxu0 0
        %1559 = vmatpush1.bf16.msra.mxu0 %v1538
        %1560 = vmatprep.subr.bf16.mxu0 0
        %1561 = vmatpush1.bf16.msra.mxu0 %v1537
        %1562 = vmatprep.subr.bf16.mxu0 0
        %1563 = vmatpush1.bf16.msra.mxu0 %v1536
        %1564 = vmatprep.subr.bf16.mxu0 0
        %1565 = vmatpush2.bf16.msra.mxu0 0
        %1566 = vmatprep.subr.bf16.mxu0 0
        %1567 = vmatpush2.bf16.msra.mxu0 0
        %1568 = vmatprep.subr.bf16.mxu0 0
        %1569 = vmatpush2.bf16.msra.mxu0 0
        %1570 = vmatprep.subr.bf16.mxu0 0
        %1571 = vmatpush2.bf16.msra.mxu0 0
        %1572 = vmatprep.subr.bf16.mxu0 0
        %1573 = vmatpush2.bf16.msra.mxu0 0
        %1574 = vmatprep.subr.bf16.mxu0 0
        %1575 = vmatpush2.bf16.msra.mxu0 0
        %1576 = vmatprep.subr.bf16.mxu0 0
        %1577 = vmatpush2.bf16.msra.mxu0 0
        %1578 = vmatprep.subr.bf16.mxu0 0
        %1579 = vmatpush2.bf16.msra.mxu0 0
        %1580 = vmatprep.mubr.bf16.mxu0 0
        %1581 = vmatmul.mubr.bf16.gmra.mxu0 %v1546
        %v1582 = vpop.f32.mrf.mxu0
        %v1583 = vadd.f32 %v1519, %v1582
        %v1584 = vpop.f32.mrf.mxu0
        %v1585 = vpop.f32.mrf.mxu0
        %v1586 = vpop.f32.mrf.mxu0
        %1587 = vdwg.mxu0
        %vm1588 = vcmask 73728
        %1589 = vst.msk [vmem:[%s805] sm:$0x1] %vm1588, %v1583
        %v1590 = vtanh.pop %v1146
        %v1591 = vxor.u32 %v1477, 2147483648
        %v1592 = vmul.f32 %v1591, 1.442695
        %v1593 = vpow.pop %v1592
        %v1594 = vadd.f32 %v1593, 1.0
        %v1595 = vrcp.pop %v1594
        %v1596 = vmul.f32 1.0, %v1595
        %v1597 = vmul.f32 %v1590, %v1596
        %v1598 = vld [vmem:[%s20] sm:$0x1]
        %v1599 = vld [vmem:[%s21] sm:$0x1]
        %v1600 = vsel %vm1485, %v1597, 0.0
        %1601 = vadd.xlane.f32.xlu0 %v1600
        %v1602 = vpop.xlane.xlu0 %1601
        %v1603 = vmul.f32 %v1602, %v1489
        %v1604 = vsub.f32 %v1597, %v1603
        %v1605 = vmul.f32 %v1604, %v1604
        %v1606 = vsel %vm1485, %v1605, 0.0
        %1607 = vadd.xlane.f32.xlu0 %v1606
        %v1608 = vpop.xlane.xlu0 %1607
        %v1609 = vmul.f32 %v1608, %v1496
        %v1610 = vmul.f32 %v1598, %v1604
        %v1611 = vrsqrt.pop %v1609
        %v1612 = vmul.f32 %v1609, %v1611
        %vm1613 = vcmp.eq.f32.partialorder %v1609, inf
        %v1614 = vsel %vm1613, %v1609, %v1612
        %vm1615 = vcmp.eq.f32.partialorder %v1609, 0.0
        %v1616 = vand.u32 %v1609, 2147483648
        %v1617 = vsel %vm1615, %v1616, %v1614
        %v1618 = vadd.f32 %v1617, 1e-06
        %v1619 = vrcp.pop %v1618
        %v1620 = vmul.f32 %v1610, %v1619
        %v1621 = vadd.f32 %v1620, %v1599
        %v1622 = vpack.c.bf16 %v1621, %v1621
        %v1623 = vld [vmem:[%s22] sm:$0xf]
        %v1624 = vld [vmem:[%s22 + $0x4] sm:$0xf]
        %v1625 = vld [vmem:[%s22 + $0x8] sm:$0xf]
        %v1626 = vld [vmem:[%s22 + $0xc] sm:$0xf]
        %v1627 = vld [vmem:[%s22 + $0x10] sm:$0xf]
        %v1628 = vld [vmem:[%s22 + $0x14] sm:$0xf]
        %v1629 = vld [vmem:[%s22 + $0x18] sm:$0xf]
        %v1630 = vld [vmem:[%s22 + $0x1c] sm:$0xf]
        %v1631 = vld [vmem:[%s23] sm:$0x1]
        %v1640 = vunpack.c.l.b16 %v1623
        %v1641 = vunpack.c.l.b16 %v1624
        %v1642 = vunpack.c.l.b16 %v1625
        %v1643 = vunpack.c.l.b16 %v1626
        %v1644 = vunpack.c.l.b16 %v1627
        %v1645 = vunpack.c.l.b16 %v1628
        %v1646 = vunpack.c.l.b16 %v1629
        %v1647 = vunpack.c.l.b16 %v1630
        %v1648 = vpack.c.b16 %v1641, %v1640
        %v1649 = vpack.c.b16 %v1643, %v1642
        %v1650 = vpack.c.b16 %v1645, %v1644
        %v1651 = vpack.c.b16 %v1647, %v1646
        %v1657 = vsel %vm1544, %v1622, 0
        %1659 = vmatprep.subr.bf16.mxu0 0
        %1660 = vmatpush1.bf16.msra.mxu0 0
        %1661 = vmatprep.subr.bf16.mxu0 0
        %1662 = vmatpush1.bf16.msra.mxu0 0
        %1663 = vmatprep.subr.bf16.mxu0 0
        %1664 = vmatpush1.bf16.msra.mxu0 0
        %1665 = vmatprep.subr.bf16.mxu0 0
        %1666 = vmatpush1.bf16.msra.mxu0 0
        %1667 = vmatprep.subr.bf16.mxu0 0
        %1668 = vmatpush1.bf16.msra.mxu0 %v1651
        %1669 = vmatprep.subr.bf16.mxu0 0
        %1670 = vmatpush1.bf16.msra.mxu0 %v1650
        %1671 = vmatprep.subr.bf16.mxu0 0
        %1672 = vmatpush1.bf16.msra.mxu0 %v1649
        %1673 = vmatprep.subr.bf16.mxu0 0
        %1674 = vmatpush1.bf16.msra.mxu0 %v1648
        %1675 = vmatprep.subr.bf16.mxu0 0
        %1676 = vmatpush2.bf16.msra.mxu0 0
        %1677 = vmatprep.subr.bf16.mxu0 0
        %1678 = vmatpush2.bf16.msra.mxu0 0
        %1679 = vmatprep.subr.bf16.mxu0 0
        %1680 = vmatpush2.bf16.msra.mxu0 0
        %1681 = vmatprep.subr.bf16.mxu0 0
        %1682 = vmatpush2.bf16.msra.mxu0 0
        %1683 = vmatprep.subr.bf16.mxu0 0
        %1684 = vmatpush2.bf16.msra.mxu0 0
        %1685 = vmatprep.subr.bf16.mxu0 0
        %1686 = vmatpush2.bf16.msra.mxu0 0
        %1687 = vmatprep.subr.bf16.mxu0 0
        %1688 = vmatpush2.bf16.msra.mxu0 0
        %1689 = vmatprep.subr.bf16.mxu0 0
        %1690 = vmatpush2.bf16.msra.mxu0 0
        %1691 = vmatprep.mubr.bf16.mxu0 0
        %1692 = vmatmul.mubr.bf16.gmra.mxu0 %v1657
        %v1693 = vpop.f32.mrf.mxu0
        %v1694 = vadd.f32 %v1631, %v1693
        %v1695 = vpop.f32.mrf.mxu0
        %v1696 = vpop.f32.mrf.mxu0
        %v1697 = vpop.f32.mrf.mxu0
        %1698 = vdwg.mxu0
        %1699 = vst.msk [vmem:[%s811] sm:$0x1] %vm1588, %v1694
        %s1700 = sand.u32 %s579, 1
        %s1701 = scalar_lea.sflag [#allocation5], %s1700
        %s1702 = sand.u32 %s579, 1
        %s1703 = scalar_lea.vmem [#allocation4], %s1702
        %s1704 = sand.u32 %s605, 1
        %s1705 = scalar_lea.sflag [#allocation7], %s1704
        %s1706 = sand.u32 %s605, 1
        %s1707 = scalar_lea.vmem [#allocation6], %s1706
        // Predicated region
        $region117: #{_lambda_.13} parent=115 // pred_check
          %p1708 = pneg %p589
        $region118: #{_lambda_.13} parent=115 // pred_check_branch
          %1710 = sbr.rel (%p1708) target = $region120
        $region119: #{_lambda_.13} parent=115 // pred_region
          %s1712 = ssub.s32 16, 16
          %1713 = vsyncadd %s1701, %s1712
          %s1714 = smul.addr %s47, 16
          %s1715 = scalar_lea.hbm %s24, %s1714
          %s1717 = sshll.u32 %s1703, 4
          %s1718 = int_to_ptr.vmem [resolvable:$true] %s1717
          %1720 = dma.vmem_to_hbm [thread:$0]  %s1718, 16, %s1715, %s1701
        $region120: #{_lambda_.13} parent=115 // pred_fallthru
          _
        // Predicated region
        $region121: #{_lambda_.13} parent=115 // pred_check
          %p1721 = pneg %p615
        $region122: #{_lambda_.13} parent=115 // pred_check_branch
          %1723 = sbr.rel (%p1721) target = $region124
        $region123: #{_lambda_.13} parent=115 // pred_region
          %s1725 = ssub.s32 16, 16
          %1726 = vsyncadd %s1705, %s1725
          %s1727 = smul.addr %s47, 16
          %s1728 = scalar_lea.hbm %s25, %s1727
          %s1730 = sshll.u32 %s1707, 4
          %s1731 = int_to_ptr.vmem [resolvable:$true] %s1730
          %1733 = dma.vmem_to_hbm [thread:$0]  %s1731, 16, %s1728, %s1705
        $region124: #{_lambda_.13} parent=115 // pred_fallthru
          _
      $region116: #{_lambda_.13} parent=5 // pred_fallthru
        _
      %p1734 = scmp.le.s32.totalorder 2, %s42
      // Predicated region
      $region125: #{_lambda_.13} parent=5 // pred_check
        %p1735 = pneg %p1734
      $region126: #{_lambda_.13} parent=5 // pred_check_branch
        %1737 = sbr.rel (%p1735) target = $region128
      $region127: #{_lambda_.13} parent=5 // pred_region
        %s1738 = ssub.s32 %s42, 2
        // Predicated region
        $region129: #{_lambda_.13} parent=127 // pred_check
          %p1739 = pneg %p595
        $region130: #{_lambda_.13} parent=127 // pred_check_branch
          %1741 = sbr.rel (%p1739) target = $region132
        $region131: #{_lambda_.13} parent=127 // pred_region
          %s1742 = sand.u32 %s580, 1
          %s1743 = scalar_lea.sflag [#allocation5], %s1742
          %s1744 = sand.u32 %s580, 1
          %s1745 = scalar_lea.vmem [#allocation4], %s1744
          %1746 = dma.done %s1743, 16
        $region132: #{_lambda_.13} parent=127 // pred_fallthru
          _
        // Predicated region
        $region133: #{_lambda_.13} parent=127 // pred_check
          %p1747 = pneg %p621
        $region134: #{_lambda_.13} parent=127 // pred_check_branch
          %1749 = sbr.rel (%p1747) target = $region136
        $region135: #{_lambda_.13} parent=127 // pred_region
          %s1750 = sand.u32 %s606, 1
          %s1751 = scalar_lea.sflag [#allocation7], %s1750
          %s1752 = sand.u32 %s606, 1
          %s1753 = scalar_lea.vmem [#allocation6], %s1752
          %1754 = dma.done %s1751, 16
        $region136: #{_lambda_.13} parent=127 // pred_fallthru
          _
      $region128: #{_lambda_.13} parent=5 // pred_fallthru
        _
    $region6: #{_lambda_.13} parent=1 // loop_footer
      %s46 = sadd.s32 1, %s42
    $region7: #{_lambda_.13} parent=1 // loop_footer_branch
      %41 = sbr.rel target = $region3
    $region8: #{_lambda_.13} parent=1 // loop_exit
      _
    %1755 = vsyncpa [#allocation5], 1
    %s1756 = scalar_lea.sflag [#allocation5], 1
    %1757 = vsyncpa %s1756, 1
    %1758 = vsyncpa [#allocation7], 1
    %s1759 = scalar_lea.sflag [#allocation7], 1
    %1760 = vsyncpa %s1759, 1

</llo_original>
